<compile_context>
chip_gen: v7x
topology: tpu7x:2x2x1
jax: 0.10.0
libtpu: 0.0.40
codegen_flags: <defaults>
</compile_context>

<pallas_src>
import numpy as np

import jax
import jax.numpy as jnp
from jax.experimental import pallas as pl
from jax.experimental.pallas import tpu as pltpu


# ----------------------------------------------------------------------------
# Bilinear (align_corners=False) upsample matrices, precomputed on host.
# ----------------------------------------------------------------------------
def _bilinear_1d(n_in, n_out):
    m = np.zeros((n_out, n_in), np.float32)
    if n_in == 1:
        m[:, 0] = 1.0
        return m
    for i in range(n_out):
        c = (i + 0.5) * n_in / n_out - 0.5          # half-pixel centers
        c = min(max(c, 0.0), float(n_in - 1))
        i0 = int(np.floor(c))
        i1 = min(i0 + 1, n_in - 1)
        f = c - i0
        m[i, i0] += 1.0 - f
        m[i, i1] += f
    return m


def _bilinear_2d(hw_in, hw_out):
    """(Hout*Wout, Hin*Win) matrix: flat_out = M @ flat_in, per channel."""
    mh = _bilinear_1d(hw_in[0], hw_out[0])
    mw = _bilinear_1d(hw_in[1], hw_out[1])
    return jnp.asarray(np.kron(mh, mw))


# ----------------------------------------------------------------------------
# Fused UNET3 kernel (one image per grid step, everything in VMEM)
# ----------------------------------------------------------------------------
def _unet3_fused_kernel(x_ref,
                        w1_ref, ss1_ref, w2_ref, ss2_ref, w3_ref, ss3_ref,
                        w3d_ref, ss3d_ref, w2d_ref, ss2d_ref,
                        w1d_ref, ss1d_ref,
                        ws1_ref, bs1_ref, ws2_ref, bs2_ref, ws3_ref, bs3_ref,
                        wo_ref, bo_ref,
                        u2_ref, u1_ref, u3_ref,
                        out_ref):
    def im2col(x):
        # (h, w, c) -> (h*w, 9*c) patch slab; column order = (dw, dh, cin),
        # matching _pack_w3x3. Row shifts (dh) are free (leading dim), only
        # the 3 dw shifts touch the sublane dim.
        h, w, c = x.shape
        zr = jnp.zeros((1, w, c), x.dtype)
        xh = jnp.concatenate([zr, x, zr], axis=0)                  # (h+2,w,c)
        rows = jnp.concatenate([xh[0:h], xh[1:h + 1], xh[2:h + 2]],
                               axis=-1)                            # (h,w,3c)
        zc = jnp.zeros((h, 1, 3 * c), x.dtype)
        xw = jnp.concatenate([zc, rows, zc], axis=1)               # (h,w+2,3c)
        cols = jnp.concatenate(
            [xw[:, 0:w], xw[:, 1:w + 1], xw[:, 2:w + 2]], axis=-1)  # (h,w,9c)
        return cols.reshape(h * w, 9 * c)

    def rebnconv(x, w_ref, ss_ref):
        # 3x3 conv (pad=1) + folded eval-BN affine + ReLU.
        # One MXU matmul with K = 9*Cin (bf16 in, f32 accumulate).
        h, w, _ = x.shape
        cout = w_ref.shape[1]
        p = im2col(x).astype(w_ref.dtype)
        y = jnp.dot(p, w_ref[...], preferred_element_type=jnp.float32)
        y = y * ss_ref[0:1, :] + ss_ref[1:2, :]
        y = jnp.maximum(y, 0.0)
        return y.reshape(h, w, cout)

    def side_conv(x, w_ref, b_ref):
        # 3x3 conv (pad=1), Cout=1: VPU multiply + lane reduce (no N=1 MXU).
        p = im2col(x)
        return jnp.sum(p * w_ref[...], axis=-1, keepdims=True) + b_ref[...]

    def maxpool2(x):
        # nn.MaxPool2d(2, stride=2); h, w even so ceil_mode is a no-op here.
        h, w, c = x.shape
        x = x.reshape(h // 2, 2, w, c)
        x = jnp.maximum(x[:, 0], x[:, 1])                          # (h/2,w,c)
        x = x.reshape(h // 2, w // 2, 2, c)
        x = jnp.maximum(x[:, :, 0, :], x[:, :, 1, :])              # (h/2,w/2,c)
        return x

    def upsample(x, u_ref, h_out, w_out):
        # bilinear (align_corners=False) as one small matmul per channel slab.
        h, w, c = x.shape
        y = jnp.dot(u_ref[...], x.reshape(h * w, c),
                    preferred_element_type=jnp.float32)
        return y.reshape(h_out, w_out, c)

    h = x_ref.shape[1]
    w = x_ref.shape[2]
    x = x_ref[0].astype(jnp.float32)                               # (H, W, Cin)

    # ---------------- encoder ----------------
    hx1 = rebnconv(x, w1_ref, ss1_ref)                             # (H,  W,  16)
    hp1 = maxpool2(hx1)                                            # (H/2,W/2,16)
    hx2 = rebnconv(hp1, w2_ref, ss2_ref)                           # (H/2,W/2,16)
    hp2 = maxpool2(hx2)                                            # (H/4,W/4,16)
    hx3 = rebnconv(hp2, w3_ref, ss3_ref)                           # (H/4,W/4,32)

    # ---------------- decoder (concats stay in VMEM) ----------------
    hx3d = rebnconv(jnp.concatenate([hp2, hx3], axis=-1),
                    w3d_ref, ss3d_ref)                             # (H/4,W/4,32)
    hx3dup = upsample(hx3d, u2_ref, h // 2, w // 2)                # (H/2,W/2,32)
    hx2d = rebnconv(jnp.concatenate([hx3dup, hx2], axis=-1),
                    w2d_ref, ss2d_ref)                             # (H/2,W/2,16)
    hx2dup = upsample(hx2d, u1_ref, h, w)                          # (H,  W,  16)
    hx1d = rebnconv(jnp.concatenate([hx2dup, hx1], axis=-1),
                    w1d_ref, ss1d_ref)                             # (H,  W,  16)

    # ---------------- side heads + 1x1 outconv + sigmoids ----------------
    d1 = side_conv(hx1d, ws1_ref, bs1_ref)                         # (H*W,    1)
    d2s = side_conv(hx2d, ws2_ref, bs2_ref)                        # (H*W/4,  1)
    d3s = side_conv(hx3, ws3_ref, bs3_ref)                         # (H*W/16, 1)
    d2 = jnp.dot(u1_ref[...], d2s, preferred_element_type=jnp.float32)
    d3 = jnp.dot(u3_ref[...], d3s, preferred_element_type=jnp.float32)

    dcat = jnp.concatenate([d1, d2, d3], axis=-1)                  # (H*W, 3)
    d0 = jnp.sum(dcat * wo_ref[...], axis=-1, keepdims=True) + bo_ref[...]

    packed = jax.nn.sigmoid(jnp.concatenate([d0, d1, d2, d3], axis=-1))
    # Lane-dense store: (4, H*W) puts H*W on the lane dimension.
    out_ref[0] = jnp.transpose(packed).astype(out_ref.dtype)


# ----------------------------------------------------------------------------
# Parameter construction (deterministic, folded eval-mode BatchNorm)
# ----------------------------------------------------------------------------
def _pack_w3x3(w):
    """(3,3,cin,cout) [kh,kw,cin,cout] -> (9*cin, cout); rows = (kw, kh, cin),
    matching the im2col column order."""
    cout = w.shape[-1]
    return jnp.transpose(w, (1, 0, 2, 3)).reshape(-1, cout)


def _make_rebnconv_params(key, cin, cout):
    k = jax.random.split(key, 6)
    w = jax.random.normal(k[0], (3, 3, cin, cout), jnp.float32) \
        / np.sqrt(9.0 * cin)
    b = 0.1 * jax.random.normal(k[1], (cout,), jnp.float32)
    gamma = 1.0 + 0.1 * jax.random.normal(k[2], (cout,), jnp.float32)
    beta = 0.1 * jax.random.normal(k[3], (cout,), jnp.float32)
    mean = 0.1 * jax.random.normal(k[4], (cout,), jnp.float32)
    var = 0.9 + 0.1 * jnp.abs(jax.random.normal(k[5], (cout,), jnp.float32))
    scale = gamma / jnp.sqrt(var + 1e-5)
    shift = (b - mean) * scale + beta
    # bf16 weights feed the MXU; accumulation stays f32 in-kernel.
    return (_pack_w3x3(w).astype(jnp.bfloat16),
            jnp.stack([scale, shift], axis=0))                     # (2, cout)


def _make_side_params(key, cin):
    k0, k1 = jax.random.split(key)
    w = jax.random.normal(k0, (3, 3, cin, 1), jnp.float32) / np.sqrt(9.0 * cin)
    b = 0.1 * jax.random.normal(k1, (1,), jnp.float32)
    return _pack_w3x3(w).reshape(1, -1), b.reshape(1, 1)           # f32 (VPU)


def make_unet3_params(key, in_ch=3, out_ch=1, mid_ch=16):
    assert out_ch == 1, "fused kernel packs the four single-channel maps"
    ks = jax.random.split(key, 10)
    p = {}
    p["r1"] = _make_rebnconv_params(ks[0], in_ch, mid_ch)
    p["r2"] = _make_rebnconv_params(ks[1], mid_ch, mid_ch)
    p["r3"] = _make_rebnconv_params(ks[2], mid_ch, mid_ch * 2)
    p["r3d"] = _make_rebnconv_params(ks[3], mid_ch * 3, mid_ch * 2)
    p["r2d"] = _make_rebnconv_params(ks[4], mid_ch * 3, mid_ch)
    p["r1d"] = _make_rebnconv_params(ks[5], mid_ch * 2, mid_ch)
    # side-conv input channels derived from mid_ch (review correctness note)
    p["s1"] = _make_side_params(ks[6], mid_ch)
    p["s2"] = _make_side_params(ks[7], mid_ch)
    p["s3"] = _make_side_params(ks[8], mid_ch * 2)
    kw, kb = jax.random.split(ks[9])
    p["out_w"] = jax.random.normal(kw, (1, 3), jnp.float32) / np.sqrt(3.0)
    p["out_b"] = 0.1 * jax.random.normal(kb, (1, 1), jnp.float32)
    return p


# ----------------------------------------------------------------------------
# Forward pass
# ----------------------------------------------------------------------------
def unet3_forward_nhwc(x_nhwc, p):
    n, h, w, cin = x_nhwc.shape
    assert h % 4 == 0 and w % 4 == 0, "need two exact 2x2 pools / upsamples"
    # TODO(synk): ceil_mode MaxPool2d for odd spatial sizes is not implemented.

    u2 = _bilinear_2d((h // 4, w // 4), (h // 2, w // 2))   # hx3d -> hx2 size
    u1 = _bilinear_2d((h // 2, w // 2), (h, w))             # hx2d / d2 -> full
    u3 = _bilinear_2d((h // 4, w // 4), (h, w))             # d3 -> full

    flat = (p["r1"] + p["r2"] + p["r3"] + p["r3d"] + p["r2d"] + p["r1d"]
            + p["s1"] + p["s2"] + p["s3"]
            + (p["out_w"], p["out_b"], u2, u1, u3))

    in_specs = [pl.BlockSpec((1, h, w, cin), lambda i: (i, 0, 0, 0))]
    for a in flat:
        in_specs.append(
            pl.BlockSpec(a.shape, lambda i, _nd=a.ndim: (0,) * _nd))

    out = pl.pallas_call(
        _unet3_fused_kernel,
        out_shape=jax.ShapeDtypeStruct((n, 4, h * w), jnp.float32),
        grid=(n,),
        in_specs=in_specs,
        out_specs=pl.BlockSpec((1, 4, h * w), lambda i: (i, 0, 0)),
        compiler_params=pltpu.CompilerParams(
            dimension_semantics=("parallel",)),  # batch across v7x's 2 TCs
    )(x_nhwc, *flat)

    out = out.reshape(n, 4, h, w)                 # already channel-first
    return out[:, 0:1], out[:, 1:2], out[:, 2:3], out[:, 3:4]


@jax.jit
def unet3_forward_nchw(x_nchw, p):
    x = jnp.transpose(x_nchw, (0, 2, 3, 1))       # NCHW -> NHWC (C on lanes)
    return unet3_forward_nhwc(x, p)               # outputs are NCHW (N,1,H,W)


# ----------------------------------------------------------------------------
if __name__ == "__main__":
    key = jax.random.PRNGKey(0)
    kx, kp = jax.random.split(key)

    N, C, H, W = 2, 3, 16, 16
    x = jax.random.normal(kx, (N, C, H, W), jnp.float32)
    params = make_unet3_params(kp, in_ch=3, out_ch=1, mid_ch=16)

    d0, d1, d2, d3 = unet3_forward_nchw(x, params)
    jax.block_until_ready((d0, d1, d2, d3))

    for d in (d0, d1, d2, d3):
        assert d.shape == (N, 1, H, W)
        assert bool(jnp.all(jnp.isfinite(d)))
        assert bool(jnp.all((d >= 0.0) & (d <= 1.0)))

    print("KERNEL_OK")
</pallas_src>

<mosaic_0001>
module attributes {stable_mosaic.version = 11 : i64} {
  func.func @_unet3_fused_kernel(%arg0: i32, %arg1: memref<1x16x16x3xf32, #tpu.memory_space<vmem>>, %arg2: memref<27x16xbf16, #tpu.memory_space<vmem>>, %arg3: memref<2x16xf32, #tpu.memory_space<vmem>>, %arg4: memref<144x16xbf16, #tpu.memory_space<vmem>>, %arg5: memref<2x16xf32, #tpu.memory_space<vmem>>, %arg6: memref<144x32xbf16, #tpu.memory_space<vmem>>, %arg7: memref<2x32xf32, #tpu.memory_space<vmem>>, %arg8: memref<432x32xbf16, #tpu.memory_space<vmem>>, %arg9: memref<2x32xf32, #tpu.memory_space<vmem>>, %arg10: memref<432x16xbf16, #tpu.memory_space<vmem>>, %arg11: memref<2x16xf32, #tpu.memory_space<vmem>>, %arg12: memref<288x16xbf16, #tpu.memory_space<vmem>>, %arg13: memref<2x16xf32, #tpu.memory_space<vmem>>, %arg14: memref<1x144xf32, #tpu.memory_space<vmem>>, %arg15: memref<1x1xf32, #tpu.memory_space<vmem>>, %arg16: memref<1x144xf32, #tpu.memory_space<vmem>>, %arg17: memref<1x1xf32, #tpu.memory_space<vmem>>, %arg18: memref<1x288xf32, #tpu.memory_space<vmem>>, %arg19: memref<1x1xf32, #tpu.memory_space<vmem>>, %arg20: memref<1x3xf32, #tpu.memory_space<vmem>>, %arg21: memref<1x1xf32, #tpu.memory_space<vmem>>, %arg22: memref<64x16xf32, #tpu.memory_space<vmem>>, %arg23: memref<256x64xf32, #tpu.memory_space<vmem>>, %arg24: memref<256x16xf32, #tpu.memory_space<vmem>>, %arg25: memref<1x4x256xf32, #tpu.memory_space<vmem>>) attributes {dimension_semantics = [#tpu.dimension_semantics<parallel>], iteration_bounds = array<i64: 2>, scalar_prefetch = 0 : i64, scratch_operands = 0 : i64, tpu.core_type = #tpu.core_type<tc>, window_params = [{transform_indices = @transform_0, window_bounds = array<i64: 1, 16, 16, 3>}, {pipeline_mode = #tpu.pipeline_mode<synchronous>, transform_indices = @transform_1, window_bounds = array<i64: 27, 16>}, {pipeline_mode = #tpu.pipeline_mode<synchronous>, transform_indices = @transform_2, window_bounds = array<i64: 2, 16>}, {pipeline_mode = #tpu.pipeline_mode<synchronous>, transform_indices = @transform_3, window_bounds = array<i64: 144, 16>}, {pipeline_mode = #tpu.pipeline_mode<synchronous>, transform_indices = @transform_4, window_bounds = array<i64: 2, 16>}, {pipeline_mode = #tpu.pipeline_mode<synchronous>, transform_indices = @transform_5, window_bounds = array<i64: 144, 32>}, {pipeline_mode = #tpu.pipeline_mode<synchronous>, transform_indices = @transform_6, window_bounds = array<i64: 2, 32>}, {pipeline_mode = #tpu.pipeline_mode<synchronous>, transform_indices = @transform_7, window_bounds = array<i64: 432, 32>}, {pipeline_mode = #tpu.pipeline_mode<synchronous>, transform_indices = @transform_8, window_bounds = array<i64: 2, 32>}, {pipeline_mode = #tpu.pipeline_mode<synchronous>, transform_indices = @transform_9, window_bounds = array<i64: 432, 16>}, {pipeline_mode = #tpu.pipeline_mode<synchronous>, transform_indices = @transform_10, window_bounds = array<i64: 2, 16>}, {pipeline_mode = #tpu.pipeline_mode<synchronous>, transform_indices = @transform_11, window_bounds = array<i64: 288, 16>}, {pipeline_mode = #tpu.pipeline_mode<synchronous>, transform_indices = @transform_12, window_bounds = array<i64: 2, 16>}, {pipeline_mode = #tpu.pipeline_mode<synchronous>, transform_indices = @transform_13, window_bounds = array<i64: 1, 144>}, {pipeline_mode = #tpu.pipeline_mode<synchronous>, transform_indices = @transform_14, window_bounds = array<i64: 1, 1>}, {pipeline_mode = #tpu.pipeline_mode<synchronous>, transform_indices = @transform_15, window_bounds = array<i64: 1, 144>}, {pipeline_mode = #tpu.pipeline_mode<synchronous>, transform_indices = @transform_16, window_bounds = array<i64: 1, 1>}, {pipeline_mode = #tpu.pipeline_mode<synchronous>, transform_indices = @transform_17, window_bounds = array<i64: 1, 288>}, {pipeline_mode = #tpu.pipeline_mode<synchronous>, transform_indices = @transform_18, window_bounds = array<i64: 1, 1>}, {pipeline_mode = #tpu.pipeline_mode<synchronous>, transform_indices = @transform_19, window_bounds = array<i64: 1, 3>}, {pipeline_mode = #tpu.pipeline_mode<synchronous>, transform_indices = @transform_20, window_bounds = array<i64: 1, 1>}, {pipeline_mode = #tpu.pipeline_mode<synchronous>, transform_indices = @transform_21, window_bounds = array<i64: 64, 16>}, {pipeline_mode = #tpu.pipeline_mode<synchronous>, transform_indices = @transform_22, window_bounds = array<i64: 256, 64>}, {pipeline_mode = #tpu.pipeline_mode<synchronous>, transform_indices = @transform_23, window_bounds = array<i64: 256, 16>}, {transform_indices = @transform_24, window_bounds = array<i64: 1, 4, 256>}]} {
    %c0 = arith.constant 0 : index
    %c0_0 = arith.constant 0 : index
    %c0_1 = arith.constant 0 : index
    %c0_2 = arith.constant 0 : index
    %0 = vector.load %arg1[%c0, %c0_0, %c0_1, %c0_2] : memref<1x16x16x3xf32, #tpu.memory_space<vmem>>, vector<1x16x16x3xf32>
    %1 = vector.shape_cast %0 : vector<1x16x16x3xf32> to vector<16x16x3xf32>
    %cst = arith.constant 0.000000e+00 : f32
    %2 = vector.broadcast %cst : f32 to vector<1x16x3xf32>
    %3 = tpu.concatenate %2, %1, %2 in 0 : vector<1x16x3xf32>, vector<16x16x3xf32>, vector<1x16x3xf32> -> vector<18x16x3xf32>
    %4 = vector.extract_strided_slice %3 {offsets = [0, 0, 0], sizes = [16, 16, 3], strides = [1, 1, 1]} : vector<18x16x3xf32> to vector<16x16x3xf32>
    %5 = vector.extract_strided_slice %3 {offsets = [1, 0, 0], sizes = [16, 16, 3], strides = [1, 1, 1]} : vector<18x16x3xf32> to vector<16x16x3xf32>
    %6 = vector.extract_strided_slice %3 {offsets = [2, 0, 0], sizes = [16, 16, 3], strides = [1, 1, 1]} : vector<18x16x3xf32> to vector<16x16x3xf32>
    %7 = tpu.concatenate %4, %5, %6 in 2 : vector<16x16x3xf32>, vector<16x16x3xf32>, vector<16x16x3xf32> -> vector<16x16x9xf32>
    %cst_3 = arith.constant 0.000000e+00 : f32
    %8 = vector.broadcast %cst_3 : f32 to vector<16x1x9xf32>
    %9 = tpu.concatenate %8, %7, %8 in 1 : vector<16x1x9xf32>, vector<16x16x9xf32>, vector<16x1x9xf32> -> vector<16x18x9xf32>
    %10 = vector.extract_strided_slice %9 {offsets = [0, 0, 0], sizes = [16, 16, 9], strides = [1, 1, 1]} : vector<16x18x9xf32> to vector<16x16x9xf32>
    %11 = vector.extract_strided_slice %9 {offsets = [0, 1, 0], sizes = [16, 16, 9], strides = [1, 1, 1]} : vector<16x18x9xf32> to vector<16x16x9xf32>
    %12 = vector.extract_strided_slice %9 {offsets = [0, 2, 0], sizes = [16, 16, 9], strides = [1, 1, 1]} : vector<16x18x9xf32> to vector<16x16x9xf32>
    %13 = tpu.concatenate %10, %11, %12 in 2 : vector<16x16x9xf32>, vector<16x16x9xf32>, vector<16x16x9xf32> -> vector<16x16x27xf32>
    %14 = vector.shape_cast %13 : vector<16x16x27xf32> to vector<256x27xf32>
    %15 = arith.truncf %14 : vector<256x27xf32> to vector<256x27xbf16>
    %c0_4 = arith.constant 0 : index
    %c0_5 = arith.constant 0 : index
    %16 = vector.load %arg2[%c0_4, %c0_5] : memref<27x16xbf16, #tpu.memory_space<vmem>>, vector<27x16xbf16>
    %cst_6 = arith.constant dense<0.000000e+00> : vector<256x16xf32>
    %17 = tpu.matmul %15, %16, %cst_6 {dimension_numbers = #tpu.dot_dimension_numbers<[1], [0], [0], [1], [0, 0, 1, 1], [], []>} : vector<256x27xbf16>, vector<27x16xbf16>, vector<256x16xf32> -> vector<256x16xf32>
    %c0_7 = arith.constant 0 : index
    %c0_8 = arith.constant 0 : index
    %18 = vector.load %arg3[%c0_7, %c0_8] : memref<2x16xf32, #tpu.memory_space<vmem>>, vector<1x16xf32>
    %19 = vector.broadcast %18 : vector<1x16xf32> to vector<256x16xf32>
    %20 = arith.mulf %17, %19 : vector<256x16xf32>
    %c1 = arith.constant 1 : index
    %c0_9 = arith.constant 0 : index
    %21 = vector.load %arg3[%c1, %c0_9] : memref<2x16xf32, #tpu.memory_space<vmem>>, vector<1x16xf32>
    %22 = vector.broadcast %21 : vector<1x16xf32> to vector<256x16xf32>
    %23 = arith.addf %20, %22 : vector<256x16xf32>
    %cst_10 = arith.constant 0.000000e+00 : f32
    %24 = vector.broadcast %cst_10 : f32 to vector<256x16xf32>
    %25 = arith.maximumf %23, %24 : vector<256x16xf32>
    %26 = vector.shape_cast %25 : vector<256x16xf32> to vector<16x16x16xf32>
    %27 = vector.shape_cast %26 : vector<16x16x16xf32> to vector<8x2x16x16xf32>
    %28 = vector.extract_strided_slice %27 {offsets = [0, 0, 0, 0], sizes = [8, 1, 16, 16], strides = [1, 1, 1, 1]} : vector<8x2x16x16xf32> to vector<8x1x16x16xf32>
    %29 = vector.shape_cast %28 : vector<8x1x16x16xf32> to vector<8x16x16xf32>
    %30 = vector.extract_strided_slice %27 {offsets = [0, 1, 0, 0], sizes = [8, 1, 16, 16], strides = [1, 1, 1, 1]} : vector<8x2x16x16xf32> to vector<8x1x16x16xf32>
    %31 = vector.shape_cast %30 : vector<8x1x16x16xf32> to vector<8x16x16xf32>
    %32 = arith.maximumf %29, %31 : vector<8x16x16xf32>
    %33 = vector.shape_cast %32 : vector<8x16x16xf32> to vector<8x8x2x16xf32>
    %34 = vector.extract_strided_slice %33 {offsets = [0, 0, 0, 0], sizes = [8, 8, 1, 16], strides = [1, 1, 1, 1]} : vector<8x8x2x16xf32> to vector<8x8x1x16xf32>
    %35 = vector.shape_cast %34 : vector<8x8x1x16xf32> to vector<8x8x16xf32>
    %36 = vector.extract_strided_slice %33 {offsets = [0, 0, 1, 0], sizes = [8, 8, 1, 16], strides = [1, 1, 1, 1]} : vector<8x8x2x16xf32> to vector<8x8x1x16xf32>
    %37 = vector.shape_cast %36 : vector<8x8x1x16xf32> to vector<8x8x16xf32>
    %38 = arith.maximumf %35, %37 : vector<8x8x16xf32>
    %cst_11 = arith.constant 0.000000e+00 : f32
    %39 = vector.broadcast %cst_11 : f32 to vector<1x8x16xf32>
    %40 = tpu.concatenate %39, %38, %39 in 0 : vector<1x8x16xf32>, vector<8x8x16xf32>, vector<1x8x16xf32> -> vector<10x8x16xf32>
    %41 = vector.extract_strided_slice %40 {offsets = [0, 0, 0], sizes = [8, 8, 16], strides = [1, 1, 1]} : vector<10x8x16xf32> to vector<8x8x16xf32>
    %42 = vector.extract_strided_slice %40 {offsets = [1, 0, 0], sizes = [8, 8, 16], strides = [1, 1, 1]} : vector<10x8x16xf32> to vector<8x8x16xf32>
    %43 = vector.extract_strided_slice %40 {offsets = [2, 0, 0], sizes = [8, 8, 16], strides = [1, 1, 1]} : vector<10x8x16xf32> to vector<8x8x16xf32>
    %44 = tpu.concatenate %41, %42, %43 in 2 : vector<8x8x16xf32>, vector<8x8x16xf32>, vector<8x8x16xf32> -> vector<8x8x48xf32>
    %cst_12 = arith.constant 0.000000e+00 : f32
    %45 = vector.broadcast %cst_12 : f32 to vector<8x1x48xf32>
    %46 = tpu.concatenate %45, %44, %45 in 1 : vector<8x1x48xf32>, vector<8x8x48xf32>, vector<8x1x48xf32> -> vector<8x10x48xf32>
    %47 = vector.extract_strided_slice %46 {offsets = [0, 0, 0], sizes = [8, 8, 48], strides = [1, 1, 1]} : vector<8x10x48xf32> to vector<8x8x48xf32>
    %48 = vector.extract_strided_slice %46 {offsets = [0, 1, 0], sizes = [8, 8, 48], strides = [1, 1, 1]} : vector<8x10x48xf32> to vector<8x8x48xf32>
    %49 = vector.extract_strided_slice %46 {offsets = [0, 2, 0], sizes = [8, 8, 48], strides = [1, 1, 1]} : vector<8x10x48xf32> to vector<8x8x48xf32>
    %50 = tpu.concatenate %47, %48, %49 in 2 : vector<8x8x48xf32>, vector<8x8x48xf32>, vector<8x8x48xf32> -> vector<8x8x144xf32>
    %51 = vector.shape_cast %50 : vector<8x8x144xf32> to vector<64x144xf32>
    %52 = arith.truncf %51 : vector<64x144xf32> to vector<64x144xbf16>
    %c0_13 = arith.constant 0 : index
    %c0_14 = arith.constant 0 : index
    %53 = vector.load %arg4[%c0_13, %c0_14] : memref<144x16xbf16, #tpu.memory_space<vmem>>, vector<144x16xbf16>
    %cst_15 = arith.constant dense<0.000000e+00> : vector<64x16xf32>
    %54 = tpu.matmul %52, %53, %cst_15 {dimension_numbers = #tpu.dot_dimension_numbers<[1], [0], [0], [1], [0, 0, 1, 1], [], []>} : vector<64x144xbf16>, vector<144x16xbf16>, vector<64x16xf32> -> vector<64x16xf32>
    %c0_16 = arith.constant 0 : index
    %c0_17 = arith.constant 0 : index
    %55 = vector.load %arg5[%c0_16, %c0_17] : memref<2x16xf32, #tpu.memory_space<vmem>>, vector<1x16xf32>
    %56 = vector.broadcast %55 : vector<1x16xf32> to vector<64x16xf32>
    %57 = arith.mulf %54, %56 : vector<64x16xf32>
    %c1_18 = arith.constant 1 : index
    %c0_19 = arith.constant 0 : index
    %58 = vector.load %arg5[%c1_18, %c0_19] : memref<2x16xf32, #tpu.memory_space<vmem>>, vector<1x16xf32>
    %59 = vector.broadcast %58 : vector<1x16xf32> to vector<64x16xf32>
    %60 = arith.addf %57, %59 : vector<64x16xf32>
    %cst_20 = arith.constant 0.000000e+00 : f32
    %61 = vector.broadcast %cst_20 : f32 to vector<64x16xf32>
    %62 = arith.maximumf %60, %61 : vector<64x16xf32>
    %63 = vector.shape_cast %62 : vector<64x16xf32> to vector<8x8x16xf32>
    %64 = vector.shape_cast %63 : vector<8x8x16xf32> to vector<4x2x8x16xf32>
    %65 = vector.extract_strided_slice %64 {offsets = [0, 0, 0, 0], sizes = [4, 1, 8, 16], strides = [1, 1, 1, 1]} : vector<4x2x8x16xf32> to vector<4x1x8x16xf32>
    %66 = vector.shape_cast %65 : vector<4x1x8x16xf32> to vector<4x8x16xf32>
    %67 = vector.extract_strided_slice %64 {offsets = [0, 1, 0, 0], sizes = [4, 1, 8, 16], strides = [1, 1, 1, 1]} : vector<4x2x8x16xf32> to vector<4x1x8x16xf32>
    %68 = vector.shape_cast %67 : vector<4x1x8x16xf32> to vector<4x8x16xf32>
    %69 = arith.maximumf %66, %68 : vector<4x8x16xf32>
    %70 = vector.shape_cast %69 : vector<4x8x16xf32> to vector<4x4x2x16xf32>
    %71 = vector.extract_strided_slice %70 {offsets = [0, 0, 0, 0], sizes = [4, 4, 1, 16], strides = [1, 1, 1, 1]} : vector<4x4x2x16xf32> to vector<4x4x1x16xf32>
    %72 = vector.shape_cast %71 : vector<4x4x1x16xf32> to vector<4x4x16xf32>
    %73 = vector.extract_strided_slice %70 {offsets = [0, 0, 1, 0], sizes = [4, 4, 1, 16], strides = [1, 1, 1, 1]} : vector<4x4x2x16xf32> to vector<4x4x1x16xf32>
    %74 = vector.shape_cast %73 : vector<4x4x1x16xf32> to vector<4x4x16xf32>
    %75 = arith.maximumf %72, %74 : vector<4x4x16xf32>
    %cst_21 = arith.constant 0.000000e+00 : f32
    %76 = vector.broadcast %cst_21 : f32 to vector<1x4x16xf32>
    %77 = tpu.concatenate %76, %75, %76 in 0 : vector<1x4x16xf32>, vector<4x4x16xf32>, vector<1x4x16xf32> -> vector<6x4x16xf32>
    %78 = vector.extract_strided_slice %77 {offsets = [0, 0, 0], sizes = [4, 4, 16], strides = [1, 1, 1]} : vector<6x4x16xf32> to vector<4x4x16xf32>
    %79 = vector.extract_strided_slice %77 {offsets = [1, 0, 0], sizes = [4, 4, 16], strides = [1, 1, 1]} : vector<6x4x16xf32> to vector<4x4x16xf32>
    %80 = vector.extract_strided_slice %77 {offsets = [2, 0, 0], sizes = [4, 4, 16], strides = [1, 1, 1]} : vector<6x4x16xf32> to vector<4x4x16xf32>
    %81 = tpu.concatenate %78, %79, %80 in 2 : vector<4x4x16xf32>, vector<4x4x16xf32>, vector<4x4x16xf32> -> vector<4x4x48xf32>
    %cst_22 = arith.constant 0.000000e+00 : f32
    %82 = vector.broadcast %cst_22 : f32 to vector<4x1x48xf32>
    %83 = tpu.concatenate %82, %81, %82 in 1 : vector<4x1x48xf32>, vector<4x4x48xf32>, vector<4x1x48xf32> -> vector<4x6x48xf32>
    %84 = vector.extract_strided_slice %83 {offsets = [0, 0, 0], sizes = [4, 4, 48], strides = [1, 1, 1]} : vector<4x6x48xf32> to vector<4x4x48xf32>
    %85 = vector.extract_strided_slice %83 {offsets = [0, 1, 0], sizes = [4, 4, 48], strides = [1, 1, 1]} : vector<4x6x48xf32> to vector<4x4x48xf32>
    %86 = vector.extract_strided_slice %83 {offsets = [0, 2, 0], sizes = [4, 4, 48], strides = [1, 1, 1]} : vector<4x6x48xf32> to vector<4x4x48xf32>
    %87 = tpu.concatenate %84, %85, %86 in 2 : vector<4x4x48xf32>, vector<4x4x48xf32>, vector<4x4x48xf32> -> vector<4x4x144xf32>
    %88 = vector.shape_cast %87 : vector<4x4x144xf32> to vector<16x144xf32>
    %89 = arith.truncf %88 : vector<16x144xf32> to vector<16x144xbf16>
    %c0_23 = arith.constant 0 : index
    %c0_24 = arith.constant 0 : index
    %90 = vector.load %arg6[%c0_23, %c0_24] : memref<144x32xbf16, #tpu.memory_space<vmem>>, vector<144x32xbf16>
    %cst_25 = arith.constant dense<0.000000e+00> : vector<16x32xf32>
    %91 = tpu.matmul %89, %90, %cst_25 {dimension_numbers = #tpu.dot_dimension_numbers<[1], [0], [0], [1], [0, 0, 1, 1], [], []>} : vector<16x144xbf16>, vector<144x32xbf16>, vector<16x32xf32> -> vector<16x32xf32>
    %c0_26 = arith.constant 0 : index
    %c0_27 = arith.constant 0 : index
    %92 = vector.load %arg7[%c0_26, %c0_27] : memref<2x32xf32, #tpu.memory_space<vmem>>, vector<1x32xf32>
    %93 = vector.broadcast %92 : vector<1x32xf32> to vector<16x32xf32>
    %94 = arith.mulf %91, %93 : vector<16x32xf32>
    %c1_28 = arith.constant 1 : index
    %c0_29 = arith.constant 0 : index
    %95 = vector.load %arg7[%c1_28, %c0_29] : memref<2x32xf32, #tpu.memory_space<vmem>>, vector<1x32xf32>
    %96 = vector.broadcast %95 : vector<1x32xf32> to vector<16x32xf32>
    %97 = arith.addf %94, %96 : vector<16x32xf32>
    %cst_30 = arith.constant 0.000000e+00 : f32
    %98 = vector.broadcast %cst_30 : f32 to vector<16x32xf32>
    %99 = arith.maximumf %97, %98 : vector<16x32xf32>
    %100 = vector.shape_cast %99 : vector<16x32xf32> to vector<4x4x32xf32>
    %101 = tpu.concatenate %75, %100 in 2 : vector<4x4x16xf32>, vector<4x4x32xf32> -> vector<4x4x48xf32>
    %cst_31 = arith.constant 0.000000e+00 : f32
    %102 = vector.broadcast %cst_31 : f32 to vector<1x4x48xf32>
    %103 = tpu.concatenate %102, %101, %102 in 0 : vector<1x4x48xf32>, vector<4x4x48xf32>, vector<1x4x48xf32> -> vector<6x4x48xf32>
    %104 = vector.extract_strided_slice %103 {offsets = [0, 0, 0], sizes = [4, 4, 48], strides = [1, 1, 1]} : vector<6x4x48xf32> to vector<4x4x48xf32>
    %105 = vector.extract_strided_slice %103 {offsets = [1, 0, 0], sizes = [4, 4, 48], strides = [1, 1, 1]} : vector<6x4x48xf32> to vector<4x4x48xf32>
    %106 = vector.extract_strided_slice %103 {offsets = [2, 0, 0], sizes = [4, 4, 48], strides = [1, 1, 1]} : vector<6x4x48xf32> to vector<4x4x48xf32>
    %107 = tpu.concatenate %104, %105, %106 in 2 : vector<4x4x48xf32>, vector<4x4x48xf32>, vector<4x4x48xf32> -> vector<4x4x144xf32>
    %cst_32 = arith.constant 0.000000e+00 : f32
    %108 = vector.broadcast %cst_32 : f32 to vector<4x1x144xf32>
    %109 = tpu.concatenate %108, %107, %108 in 1 : vector<4x1x144xf32>, vector<4x4x144xf32>, vector<4x1x144xf32> -> vector<4x6x144xf32>
    %110 = vector.extract_strided_slice %109 {offsets = [0, 0, 0], sizes = [4, 4, 144], strides = [1, 1, 1]} : vector<4x6x144xf32> to vector<4x4x144xf32>
    %111 = vector.extract_strided_slice %109 {offsets = [0, 1, 0], sizes = [4, 4, 144], strides = [1, 1, 1]} : vector<4x6x144xf32> to vector<4x4x144xf32>
    %112 = vector.extract_strided_slice %109 {offsets = [0, 2, 0], sizes = [4, 4, 144], strides = [1, 1, 1]} : vector<4x6x144xf32> to vector<4x4x144xf32>
    %113 = tpu.concatenate %110, %111, %112 in 2 : vector<4x4x144xf32>, vector<4x4x144xf32>, vector<4x4x144xf32> -> vector<4x4x432xf32>
    %114 = vector.shape_cast %113 : vector<4x4x432xf32> to vector<16x432xf32>
    %115 = arith.truncf %114 : vector<16x432xf32> to vector<16x432xbf16>
    %c0_33 = arith.constant 0 : index
    %c0_34 = arith.constant 0 : index
    %116 = vector.load %arg8[%c0_33, %c0_34] : memref<432x32xbf16, #tpu.memory_space<vmem>>, vector<432x32xbf16>
    %cst_35 = arith.constant dense<0.000000e+00> : vector<16x32xf32>
    %117 = tpu.matmul %115, %116, %cst_35 {dimension_numbers = #tpu.dot_dimension_numbers<[1], [0], [0], [1], [0, 0, 1, 1], [], []>} : vector<16x432xbf16>, vector<432x32xbf16>, vector<16x32xf32> -> vector<16x32xf32>
    %c0_36 = arith.constant 0 : index
    %c0_37 = arith.constant 0 : index
    %118 = vector.load %arg9[%c0_36, %c0_37] : memref<2x32xf32, #tpu.memory_space<vmem>>, vector<1x32xf32>
    %119 = vector.broadcast %118 : vector<1x32xf32> to vector<16x32xf32>
    %120 = arith.mulf %117, %119 : vector<16x32xf32>
    %c1_38 = arith.constant 1 : index
    %c0_39 = arith.constant 0 : index
    %121 = vector.load %arg9[%c1_38, %c0_39] : memref<2x32xf32, #tpu.memory_space<vmem>>, vector<1x32xf32>
    %122 = vector.broadcast %121 : vector<1x32xf32> to vector<16x32xf32>
    %123 = arith.addf %120, %122 : vector<16x32xf32>
    %cst_40 = arith.constant 0.000000e+00 : f32
    %124 = vector.broadcast %cst_40 : f32 to vector<16x32xf32>
    %125 = arith.maximumf %123, %124 : vector<16x32xf32>
    %126 = vector.shape_cast %125 : vector<16x32xf32> to vector<4x4x32xf32>
    %c0_41 = arith.constant 0 : index
    %c0_42 = arith.constant 0 : index
    %127 = vector.load %arg22[%c0_41, %c0_42] : memref<64x16xf32, #tpu.memory_space<vmem>>, vector<64x16xf32>
    %128 = vector.shape_cast %126 : vector<4x4x32xf32> to vector<16x32xf32>
    %cst_43 = arith.constant dense<0.000000e+00> : vector<64x32xf32>
    %129 = tpu.matmul %127, %128, %cst_43 {dimension_numbers = #tpu.dot_dimension_numbers<[1], [0], [0], [1], [0, 0, 1, 1], [], []>} : vector<64x16xf32>, vector<16x32xf32>, vector<64x32xf32> -> vector<64x32xf32>
    %130 = vector.shape_cast %129 : vector<64x32xf32> to vector<8x8x32xf32>
    %131 = tpu.concatenate %130, %63 in 2 : vector<8x8x32xf32>, vector<8x8x16xf32> -> vector<8x8x48xf32>
    %cst_44 = arith.constant 0.000000e+00 : f32
    %132 = vector.broadcast %cst_44 : f32 to vector<1x8x48xf32>
    %133 = tpu.concatenate %132, %131, %132 in 0 : vector<1x8x48xf32>, vector<8x8x48xf32>, vector<1x8x48xf32> -> vector<10x8x48xf32>
    %134 = vector.extract_strided_slice %133 {offsets = [0, 0, 0], sizes = [8, 8, 48], strides = [1, 1, 1]} : vector<10x8x48xf32> to vector<8x8x48xf32>
    %135 = vector.extract_strided_slice %133 {offsets = [1, 0, 0], sizes = [8, 8, 48], strides = [1, 1, 1]} : vector<10x8x48xf32> to vector<8x8x48xf32>
    %136 = vector.extract_strided_slice %133 {offsets = [2, 0, 0], sizes = [8, 8, 48], strides = [1, 1, 1]} : vector<10x8x48xf32> to vector<8x8x48xf32>
    %137 = tpu.concatenate %134, %135, %136 in 2 : vector<8x8x48xf32>, vector<8x8x48xf32>, vector<8x8x48xf32> -> vector<8x8x144xf32>
    %cst_45 = arith.constant 0.000000e+00 : f32
    %138 = vector.broadcast %cst_45 : f32 to vector<8x1x144xf32>
    %139 = tpu.concatenate %138, %137, %138 in 1 : vector<8x1x144xf32>, vector<8x8x144xf32>, vector<8x1x144xf32> -> vector<8x10x144xf32>
    %140 = vector.extract_strided_slice %139 {offsets = [0, 0, 0], sizes = [8, 8, 144], strides = [1, 1, 1]} : vector<8x10x144xf32> to vector<8x8x144xf32>
    %141 = vector.extract_strided_slice %139 {offsets = [0, 1, 0], sizes = [8, 8, 144], strides = [1, 1, 1]} : vector<8x10x144xf32> to vector<8x8x144xf32>
    %142 = vector.extract_strided_slice %139 {offsets = [0, 2, 0], sizes = [8, 8, 144], strides = [1, 1, 1]} : vector<8x10x144xf32> to vector<8x8x144xf32>
    %143 = tpu.concatenate %140, %141, %142 in 2 : vector<8x8x144xf32>, vector<8x8x144xf32>, vector<8x8x144xf32> -> vector<8x8x432xf32>
    %144 = vector.shape_cast %143 : vector<8x8x432xf32> to vector<64x432xf32>
    %145 = arith.truncf %144 : vector<64x432xf32> to vector<64x432xbf16>
    %c0_46 = arith.constant 0 : index
    %c0_47 = arith.constant 0 : index
    %146 = vector.load %arg10[%c0_46, %c0_47] : memref<432x16xbf16, #tpu.memory_space<vmem>>, vector<432x16xbf16>
    %cst_48 = arith.constant dense<0.000000e+00> : vector<64x16xf32>
    %147 = tpu.matmul %145, %146, %cst_48 {dimension_numbers = #tpu.dot_dimension_numbers<[1], [0], [0], [1], [0, 0, 1, 1], [], []>} : vector<64x432xbf16>, vector<432x16xbf16>, vector<64x16xf32> -> vector<64x16xf32>
    %c0_49 = arith.constant 0 : index
    %c0_50 = arith.constant 0 : index
    %148 = vector.load %arg11[%c0_49, %c0_50] : memref<2x16xf32, #tpu.memory_space<vmem>>, vector<1x16xf32>
    %149 = vector.broadcast %148 : vector<1x16xf32> to vector<64x16xf32>
    %150 = arith.mulf %147, %149 : vector<64x16xf32>
    %c1_51 = arith.constant 1 : index
    %c0_52 = arith.constant 0 : index
    %151 = vector.load %arg11[%c1_51, %c0_52] : memref<2x16xf32, #tpu.memory_space<vmem>>, vector<1x16xf32>
    %152 = vector.broadcast %151 : vector<1x16xf32> to vector<64x16xf32>
    %153 = arith.addf %150, %152 : vector<64x16xf32>
    %cst_53 = arith.constant 0.000000e+00 : f32
    %154 = vector.broadcast %cst_53 : f32 to vector<64x16xf32>
    %155 = arith.maximumf %153, %154 : vector<64x16xf32>
    %156 = vector.shape_cast %155 : vector<64x16xf32> to vector<8x8x16xf32>
    %c0_54 = arith.constant 0 : index
    %c0_55 = arith.constant 0 : index
    %157 = vector.load %arg23[%c0_54, %c0_55] : memref<256x64xf32, #tpu.memory_space<vmem>>, vector<256x64xf32>
    %158 = vector.shape_cast %156 : vector<8x8x16xf32> to vector<64x16xf32>
    %cst_56 = arith.constant dense<0.000000e+00> : vector<256x16xf32>
    %159 = tpu.matmul %157, %158, %cst_56 {dimension_numbers = #tpu.dot_dimension_numbers<[1], [0], [0], [1], [0, 0, 1, 1], [], []>} : vector<256x64xf32>, vector<64x16xf32>, vector<256x16xf32> -> vector<256x16xf32>
    %160 = vector.shape_cast %159 : vector<256x16xf32> to vector<16x16x16xf32>
    %161 = tpu.concatenate %160, %26 in 2 : vector<16x16x16xf32>, vector<16x16x16xf32> -> vector<16x16x32xf32>
    %cst_57 = arith.constant 0.000000e+00 : f32
    %162 = vector.broadcast %cst_57 : f32 to vector<1x16x32xf32>
    %163 = tpu.concatenate %162, %161, %162 in 0 : vector<1x16x32xf32>, vector<16x16x32xf32>, vector<1x16x32xf32> -> vector<18x16x32xf32>
    %164 = vector.extract_strided_slice %163 {offsets = [0, 0, 0], sizes = [16, 16, 32], strides = [1, 1, 1]} : vector<18x16x32xf32> to vector<16x16x32xf32>
    %165 = vector.extract_strided_slice %163 {offsets = [1, 0, 0], sizes = [16, 16, 32], strides = [1, 1, 1]} : vector<18x16x32xf32> to vector<16x16x32xf32>
    %166 = vector.extract_strided_slice %163 {offsets = [2, 0, 0], sizes = [16, 16, 32], strides = [1, 1, 1]} : vector<18x16x32xf32> to vector<16x16x32xf32>
    %167 = tpu.concatenate %164, %165, %166 in 2 : vector<16x16x32xf32>, vector<16x16x32xf32>, vector<16x16x32xf32> -> vector<16x16x96xf32>
    %cst_58 = arith.constant 0.000000e+00 : f32
    %168 = vector.broadcast %cst_58 : f32 to vector<16x1x96xf32>
    %169 = tpu.concatenate %168, %167, %168 in 1 : vector<16x1x96xf32>, vector<16x16x96xf32>, vector<16x1x96xf32> -> vector<16x18x96xf32>
    %170 = vector.extract_strided_slice %169 {offsets = [0, 0, 0], sizes = [16, 16, 96], strides = [1, 1, 1]} : vector<16x18x96xf32> to vector<16x16x96xf32>
    %171 = vector.extract_strided_slice %169 {offsets = [0, 1, 0], sizes = [16, 16, 96], strides = [1, 1, 1]} : vector<16x18x96xf32> to vector<16x16x96xf32>
    %172 = vector.extract_strided_slice %169 {offsets = [0, 2, 0], sizes = [16, 16, 96], strides = [1, 1, 1]} : vector<16x18x96xf32> to vector<16x16x96xf32>
    %173 = tpu.concatenate %170, %171, %172 in 2 : vector<16x16x96xf32>, vector<16x16x96xf32>, vector<16x16x96xf32> -> vector<16x16x288xf32>
    %174 = vector.shape_cast %173 : vector<16x16x288xf32> to vector<256x288xf32>
    %175 = arith.truncf %174 : vector<256x288xf32> to vector<256x288xbf16>
    %c0_59 = arith.constant 0 : index
    %c0_60 = arith.constant 0 : index
    %176 = vector.load %arg12[%c0_59, %c0_60] : memref<288x16xbf16, #tpu.memory_space<vmem>>, vector<288x16xbf16>
    %cst_61 = arith.constant dense<0.000000e+00> : vector<256x16xf32>
    %177 = tpu.matmul %175, %176, %cst_61 {dimension_numbers = #tpu.dot_dimension_numbers<[1], [0], [0], [1], [0, 0, 1, 1], [], []>} : vector<256x288xbf16>, vector<288x16xbf16>, vector<256x16xf32> -> vector<256x16xf32>
    %c0_62 = arith.constant 0 : index
    %c0_63 = arith.constant 0 : index
    %178 = vector.load %arg13[%c0_62, %c0_63] : memref<2x16xf32, #tpu.memory_space<vmem>>, vector<1x16xf32>
    %179 = vector.broadcast %178 : vector<1x16xf32> to vector<256x16xf32>
    %180 = arith.mulf %177, %179 : vector<256x16xf32>
    %c1_64 = arith.constant 1 : index
    %c0_65 = arith.constant 0 : index
    %181 = vector.load %arg13[%c1_64, %c0_65] : memref<2x16xf32, #tpu.memory_space<vmem>>, vector<1x16xf32>
    %182 = vector.broadcast %181 : vector<1x16xf32> to vector<256x16xf32>
    %183 = arith.addf %180, %182 : vector<256x16xf32>
    %cst_66 = arith.constant 0.000000e+00 : f32
    %184 = vector.broadcast %cst_66 : f32 to vector<256x16xf32>
    %185 = arith.maximumf %183, %184 : vector<256x16xf32>
    %186 = vector.shape_cast %185 : vector<256x16xf32> to vector<16x16x16xf32>
    %cst_67 = arith.constant 0.000000e+00 : f32
    %187 = vector.broadcast %cst_67 : f32 to vector<1x16x16xf32>
    %188 = tpu.concatenate %187, %186, %187 in 0 : vector<1x16x16xf32>, vector<16x16x16xf32>, vector<1x16x16xf32> -> vector<18x16x16xf32>
    %189 = vector.extract_strided_slice %188 {offsets = [0, 0, 0], sizes = [16, 16, 16], strides = [1, 1, 1]} : vector<18x16x16xf32> to vector<16x16x16xf32>
    %190 = vector.extract_strided_slice %188 {offsets = [1, 0, 0], sizes = [16, 16, 16], strides = [1, 1, 1]} : vector<18x16x16xf32> to vector<16x16x16xf32>
    %191 = vector.extract_strided_slice %188 {offsets = [2, 0, 0], sizes = [16, 16, 16], strides = [1, 1, 1]} : vector<18x16x16xf32> to vector<16x16x16xf32>
    %192 = tpu.concatenate %189, %190, %191 in 2 : vector<16x16x16xf32>, vector<16x16x16xf32>, vector<16x16x16xf32> -> vector<16x16x48xf32>
    %cst_68 = arith.constant 0.000000e+00 : f32
    %193 = vector.broadcast %cst_68 : f32 to vector<16x1x48xf32>
    %194 = tpu.concatenate %193, %192, %193 in 1 : vector<16x1x48xf32>, vector<16x16x48xf32>, vector<16x1x48xf32> -> vector<16x18x48xf32>
    %195 = vector.extract_strided_slice %194 {offsets = [0, 0, 0], sizes = [16, 16, 48], strides = [1, 1, 1]} : vector<16x18x48xf32> to vector<16x16x48xf32>
    %196 = vector.extract_strided_slice %194 {offsets = [0, 1, 0], sizes = [16, 16, 48], strides = [1, 1, 1]} : vector<16x18x48xf32> to vector<16x16x48xf32>
    %197 = vector.extract_strided_slice %194 {offsets = [0, 2, 0], sizes = [16, 16, 48], strides = [1, 1, 1]} : vector<16x18x48xf32> to vector<16x16x48xf32>
    %198 = tpu.concatenate %195, %196, %197 in 2 : vector<16x16x48xf32>, vector<16x16x48xf32>, vector<16x16x48xf32> -> vector<16x16x144xf32>
    %199 = vector.shape_cast %198 : vector<16x16x144xf32> to vector<256x144xf32>
    %c0_69 = arith.constant 0 : index
    %c0_70 = arith.constant 0 : index
    %200 = vector.load %arg14[%c0_69, %c0_70] : memref<1x144xf32, #tpu.memory_space<vmem>>, vector<1x144xf32>
    %201 = vector.broadcast %200 : vector<1x144xf32> to vector<256x144xf32>
    %202 = arith.mulf %199, %201 : vector<256x144xf32>
    %cst_71 = arith.constant dense<0.000000e+00> : vector<256xf32>
    %203 = vector.multi_reduction <add>, %202, %cst_71 [1] : vector<256x144xf32> to vector<256xf32>
    %204 = vector.shape_cast %203 : vector<256xf32> to vector<256x1xf32>
    %c0_72 = arith.constant 0 : index
    %c0_73 = arith.constant 0 : index
    %205 = vector.load %arg15[%c0_72, %c0_73] : memref<1x1xf32, #tpu.memory_space<vmem>>, vector<1x1xf32>
    %206 = vector.broadcast %205 : vector<1x1xf32> to vector<256x1xf32>
    %207 = arith.addf %204, %206 : vector<256x1xf32>
    %cst_74 = arith.constant 0.000000e+00 : f32
    %208 = vector.broadcast %cst_74 : f32 to vector<1x8x16xf32>
    %209 = tpu.concatenate %208, %156, %208 in 0 : vector<1x8x16xf32>, vector<8x8x16xf32>, vector<1x8x16xf32> -> vector<10x8x16xf32>
    %210 = vector.extract_strided_slice %209 {offsets = [0, 0, 0], sizes = [8, 8, 16], strides = [1, 1, 1]} : vector<10x8x16xf32> to vector<8x8x16xf32>
    %211 = vector.extract_strided_slice %209 {offsets = [1, 0, 0], sizes = [8, 8, 16], strides = [1, 1, 1]} : vector<10x8x16xf32> to vector<8x8x16xf32>
    %212 = vector.extract_strided_slice %209 {offsets = [2, 0, 0], sizes = [8, 8, 16], strides = [1, 1, 1]} : vector<10x8x16xf32> to vector<8x8x16xf32>
    %213 = tpu.concatenate %210, %211, %212 in 2 : vector<8x8x16xf32>, vector<8x8x16xf32>, vector<8x8x16xf32> -> vector<8x8x48xf32>
    %cst_75 = arith.constant 0.000000e+00 : f32
    %214 = vector.broadcast %cst_75 : f32 to vector<8x1x48xf32>
    %215 = tpu.concatenate %214, %213, %214 in 1 : vector<8x1x48xf32>, vector<8x8x48xf32>, vector<8x1x48xf32> -> vector<8x10x48xf32>
    %216 = vector.extract_strided_slice %215 {offsets = [0, 0, 0], sizes = [8, 8, 48], strides = [1, 1, 1]} : vector<8x10x48xf32> to vector<8x8x48xf32>
    %217 = vector.extract_strided_slice %215 {offsets = [0, 1, 0], sizes = [8, 8, 48], strides = [1, 1, 1]} : vector<8x10x48xf32> to vector<8x8x48xf32>
    %218 = vector.extract_strided_slice %215 {offsets = [0, 2, 0], sizes = [8, 8, 48], strides = [1, 1, 1]} : vector<8x10x48xf32> to vector<8x8x48xf32>
    %219 = tpu.concatenate %216, %217, %218 in 2 : vector<8x8x48xf32>, vector<8x8x48xf32>, vector<8x8x48xf32> -> vector<8x8x144xf32>
    %220 = vector.shape_cast %219 : vector<8x8x144xf32> to vector<64x144xf32>
    %c0_76 = arith.constant 0 : index
    %c0_77 = arith.constant 0 : index
    %221 = vector.load %arg16[%c0_76, %c0_77] : memref<1x144xf32, #tpu.memory_space<vmem>>, vector<1x144xf32>
    %222 = vector.broadcast %221 : vector<1x144xf32> to vector<64x144xf32>
    %223 = arith.mulf %220, %222 : vector<64x144xf32>
    %cst_78 = arith.constant dense<0.000000e+00> : vector<64xf32>
    %224 = vector.multi_reduction <add>, %223, %cst_78 [1] : vector<64x144xf32> to vector<64xf32>
    %225 = vector.shape_cast %224 : vector<64xf32> to vector<64x1xf32>
    %c0_79 = arith.constant 0 : index
    %c0_80 = arith.constant 0 : index
    %226 = vector.load %arg17[%c0_79, %c0_80] : memref<1x1xf32, #tpu.memory_space<vmem>>, vector<1x1xf32>
    %227 = vector.broadcast %226 : vector<1x1xf32> to vector<64x1xf32>
    %228 = arith.addf %225, %227 : vector<64x1xf32>
    %cst_81 = arith.constant 0.000000e+00 : f32
    %229 = vector.broadcast %cst_81 : f32 to vector<1x4x32xf32>
    %230 = tpu.concatenate %229, %100, %229 in 0 : vector<1x4x32xf32>, vector<4x4x32xf32>, vector<1x4x32xf32> -> vector<6x4x32xf32>
    %231 = vector.extract_strided_slice %230 {offsets = [0, 0, 0], sizes = [4, 4, 32], strides = [1, 1, 1]} : vector<6x4x32xf32> to vector<4x4x32xf32>
    %232 = vector.extract_strided_slice %230 {offsets = [1, 0, 0], sizes = [4, 4, 32], strides = [1, 1, 1]} : vector<6x4x32xf32> to vector<4x4x32xf32>
    %233 = vector.extract_strided_slice %230 {offsets = [2, 0, 0], sizes = [4, 4, 32], strides = [1, 1, 1]} : vector<6x4x32xf32> to vector<4x4x32xf32>
    %234 = tpu.concatenate %231, %232, %233 in 2 : vector<4x4x32xf32>, vector<4x4x32xf32>, vector<4x4x32xf32> -> vector<4x4x96xf32>
    %cst_82 = arith.constant 0.000000e+00 : f32
    %235 = vector.broadcast %cst_82 : f32 to vector<4x1x96xf32>
    %236 = tpu.concatenate %235, %234, %235 in 1 : vector<4x1x96xf32>, vector<4x4x96xf32>, vector<4x1x96xf32> -> vector<4x6x96xf32>
    %237 = vector.extract_strided_slice %236 {offsets = [0, 0, 0], sizes = [4, 4, 96], strides = [1, 1, 1]} : vector<4x6x96xf32> to vector<4x4x96xf32>
    %238 = vector.extract_strided_slice %236 {offsets = [0, 1, 0], sizes = [4, 4, 96], strides = [1, 1, 1]} : vector<4x6x96xf32> to vector<4x4x96xf32>
    %239 = vector.extract_strided_slice %236 {offsets = [0, 2, 0], sizes = [4, 4, 96], strides = [1, 1, 1]} : vector<4x6x96xf32> to vector<4x4x96xf32>
    %240 = tpu.concatenate %237, %238, %239 in 2 : vector<4x4x96xf32>, vector<4x4x96xf32>, vector<4x4x96xf32> -> vector<4x4x288xf32>
    %241 = vector.shape_cast %240 : vector<4x4x288xf32> to vector<16x288xf32>
    %c0_83 = arith.constant 0 : index
    %c0_84 = arith.constant 0 : index
    %242 = vector.load %arg18[%c0_83, %c0_84] : memref<1x288xf32, #tpu.memory_space<vmem>>, vector<1x288xf32>
    %243 = vector.broadcast %242 : vector<1x288xf32> to vector<16x288xf32>
    %244 = arith.mulf %241, %243 : vector<16x288xf32>
    %cst_85 = arith.constant dense<0.000000e+00> : vector<16xf32>
    %245 = vector.multi_reduction <add>, %244, %cst_85 [1] : vector<16x288xf32> to vector<16xf32>
    %246 = vector.shape_cast %245 : vector<16xf32> to vector<16x1xf32>
    %c0_86 = arith.constant 0 : index
    %c0_87 = arith.constant 0 : index
    %247 = vector.load %arg19[%c0_86, %c0_87] : memref<1x1xf32, #tpu.memory_space<vmem>>, vector<1x1xf32>
    %248 = vector.broadcast %247 : vector<1x1xf32> to vector<16x1xf32>
    %249 = arith.addf %246, %248 : vector<16x1xf32>
    %c0_88 = arith.constant 0 : index
    %c0_89 = arith.constant 0 : index
    %250 = vector.load %arg23[%c0_88, %c0_89] : memref<256x64xf32, #tpu.memory_space<vmem>>, vector<256x64xf32>
    %cst_90 = arith.constant dense<0.000000e+00> : vector<256x1xf32>
    %251 = tpu.matmul %250, %228, %cst_90 {dimension_numbers = #tpu.dot_dimension_numbers<[1], [0], [0], [1], [0, 0, 1, 1], [], []>} : vector<256x64xf32>, vector<64x1xf32>, vector<256x1xf32> -> vector<256x1xf32>
    %c0_91 = arith.constant 0 : index
    %c0_92 = arith.constant 0 : index
    %252 = vector.load %arg24[%c0_91, %c0_92] : memref<256x16xf32, #tpu.memory_space<vmem>>, vector<256x16xf32>
    %cst_93 = arith.constant dense<0.000000e+00> : vector<256x1xf32>
    %253 = tpu.matmul %252, %249, %cst_93 {dimension_numbers = #tpu.dot_dimension_numbers<[1], [0], [0], [1], [0, 0, 1, 1], [], []>} : vector<256x16xf32>, vector<16x1xf32>, vector<256x1xf32> -> vector<256x1xf32>
    %254 = tpu.concatenate %207, %251, %253 in 1 : vector<256x1xf32>, vector<256x1xf32>, vector<256x1xf32> -> vector<256x3xf32>
    %c0_94 = arith.constant 0 : index
    %c0_95 = arith.constant 0 : index
    %255 = vector.load %arg20[%c0_94, %c0_95] : memref<1x3xf32, #tpu.memory_space<vmem>>, vector<1x3xf32>
    %256 = vector.broadcast %255 : vector<1x3xf32> to vector<256x3xf32>
    %257 = arith.mulf %254, %256 : vector<256x3xf32>
    %cst_96 = arith.constant dense<0.000000e+00> : vector<256xf32>
    %258 = vector.multi_reduction <add>, %257, %cst_96 [1] : vector<256x3xf32> to vector<256xf32>
    %259 = vector.shape_cast %258 : vector<256xf32> to vector<256x1xf32>
    %c0_97 = arith.constant 0 : index
    %c0_98 = arith.constant 0 : index
    %260 = vector.load %arg21[%c0_97, %c0_98] : memref<1x1xf32, #tpu.memory_space<vmem>>, vector<1x1xf32>
    %261 = vector.broadcast %260 : vector<1x1xf32> to vector<256x1xf32>
    %262 = arith.addf %259, %261 : vector<256x1xf32>
    %263 = tpu.concatenate %262, %207, %251, %253 in 1 : vector<256x1xf32>, vector<256x1xf32>, vector<256x1xf32>, vector<256x1xf32> -> vector<256x4xf32>
    %264 = arith.negf %263 : vector<256x4xf32>
    %265 = math.exp %264 : vector<256x4xf32>
    %cst_99 = arith.constant 1.000000e+00 : f32
    %266 = vector.broadcast %cst_99 : f32 to vector<256x4xf32>
    %267 = arith.addf %266, %265 : vector<256x4xf32>
    %268 = arith.divf %266, %267 : vector<256x4xf32>
    %269 = tpu.transpose %268, [1, 0] : vector<256x4xf32> -> vector<4x256xf32>
    %c0_100 = arith.constant 0 : index
    %c0_101 = arith.constant 0 : index
    %c0_102 = arith.constant 0 : index
    %270 = vector.load %arg25[%c0_100, %c0_101, %c0_102] : memref<1x4x256xf32, #tpu.memory_space<vmem>>, vector<1x4x256xf32>
    %271 = vector.shape_cast %270 : vector<1x4x256xf32> to vector<4x256xf32>
    %272 = vector.shape_cast %269 : vector<4x256xf32> to vector<1x4x256xf32>
    tpu.vector_store %arg25[%c0_100, %c0_101, %c0_102], %272 {strides = array<i32>} : memref<1x4x256xf32, #tpu.memory_space<vmem>>, vector<1x4x256xf32>,
    return
  }
  func.func @transform_0(%arg0: i32) -> (i32, i32, i32, i32) {
    %c0_i32 = arith.constant 0 : i32
    %c0_i32_0 = arith.constant 0 : i32
    %c0_i32_1 = arith.constant 0 : i32
    %c0_i32_2 = arith.constant 0 : i32
    return %arg0, %c0_i32, %c0_i32_0, %c0_i32_1 : i32, i32, i32, i32
  }
  func.func @transform_1(%arg0: i32) -> (i32, i32) {
    %c0_i32 = arith.constant 0 : i32
    %c0_i32_0 = arith.constant 0 : i32
    %c0_i32_1 = arith.constant 0 : i32
    return %c0_i32, %c0_i32_0 : i32, i32
  }
  func.func @transform_2(%arg0: i32) -> (i32, i32) {
    %c0_i32 = arith.constant 0 : i32
    %c0_i32_0 = arith.constant 0 : i32
    %c0_i32_1 = arith.constant 0 : i32
    return %c0_i32, %c0_i32_0 : i32, i32
  }
  func.func @transform_3(%arg0: i32) -> (i32, i32) {
    %c0_i32 = arith.constant 0 : i32
    %c0_i32_0 = arith.constant 0 : i32
    %c0_i32_1 = arith.constant 0 : i32
    return %c0_i32, %c0_i32_0 : i32, i32
  }
  func.func @transform_4(%arg0: i32) -> (i32, i32) {
    %c0_i32 = arith.constant 0 : i32
    %c0_i32_0 = arith.constant 0 : i32
    %c0_i32_1 = arith.constant 0 : i32
    return %c0_i32, %c0_i32_0 : i32, i32
  }
  func.func @transform_5(%arg0: i32) -> (i32, i32) {
    %c0_i32 = arith.constant 0 : i32
    %c0_i32_0 = arith.constant 0 : i32
    %c0_i32_1 = arith.constant 0 : i32
    return %c0_i32, %c0_i32_0 : i32, i32
  }
  func.func @transform_6(%arg0: i32) -> (i32, i32) {
    %c0_i32 = arith.constant 0 : i32
    %c0_i32_0 = arith.constant 0 : i32
    %c0_i32_1 = arith.constant 0 : i32
    return %c0_i32, %c0_i32_0 : i32, i32
  }
  func.func @transform_7(%arg0: i32) -> (i32, i32) {
    %c0_i32 = arith.constant 0 : i32
    %c0_i32_0 = arith.constant 0 : i32
    %c0_i32_1 = arith.constant 0 : i32
    return %c0_i32, %c0_i32_0 : i32, i32
  }
  func.func @transform_8(%arg0: i32) -> (i32, i32) {
    %c0_i32 = arith.constant 0 : i32
    %c0_i32_0 = arith.constant 0 : i32
    %c0_i32_1 = arith.constant 0 : i32
    return %c0_i32, %c0_i32_0 : i32, i32
  }
  func.func @transform_9(%arg0: i32) -> (i32, i32) {
    %c0_i32 = arith.constant 0 : i32
    %c0_i32_0 = arith.constant 0 : i32
    %c0_i32_1 = arith.constant 0 : i32
    return %c0_i32, %c0_i32_0 : i32, i32
  }
  func.func @transform_10(%arg0: i32) -> (i32, i32) {
    %c0_i32 = arith.constant 0 : i32
    %c0_i32_0 = arith.constant 0 : i32
    %c0_i32_1 = arith.constant 0 : i32
    return %c0_i32, %c0_i32_0 : i32, i32
  }
  func.func @transform_11(%arg0: i32) -> (i32, i32) {
    %c0_i32 = arith.constant 0 : i32
    %c0_i32_0 = arith.constant 0 : i32
    %c0_i32_1 = arith.constant 0 : i32
    return %c0_i32, %c0_i32_0 : i32, i32
  }
  func.func @transform_12(%arg0: i32) -> (i32, i32) {
    %c0_i32 = arith.constant 0 : i32
    %c0_i32_0 = arith.constant 0 : i32
    %c0_i32_1 = arith.constant 0 : i32
    return %c0_i32, %c0_i32_0 : i32, i32
  }
  func.func @transform_13(%arg0: i32) -> (i32, i32) {
    %c0_i32 = arith.constant 0 : i32
    %c0_i32_0 = arith.constant 0 : i32
    %c0_i32_1 = arith.constant 0 : i32
    return %c0_i32, %c0_i32_0 : i32, i32
  }
  func.func @transform_14(%arg0: i32) -> (i32, i32) {
    %c0_i32 = arith.constant 0 : i32
    %c0_i32_0 = arith.constant 0 : i32
    %c0_i32_1 = arith.constant 0 : i32
    return %c0_i32, %c0_i32_0 : i32, i32
  }
  func.func @transform_15(%arg0: i32) -> (i32, i32) {
    %c0_i32 = arith.constant 0 : i32
    %c0_i32_0 = arith.constant 0 : i32
    %c0_i32_1 = arith.constant 0 : i32
    return %c0_i32, %c0_i32_0 : i32, i32
  }
  func.func @transform_16(%arg0: i32) -> (i32, i32) {
    %c0_i32 = arith.constant 0 : i32
    %c0_i32_0 = arith.constant 0 : i32
    %c0_i32_1 = arith.constant 0 : i32
    return %c0_i32, %c0_i32_0 : i32, i32
  }
  func.func @transform_17(%arg0: i32) -> (i32, i32) {
    %c0_i32 = arith.constant 0 : i32
    %c0_i32_0 = arith.constant 0 : i32
    %c0_i32_1 = arith.constant 0 : i32
    return %c0_i32, %c0_i32_0 : i32, i32
  }
  func.func @transform_18(%arg0: i32) -> (i32, i32) {
    %c0_i32 = arith.constant 0 : i32
    %c0_i32_0 = arith.constant 0 : i32
    %c0_i32_1 = arith.constant 0 : i32
    return %c0_i32, %c0_i32_0 : i32, i32
  }
  func.func @transform_19(%arg0: i32) -> (i32, i32) {
    %c0_i32 = arith.constant 0 : i32
    %c0_i32_0 = arith.constant 0 : i32
    %c0_i32_1 = arith.constant 0 : i32
    return %c0_i32, %c0_i32_0 : i32, i32
  }
  func.func @transform_20(%arg0: i32) -> (i32, i32) {
    %c0_i32 = arith.constant 0 : i32
    %c0_i32_0 = arith.constant 0 : i32
    %c0_i32_1 = arith.constant 0 : i32
    return %c0_i32, %c0_i32_0 : i32, i32
  }
  func.func @transform_21(%arg0: i32) -> (i32, i32) {
    %c0_i32 = arith.constant 0 : i32
    %c0_i32_0 = arith.constant 0 : i32
    %c0_i32_1 = arith.constant 0 : i32
    return %c0_i32, %c0_i32_0 : i32, i32
  }
  func.func @transform_22(%arg0: i32) -> (i32, i32) {
    %c0_i32 = arith.constant 0 : i32
    %c0_i32_0 = arith.constant 0 : i32
    %c0_i32_1 = arith.constant 0 : i32
    return %c0_i32, %c0_i32_0 : i32, i32
  }
  func.func @transform_23(%arg0: i32) -> (i32, i32) {
    %c0_i32 = arith.constant 0 : i32
    %c0_i32_0 = arith.constant 0 : i32
    %c0_i32_1 = arith.constant 0 : i32
    return %c0_i32, %c0_i32_0 : i32, i32
  }
  func.func @transform_24(%arg0: i32) -> (i32, i32, i32) {
    %c0_i32 = arith.constant 0 : i32
    %c0_i32_0 = arith.constant 0 : i32
    %c0_i32_1 = arith.constant 0 : i32
    return %arg0, %c0_i32, %c0_i32_0 : i32, i32, i32
  }
}

</mosaic_0001>

<llo_original>
// kernel: unet3_forward_nchw.1
$region0: #{unet3_forward_nchw.1}
  #allocation0 [shape = 'u32[]', space=smem, size = 0x4, offset = 0x4, fixed_abs, tag = 'smem constant byte address 0x4 - core index']
  #allocation1 [shape = 'u32[144,128]{1,0:T(1,128)}', space=vmem, size = 0x12000, scoped, tag = 'internal scratch']
  #allocation2 [shape = 'f32[1,1]{1,0:T(1,128)S(1)}', space=vmem, size = 0x200, scoped, tag = 'scoped memory for unet3_forward_nchw.1']
  #allocation3 [shape = 'f32[1,1]{1,0:T(1,128)S(1)}', space=vmem, size = 0x200, scoped, tag = 'scoped memory for unet3_forward_nchw.1']
  #allocation4 [shape = 'f32[1,1]{1,0:T(1,128)S(1)}', space=vmem, size = 0x200, scoped, tag = 'scoped memory for unet3_forward_nchw.1']
  #allocation5 [shape = 'f32[1,1]{1,0:T(1,128)S(1)}', space=vmem, size = 0x200, scoped, tag = 'scoped memory for unet3_forward_nchw.1']
  %s0 = inlined_call_operand.vmem [shape: f32[2,16,16,3], index: 0, kind: input, shape index: {}]
  %s1 = inlined_call_operand.vmem [shape: bf16[27,16], index: 1, kind: input, shape index: {}]
  %s2 = inlined_call_operand.vmem [shape: f32[2,16], index: 2, kind: input, shape index: {}]
  %s3 = inlined_call_operand.vmem [shape: bf16[144,16], index: 3, kind: input, shape index: {}]
  %s4 = inlined_call_operand.vmem [shape: f32[2,16], index: 4, kind: input, shape index: {}]
  %s5 = inlined_call_operand.vmem [shape: bf16[144,32], index: 5, kind: input, shape index: {}]
  %s6 = inlined_call_operand.vmem [shape: f32[2,32], index: 6, kind: input, shape index: {}]
  %s7 = inlined_call_operand.vmem [shape: bf16[432,32], index: 7, kind: input, shape index: {}]
  %s8 = inlined_call_operand.vmem [shape: f32[2,32], index: 8, kind: input, shape index: {}]
  %s9 = inlined_call_operand.vmem [shape: bf16[432,16], index: 9, kind: input, shape index: {}]
  %s10 = inlined_call_operand.vmem [shape: f32[2,16], index: 10, kind: input, shape index: {}]
  %s11 = inlined_call_operand.vmem [shape: bf16[288,16], index: 11, kind: input, shape index: {}]
  %s12 = inlined_call_operand.vmem [shape: f32[2,16], index: 12, kind: input, shape index: {}]
  %s13 = inlined_call_operand.vmem [shape: f32[1,144], index: 13, kind: input, shape index: {}]
  %s14 = inlined_call_operand.<no memory space> [shape: f32[1,1], index: 14, kind: input, shape index: {}]
  %s15 = inlined_call_operand.vmem [shape: f32[1,144], index: 15, kind: input, shape index: {}]
  %s16 = inlined_call_operand.<no memory space> [shape: f32[1,1], index: 16, kind: input, shape index: {}]
  %s17 = inlined_call_operand.vmem [shape: f32[1,288], index: 17, kind: input, shape index: {}]
  %s18 = inlined_call_operand.<no memory space> [shape: f32[1,1], index: 18, kind: input, shape index: {}]
  %s19 = inlined_call_operand.vmem [shape: f32[1,3], index: 19, kind: input, shape index: {}]
  %s20 = inlined_call_operand.<no memory space> [shape: f32[1,1], index: 20, kind: input, shape index: {}]
  %s21 = inlined_call_operand.vmem [shape: f32[64,16], index: 21, kind: input, shape index: {}]
  %s22 = inlined_call_operand.vmem [shape: f32[256,64], index: 22, kind: input, shape index: {}]
  %s23 = inlined_call_operand.vmem [shape: f32[256,16], index: 23, kind: input, shape index: {}]
  %s24 = inlined_call_operand.vmem [shape: f32[2,4,256], index: 24, kind: output, shape index: {}]
  %s25 = sld [smem:[#allocation0]]
  $region129: #{unet3_forward_nchw.1} parent=0
    _
  %s27 = ssub.s32 1, %s25
  %s28 = scalar_select 0, %s27, %s25
  %v29 = vstv %s14
  %30 = vst [vmem:[#allocation2] sm:$0x1] %v29
  %v31 = vstv %s16
  %32 = vst [vmem:[#allocation3] sm:$0x1] %v31
  %v33 = vstv %s18
  %34 = vst [vmem:[#allocation4] sm:$0x1] %v33
  %v35 = vstv %s20
  %36 = vst [vmem:[#allocation5] sm:$0x1] %v35
  loop: start=0, step=1, limit=4
  $region2: #{unet3_forward_nchw.1} parent=0 // loop_pre_header
    _
  $region3: #{unet3_forward_nchw.1} parent=0 // loop_header
    %s38 = sphi 0, %s42
    %p39 = scmp.ge.s32.totalorder %s38, 4
    %s48 = sphi 0, %s50
    %s51 = sphi 0, %s48
    %s52 = sphi 0, %s51
    %s68 = sphi 0, %s52
    %s72 = sphi 0, %s72
    %s74 = sphi 0, %s72
    %s75 = sphi 0, %s74
    %s89 = sphi 0, %s75
    %s93 = sphi 0, %s93
    %s95 = sphi 0, %s93
    %s96 = sphi 0, %s95
    %s110 = sphi 0, %s96
    %s114 = sphi 0, %s114
    %s116 = sphi 0, %s114
    %s117 = sphi 0, %s116
    %s131 = sphi 0, %s117
    %s135 = sphi 0, %s135
    %s137 = sphi 0, %s135
    %s138 = sphi 0, %s137
    %s152 = sphi 0, %s138
    %s156 = sphi 0, %s156
    %s158 = sphi 0, %s156
    %s159 = sphi 0, %s158
    %s173 = sphi 0, %s159
    %s177 = sphi 0, %s177
    %s179 = sphi 0, %s177
    %s180 = sphi 0, %s179
    %s194 = sphi 0, %s180
    %s198 = sphi 0, %s198
    %s200 = sphi 0, %s198
    %s201 = sphi 0, %s200
    %s215 = sphi 0, %s201
    %s219 = sphi 0, %s219
    %s221 = sphi 0, %s219
    %s222 = sphi 0, %s221
    %s236 = sphi 0, %s222
    %s240 = sphi 0, %s240
    %s242 = sphi 0, %s240
    %s243 = sphi 0, %s242
    %s257 = sphi 0, %s243
    %s261 = sphi 0, %s261
    %s263 = sphi 0, %s261
    %s264 = sphi 0, %s263
    %s278 = sphi 0, %s264
    %s282 = sphi 0, %s282
    %s284 = sphi 0, %s282
    %s285 = sphi 0, %s284
    %s299 = sphi 0, %s285
    %s303 = sphi 0, %s303
    %s305 = sphi 0, %s303
    %s306 = sphi 0, %s305
    %s320 = sphi 0, %s306
    %s324 = sphi 0, %s324
    %s326 = sphi 0, %s324
    %s327 = sphi 0, %s326
    %s341 = sphi 0, %s327
    %s345 = sphi 0, %s345
    %s347 = sphi 0, %s345
    %s348 = sphi 0, %s347
    %s362 = sphi 0, %s348
    %s366 = sphi 0, %s366
    %s368 = sphi 0, %s366
    %s369 = sphi 0, %s368
    %s383 = sphi 0, %s369
    %s387 = sphi 0, %s387
    %s389 = sphi 0, %s387
    %s390 = sphi 0, %s389
    %s404 = sphi 0, %s390
    %s408 = sphi 0, %s408
    %s410 = sphi 0, %s408
    %s411 = sphi 0, %s410
    %s425 = sphi 0, %s411
    %s429 = sphi 0, %s429
    %s431 = sphi 0, %s429
    %s432 = sphi 0, %s431
    %s446 = sphi 0, %s432
    %s450 = sphi 0, %s450
    %s452 = sphi 0, %s450
    %s453 = sphi 0, %s452
    %s467 = sphi 0, %s453
    %s471 = sphi 0, %s471
    %s473 = sphi 0, %s471
    %s474 = sphi 0, %s473
    %s488 = sphi 0, %s474
    %s492 = sphi 0, %s492
    %s494 = sphi 0, %s492
    %s495 = sphi 0, %s494
    %s509 = sphi 0, %s495
    %s513 = sphi 0, %s513
    %s515 = sphi 0, %s513
    %s516 = sphi 0, %s515
    %s530 = sphi 0, %s516
    %s534 = sphi 0, %s534
    %s536 = sphi 0, %s534
    %s537 = sphi 0, %s536
    %s551 = sphi 0, %s537
    %s557 = sphi 0, %s559
    %s560 = sphi 0, %s557
    %s561 = sphi 0, %s560
    %s577 = sphi 0, %s561
  $region4: #{unet3_forward_nchw.1} parent=0 // loop_header_branch
    %41 = sbr.rel (%p39) target = $region8
  $region5: #{unet3_forward_nchw.1} parent=0 // loop_body
    %s43 = ssub.s32 %s38, 1
    %s44 = ssub.s32 %s38, 2
    %s45 = sadd.s32 %s38, 1
    %s46 = ssub.s32 %s38, %s45
    %p47 = scmp.eq.s32.totalorder %s46, 0
    %s49 = sadd.s32 %s48, 1
    %s50 = scalar_select %p47, %s48, %s49
    %p53 = pneg %p47
    %p54 = scmp.eq.s32.totalorder %s38, 1
    %p55 = por %p53, %p54
    %p56 = scmp.ne.s32.totalorder %s48, %s51
    %p57 = scmp.eq.s32.totalorder %s38, 0
    %p58 = por %p56, %p57
    %p59 = scmp.ne.s32.totalorder %s48, %s51
    %p60 = scmp.eq.s32.totalorder %s43, 1
    %p61 = por %p59, %p60
    %p62 = scmp.ne.s32.totalorder %s51, %s52
    %p63 = scmp.eq.s32.totalorder %s43, 0
    %p64 = por %p62, %p63
    %p65 = scmp.ne.s32.totalorder %s51, %s52
    %p66 = scmp.eq.s32.totalorder %s44, 1
    %p67 = por %p65, %p66
    %p69 = scmp.ne.s32.totalorder %s52, %s68
    %p70 = scmp.eq.s32.totalorder %s44, 0
    %p71 = por %p69, %p70
    %s73 = sadd.s32 %s72, 1
    %p76 = scmp.eq.s32.totalorder %s38, 1
    %p77 = scmp.ne.s32.totalorder %s72, %s74
    %p78 = scmp.eq.s32.totalorder %s38, 0
    %p79 = por %p77, %p78
    %p80 = scmp.ne.s32.totalorder %s72, %s74
    %p81 = scmp.eq.s32.totalorder %s43, 1
    %p82 = por %p80, %p81
    %p83 = scmp.ne.s32.totalorder %s74, %s75
    %p84 = scmp.eq.s32.totalorder %s43, 0
    %p85 = por %p83, %p84
    %p86 = scmp.ne.s32.totalorder %s74, %s75
    %p87 = scmp.eq.s32.totalorder %s44, 1
    %p88 = por %p86, %p87
    %p90 = scmp.ne.s32.totalorder %s75, %s89
    %p91 = scmp.eq.s32.totalorder %s44, 0
    %p92 = por %p90, %p91
    %s94 = sadd.s32 %s93, 1
    %p97 = scmp.eq.s32.totalorder %s38, 1
    %p98 = scmp.ne.s32.totalorder %s93, %s95
    %p99 = scmp.eq.s32.totalorder %s38, 0
    %p100 = por %p98, %p99
    %p101 = scmp.ne.s32.totalorder %s93, %s95
    %p102 = scmp.eq.s32.totalorder %s43, 1
    %p103 = por %p101, %p102
    %p104 = scmp.ne.s32.totalorder %s95, %s96
    %p105 = scmp.eq.s32.totalorder %s43, 0
    %p106 = por %p104, %p105
    %p107 = scmp.ne.s32.totalorder %s95, %s96
    %p108 = scmp.eq.s32.totalorder %s44, 1
    %p109 = por %p107, %p108
    %p111 = scmp.ne.s32.totalorder %s96, %s110
    %p112 = scmp.eq.s32.totalorder %s44, 0
    %p113 = por %p111, %p112
    %s115 = sadd.s32 %s114, 1
    %p118 = scmp.eq.s32.totalorder %s38, 1
    %p119 = scmp.ne.s32.totalorder %s114, %s116
    %p120 = scmp.eq.s32.totalorder %s38, 0
    %p121 = por %p119, %p120
    %p122 = scmp.ne.s32.totalorder %s114, %s116
    %p123 = scmp.eq.s32.totalorder %s43, 1
    %p124 = por %p122, %p123
    %p125 = scmp.ne.s32.totalorder %s116, %s117
    %p126 = scmp.eq.s32.totalorder %s43, 0
    %p127 = por %p125, %p126
    %p128 = scmp.ne.s32.totalorder %s116, %s117
    %p129 = scmp.eq.s32.totalorder %s44, 1
    %p130 = por %p128, %p129
    %p132 = scmp.ne.s32.totalorder %s117, %s131
    %p133 = scmp.eq.s32.totalorder %s44, 0
    %p134 = por %p132, %p133
    %s136 = sadd.s32 %s135, 1
    %p139 = scmp.eq.s32.totalorder %s38, 1
    %p140 = scmp.ne.s32.totalorder %s135, %s137
    %p141 = scmp.eq.s32.totalorder %s38, 0
    %p142 = por %p140, %p141
    %p143 = scmp.ne.s32.totalorder %s135, %s137
    %p144 = scmp.eq.s32.totalorder %s43, 1
    %p145 = por %p143, %p144
    %p146 = scmp.ne.s32.totalorder %s137, %s138
    %p147 = scmp.eq.s32.totalorder %s43, 0
    %p148 = por %p146, %p147
    %p149 = scmp.ne.s32.totalorder %s137, %s138
    %p150 = scmp.eq.s32.totalorder %s44, 1
    %p151 = por %p149, %p150
    %p153 = scmp.ne.s32.totalorder %s138, %s152
    %p154 = scmp.eq.s32.totalorder %s44, 0
    %p155 = por %p153, %p154
    %s157 = sadd.s32 %s156, 1
    %p160 = scmp.eq.s32.totalorder %s38, 1
    %p161 = scmp.ne.s32.totalorder %s156, %s158
    %p162 = scmp.eq.s32.totalorder %s38, 0
    %p163 = por %p161, %p162
    %p164 = scmp.ne.s32.totalorder %s156, %s158
    %p165 = scmp.eq.s32.totalorder %s43, 1
    %p166 = por %p164, %p165
    %p167 = scmp.ne.s32.totalorder %s158, %s159
    %p168 = scmp.eq.s32.totalorder %s43, 0
    %p169 = por %p167, %p168
    %p170 = scmp.ne.s32.totalorder %s158, %s159
    %p171 = scmp.eq.s32.totalorder %s44, 1
    %p172 = por %p170, %p171
    %p174 = scmp.ne.s32.totalorder %s159, %s173
    %p175 = scmp.eq.s32.totalorder %s44, 0
    %p176 = por %p174, %p175
    %s178 = sadd.s32 %s177, 1
    %p181 = scmp.eq.s32.totalorder %s38, 1
    %p182 = scmp.ne.s32.totalorder %s177, %s179
    %p183 = scmp.eq.s32.totalorder %s38, 0
    %p184 = por %p182, %p183
    %p185 = scmp.ne.s32.totalorder %s177, %s179
    %p186 = scmp.eq.s32.totalorder %s43, 1
    %p187 = por %p185, %p186
    %p188 = scmp.ne.s32.totalorder %s179, %s180
    %p189 = scmp.eq.s32.totalorder %s43, 0
    %p190 = por %p188, %p189
    %p191 = scmp.ne.s32.totalorder %s179, %s180
    %p192 = scmp.eq.s32.totalorder %s44, 1
    %p193 = por %p191, %p192
    %p195 = scmp.ne.s32.totalorder %s180, %s194
    %p196 = scmp.eq.s32.totalorder %s44, 0
    %p197 = por %p195, %p196
    %s199 = sadd.s32 %s198, 1
    %p202 = scmp.eq.s32.totalorder %s38, 1
    %p203 = scmp.ne.s32.totalorder %s198, %s200
    %p204 = scmp.eq.s32.totalorder %s38, 0
    %p205 = por %p203, %p204
    %p206 = scmp.ne.s32.totalorder %s198, %s200
    %p207 = scmp.eq.s32.totalorder %s43, 1
    %p208 = por %p206, %p207
    %p209 = scmp.ne.s32.totalorder %s200, %s201
    %p210 = scmp.eq.s32.totalorder %s43, 0
    %p211 = por %p209, %p210
    %p212 = scmp.ne.s32.totalorder %s200, %s201
    %p213 = scmp.eq.s32.totalorder %s44, 1
    %p214 = por %p212, %p213
    %p216 = scmp.ne.s32.totalorder %s201, %s215
    %p217 = scmp.eq.s32.totalorder %s44, 0
    %p218 = por %p216, %p217
    %s220 = sadd.s32 %s219, 1
    %p223 = scmp.eq.s32.totalorder %s38, 1
    %p224 = scmp.ne.s32.totalorder %s219, %s221
    %p225 = scmp.eq.s32.totalorder %s38, 0
    %p226 = por %p224, %p225
    %p227 = scmp.ne.s32.totalorder %s219, %s221
    %p228 = scmp.eq.s32.totalorder %s43, 1
    %p229 = por %p227, %p228
    %p230 = scmp.ne.s32.totalorder %s221, %s222
    %p231 = scmp.eq.s32.totalorder %s43, 0
    %p232 = por %p230, %p231
    %p233 = scmp.ne.s32.totalorder %s221, %s222
    %p234 = scmp.eq.s32.totalorder %s44, 1
    %p235 = por %p233, %p234
    %p237 = scmp.ne.s32.totalorder %s222, %s236
    %p238 = scmp.eq.s32.totalorder %s44, 0
    %p239 = por %p237, %p238
    %s241 = sadd.s32 %s240, 1
    %p244 = scmp.eq.s32.totalorder %s38, 1
    %p245 = scmp.ne.s32.totalorder %s240, %s242
    %p246 = scmp.eq.s32.totalorder %s38, 0
    %p247 = por %p245, %p246
    %p248 = scmp.ne.s32.totalorder %s240, %s242
    %p249 = scmp.eq.s32.totalorder %s43, 1
    %p250 = por %p248, %p249
    %p251 = scmp.ne.s32.totalorder %s242, %s243
    %p252 = scmp.eq.s32.totalorder %s43, 0
    %p253 = por %p251, %p252
    %p254 = scmp.ne.s32.totalorder %s242, %s243
    %p255 = scmp.eq.s32.totalorder %s44, 1
    %p256 = por %p254, %p255
    %p258 = scmp.ne.s32.totalorder %s243, %s257
    %p259 = scmp.eq.s32.totalorder %s44, 0
    %p260 = por %p258, %p259
    %s262 = sadd.s32 %s261, 1
    %p265 = scmp.eq.s32.totalorder %s38, 1
    %p266 = scmp.ne.s32.totalorder %s261, %s263
    %p267 = scmp.eq.s32.totalorder %s38, 0
    %p268 = por %p266, %p267
    %p269 = scmp.ne.s32.totalorder %s261, %s263
    %p270 = scmp.eq.s32.totalorder %s43, 1
    %p271 = por %p269, %p270
    %p272 = scmp.ne.s32.totalorder %s263, %s264
    %p273 = scmp.eq.s32.totalorder %s43, 0
    %p274 = por %p272, %p273
    %p275 = scmp.ne.s32.totalorder %s263, %s264
    %p276 = scmp.eq.s32.totalorder %s44, 1
    %p277 = por %p275, %p276
    %p279 = scmp.ne.s32.totalorder %s264, %s278
    %p280 = scmp.eq.s32.totalorder %s44, 0
    %p281 = por %p279, %p280
    %s283 = sadd.s32 %s282, 1
    %p286 = scmp.eq.s32.totalorder %s38, 1
    %p287 = scmp.ne.s32.totalorder %s282, %s284
    %p288 = scmp.eq.s32.totalorder %s38, 0
    %p289 = por %p287, %p288
    %p290 = scmp.ne.s32.totalorder %s282, %s284
    %p291 = scmp.eq.s32.totalorder %s43, 1
    %p292 = por %p290, %p291
    %p293 = scmp.ne.s32.totalorder %s284, %s285
    %p294 = scmp.eq.s32.totalorder %s43, 0
    %p295 = por %p293, %p294
    %p296 = scmp.ne.s32.totalorder %s284, %s285
    %p297 = scmp.eq.s32.totalorder %s44, 1
    %p298 = por %p296, %p297
    %p300 = scmp.ne.s32.totalorder %s285, %s299
    %p301 = scmp.eq.s32.totalorder %s44, 0
    %p302 = por %p300, %p301
    %s304 = sadd.s32 %s303, 1
    %p307 = scmp.eq.s32.totalorder %s38, 1
    %p308 = scmp.ne.s32.totalorder %s303, %s305
    %p309 = scmp.eq.s32.totalorder %s38, 0
    %p310 = por %p308, %p309
    %p311 = scmp.ne.s32.totalorder %s303, %s305
    %p312 = scmp.eq.s32.totalorder %s43, 1
    %p313 = por %p311, %p312
    %p314 = scmp.ne.s32.totalorder %s305, %s306
    %p315 = scmp.eq.s32.totalorder %s43, 0
    %p316 = por %p314, %p315
    %p317 = scmp.ne.s32.totalorder %s305, %s306
    %p318 = scmp.eq.s32.totalorder %s44, 1
    %p319 = por %p317, %p318
    %p321 = scmp.ne.s32.totalorder %s306, %s320
    %p322 = scmp.eq.s32.totalorder %s44, 0
    %p323 = por %p321, %p322
    %s325 = sadd.s32 %s324, 1
    %p328 = scmp.eq.s32.totalorder %s38, 1
    %p329 = scmp.ne.s32.totalorder %s324, %s326
    %p330 = scmp.eq.s32.totalorder %s38, 0
    %p331 = por %p329, %p330
    %p332 = scmp.ne.s32.totalorder %s324, %s326
    %p333 = scmp.eq.s32.totalorder %s43, 1
    %p334 = por %p332, %p333
    %p335 = scmp.ne.s32.totalorder %s326, %s327
    %p336 = scmp.eq.s32.totalorder %s43, 0
    %p337 = por %p335, %p336
    %p338 = scmp.ne.s32.totalorder %s326, %s327
    %p339 = scmp.eq.s32.totalorder %s44, 1
    %p340 = por %p338, %p339
    %p342 = scmp.ne.s32.totalorder %s327, %s341
    %p343 = scmp.eq.s32.totalorder %s44, 0
    %p344 = por %p342, %p343
    %s346 = sadd.s32 %s345, 1
    %p349 = scmp.eq.s32.totalorder %s38, 1
    %p350 = scmp.ne.s32.totalorder %s345, %s347
    %p351 = scmp.eq.s32.totalorder %s38, 0
    %p352 = por %p350, %p351
    %p353 = scmp.ne.s32.totalorder %s345, %s347
    %p354 = scmp.eq.s32.totalorder %s43, 1
    %p355 = por %p353, %p354
    %p356 = scmp.ne.s32.totalorder %s347, %s348
    %p357 = scmp.eq.s32.totalorder %s43, 0
    %p358 = por %p356, %p357
    %p359 = scmp.ne.s32.totalorder %s347, %s348
    %p360 = scmp.eq.s32.totalorder %s44, 1
    %p361 = por %p359, %p360
    %p363 = scmp.ne.s32.totalorder %s348, %s362
    %p364 = scmp.eq.s32.totalorder %s44, 0
    %p365 = por %p363, %p364
    %s367 = sadd.s32 %s366, 1
    %p370 = scmp.eq.s32.totalorder %s38, 1
    %p371 = scmp.ne.s32.totalorder %s366, %s368
    %p372 = scmp.eq.s32.totalorder %s38, 0
    %p373 = por %p371, %p372
    %p374 = scmp.ne.s32.totalorder %s366, %s368
    %p375 = scmp.eq.s32.totalorder %s43, 1
    %p376 = por %p374, %p375
    %p377 = scmp.ne.s32.totalorder %s368, %s369
    %p378 = scmp.eq.s32.totalorder %s43, 0
    %p379 = por %p377, %p378
    %p380 = scmp.ne.s32.totalorder %s368, %s369
    %p381 = scmp.eq.s32.totalorder %s44, 1
    %p382 = por %p380, %p381
    %p384 = scmp.ne.s32.totalorder %s369, %s383
    %p385 = scmp.eq.s32.totalorder %s44, 0
    %p386 = por %p384, %p385
    %s388 = sadd.s32 %s387, 1
    %p391 = scmp.eq.s32.totalorder %s38, 1
    %p392 = scmp.ne.s32.totalorder %s387, %s389
    %p393 = scmp.eq.s32.totalorder %s38, 0
    %p394 = por %p392, %p393
    %p395 = scmp.ne.s32.totalorder %s387, %s389
    %p396 = scmp.eq.s32.totalorder %s43, 1
    %p397 = por %p395, %p396
    %p398 = scmp.ne.s32.totalorder %s389, %s390
    %p399 = scmp.eq.s32.totalorder %s43, 0
    %p400 = por %p398, %p399
    %p401 = scmp.ne.s32.totalorder %s389, %s390
    %p402 = scmp.eq.s32.totalorder %s44, 1
    %p403 = por %p401, %p402
    %p405 = scmp.ne.s32.totalorder %s390, %s404
    %p406 = scmp.eq.s32.totalorder %s44, 0
    %p407 = por %p405, %p406
    %s409 = sadd.s32 %s408, 1
    %p412 = scmp.eq.s32.totalorder %s38, 1
    %p413 = scmp.ne.s32.totalorder %s408, %s410
    %p414 = scmp.eq.s32.totalorder %s38, 0
    %p415 = por %p413, %p414
    %p416 = scmp.ne.s32.totalorder %s408, %s410
    %p417 = scmp.eq.s32.totalorder %s43, 1
    %p418 = por %p416, %p417
    %p419 = scmp.ne.s32.totalorder %s410, %s411
    %p420 = scmp.eq.s32.totalorder %s43, 0
    %p421 = por %p419, %p420
    %p422 = scmp.ne.s32.totalorder %s410, %s411
    %p423 = scmp.eq.s32.totalorder %s44, 1
    %p424 = por %p422, %p423
    %p426 = scmp.ne.s32.totalorder %s411, %s425
    %p427 = scmp.eq.s32.totalorder %s44, 0
    %p428 = por %p426, %p427
    %s430 = sadd.s32 %s429, 1
    %p433 = scmp.eq.s32.totalorder %s38, 1
    %p434 = scmp.ne.s32.totalorder %s429, %s431
    %p435 = scmp.eq.s32.totalorder %s38, 0
    %p436 = por %p434, %p435
    %p437 = scmp.ne.s32.totalorder %s429, %s431
    %p438 = scmp.eq.s32.totalorder %s43, 1
    %p439 = por %p437, %p438
    %p440 = scmp.ne.s32.totalorder %s431, %s432
    %p441 = scmp.eq.s32.totalorder %s43, 0
    %p442 = por %p440, %p441
    %p443 = scmp.ne.s32.totalorder %s431, %s432
    %p444 = scmp.eq.s32.totalorder %s44, 1
    %p445 = por %p443, %p444
    %p447 = scmp.ne.s32.totalorder %s432, %s446
    %p448 = scmp.eq.s32.totalorder %s44, 0
    %p449 = por %p447, %p448
    %s451 = sadd.s32 %s450, 1
    %p454 = scmp.eq.s32.totalorder %s38, 1
    %p455 = scmp.ne.s32.totalorder %s450, %s452
    %p456 = scmp.eq.s32.totalorder %s38, 0
    %p457 = por %p455, %p456
    %p458 = scmp.ne.s32.totalorder %s450, %s452
    %p459 = scmp.eq.s32.totalorder %s43, 1
    %p460 = por %p458, %p459
    %p461 = scmp.ne.s32.totalorder %s452, %s453
    %p462 = scmp.eq.s32.totalorder %s43, 0
    %p463 = por %p461, %p462
    %p464 = scmp.ne.s32.totalorder %s452, %s453
    %p465 = scmp.eq.s32.totalorder %s44, 1
    %p466 = por %p464, %p465
    %p468 = scmp.ne.s32.totalorder %s453, %s467
    %p469 = scmp.eq.s32.totalorder %s44, 0
    %p470 = por %p468, %p469
    %s472 = sadd.s32 %s471, 1
    %p475 = scmp.eq.s32.totalorder %s38, 1
    %p476 = scmp.ne.s32.totalorder %s471, %s473
    %p477 = scmp.eq.s32.totalorder %s38, 0
    %p478 = por %p476, %p477
    %p479 = scmp.ne.s32.totalorder %s471, %s473
    %p480 = scmp.eq.s32.totalorder %s43, 1
    %p481 = por %p479, %p480
    %p482 = scmp.ne.s32.totalorder %s473, %s474
    %p483 = scmp.eq.s32.totalorder %s43, 0
    %p484 = por %p482, %p483
    %p485 = scmp.ne.s32.totalorder %s473, %s474
    %p486 = scmp.eq.s32.totalorder %s44, 1
    %p487 = por %p485, %p486
    %p489 = scmp.ne.s32.totalorder %s474, %s488
    %p490 = scmp.eq.s32.totalorder %s44, 0
    %p491 = por %p489, %p490
    %s493 = sadd.s32 %s492, 1
    %p496 = scmp.eq.s32.totalorder %s38, 1
    %p497 = scmp.ne.s32.totalorder %s492, %s494
    %p498 = scmp.eq.s32.totalorder %s38, 0
    %p499 = por %p497, %p498
    %p500 = scmp.ne.s32.totalorder %s492, %s494
    %p501 = scmp.eq.s32.totalorder %s43, 1
    %p502 = por %p500, %p501
    %p503 = scmp.ne.s32.totalorder %s494, %s495
    %p504 = scmp.eq.s32.totalorder %s43, 0
    %p505 = por %p503, %p504
    %p506 = scmp.ne.s32.totalorder %s494, %s495
    %p507 = scmp.eq.s32.totalorder %s44, 1
    %p508 = por %p506, %p507
    %p510 = scmp.ne.s32.totalorder %s495, %s509
    %p511 = scmp.eq.s32.totalorder %s44, 0
    %p512 = por %p510, %p511
    %s514 = sadd.s32 %s513, 1
    %p517 = scmp.eq.s32.totalorder %s38, 1
    %p518 = scmp.ne.s32.totalorder %s513, %s515
    %p519 = scmp.eq.s32.totalorder %s38, 0
    %p520 = por %p518, %p519
    %p521 = scmp.ne.s32.totalorder %s513, %s515
    %p522 = scmp.eq.s32.totalorder %s43, 1
    %p523 = por %p521, %p522
    %p524 = scmp.ne.s32.totalorder %s515, %s516
    %p525 = scmp.eq.s32.totalorder %s43, 0
    %p526 = por %p524, %p525
    %p527 = scmp.ne.s32.totalorder %s515, %s516
    %p528 = scmp.eq.s32.totalorder %s44, 1
    %p529 = por %p527, %p528
    %p531 = scmp.ne.s32.totalorder %s516, %s530
    %p532 = scmp.eq.s32.totalorder %s44, 0
    %p533 = por %p531, %p532
    %s535 = sadd.s32 %s534, 1
    %p538 = scmp.eq.s32.totalorder %s38, 1
    %p539 = scmp.ne.s32.totalorder %s534, %s536
    %p540 = scmp.eq.s32.totalorder %s38, 0
    %p541 = por %p539, %p540
    %p542 = scmp.ne.s32.totalorder %s534, %s536
    %p543 = scmp.eq.s32.totalorder %s43, 1
    %p544 = por %p542, %p543
    %p545 = scmp.ne.s32.totalorder %s536, %s537
    %p546 = scmp.eq.s32.totalorder %s43, 0
    %p547 = por %p545, %p546
    %p548 = scmp.ne.s32.totalorder %s536, %s537
    %p549 = scmp.eq.s32.totalorder %s44, 1
    %p550 = por %p548, %p549
    %p552 = scmp.ne.s32.totalorder %s537, %s551
    %p553 = scmp.eq.s32.totalorder %s44, 0
    %p554 = por %p552, %p553
    %s555 = ssub.s32 %s38, %s45
    %p556 = scmp.eq.s32.totalorder %s555, 0
    %s558 = sadd.s32 %s557, 1
    %s559 = scalar_select %p556, %s557, %s558
    %p562 = pneg %p556
    %p563 = scmp.eq.s32.totalorder %s38, 1
    %p564 = por %p562, %p563
    %p565 = scmp.ne.s32.totalorder %s557, %s560
    %p566 = scmp.eq.s32.totalorder %s38, 0
    %p567 = por %p565, %p566
    %p568 = scmp.ne.s32.totalorder %s557, %s560
    %p569 = scmp.eq.s32.totalorder %s43, 1
    %p570 = por %p568, %p569
    %p571 = scmp.ne.s32.totalorder %s560, %s561
    %p572 = scmp.eq.s32.totalorder %s43, 0
    %p573 = por %p571, %p572
    %p574 = scmp.ne.s32.totalorder %s560, %s561
    %p575 = scmp.eq.s32.totalorder %s44, 1
    %p576 = por %p574, %p575
    %p578 = scmp.ne.s32.totalorder %s561, %s577
    %p579 = scmp.eq.s32.totalorder %s44, 0
    %p580 = por %p578, %p579
    %p581 = scmp.le.s32.totalorder 1, %s38
    %p582 = scmp.lt.s32.totalorder %s38, 3
    %p583 = pnand %p581, %p582
    %p584 = pneg %p583
    // Predicated region
    $region9: #{unet3_forward_nchw.1} parent=5 // pred_check
      _
    $region10: #{unet3_forward_nchw.1} parent=5 // pred_check_branch
      %586 = sbr.rel (%p583) target = $region12
    $region11: #{unet3_forward_nchw.1} parent=5 // pred_region
      %s587 = ssub.s32 %s38, 1
      // Predicated region
      $region13: #{unet3_forward_nchw.1} parent=11 // pred_check
        %p588 = pneg %p85
      $region14: #{unet3_forward_nchw.1} parent=11 // pred_check_branch
        %590 = sbr.rel (%p588) target = $region16
      $region15: #{unet3_forward_nchw.1} parent=11 // pred_region
        _
      $region16: #{unet3_forward_nchw.1} parent=11 // pred_fallthru
        _
      // Predicated region
      $region17: #{unet3_forward_nchw.1} parent=11 // pred_check
        %p591 = pneg %p106
      $region18: #{unet3_forward_nchw.1} parent=11 // pred_check_branch
        %593 = sbr.rel (%p591) target = $region20
      $region19: #{unet3_forward_nchw.1} parent=11 // pred_region
        _
      $region20: #{unet3_forward_nchw.1} parent=11 // pred_fallthru
        _
      // Predicated region
      $region21: #{unet3_forward_nchw.1} parent=11 // pred_check
        %p594 = pneg %p127
      $region22: #{unet3_forward_nchw.1} parent=11 // pred_check_branch
        %596 = sbr.rel (%p594) target = $region24
      $region23: #{unet3_forward_nchw.1} parent=11 // pred_region
        _
      $region24: #{unet3_forward_nchw.1} parent=11 // pred_fallthru
        _
      // Predicated region
      $region25: #{unet3_forward_nchw.1} parent=11 // pred_check
        %p597 = pneg %p148
      $region26: #{unet3_forward_nchw.1} parent=11 // pred_check_branch
        %599 = sbr.rel (%p597) target = $region28
      $region27: #{unet3_forward_nchw.1} parent=11 // pred_region
        _
      $region28: #{unet3_forward_nchw.1} parent=11 // pred_fallthru
        _
      // Predicated region
      $region29: #{unet3_forward_nchw.1} parent=11 // pred_check
        %p600 = pneg %p169
      $region30: #{unet3_forward_nchw.1} parent=11 // pred_check_branch
        %602 = sbr.rel (%p600) target = $region32
      $region31: #{unet3_forward_nchw.1} parent=11 // pred_region
        _
      $region32: #{unet3_forward_nchw.1} parent=11 // pred_fallthru
        _
      // Predicated region
      $region33: #{unet3_forward_nchw.1} parent=11 // pred_check
        %p603 = pneg %p190
      $region34: #{unet3_forward_nchw.1} parent=11 // pred_check_branch
        %605 = sbr.rel (%p603) target = $region36
      $region35: #{unet3_forward_nchw.1} parent=11 // pred_region
        _
      $region36: #{unet3_forward_nchw.1} parent=11 // pred_fallthru
        _
      // Predicated region
      $region37: #{unet3_forward_nchw.1} parent=11 // pred_check
        %p606 = pneg %p211
      $region38: #{unet3_forward_nchw.1} parent=11 // pred_check_branch
        %608 = sbr.rel (%p606) target = $region40
      $region39: #{unet3_forward_nchw.1} parent=11 // pred_region
        _
      $region40: #{unet3_forward_nchw.1} parent=11 // pred_fallthru
        _
      // Predicated region
      $region41: #{unet3_forward_nchw.1} parent=11 // pred_check
        %p609 = pneg %p232
      $region42: #{unet3_forward_nchw.1} parent=11 // pred_check_branch
        %611 = sbr.rel (%p609) target = $region44
      $region43: #{unet3_forward_nchw.1} parent=11 // pred_region
        _
      $region44: #{unet3_forward_nchw.1} parent=11 // pred_fallthru
        _
      // Predicated region
      $region45: #{unet3_forward_nchw.1} parent=11 // pred_check
        %p612 = pneg %p253
      $region46: #{unet3_forward_nchw.1} parent=11 // pred_check_branch
        %614 = sbr.rel (%p612) target = $region48
      $region47: #{unet3_forward_nchw.1} parent=11 // pred_region
        _
      $region48: #{unet3_forward_nchw.1} parent=11 // pred_fallthru
        _
      // Predicated region
      $region49: #{unet3_forward_nchw.1} parent=11 // pred_check
        %p615 = pneg %p274
      $region50: #{unet3_forward_nchw.1} parent=11 // pred_check_branch
        %617 = sbr.rel (%p615) target = $region52
      $region51: #{unet3_forward_nchw.1} parent=11 // pred_region
        _
      $region52: #{unet3_forward_nchw.1} parent=11 // pred_fallthru
        _
      // Predicated region
      $region53: #{unet3_forward_nchw.1} parent=11 // pred_check
        %p618 = pneg %p295
      $region54: #{unet3_forward_nchw.1} parent=11 // pred_check_branch
        %620 = sbr.rel (%p618) target = $region56
      $region55: #{unet3_forward_nchw.1} parent=11 // pred_region
        _
      $region56: #{unet3_forward_nchw.1} parent=11 // pred_fallthru
        _
      // Predicated region
      $region57: #{unet3_forward_nchw.1} parent=11 // pred_check
        %p621 = pneg %p316
      $region58: #{unet3_forward_nchw.1} parent=11 // pred_check_branch
        %623 = sbr.rel (%p621) target = $region60
      $region59: #{unet3_forward_nchw.1} parent=11 // pred_region
        _
      $region60: #{unet3_forward_nchw.1} parent=11 // pred_fallthru
        _
      // Predicated region
      $region61: #{unet3_forward_nchw.1} parent=11 // pred_check
        %p624 = pneg %p337
      $region62: #{unet3_forward_nchw.1} parent=11 // pred_check_branch
        %626 = sbr.rel (%p624) target = $region64
      $region63: #{unet3_forward_nchw.1} parent=11 // pred_region
        _
      $region64: #{unet3_forward_nchw.1} parent=11 // pred_fallthru
        _
      // Predicated region
      $region65: #{unet3_forward_nchw.1} parent=11 // pred_check
        %p627 = pneg %p358
      $region66: #{unet3_forward_nchw.1} parent=11 // pred_check_branch
        %629 = sbr.rel (%p627) target = $region68
      $region67: #{unet3_forward_nchw.1} parent=11 // pred_region
        _
      $region68: #{unet3_forward_nchw.1} parent=11 // pred_fallthru
        _
      // Predicated region
      $region69: #{unet3_forward_nchw.1} parent=11 // pred_check
        %p630 = pneg %p379
      $region70: #{unet3_forward_nchw.1} parent=11 // pred_check_branch
        %632 = sbr.rel (%p630) target = $region72
      $region71: #{unet3_forward_nchw.1} parent=11 // pred_region
        _
      $region72: #{unet3_forward_nchw.1} parent=11 // pred_fallthru
        _
      // Predicated region
      $region73: #{unet3_forward_nchw.1} parent=11 // pred_check
        %p633 = pneg %p400
      $region74: #{unet3_forward_nchw.1} parent=11 // pred_check_branch
        %635 = sbr.rel (%p633) target = $region76
      $region75: #{unet3_forward_nchw.1} parent=11 // pred_region
        _
      $region76: #{unet3_forward_nchw.1} parent=11 // pred_fallthru
        _
      // Predicated region
      $region77: #{unet3_forward_nchw.1} parent=11 // pred_check
        %p636 = pneg %p421
      $region78: #{unet3_forward_nchw.1} parent=11 // pred_check_branch
        %638 = sbr.rel (%p636) target = $region80
      $region79: #{unet3_forward_nchw.1} parent=11 // pred_region
        _
      $region80: #{unet3_forward_nchw.1} parent=11 // pred_fallthru
        _
      // Predicated region
      $region81: #{unet3_forward_nchw.1} parent=11 // pred_check
        %p639 = pneg %p442
      $region82: #{unet3_forward_nchw.1} parent=11 // pred_check_branch
        %641 = sbr.rel (%p639) target = $region84
      $region83: #{unet3_forward_nchw.1} parent=11 // pred_region
        _
      $region84: #{unet3_forward_nchw.1} parent=11 // pred_fallthru
        _
      // Predicated region
      $region85: #{unet3_forward_nchw.1} parent=11 // pred_check
        %p642 = pneg %p463
      $region86: #{unet3_forward_nchw.1} parent=11 // pred_check_branch
        %644 = sbr.rel (%p642) target = $region88
      $region87: #{unet3_forward_nchw.1} parent=11 // pred_region
        _
      $region88: #{unet3_forward_nchw.1} parent=11 // pred_fallthru
        _
      // Predicated region
      $region89: #{unet3_forward_nchw.1} parent=11 // pred_check
        %p645 = pneg %p484
      $region90: #{unet3_forward_nchw.1} parent=11 // pred_check_branch
        %647 = sbr.rel (%p645) target = $region92
      $region91: #{unet3_forward_nchw.1} parent=11 // pred_region
        _
      $region92: #{unet3_forward_nchw.1} parent=11 // pred_fallthru
        _
      // Predicated region
      $region93: #{unet3_forward_nchw.1} parent=11 // pred_check
        %p648 = pneg %p505
      $region94: #{unet3_forward_nchw.1} parent=11 // pred_check_branch
        %650 = sbr.rel (%p648) target = $region96
      $region95: #{unet3_forward_nchw.1} parent=11 // pred_region
        _
      $region96: #{unet3_forward_nchw.1} parent=11 // pred_fallthru
        _
      // Predicated region
      $region97: #{unet3_forward_nchw.1} parent=11 // pred_check
        %p651 = pneg %p526
      $region98: #{unet3_forward_nchw.1} parent=11 // pred_check_branch
        %653 = sbr.rel (%p651) target = $region100
      $region99: #{unet3_forward_nchw.1} parent=11 // pred_region
        _
      $region100: #{unet3_forward_nchw.1} parent=11 // pred_fallthru
        _
      // Predicated region
      $region101: #{unet3_forward_nchw.1} parent=11 // pred_check
        %p654 = pneg %p547
      $region102: #{unet3_forward_nchw.1} parent=11 // pred_check_branch
        %656 = sbr.rel (%p654) target = $region104
      $region103: #{unet3_forward_nchw.1} parent=11 // pred_region
        _
      $region104: #{unet3_forward_nchw.1} parent=11 // pred_fallthru
        _
    $region12: #{unet3_forward_nchw.1} parent=5 // pred_fallthru
      _
    %p657 = scmp.lt.s32.totalorder %s38, 2
    // Predicated region
    $region105: #{unet3_forward_nchw.1} parent=5 // pred_check
      %p658 = pneg %p657
    $region106: #{unet3_forward_nchw.1} parent=5 // pred_check_branch
      %660 = sbr.rel (%p658) target = $region108
    $region107: #{unet3_forward_nchw.1} parent=5 // pred_region
      // Predicated region
      $region109: #{unet3_forward_nchw.1} parent=107 // pred_check
        %p661 = pneg %p58
      $region110: #{unet3_forward_nchw.1} parent=107 // pred_check_branch
        %663 = sbr.rel (%p661) target = $region112
      $region111: #{unet3_forward_nchw.1} parent=107 // pred_region
        %p664 = scmp.lt.s32.totalorder %s38, 1
        %s665 = scalar_select %p664, %s38, 1
        %s666 = smul.addr %s665, 32
        %s667 = smul.addr %s666, 8
        %s668 = scalar_lea.vmem %s0, %s667
      $region112: #{unet3_forward_nchw.1} parent=107 // pred_fallthru
        _
    $region108: #{unet3_forward_nchw.1} parent=5 // pred_fallthru
      _
    %p669 = scmp.le.s32.totalorder 1, %s38
    %p670 = scmp.lt.s32.totalorder %s38, 3
    %p671 = pnand %p669, %p670
    %p672 = pneg %p671
    // Predicated region
    $region113: #{unet3_forward_nchw.1} parent=5 // pred_check
      _
    $region114: #{unet3_forward_nchw.1} parent=5 // pred_check_branch
      %674 = sbr.rel (%p671) target = $region116
    $region115: #{unet3_forward_nchw.1} parent=5 // pred_region
      %s675 = ssub.s32 %s38, 1
      %p676 = scmp.lt.s32.totalorder %s43, 1
      %s677 = scalar_select %p676, %s43, 1
      %s678 = smul.addr %s677, 32
      %s679 = smul.addr %s678, 8
      %s680 = scalar_lea.vmem %s0, %s679
      %p681 = pneg %p64
      %p682 = pneg %p61
      %p683 = pneg %p85
      %p684 = pneg %p82
      %p685 = pneg %p106
      %p686 = pneg %p103
      %p687 = pneg %p127
      %p688 = pneg %p124
      %p689 = pneg %p148
      %p690 = pneg %p145
      %p691 = pneg %p169
      %p692 = pneg %p166
      %p693 = pneg %p190
      %p694 = pneg %p187
      %p695 = pneg %p211
      %p696 = pneg %p208
      %p697 = pneg %p232
      %p698 = pneg %p229
      %p699 = pneg %p253
      %p700 = pneg %p250
      %p701 = pneg %p274
      %p702 = pneg %p271
      %p703 = pneg %p295
      %p704 = pneg %p292
      %p705 = pneg %p316
      %p706 = pneg %p313
      %p707 = pneg %p337
      %p708 = pneg %p334
      %p709 = pneg %p358
      %p710 = pneg %p355
      %p711 = pneg %p379
      %p712 = pneg %p376
      %p713 = pneg %p400
      %p714 = pneg %p397
      %p715 = pneg %p421
      %p716 = pneg %p418
      %p717 = pneg %p442
      %p718 = pneg %p439
      %p719 = pneg %p463
      %p720 = pneg %p460
      %p721 = pneg %p484
      %p722 = pneg %p481
      %p723 = pneg %p505
      %p724 = pneg %p502
      %p725 = pneg %p526
      %p726 = pneg %p523
      %p727 = pneg %p547
      %p728 = pneg %p544
      %p729 = pneg %p573
      %p730 = pneg %p570
      %p731 = scmp.lt.s32.totalorder %s43, 1
      %s732 = scalar_select %p731, %s43, 1
      %s733 = smul.addr %s732, 2
      %s734 = smul.addr %s733, 4
      %s735 = scalar_lea.vmem %s24, %s734
      %p736 = scmp.lt.s32.totalorder %s43, 1
      %s737 = scalar_select %p736, %s43, 1
      %s738 = smul.addr %s737, 32
      %s739 = smul.addr %s738, 8
      %s740 = scalar_lea.vmem %s0, %s739
      %p741 = scmp.lt.s32.totalorder %s43, 1
      %s742 = scalar_select %p741, %s43, 1
      %s743 = smul.addr %s742, 2
      %s744 = smul.addr %s743, 4
      %s745 = scalar_lea.vmem %s24, %s744
      %v747 = vld [vmem:[%s740] sm:$0xff]
      %v748 = vld [vmem:[%s740 + $0x8] sm:$0xff]
      %v749 = vld [vmem:[%s740 + $0x10] sm:$0xff]
      %v750 = vld [vmem:[%s740 + $0x18] sm:$0xff]
      %v751 = vld [vmem:[%s740 + $0x20] sm:$0xff]
      %v752 = vld [vmem:[%s740 + $0x28] sm:$0xff]
      %v753 = vld [vmem:[%s740 + $0x30] sm:$0xff]
      %v754 = vld [vmem:[%s740 + $0x38] sm:$0xff]
      %v755 = vld [vmem:[%s740 + $0x40] sm:$0xff]
      %v756 = vld [vmem:[%s740 + $0x48] sm:$0xff]
      %v757 = vld [vmem:[%s740 + $0x50] sm:$0xff]
      %v758 = vld [vmem:[%s740 + $0x58] sm:$0xff]
      %v759 = vld [vmem:[%s740 + $0x60] sm:$0xff]
      %v760 = vld [vmem:[%s740 + $0x68] sm:$0xff]
      %v761 = vld [vmem:[%s740 + $0x70] sm:$0xff]
      %v762 = vld [vmem:[%s740 + $0x78] sm:$0xff]
      %v763 = vld [vmem:[%s740 + $0x80] sm:$0xff]
      %v764 = vld [vmem:[%s740 + $0x88] sm:$0xff]
      %v765 = vld [vmem:[%s740 + $0x90] sm:$0xff]
      %v766 = vld [vmem:[%s740 + $0x98] sm:$0xff]
      %v767 = vld [vmem:[%s740 + $0xa0] sm:$0xff]
      %v768 = vld [vmem:[%s740 + $0xa8] sm:$0xff]
      %v769 = vld [vmem:[%s740 + $0xb0] sm:$0xff]
      %v770 = vld [vmem:[%s740 + $0xb8] sm:$0xff]
      %v771 = vld [vmem:[%s740 + $0xc0] sm:$0xff]
      %v772 = vld [vmem:[%s740 + $0xc8] sm:$0xff]
      %v773 = vld [vmem:[%s740 + $0xd0] sm:$0xff]
      %v774 = vld [vmem:[%s740 + $0xd8] sm:$0xff]
      %v775 = vld [vmem:[%s740 + $0xe0] sm:$0xff]
      %v776 = vld [vmem:[%s740 + $0xe8] sm:$0xff]
      %v777 = vld [vmem:[%s740 + $0xf0] sm:$0xff]
      %v778 = vld [vmem:[%s740 + $0xf8] sm:$0xff]
      %811 = vrot.lane.b32.xlu0 %v747, 3
      %v812 = vpop.permute.xlu0 %811
      %813 = vrot.lane.b32.xlu0 %v748, 3
      %v814 = vpop.permute.xlu0 %813
      %815 = vrot.lane.b32.xlu0 %v749, 3
      %v816 = vpop.permute.xlu0 %815
      %817 = vrot.lane.b32.xlu0 %v750, 3
      %v818 = vpop.permute.xlu0 %817
      %819 = vrot.lane.b32.xlu0 %v751, 3
      %v820 = vpop.permute.xlu0 %819
      %821 = vrot.lane.b32.xlu0 %v752, 3
      %v822 = vpop.permute.xlu0 %821
      %823 = vrot.lane.b32.xlu0 %v753, 3
      %v824 = vpop.permute.xlu0 %823
      %825 = vrot.lane.b32.xlu0 %v754, 3
      %v826 = vpop.permute.xlu0 %825
      %827 = vrot.lane.b32.xlu0 %v755, 3
      %v828 = vpop.permute.xlu0 %827
      %829 = vrot.lane.b32.xlu0 %v756, 3
      %v830 = vpop.permute.xlu0 %829
      %831 = vrot.lane.b32.xlu0 %v757, 3
      %v832 = vpop.permute.xlu0 %831
      %833 = vrot.lane.b32.xlu0 %v758, 3
      %v834 = vpop.permute.xlu0 %833
      %835 = vrot.lane.b32.xlu0 %v759, 3
      %v836 = vpop.permute.xlu0 %835
      %837 = vrot.lane.b32.xlu0 %v760, 3
      %v838 = vpop.permute.xlu0 %837
      %839 = vrot.lane.b32.xlu0 %v761, 3
      %v840 = vpop.permute.xlu0 %839
      %841 = vrot.lane.b32.xlu0 %v762, 3
      %v842 = vpop.permute.xlu0 %841
      %843 = vrot.lane.b32.xlu0 %v763, 3
      %v844 = vpop.permute.xlu0 %843
      %845 = vrot.lane.b32.xlu0 %v764, 3
      %v846 = vpop.permute.xlu0 %845
      %847 = vrot.lane.b32.xlu0 %v765, 3
      %v848 = vpop.permute.xlu0 %847
      %849 = vrot.lane.b32.xlu0 %v766, 3
      %v850 = vpop.permute.xlu0 %849
      %851 = vrot.lane.b32.xlu0 %v767, 3
      %v852 = vpop.permute.xlu0 %851
      %853 = vrot.lane.b32.xlu0 %v768, 3
      %v854 = vpop.permute.xlu0 %853
      %855 = vrot.lane.b32.xlu0 %v769, 3
      %v856 = vpop.permute.xlu0 %855
      %857 = vrot.lane.b32.xlu0 %v770, 3
      %v858 = vpop.permute.xlu0 %857
      %859 = vrot.lane.b32.xlu0 %v771, 3
      %v860 = vpop.permute.xlu0 %859
      %861 = vrot.lane.b32.xlu0 %v772, 3
      %v862 = vpop.permute.xlu0 %861
      %863 = vrot.lane.b32.xlu0 %v773, 3
      %v864 = vpop.permute.xlu0 %863
      %865 = vrot.lane.b32.xlu0 %v774, 3
      %v866 = vpop.permute.xlu0 %865
      %867 = vrot.lane.b32.xlu0 %v775, 3
      %v868 = vpop.permute.xlu0 %867
      %869 = vrot.lane.b32.xlu0 %v776, 3
      %v870 = vpop.permute.xlu0 %869
      %871 = vrot.lane.b32.xlu0 %v777, 3
      %v872 = vpop.permute.xlu0 %871
      %873 = vrot.lane.b32.xlu0 %v778, 3
      %v874 = vpop.permute.xlu0 %873
      %908 = vrot.lane.b32.xlu0 %v749, 6
      %v909 = vpop.permute.xlu0 %908
      %910 = vrot.lane.b32.xlu0 %v750, 6
      %v911 = vpop.permute.xlu0 %910
      %912 = vrot.lane.b32.xlu0 %v751, 6
      %v913 = vpop.permute.xlu0 %912
      %914 = vrot.lane.b32.xlu0 %v752, 6
      %v915 = vpop.permute.xlu0 %914
      %916 = vrot.lane.b32.xlu0 %v753, 6
      %v917 = vpop.permute.xlu0 %916
      %918 = vrot.lane.b32.xlu0 %v754, 6
      %v919 = vpop.permute.xlu0 %918
      %920 = vrot.lane.b32.xlu0 %v755, 6
      %v921 = vpop.permute.xlu0 %920
      %922 = vrot.lane.b32.xlu0 %v756, 6
      %v923 = vpop.permute.xlu0 %922
      %924 = vrot.lane.b32.xlu0 %v757, 6
      %v925 = vpop.permute.xlu0 %924
      %926 = vrot.lane.b32.xlu0 %v758, 6
      %v927 = vpop.permute.xlu0 %926
      %928 = vrot.lane.b32.xlu0 %v759, 6
      %v929 = vpop.permute.xlu0 %928
      %930 = vrot.lane.b32.xlu0 %v760, 6
      %v931 = vpop.permute.xlu0 %930
      %932 = vrot.lane.b32.xlu0 %v761, 6
      %v933 = vpop.permute.xlu0 %932
      %934 = vrot.lane.b32.xlu0 %v762, 6
      %v935 = vpop.permute.xlu0 %934
      %936 = vrot.lane.b32.xlu0 %v763, 6
      %v937 = vpop.permute.xlu0 %936
      %938 = vrot.lane.b32.xlu0 %v764, 6
      %v939 = vpop.permute.xlu0 %938
      %940 = vrot.lane.b32.xlu0 %v765, 6
      %v941 = vpop.permute.xlu0 %940
      %942 = vrot.lane.b32.xlu0 %v766, 6
      %v943 = vpop.permute.xlu0 %942
      %944 = vrot.lane.b32.xlu0 %v767, 6
      %v945 = vpop.permute.xlu0 %944
      %946 = vrot.lane.b32.xlu0 %v768, 6
      %v947 = vpop.permute.xlu0 %946
      %948 = vrot.lane.b32.xlu0 %v769, 6
      %v949 = vpop.permute.xlu0 %948
      %950 = vrot.lane.b32.xlu0 %v770, 6
      %v951 = vpop.permute.xlu0 %950
      %952 = vrot.lane.b32.xlu0 %v771, 6
      %v953 = vpop.permute.xlu0 %952
      %954 = vrot.lane.b32.xlu0 %v772, 6
      %v955 = vpop.permute.xlu0 %954
      %956 = vrot.lane.b32.xlu0 %v773, 6
      %v957 = vpop.permute.xlu0 %956
      %958 = vrot.lane.b32.xlu0 %v774, 6
      %v959 = vpop.permute.xlu0 %958
      %960 = vrot.lane.b32.xlu0 %v775, 6
      %v961 = vpop.permute.xlu0 %960
      %962 = vrot.lane.b32.xlu0 %v776, 6
      %v963 = vpop.permute.xlu0 %962
      %964 = vrot.lane.b32.xlu0 %v777, 6
      %v965 = vpop.permute.xlu0 %964
      %966 = vrot.lane.b32.xlu0 %v778, 6
      %v967 = vpop.permute.xlu0 %966
      %968 = vrot.lane.b32.xlu0 0.0, 6
      %v969 = vpop.permute.xlu0 %968
      %vm1001 = vcmask 23552
      %v1002 = vsel %vm1001, 0.0, %v812
      %v1003 = vsel %vm1001, 0.0, %v814
      %v1004 = vsel %vm1001, %v747, %v816
      %v1005 = vsel %vm1001, %v748, %v818
      %v1006 = vsel %vm1001, %v749, %v820
      %v1007 = vsel %vm1001, %v750, %v822
      %v1008 = vsel %vm1001, %v751, %v824
      %v1009 = vsel %vm1001, %v752, %v826
      %v1010 = vsel %vm1001, %v753, %v828
      %v1011 = vsel %vm1001, %v754, %v830
      %v1012 = vsel %vm1001, %v755, %v832
      %v1013 = vsel %vm1001, %v756, %v834
      %v1014 = vsel %vm1001, %v757, %v836
      %v1015 = vsel %vm1001, %v758, %v838
      %v1016 = vsel %vm1001, %v759, %v840
      %v1017 = vsel %vm1001, %v760, %v842
      %v1018 = vsel %vm1001, %v761, %v844
      %v1019 = vsel %vm1001, %v762, %v846
      %v1020 = vsel %vm1001, %v763, %v848
      %v1021 = vsel %vm1001, %v764, %v850
      %v1022 = vsel %vm1001, %v765, %v852
      %v1023 = vsel %vm1001, %v766, %v854
      %v1024 = vsel %vm1001, %v767, %v856
      %v1025 = vsel %vm1001, %v768, %v858
      %v1026 = vsel %vm1001, %v769, %v860
      %v1027 = vsel %vm1001, %v770, %v862
      %v1028 = vsel %vm1001, %v771, %v864
      %v1029 = vsel %vm1001, %v772, %v866
      %v1030 = vsel %vm1001, %v773, %v868
      %v1031 = vsel %vm1001, %v774, %v870
      %v1032 = vsel %vm1001, %v775, %v872
      %v1033 = vsel %vm1001, %v776, %v874
      %vm1034 = vcmask 48128
      %v1035 = vsel %vm1034, %v1002, %v909
      %v1036 = vsel %vm1034, %v1003, %v911
      %v1037 = vsel %vm1034, %v1004, %v913
      %v1038 = vsel %vm1034, %v1005, %v915
      %v1039 = vsel %vm1034, %v1006, %v917
      %v1040 = vsel %vm1034, %v1007, %v919
      %v1041 = vsel %vm1034, %v1008, %v921
      %v1042 = vsel %vm1034, %v1009, %v923
      %v1043 = vsel %vm1034, %v1010, %v925
      %v1044 = vsel %vm1034, %v1011, %v927
      %v1045 = vsel %vm1034, %v1012, %v929
      %v1046 = vsel %vm1034, %v1013, %v931
      %v1047 = vsel %vm1034, %v1014, %v933
      %v1048 = vsel %vm1034, %v1015, %v935
      %v1049 = vsel %vm1034, %v1016, %v937
      %v1050 = vsel %vm1034, %v1017, %v939
      %v1051 = vsel %vm1034, %v1018, %v941
      %v1052 = vsel %vm1034, %v1019, %v943
      %v1053 = vsel %vm1034, %v1020, %v945
      %v1054 = vsel %vm1034, %v1021, %v947
      %v1055 = vsel %vm1034, %v1022, %v949
      %v1056 = vsel %vm1034, %v1023, %v951
      %v1057 = vsel %vm1034, %v1024, %v953
      %v1058 = vsel %vm1034, %v1025, %v955
      %v1059 = vsel %vm1034, %v1026, %v957
      %v1060 = vsel %vm1034, %v1027, %v959
      %v1061 = vsel %vm1034, %v1028, %v961
      %v1062 = vsel %vm1034, %v1029, %v963
      %v1063 = vsel %vm1034, %v1030, %v965
      %v1064 = vsel %vm1034, %v1031, %v967
      %v1065 = vsel %vm1034, %v1032, %v969
      %v1066 = vsel %vm1034, %v1033, %v969
      %vm1099 = vcmask 1040384
      %v1100 = vrot.slane %v1035, 7
      %v1101 = vrot.slane %v1036, 7
      %v1102 = vsel %vm1099, %v1100, %v1101
      %v1103 = vrot.slane %v1037, 7
      %v1104 = vrot.slane %v1038, 7
      %v1105 = vsel %vm1099, %v1103, %v1104
      %v1106 = vrot.slane %v1039, 7
      %v1107 = vrot.slane %v1040, 7
      %v1108 = vsel %vm1099, %v1106, %v1107
      %v1109 = vrot.slane %v1041, 7
      %v1110 = vrot.slane %v1042, 7
      %v1111 = vsel %vm1099, %v1109, %v1110
      %v1112 = vrot.slane %v1043, 7
      %v1113 = vrot.slane %v1044, 7
      %v1114 = vsel %vm1099, %v1112, %v1113
      %v1115 = vrot.slane %v1045, 7
      %v1116 = vrot.slane %v1046, 7
      %v1117 = vsel %vm1099, %v1115, %v1116
      %v1118 = vrot.slane %v1047, 7
      %v1119 = vrot.slane %v1048, 7
      %v1120 = vsel %vm1099, %v1118, %v1119
      %v1121 = vrot.slane %v1049, 7
      %v1122 = vrot.slane %v1050, 7
      %v1123 = vsel %vm1099, %v1121, %v1122
      %v1124 = vrot.slane %v1051, 7
      %v1125 = vrot.slane %v1052, 7
      %v1126 = vsel %vm1099, %v1124, %v1125
      %v1127 = vrot.slane %v1053, 7
      %v1128 = vrot.slane %v1054, 7
      %v1129 = vsel %vm1099, %v1127, %v1128
      %v1130 = vrot.slane %v1055, 7
      %v1131 = vrot.slane %v1056, 7
      %v1132 = vsel %vm1099, %v1130, %v1131
      %v1133 = vrot.slane %v1057, 7
      %v1134 = vrot.slane %v1058, 7
      %v1135 = vsel %vm1099, %v1133, %v1134
      %v1136 = vrot.slane %v1059, 7
      %v1137 = vrot.slane %v1060, 7
      %v1138 = vsel %vm1099, %v1136, %v1137
      %v1139 = vrot.slane %v1061, 7
      %v1140 = vrot.slane %v1062, 7
      %v1141 = vsel %vm1099, %v1139, %v1140
      %v1142 = vrot.slane %v1063, 7
      %v1143 = vrot.slane %v1064, 7
      %v1144 = vsel %vm1099, %v1142, %v1143
      %v1145 = vrot.slane %v1065, 7
      %v1146 = vrot.slane %v1066, 7
      %v1147 = vsel %vm1099, %v1145, %v1146
      %v1196 = vsel %vm1099, 0.0, %v1100
      %v1197 = vsel %vm1099, 0.0, %v1103
      %v1198 = vsel %vm1099, 0.0, %v1106
      %v1199 = vsel %vm1099, 0.0, %v1109
      %v1200 = vsel %vm1099, 0.0, %v1112
      %v1201 = vsel %vm1099, 0.0, %v1115
      %v1202 = vsel %vm1099, 0.0, %v1118
      %v1203 = vsel %vm1099, 0.0, %v1121
      %v1204 = vsel %vm1099, 0.0, %v1124
      %v1205 = vsel %vm1099, 0.0, %v1127
      %v1206 = vsel %vm1099, 0.0, %v1130
      %v1207 = vsel %vm1099, 0.0, %v1133
      %v1208 = vsel %vm1099, 0.0, %v1136
      %v1209 = vsel %vm1099, 0.0, %v1139
      %v1210 = vsel %vm1099, 0.0, %v1142
      %v1211 = vsel %vm1099, 0.0, %v1145
      %v1212 = vsel %vm1099, %v1101, 0.0
      %v1213 = vsel %vm1099, %v1104, 0.0
      %v1214 = vsel %vm1099, %v1107, 0.0
      %v1215 = vsel %vm1099, %v1110, 0.0
      %v1216 = vsel %vm1099, %v1113, 0.0
      %v1217 = vsel %vm1099, %v1116, 0.0
      %v1218 = vsel %vm1099, %v1119, 0.0
      %v1219 = vsel %vm1099, %v1122, 0.0
      %v1220 = vsel %vm1099, %v1125, 0.0
      %v1221 = vsel %vm1099, %v1128, 0.0
      %v1222 = vsel %vm1099, %v1131, 0.0
      %v1223 = vsel %vm1099, %v1134, 0.0
      %v1224 = vsel %vm1099, %v1137, 0.0
      %v1225 = vsel %vm1099, %v1140, 0.0
      %v1226 = vsel %vm1099, %v1143, 0.0
      %v1227 = vsel %vm1099, %v1146, 0.0
      %vm1260 = vcmask 1046528
      %v1261 = vrot.slane %v1196, 1
      %v1262 = vrot.slane %v1102, 1
      %v1263 = vsel %vm1260, %v1261, %v1262
      %v1264 = vrot.slane %v1212, 1
      %v1265 = vsel %vm1260, %v1262, %v1264
      %v1266 = vrot.slane %v1197, 1
      %v1267 = vrot.slane %v1105, 1
      %v1268 = vsel %vm1260, %v1266, %v1267
      %v1269 = vrot.slane %v1213, 1
      %v1270 = vsel %vm1260, %v1267, %v1269
      %v1271 = vrot.slane %v1198, 1
      %v1272 = vrot.slane %v1108, 1
      %v1273 = vsel %vm1260, %v1271, %v1272
      %v1274 = vrot.slane %v1214, 1
      %v1275 = vsel %vm1260, %v1272, %v1274
      %v1276 = vrot.slane %v1199, 1
      %v1277 = vrot.slane %v1111, 1
      %v1278 = vsel %vm1260, %v1276, %v1277
      %v1279 = vrot.slane %v1215, 1
      %v1280 = vsel %vm1260, %v1277, %v1279
      %v1281 = vrot.slane %v1200, 1
      %v1282 = vrot.slane %v1114, 1
      %v1283 = vsel %vm1260, %v1281, %v1282
      %v1284 = vrot.slane %v1216, 1
      %v1285 = vsel %vm1260, %v1282, %v1284
      %v1286 = vrot.slane %v1201, 1
      %v1287 = vrot.slane %v1117, 1
      %v1288 = vsel %vm1260, %v1286, %v1287
      %v1289 = vrot.slane %v1217, 1
      %v1290 = vsel %vm1260, %v1287, %v1289
      %v1291 = vrot.slane %v1202, 1
      %v1292 = vrot.slane %v1120, 1
      %v1293 = vsel %vm1260, %v1291, %v1292
      %v1294 = vrot.slane %v1218, 1
      %v1295 = vsel %vm1260, %v1292, %v1294
      %v1296 = vrot.slane %v1203, 1
      %v1297 = vrot.slane %v1123, 1
      %v1298 = vsel %vm1260, %v1296, %v1297
      %v1299 = vrot.slane %v1219, 1
      %v1300 = vsel %vm1260, %v1297, %v1299
      %v1301 = vrot.slane %v1204, 1
      %v1302 = vrot.slane %v1126, 1
      %v1303 = vsel %vm1260, %v1301, %v1302
      %v1304 = vrot.slane %v1220, 1
      %v1305 = vsel %vm1260, %v1302, %v1304
      %v1306 = vrot.slane %v1205, 1
      %v1307 = vrot.slane %v1129, 1
      %v1308 = vsel %vm1260, %v1306, %v1307
      %v1309 = vrot.slane %v1221, 1
      %v1310 = vsel %vm1260, %v1307, %v1309
      %v1311 = vrot.slane %v1206, 1
      %v1312 = vrot.slane %v1132, 1
      %v1313 = vsel %vm1260, %v1311, %v1312
      %v1314 = vrot.slane %v1222, 1
      %v1315 = vsel %vm1260, %v1312, %v1314
      %v1316 = vrot.slane %v1207, 1
      %v1317 = vrot.slane %v1135, 1
      %v1318 = vsel %vm1260, %v1316, %v1317
      %v1319 = vrot.slane %v1223, 1
      %v1320 = vsel %vm1260, %v1317, %v1319
      %v1321 = vrot.slane %v1208, 1
      %v1322 = vrot.slane %v1138, 1
      %v1323 = vsel %vm1260, %v1321, %v1322
      %v1324 = vrot.slane %v1224, 1
      %v1325 = vsel %vm1260, %v1322, %v1324
      %v1326 = vrot.slane %v1209, 1
      %v1327 = vrot.slane %v1141, 1
      %v1328 = vsel %vm1260, %v1326, %v1327
      %v1329 = vrot.slane %v1225, 1
      %v1330 = vsel %vm1260, %v1327, %v1329
      %v1331 = vrot.slane %v1210, 1
      %v1332 = vrot.slane %v1144, 1
      %v1333 = vsel %vm1260, %v1331, %v1332
      %v1334 = vrot.slane %v1226, 1
      %v1335 = vsel %vm1260, %v1332, %v1334
      %v1336 = vrot.slane %v1211, 1
      %v1337 = vrot.slane %v1147, 1
      %v1338 = vsel %vm1260, %v1336, %v1337
      %v1339 = vrot.slane %v1227, 1
      %v1340 = vsel %vm1260, %v1337, %v1339
      %1341 = vrot.lane.b32.xlu0 %v1263, 9
      %v1342 = vpop.permute.xlu0 %1341
      %1343 = vrot.lane.b32.xlu0 %v1265, 9
      %v1344 = vpop.permute.xlu0 %1343
      %1345 = vrot.lane.b32.xlu0 %v1268, 9
      %v1346 = vpop.permute.xlu0 %1345
      %1347 = vrot.lane.b32.xlu0 %v1270, 9
      %v1348 = vpop.permute.xlu0 %1347
      %1349 = vrot.lane.b32.xlu0 %v1273, 9
      %v1350 = vpop.permute.xlu0 %1349
      %1351 = vrot.lane.b32.xlu0 %v1275, 9
      %v1352 = vpop.permute.xlu0 %1351
      %1353 = vrot.lane.b32.xlu0 %v1278, 9
      %v1354 = vpop.permute.xlu0 %1353
      %1355 = vrot.lane.b32.xlu0 %v1280, 9
      %v1356 = vpop.permute.xlu0 %1355
      %1357 = vrot.lane.b32.xlu0 %v1283, 9
      %v1358 = vpop.permute.xlu0 %1357
      %1359 = vrot.lane.b32.xlu0 %v1285, 9
      %v1360 = vpop.permute.xlu0 %1359
      %1361 = vrot.lane.b32.xlu0 %v1288, 9
      %v1362 = vpop.permute.xlu0 %1361
      %1363 = vrot.lane.b32.xlu0 %v1290, 9
      %v1364 = vpop.permute.xlu0 %1363
      %1365 = vrot.lane.b32.xlu0 %v1293, 9
      %v1366 = vpop.permute.xlu0 %1365
      %1367 = vrot.lane.b32.xlu0 %v1295, 9
      %v1368 = vpop.permute.xlu0 %1367
      %1369 = vrot.lane.b32.xlu0 %v1298, 9
      %v1370 = vpop.permute.xlu0 %1369
      %1371 = vrot.lane.b32.xlu0 %v1300, 9
      %v1372 = vpop.permute.xlu0 %1371
      %1373 = vrot.lane.b32.xlu0 %v1303, 9
      %v1374 = vpop.permute.xlu0 %1373
      %1375 = vrot.lane.b32.xlu0 %v1305, 9
      %v1376 = vpop.permute.xlu0 %1375
      %1377 = vrot.lane.b32.xlu0 %v1308, 9
      %v1378 = vpop.permute.xlu0 %1377
      %1379 = vrot.lane.b32.xlu0 %v1310, 9
      %v1380 = vpop.permute.xlu0 %1379
      %1381 = vrot.lane.b32.xlu0 %v1313, 9
      %v1382 = vpop.permute.xlu0 %1381
      %1383 = vrot.lane.b32.xlu0 %v1315, 9
      %v1384 = vpop.permute.xlu0 %1383
      %1385 = vrot.lane.b32.xlu0 %v1318, 9
      %v1386 = vpop.permute.xlu0 %1385
      %1387 = vrot.lane.b32.xlu0 %v1320, 9
      %v1388 = vpop.permute.xlu0 %1387
      %1389 = vrot.lane.b32.xlu0 %v1323, 9
      %v1390 = vpop.permute.xlu0 %1389
      %1391 = vrot.lane.b32.xlu0 %v1325, 9
      %v1392 = vpop.permute.xlu0 %1391
      %1393 = vrot.lane.b32.xlu0 %v1328, 9
      %v1394 = vpop.permute.xlu0 %1393
      %1395 = vrot.lane.b32.xlu0 %v1330, 9
      %v1396 = vpop.permute.xlu0 %1395
      %1397 = vrot.lane.b32.xlu0 %v1333, 9
      %v1398 = vpop.permute.xlu0 %1397
      %1399 = vrot.lane.b32.xlu0 %v1335, 9
      %v1400 = vpop.permute.xlu0 %1399
      %1401 = vrot.lane.b32.xlu0 %v1338, 9
      %v1402 = vpop.permute.xlu0 %1401
      %1403 = vrot.lane.b32.xlu0 %v1340, 9
      %v1404 = vpop.permute.xlu0 %1403
      %vm1437 = vcmask 1045504
      %v1438 = vrot.slane %v1196, 2
      %v1439 = vrot.slane %v1102, 2
      %v1440 = vsel %vm1437, %v1438, %v1439
      %v1441 = vrot.slane %v1212, 2
      %v1442 = vsel %vm1437, %v1439, %v1441
      %v1443 = vrot.slane %v1197, 2
      %v1444 = vrot.slane %v1105, 2
      %v1445 = vsel %vm1437, %v1443, %v1444
      %v1446 = vrot.slane %v1213, 2
      %v1447 = vsel %vm1437, %v1444, %v1446
      %v1448 = vrot.slane %v1198, 2
      %v1449 = vrot.slane %v1108, 2
      %v1450 = vsel %vm1437, %v1448, %v1449
      %v1451 = vrot.slane %v1214, 2
      %v1452 = vsel %vm1437, %v1449, %v1451
      %v1453 = vrot.slane %v1199, 2
      %v1454 = vrot.slane %v1111, 2
      %v1455 = vsel %vm1437, %v1453, %v1454
      %v1456 = vrot.slane %v1215, 2
      %v1457 = vsel %vm1437, %v1454, %v1456
      %v1458 = vrot.slane %v1200, 2
      %v1459 = vrot.slane %v1114, 2
      %v1460 = vsel %vm1437, %v1458, %v1459
      %v1461 = vrot.slane %v1216, 2
      %v1462 = vsel %vm1437, %v1459, %v1461
      %v1463 = vrot.slane %v1201, 2
      %v1464 = vrot.slane %v1117, 2
      %v1465 = vsel %vm1437, %v1463, %v1464
      %v1466 = vrot.slane %v1217, 2
      %v1467 = vsel %vm1437, %v1464, %v1466
      %v1468 = vrot.slane %v1202, 2
      %v1469 = vrot.slane %v1120, 2
      %v1470 = vsel %vm1437, %v1468, %v1469
      %v1471 = vrot.slane %v1218, 2
      %v1472 = vsel %vm1437, %v1469, %v1471
      %v1473 = vrot.slane %v1203, 2
      %v1474 = vrot.slane %v1123, 2
      %v1475 = vsel %vm1437, %v1473, %v1474
      %v1476 = vrot.slane %v1219, 2
      %v1477 = vsel %vm1437, %v1474, %v1476
      %v1478 = vrot.slane %v1204, 2
      %v1479 = vrot.slane %v1126, 2
      %v1480 = vsel %vm1437, %v1478, %v1479
      %v1481 = vrot.slane %v1220, 2
      %v1482 = vsel %vm1437, %v1479, %v1481
      %v1483 = vrot.slane %v1205, 2
      %v1484 = vrot.slane %v1129, 2
      %v1485 = vsel %vm1437, %v1483, %v1484
      %v1486 = vrot.slane %v1221, 2
      %v1487 = vsel %vm1437, %v1484, %v1486
      %v1488 = vrot.slane %v1206, 2
      %v1489 = vrot.slane %v1132, 2
      %v1490 = vsel %vm1437, %v1488, %v1489
      %v1491 = vrot.slane %v1222, 2
      %v1492 = vsel %vm1437, %v1489, %v1491
      %v1493 = vrot.slane %v1207, 2
      %v1494 = vrot.slane %v1135, 2
      %v1495 = vsel %vm1437, %v1493, %v1494
      %v1496 = vrot.slane %v1223, 2
      %v1497 = vsel %vm1437, %v1494, %v1496
      %v1498 = vrot.slane %v1208, 2
      %v1499 = vrot.slane %v1138, 2
      %v1500 = vsel %vm1437, %v1498, %v1499
      %v1501 = vrot.slane %v1224, 2
      %v1502 = vsel %vm1437, %v1499, %v1501
      %v1503 = vrot.slane %v1209, 2
      %v1504 = vrot.slane %v1141, 2
      %v1505 = vsel %vm1437, %v1503, %v1504
      %v1506 = vrot.slane %v1225, 2
      %v1507 = vsel %vm1437, %v1504, %v1506
      %v1508 = vrot.slane %v1210, 2
      %v1509 = vrot.slane %v1144, 2
      %v1510 = vsel %vm1437, %v1508, %v1509
      %v1511 = vrot.slane %v1226, 2
      %v1512 = vsel %vm1437, %v1509, %v1511
      %v1513 = vrot.slane %v1211, 2
      %v1514 = vrot.slane %v1147, 2
      %v1515 = vsel %vm1437, %v1513, %v1514
      %v1516 = vrot.slane %v1227, 2
      %v1517 = vsel %vm1437, %v1514, %v1516
      %1518 = vrot.lane.b32.xlu0 %v1440, 18
      %v1519 = vpop.permute.xlu0 %1518
      %1520 = vrot.lane.b32.xlu0 %v1442, 18
      %v1521 = vpop.permute.xlu0 %1520
      %1522 = vrot.lane.b32.xlu0 %v1445, 18
      %v1523 = vpop.permute.xlu0 %1522
      %1524 = vrot.lane.b32.xlu0 %v1447, 18
      %v1525 = vpop.permute.xlu0 %1524
      %1526 = vrot.lane.b32.xlu0 %v1450, 18
      %v1527 = vpop.permute.xlu0 %1526
      %1528 = vrot.lane.b32.xlu0 %v1452, 18
      %v1529 = vpop.permute.xlu0 %1528
      %1530 = vrot.lane.b32.xlu0 %v1455, 18
      %v1531 = vpop.permute.xlu0 %1530
      %1532 = vrot.lane.b32.xlu0 %v1457, 18
      %v1533 = vpop.permute.xlu0 %1532
      %1534 = vrot.lane.b32.xlu0 %v1460, 18
      %v1535 = vpop.permute.xlu0 %1534
      %1536 = vrot.lane.b32.xlu0 %v1462, 18
      %v1537 = vpop.permute.xlu0 %1536
      %1538 = vrot.lane.b32.xlu0 %v1465, 18
      %v1539 = vpop.permute.xlu0 %1538
      %1540 = vrot.lane.b32.xlu0 %v1467, 18
      %v1541 = vpop.permute.xlu0 %1540
      %1542 = vrot.lane.b32.xlu0 %v1470, 18
      %v1543 = vpop.permute.xlu0 %1542
      %1544 = vrot.lane.b32.xlu0 %v1472, 18
      %v1545 = vpop.permute.xlu0 %1544
      %1546 = vrot.lane.b32.xlu0 %v1475, 18
      %v1547 = vpop.permute.xlu0 %1546
      %1548 = vrot.lane.b32.xlu0 %v1477, 18
      %v1549 = vpop.permute.xlu0 %1548
      %1550 = vrot.lane.b32.xlu0 %v1480, 18
      %v1551 = vpop.permute.xlu0 %1550
      %1552 = vrot.lane.b32.xlu0 %v1482, 18
      %v1553 = vpop.permute.xlu0 %1552
      %1554 = vrot.lane.b32.xlu0 %v1485, 18
      %v1555 = vpop.permute.xlu0 %1554
      %1556 = vrot.lane.b32.xlu0 %v1487, 18
      %v1557 = vpop.permute.xlu0 %1556
      %1558 = vrot.lane.b32.xlu0 %v1490, 18
      %v1559 = vpop.permute.xlu0 %1558
      %1560 = vrot.lane.b32.xlu0 %v1492, 18
      %v1561 = vpop.permute.xlu0 %1560
      %1562 = vrot.lane.b32.xlu0 %v1495, 18
      %v1563 = vpop.permute.xlu0 %1562
      %1564 = vrot.lane.b32.xlu0 %v1497, 18
      %v1565 = vpop.permute.xlu0 %1564
      %1566 = vrot.lane.b32.xlu0 %v1500, 18
      %v1567 = vpop.permute.xlu0 %1566
      %1568 = vrot.lane.b32.xlu0 %v1502, 18
      %v1569 = vpop.permute.xlu0 %1568
      %1570 = vrot.lane.b32.xlu0 %v1505, 18
      %v1571 = vpop.permute.xlu0 %1570
      %1572 = vrot.lane.b32.xlu0 %v1507, 18
      %v1573 = vpop.permute.xlu0 %1572
      %1574 = vrot.lane.b32.xlu0 %v1510, 18
      %v1575 = vpop.permute.xlu0 %1574
      %1576 = vrot.lane.b32.xlu0 %v1512, 18
      %v1577 = vpop.permute.xlu0 %1576
      %1578 = vrot.lane.b32.xlu0 %v1515, 18
      %v1579 = vpop.permute.xlu0 %1578
      %1580 = vrot.lane.b32.xlu0 %v1517, 18
      %v1581 = vpop.permute.xlu0 %1580
      %vm1614 = vcmask 72704
      %v1615 = vsel %vm1614, %v1196, %v1342
      %v1616 = vsel %vm1614, %v1102, %v1344
      %v1617 = vsel %vm1614, %v1197, %v1346
      %v1618 = vsel %vm1614, %v1105, %v1348
      %v1619 = vsel %vm1614, %v1198, %v1350
      %v1620 = vsel %vm1614, %v1108, %v1352
      %v1621 = vsel %vm1614, %v1199, %v1354
      %v1622 = vsel %vm1614, %v1111, %v1356
      %v1623 = vsel %vm1614, %v1200, %v1358
      %v1624 = vsel %vm1614, %v1114, %v1360
      %v1625 = vsel %vm1614, %v1201, %v1362
      %v1626 = vsel %vm1614, %v1117, %v1364
      %v1627 = vsel %vm1614, %v1202, %v1366
      %v1628 = vsel %vm1614, %v1120, %v1368
      %v1629 = vsel %vm1614, %v1203, %v1370
      %v1630 = vsel %vm1614, %v1123, %v1372
      %v1631 = vsel %vm1614, %v1204, %v1374
      %v1632 = vsel %vm1614, %v1126, %v1376
      %v1633 = vsel %vm1614, %v1205, %v1378
      %v1634 = vsel %vm1614, %v1129, %v1380
      %v1635 = vsel %vm1614, %v1206, %v1382
      %v1636 = vsel %vm1614, %v1132, %v1384
      %v1637 = vsel %vm1614, %v1207, %v1386
      %v1638 = vsel %vm1614, %v1135, %v1388
      %v1639 = vsel %vm1614, %v1208, %v1390
      %v1640 = vsel %vm1614, %v1138, %v1392
      %v1641 = vsel %vm1614, %v1209, %v1394
      %v1642 = vsel %vm1614, %v1141, %v1396
      %v1643 = vsel %vm1614, %v1210, %v1398
      %v1644 = vsel %vm1614, %v1144, %v1400
      %v1645 = vsel %vm1614, %v1211, %v1402
      %v1646 = vsel %vm1614, %v1147, %v1404
      %vm1647 = vcmask 146432
      %v1648 = vsel %vm1647, %v1615, %v1519
      %v1649 = vsel %vm1647, %v1616, %v1521
      %v1650 = vsel %vm1647, %v1617, %v1523
      %v1651 = vsel %vm1647, %v1618, %v1525
      %v1652 = vsel %vm1647, %v1619, %v1527
      %v1653 = vsel %vm1647, %v1620, %v1529
      %v1654 = vsel %vm1647, %v1621, %v1531
      %v1655 = vsel %vm1647, %v1622, %v1533
      %v1656 = vsel %vm1647, %v1623, %v1535
      %v1657 = vsel %vm1647, %v1624, %v1537
      %v1658 = vsel %vm1647, %v1625, %v1539
      %v1659 = vsel %vm1647, %v1626, %v1541
      %v1660 = vsel %vm1647, %v1627, %v1543
      %v1661 = vsel %vm1647, %v1628, %v1545
      %v1662 = vsel %vm1647, %v1629, %v1547
      %v1663 = vsel %vm1647, %v1630, %v1549
      %v1664 = vsel %vm1647, %v1631, %v1551
      %v1665 = vsel %vm1647, %v1632, %v1553
      %v1666 = vsel %vm1647, %v1633, %v1555
      %v1667 = vsel %vm1647, %v1634, %v1557
      %v1668 = vsel %vm1647, %v1635, %v1559
      %v1669 = vsel %vm1647, %v1636, %v1561
      %v1670 = vsel %vm1647, %v1637, %v1563
      %v1671 = vsel %vm1647, %v1638, %v1565
      %v1672 = vsel %vm1647, %v1639, %v1567
      %v1673 = vsel %vm1647, %v1640, %v1569
      %v1674 = vsel %vm1647, %v1641, %v1571
      %v1675 = vsel %vm1647, %v1642, %v1573
      %v1676 = vsel %vm1647, %v1643, %v1575
      %v1677 = vsel %vm1647, %v1644, %v1577
      %v1678 = vsel %vm1647, %v1645, %v1579
      %v1679 = vsel %vm1647, %v1646, %v1581
      %v1680 = vpack.c.bf16 %v1649, %v1648
      %v1681 = vpack.c.bf16 %v1651, %v1650
      %v1682 = vpack.c.bf16 %v1653, %v1652
      %v1683 = vpack.c.bf16 %v1655, %v1654
      %v1684 = vpack.c.bf16 %v1657, %v1656
      %v1685 = vpack.c.bf16 %v1659, %v1658
      %v1686 = vpack.c.bf16 %v1661, %v1660
      %v1687 = vpack.c.bf16 %v1663, %v1662
      %v1688 = vpack.c.bf16 %v1665, %v1664
      %v1689 = vpack.c.bf16 %v1667, %v1666
      %v1690 = vpack.c.bf16 %v1669, %v1668
      %v1691 = vpack.c.bf16 %v1671, %v1670
      %v1692 = vpack.c.bf16 %v1673, %v1672
      %v1693 = vpack.c.bf16 %v1675, %v1674
      %v1694 = vpack.c.bf16 %v1677, %v1676
      %v1695 = vpack.c.bf16 %v1679, %v1678
      %v1696 = vld [vmem:[%s1] sm:$0xf]
      %v1697 = vld [vmem:[%s1 + $0x4] sm:$0xf]
      %v1698 = vld [vmem:[%s1 + $0x8] sm:$0xf]
      %v1699 = vld [vmem:[%s1 + $0xc] sm:$0x3]
      %v1704 = vunpack.c.l.b16 %v1696
      %v1705 = vunpack.c.l.b16 %v1697
      %v1706 = vunpack.c.l.b16 %v1698
      %v1707 = vunpack.c.l.b16 %v1699
      %v1708 = vpack.c.b16 %v1705, %v1704
      %v1709 = vpack.c.b16 %v1707, %v1706
      %vm1711 = vcmask 220160
      %v1713 = vsel %vm1711, %v1680, 0
      %v1716 = vsel %vm1711, %v1681, 0
      %v1719 = vsel %vm1711, %v1682, 0
      %v1722 = vsel %vm1711, %v1683, 0
      %v1725 = vsel %vm1711, %v1684, 0
      %v1728 = vsel %vm1711, %v1685, 0
      %v1731 = vsel %vm1711, %v1686, 0
      %v1734 = vsel %vm1711, %v1687, 0
      %v1737 = vsel %vm1711, %v1688, 0
      %v1740 = vsel %vm1711, %v1689, 0
      %v1743 = vsel %vm1711, %v1690, 0
      %v1746 = vsel %vm1711, %v1691, 0
      %v1749 = vsel %vm1711, %v1692, 0
      %v1752 = vsel %vm1711, %v1693, 0
      %v1755 = vsel %vm1711, %v1694, 0
      %v1758 = vsel %vm1711, %v1695, 0
      %vm1760 = vcmask 1044480
      %v1761 = vsel %vm1760, 4294967295, 65535
      %v1762 = vsel %vm1437, %v1761, 0
      %v1764 = vand.u32 %v1709, %v1762
      %1766 = vmatprep.subr.bf16.mxu0 0
      %1767 = vmatpush1.bf16.msra.mxu0 %v1708
      %1768 = vmatprep.subr.bf16.mxu0 0
      %1769 = vmatpush1.bf16.msra.mxu0 %v1764
      %1770 = vmatprep.subr.bf16.mxu0 0
      %1771 = vmatpush1.bf16.msra.mxu0 0
      %1772 = vmatprep.subr.bf16.mxu0 0
      %1773 = vmatpush1.bf16.msra.mxu0 0
      %1774 = vmatprep.subr.bf16.mxu0 0
      %1775 = vmatpush1.bf16.msra.mxu0 0
      %1776 = vmatprep.subr.bf16.mxu0 0
      %1777 = vmatpush1.bf16.msra.mxu0 0
      %1778 = vmatprep.subr.bf16.mxu0 0
      %1779 = vmatpush1.bf16.msra.mxu0 0
      %1780 = vmatprep.subr.bf16.mxu0 0
      %1781 = vmatpush1.bf16.msra.mxu0 0
      %1782 = vmatprep.subr.bf16.mxu0 0
      %1783 = vmatpush1.bf16.msra.mxu0 0
      %1784 = vmatprep.subr.bf16.mxu0 0
      %1785 = vmatpush1.bf16.msra.mxu0 0
      %1786 = vmatprep.subr.bf16.mxu0 0
      %1787 = vmatpush1.bf16.msra.mxu0 0
      %1788 = vmatprep.subr.bf16.mxu0 0
      %1789 = vmatpush1.bf16.msra.mxu0 0
      %1790 = vmatprep.subr.bf16.mxu0 0
      %1791 = vmatpush1.bf16.msra.mxu0 0
      %1792 = vmatprep.subr.bf16.mxu0 0
      %1793 = vmatpush1.bf16.msra.mxu0 0
      %1794 = vmatprep.subr.bf16.mxu0 0
      %1795 = vmatpush1.bf16.msra.mxu0 0
      %1796 = vmatprep.subr.bf16.mxu0 0
      %1797 = vmatpush1.bf16.msra.mxu0 0
      %1798 = vmatprep.mubr.bf16.mxu0 0
      %1799 = vmatmul.mubr.bf16.gmra.mrb[0].mxu0 %v1713
      %v1800 = vpop.f32.mrb[0].mxu0
      %v1801 = vadd.f32 0.0, %v1800
      %v1802 = vpop.f32.mrb[0].mxu0
      %v1803 = vpop.f32.mrb[0].mxu0
      %v1804 = vadd.f32 0.0, %v1803
      %v1805 = vpop.f32.mrb[0].mxu0
      %1806 = vmatprep.mubr.bf16.mxu0 0
      %1807 = vmatmul.mubr.bf16.gmra.mrb[0].mxu0 %v1716
      %v1808 = vpop.f32.mrb[0].mxu0
      %v1809 = vadd.f32 0.0, %v1808
      %v1810 = vpop.f32.mrb[0].mxu0
      %v1811 = vpop.f32.mrb[0].mxu0
      %v1812 = vadd.f32 0.0, %v1811
      %v1813 = vpop.f32.mrb[0].mxu0
      %1814 = vmatprep.mubr.bf16.mxu0 0
      %1815 = vmatmul.mubr.bf16.gmra.mrb[0].mxu0 %v1719
      %v1816 = vpop.f32.mrb[0].mxu0
      %v1817 = vadd.f32 0.0, %v1816
      %v1818 = vpop.f32.mrb[0].mxu0
      %v1819 = vpop.f32.mrb[0].mxu0
      %v1820 = vadd.f32 0.0, %v1819
      %v1821 = vpop.f32.mrb[0].mxu0
      %1822 = vmatprep.mubr.bf16.mxu0 0
      %1823 = vmatmul.mubr.bf16.gmra.mrb[0].mxu0 %v1722
      %v1824 = vpop.f32.mrb[0].mxu0
      %v1825 = vadd.f32 0.0, %v1824
      %v1826 = vpop.f32.mrb[0].mxu0
      %v1827 = vpop.f32.mrb[0].mxu0
      %v1828 = vadd.f32 0.0, %v1827
      %v1829 = vpop.f32.mrb[0].mxu0
      %1830 = vmatprep.mubr.bf16.mxu0 0
      %1831 = vmatmul.mubr.bf16.gmra.mrb[0].mxu0 %v1725
      %v1832 = vpop.f32.mrb[0].mxu0
      %v1833 = vadd.f32 0.0, %v1832
      %v1834 = vpop.f32.mrb[0].mxu0
      %v1835 = vpop.f32.mrb[0].mxu0
      %v1836 = vadd.f32 0.0, %v1835
      %v1837 = vpop.f32.mrb[0].mxu0
      %1838 = vmatprep.mubr.bf16.mxu0 0
      %1839 = vmatmul.mubr.bf16.gmra.mrb[0].mxu0 %v1728
      %v1840 = vpop.f32.mrb[0].mxu0
      %v1841 = vadd.f32 0.0, %v1840
      %v1842 = vpop.f32.mrb[0].mxu0
      %v1843 = vpop.f32.mrb[0].mxu0
      %v1844 = vadd.f32 0.0, %v1843
      %v1845 = vpop.f32.mrb[0].mxu0
      %1846 = vmatprep.mubr.bf16.mxu0 0
      %1847 = vmatmul.mubr.bf16.gmra.mrb[0].mxu0 %v1731
      %v1848 = vpop.f32.mrb[0].mxu0
      %v1849 = vadd.f32 0.0, %v1848
      %v1850 = vpop.f32.mrb[0].mxu0
      %v1851 = vpop.f32.mrb[0].mxu0
      %v1852 = vadd.f32 0.0, %v1851
      %v1853 = vpop.f32.mrb[0].mxu0
      %1854 = vmatprep.mubr.bf16.mxu0 0
      %1855 = vmatmul.mubr.bf16.gmra.mrb[0].mxu0 %v1734
      %v1856 = vpop.f32.mrb[0].mxu0
      %v1857 = vadd.f32 0.0, %v1856
      %v1858 = vpop.f32.mrb[0].mxu0
      %v1859 = vpop.f32.mrb[0].mxu0
      %v1860 = vadd.f32 0.0, %v1859
      %v1861 = vpop.f32.mrb[0].mxu0
      %1862 = vmatprep.mubr.bf16.mxu0 0
      %1863 = vmatmul.mubr.bf16.gmra.mrb[0].mxu0 %v1737
      %v1864 = vpop.f32.mrb[0].mxu0
      %v1865 = vadd.f32 0.0, %v1864
      %v1866 = vpop.f32.mrb[0].mxu0
      %v1867 = vpop.f32.mrb[0].mxu0
      %v1868 = vadd.f32 0.0, %v1867
      %v1869 = vpop.f32.mrb[0].mxu0
      %1870 = vmatprep.mubr.bf16.mxu0 0
      %1871 = vmatmul.mubr.bf16.gmra.mrb[0].mxu0 %v1740
      %v1872 = vpop.f32.mrb[0].mxu0
      %v1873 = vadd.f32 0.0, %v1872
      %v1874 = vpop.f32.mrb[0].mxu0
      %v1875 = vpop.f32.mrb[0].mxu0
      %v1876 = vadd.f32 0.0, %v1875
      %v1877 = vpop.f32.mrb[0].mxu0
      %1878 = vmatprep.mubr.bf16.mxu0 0
      %1879 = vmatmul.mubr.bf16.gmra.mrb[0].mxu0 %v1743
      %v1880 = vpop.f32.mrb[0].mxu0
      %v1881 = vadd.f32 0.0, %v1880
      %v1882 = vpop.f32.mrb[0].mxu0
      %v1883 = vpop.f32.mrb[0].mxu0
      %v1884 = vadd.f32 0.0, %v1883
      %v1885 = vpop.f32.mrb[0].mxu0
      %1886 = vmatprep.mubr.bf16.mxu0 0
      %1887 = vmatmul.mubr.bf16.gmra.mrb[0].mxu0 %v1746
      %v1888 = vpop.f32.mrb[0].mxu0
      %v1889 = vadd.f32 0.0, %v1888
      %v1890 = vpop.f32.mrb[0].mxu0
      %v1891 = vpop.f32.mrb[0].mxu0
      %v1892 = vadd.f32 0.0, %v1891
      %v1893 = vpop.f32.mrb[0].mxu0
      %1894 = vmatprep.mubr.bf16.mxu0 0
      %1895 = vmatmul.mubr.bf16.gmra.mrb[0].mxu0 %v1749
      %v1896 = vpop.f32.mrb[0].mxu0
      %v1897 = vadd.f32 0.0, %v1896
      %v1898 = vpop.f32.mrb[0].mxu0
      %v1899 = vpop.f32.mrb[0].mxu0
      %v1900 = vadd.f32 0.0, %v1899
      %v1901 = vpop.f32.mrb[0].mxu0
      %1902 = vmatprep.mubr.bf16.mxu0 0
      %1903 = vmatmul.mubr.bf16.gmra.mrb[0].mxu0 %v1752
      %v1904 = vpop.f32.mrb[0].mxu0
      %v1905 = vadd.f32 0.0, %v1904
      %v1906 = vpop.f32.mrb[0].mxu0
      %v1907 = vpop.f32.mrb[0].mxu0
      %v1908 = vadd.f32 0.0, %v1907
      %v1909 = vpop.f32.mrb[0].mxu0
      %1910 = vmatprep.mubr.bf16.mxu0 0
      %1911 = vmatmul.mubr.bf16.gmra.mrb[0].mxu0 %v1755
      %v1912 = vpop.f32.mrb[0].mxu0
      %v1913 = vadd.f32 0.0, %v1912
      %v1914 = vpop.f32.mrb[0].mxu0
      %v1915 = vpop.f32.mrb[0].mxu0
      %v1916 = vadd.f32 0.0, %v1915
      %v1917 = vpop.f32.mrb[0].mxu0
      %1918 = vmatprep.mubr.bf16.mxu0 0
      %1919 = vmatmul.mubr.bf16.gmra.mrb[0].mxu0 %v1758
      %v1920 = vpop.f32.mrb[0].mxu0
      %v1921 = vadd.f32 0.0, %v1920
      %v1922 = vpop.f32.mrb[0].mxu0
      %v1923 = vpop.f32.mrb[0].mxu0
      %v1924 = vadd.f32 0.0, %v1923
      %v1925 = vpop.f32.mrb[0].mxu0
      %1926 = vdwg.mxu0
      %v1927 = vld [vmem:[%s2] sm:$0x1]
      %v1928 = vlaneseq
      %v1929 = vshrl.u32 %v1928, 7
      %v1930 = vsub.s32 0, %v1929
      %v1931 = vrot.slane %v1927, %v1930
      %v1932 = vmul.f32 %v1801, %v1931
      %v1933 = vmul.f32 %v1804, %v1931
      %v1934 = vmul.f32 %v1809, %v1931
      %v1935 = vmul.f32 %v1812, %v1931
      %v1936 = vmul.f32 %v1817, %v1931
      %v1937 = vmul.f32 %v1820, %v1931
      %v1938 = vmul.f32 %v1825, %v1931
      %v1939 = vmul.f32 %v1828, %v1931
      %v1940 = vmul.f32 %v1833, %v1931
      %v1941 = vmul.f32 %v1836, %v1931
      %v1942 = vmul.f32 %v1841, %v1931
      %v1943 = vmul.f32 %v1844, %v1931
      %v1944 = vmul.f32 %v1849, %v1931
      %v1945 = vmul.f32 %v1852, %v1931
      %v1946 = vmul.f32 %v1857, %v1931
      %v1947 = vmul.f32 %v1860, %v1931
      %v1948 = vmul.f32 %v1865, %v1931
      %v1949 = vmul.f32 %v1868, %v1931
      %v1950 = vmul.f32 %v1873, %v1931
      %v1951 = vmul.f32 %v1876, %v1931
      %v1952 = vmul.f32 %v1881, %v1931
      %v1953 = vmul.f32 %v1884, %v1931
      %v1954 = vmul.f32 %v1889, %v1931
      %v1955 = vmul.f32 %v1892, %v1931
      %v1956 = vmul.f32 %v1897, %v1931
      %v1957 = vmul.f32 %v1900, %v1931
      %v1958 = vmul.f32 %v1905, %v1931
      %v1959 = vmul.f32 %v1908, %v1931
      %v1960 = vmul.f32 %v1913, %v1931
      %v1961 = vmul.f32 %v1916, %v1931
      %v1962 = vmul.f32 %v1921, %v1931
      %v1963 = vmul.f32 %v1924, %v1931
      %v1964 = vld [vmem:[%s2 + $0x1] sm:$0x1]
      %v1965 = vlaneseq
      %v1966 = vshrl.u32 %v1965, 7
      %v1967 = vsub.s32 0, %v1966
      %v1968 = vrot.slane %v1964, %v1967
      %v1969 = vadd.f32 %v1932, %v1968
      %v1970 = vadd.f32 %v1933, %v1968
      %v1971 = vadd.f32 %v1934, %v1968
      %v1972 = vadd.f32 %v1935, %v1968
      %v1973 = vadd.f32 %v1936, %v1968
      %v1974 = vadd.f32 %v1937, %v1968
      %v1975 = vadd.f32 %v1938, %v1968
      %v1976 = vadd.f32 %v1939, %v1968
      %v1977 = vadd.f32 %v1940, %v1968
      %v1978 = vadd.f32 %v1941, %v1968
      %v1979 = vadd.f32 %v1942, %v1968
      %v1980 = vadd.f32 %v1943, %v1968
      %v1981 = vadd.f32 %v1944, %v1968
      %v1982 = vadd.f32 %v1945, %v1968
      %v1983 = vadd.f32 %v1946, %v1968
      %v1984 = vadd.f32 %v1947, %v1968
      %v1985 = vadd.f32 %v1948, %v1968
      %v1986 = vadd.f32 %v1949, %v1968
      %v1987 = vadd.f32 %v1950, %v1968
      %v1988 = vadd.f32 %v1951, %v1968
      %v1989 = vadd.f32 %v1952, %v1968
      %v1990 = vadd.f32 %v1953, %v1968
      %v1991 = vadd.f32 %v1954, %v1968
      %v1992 = vadd.f32 %v1955, %v1968
      %v1993 = vadd.f32 %v1956, %v1968
      %v1994 = vadd.f32 %v1957, %v1968
      %v1995 = vadd.f32 %v1958, %v1968
      %v1996 = vadd.f32 %v1959, %v1968
      %v1997 = vadd.f32 %v1960, %v1968
      %v1998 = vadd.f32 %v1961, %v1968
      %v1999 = vadd.f32 %v1962, %v1968
      %v2000 = vadd.f32 %v1963, %v1968
      %v2001 = vmax.f32 %v1969, 0.0
      %v2002 = vmax.f32 %v1970, 0.0
      %v2003 = vmax.f32 %v1971, 0.0
      %v2004 = vmax.f32 %v1972, 0.0
      %v2005 = vmax.f32 %v1973, 0.0
      %v2006 = vmax.f32 %v1974, 0.0
      %v2007 = vmax.f32 %v1975, 0.0
      %v2008 = vmax.f32 %v1976, 0.0
      %v2009 = vmax.f32 %v1977, 0.0
      %v2010 = vmax.f32 %v1978, 0.0
      %v2011 = vmax.f32 %v1979, 0.0
      %v2012 = vmax.f32 %v1980, 0.0
      %v2013 = vmax.f32 %v1981, 0.0
      %v2014 = vmax.f32 %v1982, 0.0
      %v2015 = vmax.f32 %v1983, 0.0
      %v2016 = vmax.f32 %v1984, 0.0
      %v2017 = vmax.f32 %v1985, 0.0
      %v2018 = vmax.f32 %v1986, 0.0
      %v2019 = vmax.f32 %v1987, 0.0
      %v2020 = vmax.f32 %v1988, 0.0
      %v2021 = vmax.f32 %v1989, 0.0
      %v2022 = vmax.f32 %v1990, 0.0
      %v2023 = vmax.f32 %v1991, 0.0
      %v2024 = vmax.f32 %v1992, 0.0
      %v2025 = vmax.f32 %v1993, 0.0
      %v2026 = vmax.f32 %v1994, 0.0
      %v2027 = vmax.f32 %v1995, 0.0
      %v2028 = vmax.f32 %v1996, 0.0
      %v2029 = vmax.f32 %v1997, 0.0
      %v2030 = vmax.f32 %v1998, 0.0
      %v2031 = vmax.f32 %v1999, 0.0
      %v2032 = vmax.f32 %v2000, 0.0
      %v2033 = vmax.f32 %v2001, %v2003
      %v2034 = vmax.f32 %v2002, %v2004
      %v2035 = vmax.f32 %v2005, %v2007
      %v2036 = vmax.f32 %v2006, %v2008
      %v2037 = vmax.f32 %v2009, %v2011
      %v2038 = vmax.f32 %v2010, %v2012
      %v2039 = vmax.f32 %v2013, %v2015
      %v2040 = vmax.f32 %v2014, %v2016
      %v2041 = vmax.f32 %v2017, %v2019
      %v2042 = vmax.f32 %v2018, %v2020
      %v2043 = vmax.f32 %v2021, %v2023
      %v2044 = vmax.f32 %v2022, %v2024
      %v2045 = vmax.f32 %v2025, %v2027
      %v2046 = vmax.f32 %v2026, %v2028
      %v2047 = vmax.f32 %v2029, %v2031
      %v2048 = vmax.f32 %v2030, %v2032
      %v2065 = vcombine.high %v2033, %v2033
      %v2067 = vunpack.c.l.s4 1983009808
      %v2068 = vunpack.c.0.s8 %v2067
      %v2069 = vlaneseq
      %v2070 = vshrl.u32 %v2069, 7
      %v2071 = vsub.s32 %v2068, %v2070
      %v2072 = vrot.slane %v2033, %v2071
      %v2074 = vunpack.c.l.s4 1983009808
      %v2075 = vunpack.c.0.s8 %v2074
      %v2076 = vlaneseq
      %v2077 = vshrl.u32 %v2076, 7
      %v2078 = vsub.s32 %v2075, %v2077
      %v2079 = vrot.slane %v2065, %v2078
      %v2080 = vcombine.high %v2072, %v2072
      %v2081 = vcombine.high %v2079, %v2079
      %v2082 = vcombine.high %v2034, %v2034
      %v2084 = vunpack.c.l.s4 1983009808
      %v2085 = vunpack.c.0.s8 %v2084
      %v2086 = vlaneseq
      %v2087 = vshrl.u32 %v2086, 7
      %v2088 = vsub.s32 %v2085, %v2087
      %v2089 = vrot.slane %v2034, %v2088
      %v2091 = vunpack.c.l.s4 1983009808
      %v2092 = vunpack.c.0.s8 %v2091
      %v2093 = vlaneseq
      %v2094 = vshrl.u32 %v2093, 7
      %v2095 = vsub.s32 %v2092, %v2094
      %v2096 = vrot.slane %v2082, %v2095
      %v2097 = vcombine.high %v2089, %v2089
      %v2098 = vcombine.high %v2096, %v2096
      %v2099 = vcombine.high %v2035, %v2035
      %v2101 = vunpack.c.l.s4 1983009808
      %v2102 = vunpack.c.0.s8 %v2101
      %v2103 = vlaneseq
      %v2104 = vshrl.u32 %v2103, 7
      %v2105 = vsub.s32 %v2102, %v2104
      %v2106 = vrot.slane %v2035, %v2105
      %v2108 = vunpack.c.l.s4 1983009808
      %v2109 = vunpack.c.0.s8 %v2108
      %v2110 = vlaneseq
      %v2111 = vshrl.u32 %v2110, 7
      %v2112 = vsub.s32 %v2109, %v2111
      %v2113 = vrot.slane %v2099, %v2112
      %v2114 = vcombine.high %v2106, %v2106
      %v2115 = vcombine.high %v2113, %v2113
      %v2116 = vcombine.high %v2036, %v2036
      %v2118 = vunpack.c.l.s4 1983009808
      %v2119 = vunpack.c.0.s8 %v2118
      %v2120 = vlaneseq
      %v2121 = vshrl.u32 %v2120, 7
      %v2122 = vsub.s32 %v2119, %v2121
      %v2123 = vrot.slane %v2036, %v2122
      %v2125 = vunpack.c.l.s4 1983009808
      %v2126 = vunpack.c.0.s8 %v2125
      %v2127 = vlaneseq
      %v2128 = vshrl.u32 %v2127, 7
      %v2129 = vsub.s32 %v2126, %v2128
      %v2130 = vrot.slane %v2116, %v2129
      %v2131 = vcombine.high %v2123, %v2123
      %v2132 = vcombine.high %v2130, %v2130
      %v2133 = vcombine.high %v2037, %v2037
      %v2135 = vunpack.c.l.s4 1983009808
      %v2136 = vunpack.c.0.s8 %v2135
      %v2137 = vlaneseq
      %v2138 = vshrl.u32 %v2137, 7
      %v2139 = vsub.s32 %v2136, %v2138
      %v2140 = vrot.slane %v2037, %v2139
      %v2142 = vunpack.c.l.s4 1983009808
      %v2143 = vunpack.c.0.s8 %v2142
      %v2144 = vlaneseq
      %v2145 = vshrl.u32 %v2144, 7
      %v2146 = vsub.s32 %v2143, %v2145
      %v2147 = vrot.slane %v2133, %v2146
      %v2148 = vcombine.high %v2140, %v2140
      %v2149 = vcombine.high %v2147, %v2147
      %v2150 = vcombine.high %v2038, %v2038
      %v2152 = vunpack.c.l.s4 1983009808
      %v2153 = vunpack.c.0.s8 %v2152
      %v2154 = vlaneseq
      %v2155 = vshrl.u32 %v2154, 7
      %v2156 = vsub.s32 %v2153, %v2155
      %v2157 = vrot.slane %v2038, %v2156
      %v2159 = vunpack.c.l.s4 1983009808
      %v2160 = vunpack.c.0.s8 %v2159
      %v2161 = vlaneseq
      %v2162 = vshrl.u32 %v2161, 7
      %v2163 = vsub.s32 %v2160, %v2162
      %v2164 = vrot.slane %v2150, %v2163
      %v2165 = vcombine.high %v2157, %v2157
      %v2166 = vcombine.high %v2164, %v2164
      %v2167 = vcombine.high %v2039, %v2039
      %v2169 = vunpack.c.l.s4 1983009808
      %v2170 = vunpack.c.0.s8 %v2169
      %v2171 = vlaneseq
      %v2172 = vshrl.u32 %v2171, 7
      %v2173 = vsub.s32 %v2170, %v2172
      %v2174 = vrot.slane %v2039, %v2173
      %v2176 = vunpack.c.l.s4 1983009808
      %v2177 = vunpack.c.0.s8 %v2176
      %v2178 = vlaneseq
      %v2179 = vshrl.u32 %v2178, 7
      %v2180 = vsub.s32 %v2177, %v2179
      %v2181 = vrot.slane %v2167, %v2180
      %v2182 = vcombine.high %v2174, %v2174
      %v2183 = vcombine.high %v2181, %v2181
      %v2184 = vcombine.high %v2040, %v2040
      %v2186 = vunpack.c.l.s4 1983009808
      %v2187 = vunpack.c.0.s8 %v2186
      %v2188 = vlaneseq
      %v2189 = vshrl.u32 %v2188, 7
      %v2190 = vsub.s32 %v2187, %v2189
      %v2191 = vrot.slane %v2040, %v2190
      %v2193 = vunpack.c.l.s4 1983009808
      %v2194 = vunpack.c.0.s8 %v2193
      %v2195 = vlaneseq
      %v2196 = vshrl.u32 %v2195, 7
      %v2197 = vsub.s32 %v2194, %v2196
      %v2198 = vrot.slane %v2184, %v2197
      %v2199 = vcombine.high %v2191, %v2191
      %v2200 = vcombine.high %v2198, %v2198
      %v2201 = vcombine.high %v2041, %v2041
      %v2203 = vunpack.c.l.s4 1983009808
      %v2204 = vunpack.c.0.s8 %v2203
      %v2205 = vlaneseq
      %v2206 = vshrl.u32 %v2205, 7
      %v2207 = vsub.s32 %v2204, %v2206
      %v2208 = vrot.slane %v2041, %v2207
      %v2210 = vunpack.c.l.s4 1983009808
      %v2211 = vunpack.c.0.s8 %v2210
      %v2212 = vlaneseq
      %v2213 = vshrl.u32 %v2212, 7
      %v2214 = vsub.s32 %v2211, %v2213
      %v2215 = vrot.slane %v2201, %v2214
      %v2216 = vcombine.high %v2208, %v2208
      %v2217 = vcombine.high %v2215, %v2215
      %v2218 = vcombine.high %v2042, %v2042
      %v2220 = vunpack.c.l.s4 1983009808
      %v2221 = vunpack.c.0.s8 %v2220
      %v2222 = vlaneseq
      %v2223 = vshrl.u32 %v2222, 7
      %v2224 = vsub.s32 %v2221, %v2223
      %v2225 = vrot.slane %v2042, %v2224
      %v2227 = vunpack.c.l.s4 1983009808
      %v2228 = vunpack.c.0.s8 %v2227
      %v2229 = vlaneseq
      %v2230 = vshrl.u32 %v2229, 7
      %v2231 = vsub.s32 %v2228, %v2230
      %v2232 = vrot.slane %v2218, %v2231
      %v2233 = vcombine.high %v2225, %v2225
      %v2234 = vcombine.high %v2232, %v2232
      %v2235 = vcombine.high %v2043, %v2043
      %v2237 = vunpack.c.l.s4 1983009808
      %v2238 = vunpack.c.0.s8 %v2237
      %v2239 = vlaneseq
      %v2240 = vshrl.u32 %v2239, 7
      %v2241 = vsub.s32 %v2238, %v2240
      %v2242 = vrot.slane %v2043, %v2241
      %v2244 = vunpack.c.l.s4 1983009808
      %v2245 = vunpack.c.0.s8 %v2244
      %v2246 = vlaneseq
      %v2247 = vshrl.u32 %v2246, 7
      %v2248 = vsub.s32 %v2245, %v2247
      %v2249 = vrot.slane %v2235, %v2248
      %v2250 = vcombine.high %v2242, %v2242
      %v2251 = vcombine.high %v2249, %v2249
      %v2252 = vcombine.high %v2044, %v2044
      %v2254 = vunpack.c.l.s4 1983009808
      %v2255 = vunpack.c.0.s8 %v2254
      %v2256 = vlaneseq
      %v2257 = vshrl.u32 %v2256, 7
      %v2258 = vsub.s32 %v2255, %v2257
      %v2259 = vrot.slane %v2044, %v2258
      %v2261 = vunpack.c.l.s4 1983009808
      %v2262 = vunpack.c.0.s8 %v2261
      %v2263 = vlaneseq
      %v2264 = vshrl.u32 %v2263, 7
      %v2265 = vsub.s32 %v2262, %v2264
      %v2266 = vrot.slane %v2252, %v2265
      %v2267 = vcombine.high %v2259, %v2259
      %v2268 = vcombine.high %v2266, %v2266
      %v2269 = vcombine.high %v2045, %v2045
      %v2271 = vunpack.c.l.s4 1983009808
      %v2272 = vunpack.c.0.s8 %v2271
      %v2273 = vlaneseq
      %v2274 = vshrl.u32 %v2273, 7
      %v2275 = vsub.s32 %v2272, %v2274
      %v2276 = vrot.slane %v2045, %v2275
      %v2278 = vunpack.c.l.s4 1983009808
      %v2279 = vunpack.c.0.s8 %v2278
      %v2280 = vlaneseq
      %v2281 = vshrl.u32 %v2280, 7
      %v2282 = vsub.s32 %v2279, %v2281
      %v2283 = vrot.slane %v2269, %v2282
      %v2284 = vcombine.high %v2276, %v2276
      %v2285 = vcombine.high %v2283, %v2283
      %v2286 = vcombine.high %v2046, %v2046
      %v2288 = vunpack.c.l.s4 1983009808
      %v2289 = vunpack.c.0.s8 %v2288
      %v2290 = vlaneseq
      %v2291 = vshrl.u32 %v2290, 7
      %v2292 = vsub.s32 %v2289, %v2291
      %v2293 = vrot.slane %v2046, %v2292
      %v2295 = vunpack.c.l.s4 1983009808
      %v2296 = vunpack.c.0.s8 %v2295
      %v2297 = vlaneseq
      %v2298 = vshrl.u32 %v2297, 7
      %v2299 = vsub.s32 %v2296, %v2298
      %v2300 = vrot.slane %v2286, %v2299
      %v2301 = vcombine.high %v2293, %v2293
      %v2302 = vcombine.high %v2300, %v2300
      %v2303 = vcombine.high %v2047, %v2047
      %v2305 = vunpack.c.l.s4 1983009808
      %v2306 = vunpack.c.0.s8 %v2305
      %v2307 = vlaneseq
      %v2308 = vshrl.u32 %v2307, 7
      %v2309 = vsub.s32 %v2306, %v2308
      %v2310 = vrot.slane %v2047, %v2309
      %v2312 = vunpack.c.l.s4 1983009808
      %v2313 = vunpack.c.0.s8 %v2312
      %v2314 = vlaneseq
      %v2315 = vshrl.u32 %v2314, 7
      %v2316 = vsub.s32 %v2313, %v2315
      %v2317 = vrot.slane %v2303, %v2316
      %v2318 = vcombine.high %v2310, %v2310
      %v2319 = vcombine.high %v2317, %v2317
      %v2320 = vcombine.high %v2048, %v2048
      %v2322 = vunpack.c.l.s4 1983009808
      %v2323 = vunpack.c.0.s8 %v2322
      %v2324 = vlaneseq
      %v2325 = vshrl.u32 %v2324, 7
      %v2326 = vsub.s32 %v2323, %v2325
      %v2327 = vrot.slane %v2048, %v2326
      %v2329 = vunpack.c.l.s4 1983009808
      %v2330 = vunpack.c.0.s8 %v2329
      %v2331 = vlaneseq
      %v2332 = vshrl.u32 %v2331, 7
      %v2333 = vsub.s32 %v2330, %v2332
      %v2334 = vrot.slane %v2320, %v2333
      %v2335 = vcombine.high %v2327, %v2327
      %v2336 = vcombine.high %v2334, %v2334
      %v2401 = vrot.slane %v2072, 7
      %v2402 = vrot.slane %v2401, 2
      %v2403 = vrot.slane %v2080, 7
      %v2404 = vrot.slane %v2403, 2
      %v2405 = vrot.slane %v2079, 7
      %v2406 = vrot.slane %v2405, 2
      %v2407 = vrot.slane %v2081, 7
      %v2408 = vrot.slane %v2407, 2
      %v2409 = vrot.slane %v2089, 7
      %v2410 = vrot.slane %v2409, 2
      %v2411 = vrot.slane %v2097, 7
      %v2412 = vrot.slane %v2411, 2
      %v2413 = vrot.slane %v2096, 7
      %v2414 = vrot.slane %v2413, 2
      %v2415 = vrot.slane %v2098, 7
      %v2416 = vrot.slane %v2415, 2
      %v2417 = vrot.slane %v2106, 7
      %v2418 = vrot.slane %v2417, 2
      %v2419 = vrot.slane %v2114, 7
      %v2420 = vrot.slane %v2419, 2
      %v2421 = vrot.slane %v2113, 7
      %v2422 = vrot.slane %v2421, 2
      %v2423 = vrot.slane %v2115, 7
      %v2424 = vrot.slane %v2423, 2
      %v2425 = vrot.slane %v2123, 7
      %v2426 = vrot.slane %v2425, 2
      %v2427 = vrot.slane %v2131, 7
      %v2428 = vrot.slane %v2427, 2
      %v2429 = vrot.slane %v2130, 7
      %v2430 = vrot.slane %v2429, 2
      %v2431 = vrot.slane %v2132, 7
      %v2432 = vrot.slane %v2431, 2
      %v2433 = vrot.slane %v2140, 7
      %v2434 = vrot.slane %v2433, 2
      %v2435 = vrot.slane %v2148, 7
      %v2436 = vrot.slane %v2435, 2
      %v2437 = vrot.slane %v2147, 7
      %v2438 = vrot.slane %v2437, 2
      %v2439 = vrot.slane %v2149, 7
      %v2440 = vrot.slane %v2439, 2
      %v2441 = vrot.slane %v2157, 7
      %v2442 = vrot.slane %v2441, 2
      %v2443 = vrot.slane %v2165, 7
      %v2444 = vrot.slane %v2443, 2
      %v2445 = vrot.slane %v2164, 7
      %v2446 = vrot.slane %v2445, 2
      %v2447 = vrot.slane %v2166, 7
      %v2448 = vrot.slane %v2447, 2
      %v2449 = vrot.slane %v2174, 7
      %v2450 = vrot.slane %v2449, 2
      %v2451 = vrot.slane %v2182, 7
      %v2452 = vrot.slane %v2451, 2
      %v2453 = vrot.slane %v2181, 7
      %v2454 = vrot.slane %v2453, 2
      %v2455 = vrot.slane %v2183, 7
      %v2456 = vrot.slane %v2455, 2
      %v2457 = vrot.slane %v2191, 7
      %v2458 = vrot.slane %v2457, 2
      %v2459 = vrot.slane %v2199, 7
      %v2460 = vrot.slane %v2459, 2
      %v2461 = vrot.slane %v2198, 7
      %v2462 = vrot.slane %v2461, 2
      %v2463 = vrot.slane %v2200, 7
      %v2464 = vrot.slane %v2463, 2
      %v2465 = vrot.slane %v2208, 7
      %v2466 = vrot.slane %v2465, 2
      %v2467 = vrot.slane %v2216, 7
      %v2468 = vrot.slane %v2467, 2
      %v2469 = vrot.slane %v2215, 7
      %v2470 = vrot.slane %v2469, 2
      %v2471 = vrot.slane %v2217, 7
      %v2472 = vrot.slane %v2471, 2
      %v2473 = vrot.slane %v2225, 7
      %v2474 = vrot.slane %v2473, 2
      %v2475 = vrot.slane %v2233, 7
      %v2476 = vrot.slane %v2475, 2
      %v2477 = vrot.slane %v2232, 7
      %v2478 = vrot.slane %v2477, 2
      %v2479 = vrot.slane %v2234, 7
      %v2480 = vrot.slane %v2479, 2
      %v2481 = vrot.slane %v2242, 7
      %v2482 = vrot.slane %v2481, 2
      %v2483 = vrot.slane %v2250, 7
      %v2484 = vrot.slane %v2483, 2
      %v2485 = vrot.slane %v2249, 7
      %v2486 = vrot.slane %v2485, 2
      %v2487 = vrot.slane %v2251, 7
      %v2488 = vrot.slane %v2487, 2
      %v2489 = vrot.slane %v2259, 7
      %v2490 = vrot.slane %v2489, 2
      %v2491 = vrot.slane %v2267, 7
      %v2492 = vrot.slane %v2491, 2
      %v2493 = vrot.slane %v2266, 7
      %v2494 = vrot.slane %v2493, 2
      %v2495 = vrot.slane %v2268, 7
      %v2496 = vrot.slane %v2495, 2
      %v2497 = vrot.slane %v2276, 7
      %v2498 = vrot.slane %v2497, 2
      %v2499 = vrot.slane %v2284, 7
      %v2500 = vrot.slane %v2499, 2
      %v2501 = vrot.slane %v2283, 7
      %v2502 = vrot.slane %v2501, 2
      %v2503 = vrot.slane %v2285, 7
      %v2504 = vrot.slane %v2503, 2
      %v2505 = vrot.slane %v2293, 7
      %v2506 = vrot.slane %v2505, 2
      %v2507 = vrot.slane %v2301, 7
      %v2508 = vrot.slane %v2507, 2
      %v2509 = vrot.slane %v2300, 7
      %v2510 = vrot.slane %v2509, 2
      %v2511 = vrot.slane %v2302, 7
      %v2512 = vrot.slane %v2511, 2
      %v2513 = vrot.slane %v2310, 7
      %v2514 = vrot.slane %v2513, 2
      %v2515 = vrot.slane %v2318, 7
      %v2516 = vrot.slane %v2515, 2
      %v2517 = vrot.slane %v2317, 7
      %v2518 = vrot.slane %v2517, 2
      %v2519 = vrot.slane %v2319, 7
      %v2520 = vrot.slane %v2519, 2
      %v2521 = vrot.slane %v2327, 7
      %v2522 = vrot.slane %v2521, 2
      %v2523 = vrot.slane %v2335, 7
      %v2524 = vrot.slane %v2523, 2
      %v2525 = vrot.slane %v2334, 7
      %v2526 = vrot.slane %v2525, 2
      %v2527 = vrot.slane %v2336, 7
      %v2528 = vrot.slane %v2527, 2
      %v2593 = vmax.f32 %v2072, %v2402
      %v2594 = vmax.f32 %v2080, %v2404
      %v2595 = vmax.f32 %v2079, %v2406
      %v2596 = vmax.f32 %v2081, %v2408
      %v2597 = vmax.f32 %v2089, %v2410
      %v2598 = vmax.f32 %v2097, %v2412
      %v2599 = vmax.f32 %v2096, %v2414
      %v2600 = vmax.f32 %v2098, %v2416
      %v2601 = vmax.f32 %v2106, %v2418
      %v2602 = vmax.f32 %v2114, %v2420
      %v2603 = vmax.f32 %v2113, %v2422
      %v2604 = vmax.f32 %v2115, %v2424
      %v2605 = vmax.f32 %v2123, %v2426
      %v2606 = vmax.f32 %v2131, %v2428
      %v2607 = vmax.f32 %v2130, %v2430
      %v2608 = vmax.f32 %v2132, %v2432
      %v2609 = vmax.f32 %v2140, %v2434
      %v2610 = vmax.f32 %v2148, %v2436
      %v2611 = vmax.f32 %v2147, %v2438
      %v2612 = vmax.f32 %v2149, %v2440
      %v2613 = vmax.f32 %v2157, %v2442
      %v2614 = vmax.f32 %v2165, %v2444
      %v2615 = vmax.f32 %v2164, %v2446
      %v2616 = vmax.f32 %v2166, %v2448
      %v2617 = vmax.f32 %v2174, %v2450
      %v2618 = vmax.f32 %v2182, %v2452
      %v2619 = vmax.f32 %v2181, %v2454
      %v2620 = vmax.f32 %v2183, %v2456
      %v2621 = vmax.f32 %v2191, %v2458
      %v2622 = vmax.f32 %v2199, %v2460
      %v2623 = vmax.f32 %v2198, %v2462
      %v2624 = vmax.f32 %v2200, %v2464
      %v2625 = vmax.f32 %v2208, %v2466
      %v2626 = vmax.f32 %v2216, %v2468
      %v2627 = vmax.f32 %v2215, %v2470
      %v2628 = vmax.f32 %v2217, %v2472
      %v2629 = vmax.f32 %v2225, %v2474
      %v2630 = vmax.f32 %v2233, %v2476
      %v2631 = vmax.f32 %v2232, %v2478
      %v2632 = vmax.f32 %v2234, %v2480
      %v2633 = vmax.f32 %v2242, %v2482
      %v2634 = vmax.f32 %v2250, %v2484
      %v2635 = vmax.f32 %v2249, %v2486
      %v2636 = vmax.f32 %v2251, %v2488
      %v2637 = vmax.f32 %v2259, %v2490
      %v2638 = vmax.f32 %v2267, %v2492
      %v2639 = vmax.f32 %v2266, %v2494
      %v2640 = vmax.f32 %v2268, %v2496
      %v2641 = vmax.f32 %v2276, %v2498
      %v2642 = vmax.f32 %v2284, %v2500
      %v2643 = vmax.f32 %v2283, %v2502
      %v2644 = vmax.f32 %v2285, %v2504
      %v2645 = vmax.f32 %v2293, %v2506
      %v2646 = vmax.f32 %v2301, %v2508
      %v2647 = vmax.f32 %v2300, %v2510
      %v2648 = vmax.f32 %v2302, %v2512
      %v2649 = vmax.f32 %v2310, %v2514
      %v2650 = vmax.f32 %v2318, %v2516
      %v2651 = vmax.f32 %v2317, %v2518
      %v2652 = vmax.f32 %v2319, %v2520
      %v2653 = vmax.f32 %v2327, %v2522
      %v2654 = vmax.f32 %v2335, %v2524
      %v2655 = vmax.f32 %v2334, %v2526
      %v2656 = vmax.f32 %v2336, %v2528
      %v2721 = vlaneseq
      %v2722 = vshrl.u32 %v2721, 7
      %v2723 = vsub.s32 0, %v2722
      %v2724 = vrot.slane %v2593, %v2723
      %v2725 = vlaneseq
      %v2726 = vshrl.u32 %v2725, 7
      %v2727 = vsub.s32 0, %v2726
      %v2728 = vrot.slane %v2594, %v2727
      %v2729 = vlaneseq
      %v2730 = vshrl.u32 %v2729, 7
      %v2731 = vsub.s32 0, %v2730
      %v2732 = vrot.slane %v2595, %v2731
      %v2733 = vlaneseq
      %v2734 = vshrl.u32 %v2733, 7
      %v2735 = vsub.s32 0, %v2734
      %v2736 = vrot.slane %v2596, %v2735
      %v2737 = vlaneseq
      %v2738 = vshrl.u32 %v2737, 7
      %v2739 = vsub.s32 0, %v2738
      %v2740 = vrot.slane %v2597, %v2739
      %v2741 = vlaneseq
      %v2742 = vshrl.u32 %v2741, 7
      %v2743 = vsub.s32 0, %v2742
      %v2744 = vrot.slane %v2598, %v2743
      %v2745 = vlaneseq
      %v2746 = vshrl.u32 %v2745, 7
      %v2747 = vsub.s32 0, %v2746
      %v2748 = vrot.slane %v2599, %v2747
      %v2749 = vlaneseq
      %v2750 = vshrl.u32 %v2749, 7
      %v2751 = vsub.s32 0, %v2750
      %v2752 = vrot.slane %v2600, %v2751
      %v2753 = vlaneseq
      %v2754 = vshrl.u32 %v2753, 7
      %v2755 = vsub.s32 0, %v2754
      %v2756 = vrot.slane %v2601, %v2755
      %v2757 = vlaneseq
      %v2758 = vshrl.u32 %v2757, 7
      %v2759 = vsub.s32 0, %v2758
      %v2760 = vrot.slane %v2602, %v2759
      %v2761 = vlaneseq
      %v2762 = vshrl.u32 %v2761, 7
      %v2763 = vsub.s32 0, %v2762
      %v2764 = vrot.slane %v2603, %v2763
      %v2765 = vlaneseq
      %v2766 = vshrl.u32 %v2765, 7
      %v2767 = vsub.s32 0, %v2766
      %v2768 = vrot.slane %v2604, %v2767
      %v2769 = vlaneseq
      %v2770 = vshrl.u32 %v2769, 7
      %v2771 = vsub.s32 0, %v2770
      %v2772 = vrot.slane %v2605, %v2771
      %v2773 = vlaneseq
      %v2774 = vshrl.u32 %v2773, 7
      %v2775 = vsub.s32 0, %v2774
      %v2776 = vrot.slane %v2606, %v2775
      %v2777 = vlaneseq
      %v2778 = vshrl.u32 %v2777, 7
      %v2779 = vsub.s32 0, %v2778
      %v2780 = vrot.slane %v2607, %v2779
      %v2781 = vlaneseq
      %v2782 = vshrl.u32 %v2781, 7
      %v2783 = vsub.s32 0, %v2782
      %v2784 = vrot.slane %v2608, %v2783
      %v2785 = vlaneseq
      %v2786 = vshrl.u32 %v2785, 7
      %v2787 = vsub.s32 0, %v2786
      %v2788 = vrot.slane %v2609, %v2787
      %v2789 = vlaneseq
      %v2790 = vshrl.u32 %v2789, 7
      %v2791 = vsub.s32 0, %v2790
      %v2792 = vrot.slane %v2610, %v2791
      %v2793 = vlaneseq
      %v2794 = vshrl.u32 %v2793, 7
      %v2795 = vsub.s32 0, %v2794
      %v2796 = vrot.slane %v2611, %v2795
      %v2797 = vlaneseq
      %v2798 = vshrl.u32 %v2797, 7
      %v2799 = vsub.s32 0, %v2798
      %v2800 = vrot.slane %v2612, %v2799
      %v2801 = vlaneseq
      %v2802 = vshrl.u32 %v2801, 7
      %v2803 = vsub.s32 0, %v2802
      %v2804 = vrot.slane %v2613, %v2803
      %v2805 = vlaneseq
      %v2806 = vshrl.u32 %v2805, 7
      %v2807 = vsub.s32 0, %v2806
      %v2808 = vrot.slane %v2614, %v2807
      %v2809 = vlaneseq
      %v2810 = vshrl.u32 %v2809, 7
      %v2811 = vsub.s32 0, %v2810
      %v2812 = vrot.slane %v2615, %v2811
      %v2813 = vlaneseq
      %v2814 = vshrl.u32 %v2813, 7
      %v2815 = vsub.s32 0, %v2814
      %v2816 = vrot.slane %v2616, %v2815
      %v2817 = vlaneseq
      %v2818 = vshrl.u32 %v2817, 7
      %v2819 = vsub.s32 0, %v2818
      %v2820 = vrot.slane %v2617, %v2819
      %v2821 = vlaneseq
      %v2822 = vshrl.u32 %v2821, 7
      %v2823 = vsub.s32 0, %v2822
      %v2824 = vrot.slane %v2618, %v2823
      %v2825 = vlaneseq
      %v2826 = vshrl.u32 %v2825, 7
      %v2827 = vsub.s32 0, %v2826
      %v2828 = vrot.slane %v2619, %v2827
      %v2829 = vlaneseq
      %v2830 = vshrl.u32 %v2829, 7
      %v2831 = vsub.s32 0, %v2830
      %v2832 = vrot.slane %v2620, %v2831
      %v2833 = vlaneseq
      %v2834 = vshrl.u32 %v2833, 7
      %v2835 = vsub.s32 0, %v2834
      %v2836 = vrot.slane %v2621, %v2835
      %v2837 = vlaneseq
      %v2838 = vshrl.u32 %v2837, 7
      %v2839 = vsub.s32 0, %v2838
      %v2840 = vrot.slane %v2622, %v2839
      %v2841 = vlaneseq
      %v2842 = vshrl.u32 %v2841, 7
      %v2843 = vsub.s32 0, %v2842
      %v2844 = vrot.slane %v2623, %v2843
      %v2845 = vlaneseq
      %v2846 = vshrl.u32 %v2845, 7
      %v2847 = vsub.s32 0, %v2846
      %v2848 = vrot.slane %v2624, %v2847
      %v2849 = vlaneseq
      %v2850 = vshrl.u32 %v2849, 7
      %v2851 = vsub.s32 0, %v2850
      %v2852 = vrot.slane %v2625, %v2851
      %v2853 = vlaneseq
      %v2854 = vshrl.u32 %v2853, 7
      %v2855 = vsub.s32 0, %v2854
      %v2856 = vrot.slane %v2626, %v2855
      %v2857 = vlaneseq
      %v2858 = vshrl.u32 %v2857, 7
      %v2859 = vsub.s32 0, %v2858
      %v2860 = vrot.slane %v2627, %v2859
      %v2861 = vlaneseq
      %v2862 = vshrl.u32 %v2861, 7
      %v2863 = vsub.s32 0, %v2862
      %v2864 = vrot.slane %v2628, %v2863
      %v2865 = vlaneseq
      %v2866 = vshrl.u32 %v2865, 7
      %v2867 = vsub.s32 0, %v2866
      %v2868 = vrot.slane %v2629, %v2867
      %v2869 = vlaneseq
      %v2870 = vshrl.u32 %v2869, 7
      %v2871 = vsub.s32 0, %v2870
      %v2872 = vrot.slane %v2630, %v2871
      %v2873 = vlaneseq
      %v2874 = vshrl.u32 %v2873, 7
      %v2875 = vsub.s32 0, %v2874
      %v2876 = vrot.slane %v2631, %v2875
      %v2877 = vlaneseq
      %v2878 = vshrl.u32 %v2877, 7
      %v2879 = vsub.s32 0, %v2878
      %v2880 = vrot.slane %v2632, %v2879
      %v2881 = vlaneseq
      %v2882 = vshrl.u32 %v2881, 7
      %v2883 = vsub.s32 0, %v2882
      %v2884 = vrot.slane %v2633, %v2883
      %v2885 = vlaneseq
      %v2886 = vshrl.u32 %v2885, 7
      %v2887 = vsub.s32 0, %v2886
      %v2888 = vrot.slane %v2634, %v2887
      %v2889 = vlaneseq
      %v2890 = vshrl.u32 %v2889, 7
      %v2891 = vsub.s32 0, %v2890
      %v2892 = vrot.slane %v2635, %v2891
      %v2893 = vlaneseq
      %v2894 = vshrl.u32 %v2893, 7
      %v2895 = vsub.s32 0, %v2894
      %v2896 = vrot.slane %v2636, %v2895
      %v2897 = vlaneseq
      %v2898 = vshrl.u32 %v2897, 7
      %v2899 = vsub.s32 0, %v2898
      %v2900 = vrot.slane %v2637, %v2899
      %v2901 = vlaneseq
      %v2902 = vshrl.u32 %v2901, 7
      %v2903 = vsub.s32 0, %v2902
      %v2904 = vrot.slane %v2638, %v2903
      %v2905 = vlaneseq
      %v2906 = vshrl.u32 %v2905, 7
      %v2907 = vsub.s32 0, %v2906
      %v2908 = vrot.slane %v2639, %v2907
      %v2909 = vlaneseq
      %v2910 = vshrl.u32 %v2909, 7
      %v2911 = vsub.s32 0, %v2910
      %v2912 = vrot.slane %v2640, %v2911
      %v2913 = vlaneseq
      %v2914 = vshrl.u32 %v2913, 7
      %v2915 = vsub.s32 0, %v2914
      %v2916 = vrot.slane %v2641, %v2915
      %v2917 = vlaneseq
      %v2918 = vshrl.u32 %v2917, 7
      %v2919 = vsub.s32 0, %v2918
      %v2920 = vrot.slane %v2642, %v2919
      %v2921 = vlaneseq
      %v2922 = vshrl.u32 %v2921, 7
      %v2923 = vsub.s32 0, %v2922
      %v2924 = vrot.slane %v2643, %v2923
      %v2925 = vlaneseq
      %v2926 = vshrl.u32 %v2925, 7
      %v2927 = vsub.s32 0, %v2926
      %v2928 = vrot.slane %v2644, %v2927
      %v2929 = vlaneseq
      %v2930 = vshrl.u32 %v2929, 7
      %v2931 = vsub.s32 0, %v2930
      %v2932 = vrot.slane %v2645, %v2931
      %v2933 = vlaneseq
      %v2934 = vshrl.u32 %v2933, 7
      %v2935 = vsub.s32 0, %v2934
      %v2936 = vrot.slane %v2646, %v2935
      %v2937 = vlaneseq
      %v2938 = vshrl.u32 %v2937, 7
      %v2939 = vsub.s32 0, %v2938
      %v2940 = vrot.slane %v2647, %v2939
      %v2941 = vlaneseq
      %v2942 = vshrl.u32 %v2941, 7
      %v2943 = vsub.s32 0, %v2942
      %v2944 = vrot.slane %v2648, %v2943
      %v2945 = vlaneseq
      %v2946 = vshrl.u32 %v2945, 7
      %v2947 = vsub.s32 0, %v2946
      %v2948 = vrot.slane %v2649, %v2947
      %v2949 = vlaneseq
      %v2950 = vshrl.u32 %v2949, 7
      %v2951 = vsub.s32 0, %v2950
      %v2952 = vrot.slane %v2650, %v2951
      %v2953 = vlaneseq
      %v2954 = vshrl.u32 %v2953, 7
      %v2955 = vsub.s32 0, %v2954
      %v2956 = vrot.slane %v2651, %v2955
      %v2957 = vlaneseq
      %v2958 = vshrl.u32 %v2957, 7
      %v2959 = vsub.s32 0, %v2958
      %v2960 = vrot.slane %v2652, %v2959
      %v2961 = vlaneseq
      %v2962 = vshrl.u32 %v2961, 7
      %v2963 = vsub.s32 0, %v2962
      %v2964 = vrot.slane %v2653, %v2963
      %v2965 = vlaneseq
      %v2966 = vshrl.u32 %v2965, 7
      %v2967 = vsub.s32 0, %v2966
      %v2968 = vrot.slane %v2654, %v2967
      %v2969 = vlaneseq
      %v2970 = vshrl.u32 %v2969, 7
      %v2971 = vsub.s32 0, %v2970
      %v2972 = vrot.slane %v2655, %v2971
      %v2973 = vlaneseq
      %v2974 = vshrl.u32 %v2973, 7
      %v2975 = vsub.s32 0, %v2974
      %v2976 = vrot.slane %v2656, %v2975
      %vm2977 = vcmask 1041409
      %v2978 = vsel %vm2977, %v2728, %v2724
      %vm2979 = vcmask 1042434
      %v2980 = vsel %vm2979, %v2732, %v2978
      %vm2981 = vcmask 1043459
      %v2982 = vsel %vm2981, %v2736, %v2980
      %vm2983 = vcmask 1044484
      %v2984 = vsel %vm2983, %v2740, %v2982
      %vm2985 = vcmask 1045509
      %v2986 = vsel %vm2985, %v2744, %v2984
      %vm2987 = vcmask 1046534
      %v2988 = vsel %vm2987, %v2748, %v2986
      %vm2989 = vcmask 1047559
      %v2990 = vsel %vm2989, %v2752, %v2988
      %v2991 = vsel %vm2977, %v2760, %v2756
      %v2992 = vsel %vm2979, %v2764, %v2991
      %v2993 = vsel %vm2981, %v2768, %v2992
      %v2994 = vsel %vm2983, %v2772, %v2993
      %v2995 = vsel %vm2985, %v2776, %v2994
      %v2996 = vsel %vm2987, %v2780, %v2995
      %v2997 = vsel %vm2989, %v2784, %v2996
      %v2998 = vsel %vm2977, %v2792, %v2788
      %v2999 = vsel %vm2979, %v2796, %v2998
      %v3000 = vsel %vm2981, %v2800, %v2999
      %v3001 = vsel %vm2983, %v2804, %v3000
      %v3002 = vsel %vm2985, %v2808, %v3001
      %v3003 = vsel %vm2987, %v2812, %v3002
      %v3004 = vsel %vm2989, %v2816, %v3003
      %v3005 = vsel %vm2977, %v2824, %v2820
      %v3006 = vsel %vm2979, %v2828, %v3005
      %v3007 = vsel %vm2981, %v2832, %v3006
      %v3008 = vsel %vm2983, %v2836, %v3007
      %v3009 = vsel %vm2985, %v2840, %v3008
      %v3010 = vsel %vm2987, %v2844, %v3009
      %v3011 = vsel %vm2989, %v2848, %v3010
      %v3012 = vsel %vm2977, %v2856, %v2852
      %v3013 = vsel %vm2979, %v2860, %v3012
      %v3014 = vsel %vm2981, %v2864, %v3013
      %v3015 = vsel %vm2983, %v2868, %v3014
      %v3016 = vsel %vm2985, %v2872, %v3015
      %v3017 = vsel %vm2987, %v2876, %v3016
      %v3018 = vsel %vm2989, %v2880, %v3017
      %v3019 = vsel %vm2977, %v2888, %v2884
      %v3020 = vsel %vm2979, %v2892, %v3019
      %v3021 = vsel %vm2981, %v2896, %v3020
      %v3022 = vsel %vm2983, %v2900, %v3021
      %v3023 = vsel %vm2985, %v2904, %v3022
      %v3024 = vsel %vm2987, %v2908, %v3023
      %v3025 = vsel %vm2989, %v2912, %v3024
      %v3026 = vsel %vm2977, %v2920, %v2916
      %v3027 = vsel %vm2979, %v2924, %v3026
      %v3028 = vsel %vm2981, %v2928, %v3027
      %v3029 = vsel %vm2983, %v2932, %v3028
      %v3030 = vsel %vm2985, %v2936, %v3029
      %v3031 = vsel %vm2987, %v2940, %v3030
      %v3032 = vsel %vm2989, %v2944, %v3031
      %v3033 = vsel %vm2977, %v2952, %v2948
      %v3034 = vsel %vm2979, %v2956, %v3033
      %v3035 = vsel %vm2981, %v2960, %v3034
      %v3036 = vsel %vm2983, %v2964, %v3035
      %v3037 = vsel %vm2985, %v2968, %v3036
      %v3038 = vsel %vm2987, %v2972, %v3037
      %v3039 = vsel %vm2989, %v2976, %v3038
      %3047 = vrot.lane.b32.xlu0 %v2990, 16
      %v3048 = vpop.permute.xlu0 %3047
      %3049 = vrot.lane.b32.xlu0 %v2997, 16
      %v3050 = vpop.permute.xlu0 %3049
      %3051 = vrot.lane.b32.xlu0 %v3004, 16
      %v3052 = vpop.permute.xlu0 %3051
      %3053 = vrot.lane.b32.xlu0 %v3011, 16
      %v3054 = vpop.permute.xlu0 %3053
      %3055 = vrot.lane.b32.xlu0 %v3018, 16
      %v3056 = vpop.permute.xlu0 %3055
      %3057 = vrot.lane.b32.xlu0 %v3025, 16
      %v3058 = vpop.permute.xlu0 %3057
      %3059 = vrot.lane.b32.xlu0 %v3032, 16
      %v3060 = vpop.permute.xlu0 %3059
      %3061 = vrot.lane.b32.xlu0 %v3039, 16
      %v3062 = vpop.permute.xlu0 %3061
      %3071 = vrot.lane.b32.xlu0 %v2997, 32
      %v3072 = vpop.permute.xlu0 %3071
      %3073 = vrot.lane.b32.xlu0 %v3004, 32
      %v3074 = vpop.permute.xlu0 %3073
      %3075 = vrot.lane.b32.xlu0 %v3011, 32
      %v3076 = vpop.permute.xlu0 %3075
      %3077 = vrot.lane.b32.xlu0 %v3018, 32
      %v3078 = vpop.permute.xlu0 %3077
      %3079 = vrot.lane.b32.xlu0 %v3025, 32
      %v3080 = vpop.permute.xlu0 %3079
      %3081 = vrot.lane.b32.xlu0 %v3032, 32
      %v3082 = vpop.permute.xlu0 %3081
      %3083 = vrot.lane.b32.xlu0 %v3039, 32
      %v3084 = vpop.permute.xlu0 %3083
      %3085 = vrot.lane.b32.xlu0 0.0, 32
      %v3086 = vpop.permute.xlu0 %3085
      %vm3095 = vcmask 130048
      %v3096 = vsel %vm3095, 0.0, %v3048
      %v3097 = vsel %vm3095, %v2990, %v3050
      %v3098 = vsel %vm3095, %v2997, %v3052
      %v3099 = vsel %vm3095, %v3004, %v3054
      %v3100 = vsel %vm3095, %v3011, %v3056
      %v3101 = vsel %vm3095, %v3018, %v3058
      %v3102 = vsel %vm3095, %v3025, %v3060
      %v3103 = vsel %vm3095, %v3032, %v3062
      %vm3104 = vcmask 261120
      %v3105 = vsel %vm3104, %v3096, %v3072
      %v3106 = vsel %vm3104, %v3097, %v3074
      %v3107 = vsel %vm3104, %v3098, %v3076
      %v3108 = vsel %vm3104, %v3099, %v3078
      %v3109 = vsel %vm3104, %v3100, %v3080
      %v3110 = vsel %vm3104, %v3101, %v3082
      %v3111 = vsel %vm3104, %v3102, %v3084
      %v3112 = vsel %vm3104, %v3103, %v3086
      %v3121 = vrot.slane %v3105, 7
      %v3122 = vrot.slane %v3106, 7
      %v3123 = vrot.slane %v3107, 7
      %v3124 = vrot.slane %v3108, 7
      %v3125 = vrot.slane %v3109, 7
      %v3126 = vrot.slane %v3110, 7
      %v3127 = vrot.slane %v3111, 7
      %v3128 = vrot.slane %v3112, 7
      %v3137 = vsel %vm1099, 0.0, %v3121
      %v3138 = vsel %vm1099, 0.0, %v3122
      %v3139 = vsel %vm1099, 0.0, %v3123
      %v3140 = vsel %vm1099, 0.0, %v3124
      %v3141 = vsel %vm1099, 0.0, %v3125
      %v3142 = vsel %vm1099, 0.0, %v3126
      %v3143 = vsel %vm1099, 0.0, %v3127
      %v3144 = vsel %vm1099, 0.0, %v3128
      %v3145 = vsel %vm1099, %v3121, 0.0
      %v3146 = vsel %vm1099, %v3122, 0.0
      %v3147 = vsel %vm1099, %v3123, 0.0
      %v3148 = vsel %vm1099, %v3124, 0.0
      %v3149 = vsel %vm1099, %v3125, 0.0
      %v3150 = vsel %vm1099, %v3126, 0.0
      %v3151 = vsel %vm1099, %v3127, 0.0
      %v3152 = vsel %vm1099, %v3128, 0.0
      %v3169 = vrot.slane %v3137, 1
      %v3170 = vrot.slane %v3145, 1
      %v3171 = vsel %vm1260, %v3169, %v3170
      %v3172 = vrot.slane %v3138, 1
      %v3173 = vrot.slane %v3146, 1
      %v3174 = vsel %vm1260, %v3172, %v3173
      %v3175 = vrot.slane %v3139, 1
      %v3176 = vrot.slane %v3147, 1
      %v3177 = vsel %vm1260, %v3175, %v3176
      %v3178 = vrot.slane %v3140, 1
      %v3179 = vrot.slane %v3148, 1
      %v3180 = vsel %vm1260, %v3178, %v3179
      %v3181 = vrot.slane %v3141, 1
      %v3182 = vrot.slane %v3149, 1
      %v3183 = vsel %vm1260, %v3181, %v3182
      %v3184 = vrot.slane %v3142, 1
      %v3185 = vrot.slane %v3150, 1
      %v3186 = vsel %vm1260, %v3184, %v3185
      %v3187 = vrot.slane %v3143, 1
      %v3188 = vrot.slane %v3151, 1
      %v3189 = vsel %vm1260, %v3187, %v3188
      %v3190 = vrot.slane %v3144, 1
      %v3191 = vrot.slane %v3152, 1
      %v3192 = vsel %vm1260, %v3190, %v3191
      %3193 = vrot.lane.b32.xlu0 %v3171, 48
      %v3194 = vpop.permute.xlu0 %3193
      %3195 = vrot.lane.b32.xlu0 %v3174, 48
      %v3196 = vpop.permute.xlu0 %3195
      %3197 = vrot.lane.b32.xlu0 %v3177, 48
      %v3198 = vpop.permute.xlu0 %3197
      %3199 = vrot.lane.b32.xlu0 %v3180, 48
      %v3200 = vpop.permute.xlu0 %3199
      %3201 = vrot.lane.b32.xlu0 %v3183, 48
      %v3202 = vpop.permute.xlu0 %3201
      %3203 = vrot.lane.b32.xlu0 %v3186, 48
      %v3204 = vpop.permute.xlu0 %3203
      %3205 = vrot.lane.b32.xlu0 %v3189, 48
      %v3206 = vpop.permute.xlu0 %3205
      %3207 = vrot.lane.b32.xlu0 %v3192, 48
      %v3208 = vpop.permute.xlu0 %3207
      %v3217 = vrot.slane %v3137, 2
      %v3218 = vrot.slane %v3145, 2
      %v3219 = vsel %vm1437, %v3217, %v3218
      %v3220 = vrot.slane %v3138, 2
      %v3221 = vrot.slane %v3146, 2
      %v3222 = vsel %vm1437, %v3220, %v3221
      %v3223 = vrot.slane %v3139, 2
      %v3224 = vrot.slane %v3147, 2
      %v3225 = vsel %vm1437, %v3223, %v3224
      %v3226 = vrot.slane %v3140, 2
      %v3227 = vrot.slane %v3148, 2
      %v3228 = vsel %vm1437, %v3226, %v3227
      %v3229 = vrot.slane %v3141, 2
      %v3230 = vrot.slane %v3149, 2
      %v3231 = vsel %vm1437, %v3229, %v3230
      %v3232 = vrot.slane %v3142, 2
      %v3233 = vrot.slane %v3150, 2
      %v3234 = vsel %vm1437, %v3232, %v3233
      %v3235 = vrot.slane %v3143, 2
      %v3236 = vrot.slane %v3151, 2
      %v3237 = vsel %vm1437, %v3235, %v3236
      %v3238 = vrot.slane %v3144, 2
      %v3239 = vrot.slane %v3152, 2
      %v3240 = vsel %vm1437, %v3238, %v3239
      %3241 = vrot.lane.b32.xlu0 %v3219, 96
      %v3242 = vpop.permute.xlu0 %3241
      %3243 = vrot.lane.b32.xlu0 %v3222, 96
      %v3244 = vpop.permute.xlu0 %3243
      %3245 = vrot.lane.b32.xlu0 %v3225, 96
      %v3246 = vpop.permute.xlu0 %3245
      %3247 = vrot.lane.b32.xlu0 %v3228, 96
      %v3248 = vpop.permute.xlu0 %3247
      %3249 = vrot.lane.b32.xlu0 %v3231, 96
      %v3250 = vpop.permute.xlu0 %3249
      %3251 = vrot.lane.b32.xlu0 %v3234, 96
      %v3252 = vpop.permute.xlu0 %3251
      %3253 = vrot.lane.b32.xlu0 %v3237, 96
      %v3254 = vpop.permute.xlu0 %3253
      %3255 = vrot.lane.b32.xlu0 %v3240, 96
      %v3256 = vpop.permute.xlu0 %3255
      %vm3265 = vcmask 392192
      %v3266 = vsel %vm3265, %v3137, %v3194
      %v3267 = vsel %vm3265, %v3138, %v3196
      %v3268 = vsel %vm3265, %v3139, %v3198
      %v3269 = vsel %vm3265, %v3140, %v3200
      %v3270 = vsel %vm3265, %v3141, %v3202
      %v3271 = vsel %vm3265, %v3142, %v3204
      %v3272 = vsel %vm3265, %v3143, %v3206
      %v3273 = vsel %vm3265, %v3144, %v3208
      %vm3274 = vcmask 785408
      %v3275 = vsel %vm3274, %v3266, %v3242
      %v3276 = vsel %vm3274, %v3267, %v3244
      %v3277 = vsel %vm3274, %v3268, %v3246
      %v3278 = vsel %vm3274, %v3269, %v3248
      %v3279 = vsel %vm3274, %v3270, %v3250
      %v3280 = vsel %vm3274, %v3271, %v3252
      %v3281 = vsel %vm3274, %v3272, %v3254
      %v3282 = vsel %vm3274, %v3273, %v3256
      %v3283 = vpack.c.bf16 %v3276, %v3275
      %v3284 = vpack.c.bf16 %v3244, %v3242
      %v3285 = vpack.c.bf16 %v3278, %v3277
      %v3286 = vpack.c.bf16 %v3248, %v3246
      %v3287 = vpack.c.bf16 %v3280, %v3279
      %v3288 = vpack.c.bf16 %v3252, %v3250
      %v3289 = vpack.c.bf16 %v3282, %v3281
      %v3290 = vpack.c.bf16 %v3256, %v3254
      %v3291 = vld [vmem:[%s3] sm:$0xf]
      %v3292 = vld [vmem:[%s3 + $0x4] sm:$0xf]
      %v3293 = vld [vmem:[%s3 + $0x8] sm:$0xf]
      %v3294 = vld [vmem:[%s3 + $0xc] sm:$0xf]
      %v3295 = vld [vmem:[%s3 + $0x10] sm:$0xf]
      %v3296 = vld [vmem:[%s3 + $0x14] sm:$0xf]
      %v3297 = vld [vmem:[%s3 + $0x18] sm:$0xf]
      %v3298 = vld [vmem:[%s3 + $0x1c] sm:$0xf]
      %v3299 = vld [vmem:[%s3 + $0x20] sm:$0xf]
      %v3300 = vld [vmem:[%s3 + $0x24] sm:$0xf]
      %v3301 = vld [vmem:[%s3 + $0x28] sm:$0xf]
      %v3302 = vld [vmem:[%s3 + $0x2c] sm:$0xf]
      %v3303 = vld [vmem:[%s3 + $0x30] sm:$0xf]
      %v3304 = vld [vmem:[%s3 + $0x34] sm:$0xf]
      %v3305 = vld [vmem:[%s3 + $0x38] sm:$0xf]
      %v3306 = vld [vmem:[%s3 + $0x3c] sm:$0xf]
      %v3307 = vld [vmem:[%s3 + $0x40] sm:$0xf]
      %v3308 = vld [vmem:[%s3 + $0x44] sm:$0xf]
      %v3327 = vunpack.c.l.b16 %v3291
      %v3328 = vunpack.c.l.b16 %v3292
      %v3329 = vunpack.c.l.b16 %v3293
      %v3330 = vunpack.c.l.b16 %v3294
      %v3331 = vunpack.c.l.b16 %v3295
      %v3332 = vunpack.c.l.b16 %v3296
      %v3333 = vunpack.c.l.b16 %v3297
      %v3334 = vunpack.c.l.b16 %v3298
      %v3335 = vunpack.c.l.b16 %v3299
      %v3336 = vunpack.c.l.b16 %v3300
      %v3337 = vunpack.c.l.b16 %v3301
      %v3338 = vunpack.c.l.b16 %v3302
      %v3339 = vunpack.c.l.b16 %v3303
      %v3340 = vunpack.c.l.b16 %v3304
      %v3341 = vunpack.c.l.b16 %v3305
      %v3342 = vunpack.c.l.b16 %v3306
      %v3343 = vunpack.c.l.b16 %v3307
      %v3344 = vunpack.c.l.b16 %v3308
      %v3345 = vpack.c.b16 %v3328, %v3327
      %v3346 = vpack.c.b16 %v3330, %v3329
      %v3347 = vpack.c.b16 %v3332, %v3331
      %v3348 = vpack.c.b16 %v3334, %v3333
      %v3349 = vpack.c.b16 %v3336, %v3335
      %v3350 = vpack.c.b16 %v3338, %v3337
      %v3351 = vpack.c.b16 %v3340, %v3339
      %v3352 = vpack.c.b16 %v3342, %v3341
      %v3353 = vpack.c.b16 %v3344, %v3343
      %v3364 = vsel %vm3095, %v3284, 0
      %v3367 = vsel %vm3095, %v3286, 0
      %v3370 = vsel %vm3095, %v3288, 0
      %v3373 = vsel %vm3095, %v3290, 0
      %3375 = vmatprep.subr.bf16.mxu0 0
      %3376 = vmatpush1.bf16.msra.mxu0 %v3345
      %3377 = vmatprep.subr.bf16.mxu0 0
      %3378 = vmatpush1.bf16.msra.mxu0 %v3346
      %3379 = vmatprep.subr.bf16.mxu0 0
      %3380 = vmatpush1.bf16.msra.mxu0 %v3347
      %3381 = vmatprep.subr.bf16.mxu0 0
      %3382 = vmatpush1.bf16.msra.mxu0 %v3348
      %3383 = vmatprep.subr.bf16.mxu0 0
      %3384 = vmatpush1.bf16.msra.mxu0 %v3349
      %3385 = vmatprep.subr.bf16.mxu0 0
      %3386 = vmatpush1.bf16.msra.mxu0 %v3350
      %3387 = vmatprep.subr.bf16.mxu0 0
      %3388 = vmatpush1.bf16.msra.mxu0 %v3351
      %3389 = vmatprep.subr.bf16.mxu0 0
      %3390 = vmatpush1.bf16.msra.mxu0 %v3352
      %3391 = vmatprep.subr.bf16.mxu0 0
      %3392 = vmatpush1.bf16.msra.mxu0 %v3353
      %3393 = vmatprep.subr.bf16.mxu0 0
      %3394 = vmatpush1.bf16.msra.mxu0 0
      %3395 = vmatprep.subr.bf16.mxu0 0
      %3396 = vmatpush1.bf16.msra.mxu0 0
      %3397 = vmatprep.subr.bf16.mxu0 0
      %3398 = vmatpush1.bf16.msra.mxu0 0
      %3399 = vmatprep.subr.bf16.mxu0 0
      %3400 = vmatpush1.bf16.msra.mxu0 0
      %3401 = vmatprep.subr.bf16.mxu0 0
      %3402 = vmatpush1.bf16.msra.mxu0 0
      %3403 = vmatprep.subr.bf16.mxu0 0
      %3404 = vmatpush1.bf16.msra.mxu0 0
      %3405 = vmatprep.subr.bf16.mxu0 0
      %3406 = vmatpush1.bf16.msra.mxu0 0
      %3407 = vmatprep.mubr.bf16.mxu0 %v3364
      %3408 = vmatmul.mubr.bf16.gmra.mrb[0].mxu0 %v3283
      %v3409 = vpop.f32.mrb[0].mxu0
      %v3410 = vadd.f32 0.0, %v3409
      %v3411 = vpop.f32.mrb[0].mxu0
      %v3412 = vpop.f32.mrb[0].mxu0
      %v3413 = vadd.f32 0.0, %v3412
      %v3414 = vpop.f32.mrb[0].mxu0
      %3415 = vmatprep.mubr.bf16.mxu0 %v3367
      %3416 = vmatmul.mubr.bf16.gmra.mrb[0].mxu0 %v3285
      %v3417 = vpop.f32.mrb[0].mxu0
      %v3418 = vadd.f32 0.0, %v3417
      %v3419 = vpop.f32.mrb[0].mxu0
      %v3420 = vpop.f32.mrb[0].mxu0
      %v3421 = vadd.f32 0.0, %v3420
      %v3422 = vpop.f32.mrb[0].mxu0
      %3423 = vmatprep.mubr.bf16.mxu0 %v3370
      %3424 = vmatmul.mubr.bf16.gmra.mrb[0].mxu0 %v3287
      %v3425 = vpop.f32.mrb[0].mxu0
      %v3426 = vadd.f32 0.0, %v3425
      %v3427 = vpop.f32.mrb[0].mxu0
      %v3428 = vpop.f32.mrb[0].mxu0
      %v3429 = vadd.f32 0.0, %v3428
      %v3430 = vpop.f32.mrb[0].mxu0
      %3431 = vmatprep.mubr.bf16.mxu0 %v3373
      %3432 = vmatmul.mubr.bf16.gmra.mrb[0].mxu0 %v3289
      %v3433 = vpop.f32.mrb[0].mxu0
      %v3434 = vadd.f32 0.0, %v3433
      %v3435 = vpop.f32.mrb[0].mxu0
      %v3436 = vpop.f32.mrb[0].mxu0
      %v3437 = vadd.f32 0.0, %v3436
      %v3438 = vpop.f32.mrb[0].mxu0
      %3439 = vdwg.mxu0
      %v3440 = vld [vmem:[%s4] sm:$0x1]
      %v3441 = vlaneseq
      %v3442 = vshrl.u32 %v3441, 7
      %v3443 = vsub.s32 0, %v3442
      %v3444 = vrot.slane %v3440, %v3443
      %v3445 = vmul.f32 %v3410, %v3444
      %v3446 = vmul.f32 %v3413, %v3444
      %v3447 = vmul.f32 %v3418, %v3444
      %v3448 = vmul.f32 %v3421, %v3444
      %v3449 = vmul.f32 %v3426, %v3444
      %v3450 = vmul.f32 %v3429, %v3444
      %v3451 = vmul.f32 %v3434, %v3444
      %v3452 = vmul.f32 %v3437, %v3444
      %v3453 = vld [vmem:[%s4 + $0x1] sm:$0x1]
      %v3454 = vlaneseq
      %v3455 = vshrl.u32 %v3454, 7
      %v3456 = vsub.s32 0, %v3455
      %v3457 = vrot.slane %v3453, %v3456
      %v3458 = vadd.f32 %v3445, %v3457
      %v3459 = vadd.f32 %v3446, %v3457
      %v3460 = vadd.f32 %v3447, %v3457
      %v3461 = vadd.f32 %v3448, %v3457
      %v3462 = vadd.f32 %v3449, %v3457
      %v3463 = vadd.f32 %v3450, %v3457
      %v3464 = vadd.f32 %v3451, %v3457
      %v3465 = vadd.f32 %v3452, %v3457
      %v3466 = vmax.f32 %v3458, 0.0
      %v3467 = vmax.f32 %v3459, 0.0
      %v3468 = vmax.f32 %v3460, 0.0
      %v3469 = vmax.f32 %v3461, 0.0
      %v3470 = vmax.f32 %v3462, 0.0
      %v3471 = vmax.f32 %v3463, 0.0
      %v3472 = vmax.f32 %v3464, 0.0
      %v3473 = vmax.f32 %v3465, 0.0
      %v3474 = vmax.f32 %v3466, %v3467
      %v3475 = vmax.f32 %v3468, %v3469
      %v3476 = vmax.f32 %v3470, %v3471
      %v3477 = vmax.f32 %v3472, %v3473
      %v3482 = vcombine.high %v3474, %v3474
      %v3484 = vunpack.c.l.s4 1983009808
      %v3485 = vunpack.c.0.s8 %v3484
      %v3486 = vlaneseq
      %v3487 = vshrl.u32 %v3486, 7
      %v3488 = vsub.s32 %v3485, %v3487
      %v3489 = vrot.slane %v3474, %v3488
      %v3491 = vunpack.c.l.s4 1983009808
      %v3492 = vunpack.c.0.s8 %v3491
      %v3493 = vlaneseq
      %v3494 = vshrl.u32 %v3493, 7
      %v3495 = vsub.s32 %v3492, %v3494
      %v3496 = vrot.slane %v3482, %v3495
      %v3497 = vcombine.high %v3489, %v3489
      %v3498 = vcombine.high %v3496, %v3496
      %v3499 = vcombine.high %v3475, %v3475
      %v3501 = vunpack.c.l.s4 1983009808
      %v3502 = vunpack.c.0.s8 %v3501
      %v3503 = vlaneseq
      %v3504 = vshrl.u32 %v3503, 7
      %v3505 = vsub.s32 %v3502, %v3504
      %v3506 = vrot.slane %v3475, %v3505
      %v3508 = vunpack.c.l.s4 1983009808
      %v3509 = vunpack.c.0.s8 %v3508
      %v3510 = vlaneseq
      %v3511 = vshrl.u32 %v3510, 7
      %v3512 = vsub.s32 %v3509, %v3511
      %v3513 = vrot.slane %v3499, %v3512
      %v3514 = vcombine.high %v3506, %v3506
      %v3515 = vcombine.high %v3513, %v3513
      %v3516 = vcombine.high %v3476, %v3476
      %v3518 = vunpack.c.l.s4 1983009808
      %v3519 = vunpack.c.0.s8 %v3518
      %v3520 = vlaneseq
      %v3521 = vshrl.u32 %v3520, 7
      %v3522 = vsub.s32 %v3519, %v3521
      %v3523 = vrot.slane %v3476, %v3522
      %v3525 = vunpack.c.l.s4 1983009808
      %v3526 = vunpack.c.0.s8 %v3525
      %v3527 = vlaneseq
      %v3528 = vshrl.u32 %v3527, 7
      %v3529 = vsub.s32 %v3526, %v3528
      %v3530 = vrot.slane %v3516, %v3529
      %v3531 = vcombine.high %v3523, %v3523
      %v3532 = vcombine.high %v3530, %v3530
      %v3533 = vcombine.high %v3477, %v3477
      %v3535 = vunpack.c.l.s4 1983009808
      %v3536 = vunpack.c.0.s8 %v3535
      %v3537 = vlaneseq
      %v3538 = vshrl.u32 %v3537, 7
      %v3539 = vsub.s32 %v3536, %v3538
      %v3540 = vrot.slane %v3477, %v3539
      %v3542 = vunpack.c.l.s4 1983009808
      %v3543 = vunpack.c.0.s8 %v3542
      %v3544 = vlaneseq
      %v3545 = vshrl.u32 %v3544, 7
      %v3546 = vsub.s32 %v3543, %v3545
      %v3547 = vrot.slane %v3533, %v3546
      %v3548 = vcombine.high %v3540, %v3540
      %v3549 = vcombine.high %v3547, %v3547
      %v3566 = vrot.slane %v3489, 7
      %v3567 = vrot.slane %v3566, 2
      %v3568 = vrot.slane %v3497, 7
      %v3569 = vrot.slane %v3568, 2
      %v3570 = vrot.slane %v3496, 7
      %v3571 = vrot.slane %v3570, 2
      %v3572 = vrot.slane %v3498, 7
      %v3573 = vrot.slane %v3572, 2
      %v3574 = vrot.slane %v3506, 7
      %v3575 = vrot.slane %v3574, 2
      %v3576 = vrot.slane %v3514, 7
      %v3577 = vrot.slane %v3576, 2
      %v3578 = vrot.slane %v3513, 7
      %v3579 = vrot.slane %v3578, 2
      %v3580 = vrot.slane %v3515, 7
      %v3581 = vrot.slane %v3580, 2
      %v3582 = vrot.slane %v3523, 7
      %v3583 = vrot.slane %v3582, 2
      %v3584 = vrot.slane %v3531, 7
      %v3585 = vrot.slane %v3584, 2
      %v3586 = vrot.slane %v3530, 7
      %v3587 = vrot.slane %v3586, 2
      %v3588 = vrot.slane %v3532, 7
      %v3589 = vrot.slane %v3588, 2
      %v3590 = vrot.slane %v3540, 7
      %v3591 = vrot.slane %v3590, 2
      %v3592 = vrot.slane %v3548, 7
      %v3593 = vrot.slane %v3592, 2
      %v3594 = vrot.slane %v3547, 7
      %v3595 = vrot.slane %v3594, 2
      %v3596 = vrot.slane %v3549, 7
      %v3597 = vrot.slane %v3596, 2
      %v3614 = vmax.f32 %v3489, %v3567
      %v3615 = vmax.f32 %v3497, %v3569
      %v3616 = vmax.f32 %v3496, %v3571
      %v3617 = vmax.f32 %v3498, %v3573
      %v3618 = vmax.f32 %v3506, %v3575
      %v3619 = vmax.f32 %v3514, %v3577
      %v3620 = vmax.f32 %v3513, %v3579
      %v3621 = vmax.f32 %v3515, %v3581
      %v3622 = vmax.f32 %v3523, %v3583
      %v3623 = vmax.f32 %v3531, %v3585
      %v3624 = vmax.f32 %v3530, %v3587
      %v3625 = vmax.f32 %v3532, %v3589
      %v3626 = vmax.f32 %v3540, %v3591
      %v3627 = vmax.f32 %v3548, %v3593
      %v3628 = vmax.f32 %v3547, %v3595
      %v3629 = vmax.f32 %v3549, %v3597
      %v3646 = vlaneseq
      %v3647 = vshrl.u32 %v3646, 7
      %v3648 = vsub.s32 0, %v3647
      %v3649 = vrot.slane %v3614, %v3648
      %v3650 = vlaneseq
      %v3651 = vshrl.u32 %v3650, 7
      %v3652 = vsub.s32 0, %v3651
      %v3653 = vrot.slane %v3615, %v3652
      %v3654 = vlaneseq
      %v3655 = vshrl.u32 %v3654, 7
      %v3656 = vsub.s32 0, %v3655
      %v3657 = vrot.slane %v3616, %v3656
      %v3658 = vlaneseq
      %v3659 = vshrl.u32 %v3658, 7
      %v3660 = vsub.s32 0, %v3659
      %v3661 = vrot.slane %v3617, %v3660
      %v3662 = vlaneseq
      %v3663 = vshrl.u32 %v3662, 7
      %v3664 = vsub.s32 0, %v3663
      %v3665 = vrot.slane %v3618, %v3664
      %v3666 = vlaneseq
      %v3667 = vshrl.u32 %v3666, 7
      %v3668 = vsub.s32 0, %v3667
      %v3669 = vrot.slane %v3619, %v3668
      %v3670 = vlaneseq
      %v3671 = vshrl.u32 %v3670, 7
      %v3672 = vsub.s32 0, %v3671
      %v3673 = vrot.slane %v3620, %v3672
      %v3674 = vlaneseq
      %v3675 = vshrl.u32 %v3674, 7
      %v3676 = vsub.s32 0, %v3675
      %v3677 = vrot.slane %v3621, %v3676
      %v3678 = vlaneseq
      %v3679 = vshrl.u32 %v3678, 7
      %v3680 = vsub.s32 0, %v3679
      %v3681 = vrot.slane %v3622, %v3680
      %v3682 = vlaneseq
      %v3683 = vshrl.u32 %v3682, 7
      %v3684 = vsub.s32 0, %v3683
      %v3685 = vrot.slane %v3623, %v3684
      %v3686 = vlaneseq
      %v3687 = vshrl.u32 %v3686, 7
      %v3688 = vsub.s32 0, %v3687
      %v3689 = vrot.slane %v3624, %v3688
      %v3690 = vlaneseq
      %v3691 = vshrl.u32 %v3690, 7
      %v3692 = vsub.s32 0, %v3691
      %v3693 = vrot.slane %v3625, %v3692
      %v3694 = vlaneseq
      %v3695 = vshrl.u32 %v3694, 7
      %v3696 = vsub.s32 0, %v3695
      %v3697 = vrot.slane %v3626, %v3696
      %v3698 = vlaneseq
      %v3699 = vshrl.u32 %v3698, 7
      %v3700 = vsub.s32 0, %v3699
      %v3701 = vrot.slane %v3627, %v3700
      %v3702 = vlaneseq
      %v3703 = vshrl.u32 %v3702, 7
      %v3704 = vsub.s32 0, %v3703
      %v3705 = vrot.slane %v3628, %v3704
      %v3706 = vlaneseq
      %v3707 = vshrl.u32 %v3706, 7
      %v3708 = vsub.s32 0, %v3707
      %v3709 = vrot.slane %v3629, %v3708
      %v3710 = vsel %vm2977, %v3653, %v3649
      %v3711 = vsel %vm2979, %v3657, %v3710
      %v3712 = vsel %vm2981, %v3661, %v3711
      %v3713 = vsel %vm2977, %v3669, %v3665
      %v3714 = vsel %vm2979, %v3673, %v3713
      %v3715 = vsel %vm2981, %v3677, %v3714
      %v3716 = vsel %vm2977, %v3685, %v3681
      %v3717 = vsel %vm2979, %v3689, %v3716
      %v3718 = vsel %vm2981, %v3693, %v3717
      %v3719 = vsel %vm2977, %v3701, %v3697
      %v3720 = vsel %vm2979, %v3705, %v3719
      %v3721 = vsel %vm2981, %v3709, %v3720
      %3725 = vrot.lane.b32.xlu0 %v3712, 16
      %v3726 = vpop.permute.xlu0 %3725
      %3727 = vrot.lane.b32.xlu0 %v3715, 16
      %v3728 = vpop.permute.xlu0 %3727
      %3729 = vrot.lane.b32.xlu0 %v3718, 16
      %v3730 = vpop.permute.xlu0 %3729
      %3731 = vrot.lane.b32.xlu0 %v3721, 16
      %v3732 = vpop.permute.xlu0 %3731
      %3737 = vrot.lane.b32.xlu0 %v3715, 32
      %v3738 = vpop.permute.xlu0 %3737
      %3739 = vrot.lane.b32.xlu0 %v3718, 32
      %v3740 = vpop.permute.xlu0 %3739
      %3741 = vrot.lane.b32.xlu0 %v3721, 32
      %v3742 = vpop.permute.xlu0 %3741
      %v3746 = vsel %vm3095, 0.0, %v3726
      %v3747 = vsel %vm3095, %v3712, %v3728
      %v3748 = vsel %vm3095, %v3715, %v3730
      %v3749 = vsel %vm3095, %v3718, %v3732
      %v3750 = vsel %vm3104, %v3746, %v3738
      %v3751 = vsel %vm3104, %v3747, %v3740
      %v3752 = vsel %vm3104, %v3748, %v3742
      %v3753 = vsel %vm3104, %v3749, %v3086
      %v3758 = vrot.slane %v3750, 7
      %v3759 = vrot.slane %v3751, 7
      %v3760 = vrot.slane %v3752, 7
      %v3761 = vrot.slane %v3753, 7
      %v3766 = vsel %vm1099, 0.0, %v3758
      %v3767 = vsel %vm1099, 0.0, %v3759
      %v3768 = vsel %vm1099, 0.0, %v3760
      %v3769 = vsel %vm1099, 0.0, %v3761
      %v3770 = vsel %vm1760, %v3766, 0.0
      %v3771 = vsel %vm1760, %v3767, 0.0
      %v3772 = vsel %vm1760, %v3768, 0.0
      %v3773 = vsel %vm1760, %v3769, 0.0
      %v3778 = vrot.slane %v3770, 1
      %v3779 = vrot.slane %v3771, 1
      %v3780 = vrot.slane %v3772, 1
      %v3781 = vrot.slane %v3773, 1
      %3782 = vrot.lane.b32.xlu0 %v3778, 48
      %v3783 = vpop.permute.xlu0 %3782
      %3784 = vrot.lane.b32.xlu0 %v3779, 48
      %v3785 = vpop.permute.xlu0 %3784
      %3786 = vrot.lane.b32.xlu0 %v3780, 48
      %v3787 = vpop.permute.xlu0 %3786
      %3788 = vrot.lane.b32.xlu0 %v3781, 48
      %v3789 = vpop.permute.xlu0 %3788
      %v3794 = vrot.slane %v3770, 2
      %v3795 = vrot.slane %v3771, 2
      %v3796 = vrot.slane %v3772, 2
      %v3797 = vrot.slane %v3773, 2
      %3798 = vrot.lane.b32.xlu0 %v3794, 96
      %v3799 = vpop.permute.xlu0 %3798
      %3800 = vrot.lane.b32.xlu0 %v3795, 96
      %v3801 = vpop.permute.xlu0 %3800
      %3802 = vrot.lane.b32.xlu0 %v3796, 96
      %v3803 = vpop.permute.xlu0 %3802
      %3804 = vrot.lane.b32.xlu0 %v3797, 96
      %v3805 = vpop.permute.xlu0 %3804
      %v3810 = vsel %vm3265, %v3770, %v3783
      %v3811 = vsel %vm3265, %v3771, %v3785
      %v3812 = vsel %vm3265, %v3772, %v3787
      %v3813 = vsel %vm3265, %v3773, %v3789
      %v3814 = vsel %vm3274, %v3810, %v3799
      %v3815 = vsel %vm3274, %v3811, %v3801
      %v3816 = vsel %vm3274, %v3812, %v3803
      %v3817 = vsel %vm3274, %v3813, %v3805
      %v3822 = vcombine.low %v3814, %v3799
      %v3823 = vcombine.low %v3815, %v3801
      %v3824 = vcombine.low %v3816, %v3803
      %v3825 = vcombine.low %v3817, %v3805
      %v3826 = vcombine.low %v3822, %v3823
      %v3827 = vcombine.high %v3822, %v3823
      %v3828 = vcombine.low %v3824, %v3825
      %v3829 = vcombine.high %v3824, %v3825
      %v3834 = vpack.c.bf16 %v3828, %v3826
      %v3835 = vpack.c.bf16 %v3829, %v3827
      %v3836 = vld [vmem:[%s5] sm:$0xf]
      %v3837 = vld [vmem:[%s5 + $0x4] sm:$0xf]
      %v3838 = vld [vmem:[%s5 + $0x8] sm:$0xf]
      %v3839 = vld [vmem:[%s5 + $0xc] sm:$0xf]
      %v3840 = vld [vmem:[%s5 + $0x10] sm:$0xf]
      %v3841 = vld [vmem:[%s5 + $0x14] sm:$0xf]
      %v3842 = vld [vmem:[%s5 + $0x18] sm:$0xf]
      %v3843 = vld [vmem:[%s5 + $0x1c] sm:$0xf]
      %v3844 = vld [vmem:[%s5 + $0x20] sm:$0xf]
      %v3845 = vld [vmem:[%s5 + $0x24] sm:$0xf]
      %v3846 = vld [vmem:[%s5 + $0x28] sm:$0xf]
      %v3847 = vld [vmem:[%s5 + $0x2c] sm:$0xf]
      %v3848 = vld [vmem:[%s5 + $0x30] sm:$0xf]
      %v3849 = vld [vmem:[%s5 + $0x34] sm:$0xf]
      %v3850 = vld [vmem:[%s5 + $0x38] sm:$0xf]
      %v3851 = vld [vmem:[%s5 + $0x3c] sm:$0xf]
      %v3852 = vld [vmem:[%s5 + $0x40] sm:$0xf]
      %v3853 = vld [vmem:[%s5 + $0x44] sm:$0xf]
      %v3872 = vunpack.c.l.b16 %v3836
      %v3873 = vunpack.c.l.b16 %v3837
      %v3874 = vunpack.c.l.b16 %v3838
      %v3875 = vunpack.c.l.b16 %v3839
      %v3876 = vunpack.c.l.b16 %v3840
      %v3877 = vunpack.c.l.b16 %v3841
      %v3878 = vunpack.c.l.b16 %v3842
      %v3879 = vunpack.c.l.b16 %v3843
      %v3880 = vunpack.c.l.b16 %v3844
      %v3881 = vunpack.c.l.b16 %v3845
      %v3882 = vunpack.c.l.b16 %v3846
      %v3883 = vunpack.c.l.b16 %v3847
      %v3884 = vunpack.c.l.b16 %v3848
      %v3885 = vunpack.c.l.b16 %v3849
      %v3886 = vunpack.c.l.b16 %v3850
      %v3887 = vunpack.c.l.b16 %v3851
      %v3888 = vunpack.c.l.b16 %v3852
      %v3889 = vunpack.c.l.b16 %v3853
      %v3890 = vpack.c.b16 %v3873, %v3872
      %v3891 = vpack.c.b16 %v3875, %v3874
      %v3892 = vpack.c.b16 %v3877, %v3876
      %v3893 = vpack.c.b16 %v3879, %v3878
      %v3894 = vpack.c.b16 %v3881, %v3880
      %v3895 = vpack.c.b16 %v3883, %v3882
      %v3896 = vpack.c.b16 %v3885, %v3884
      %v3897 = vpack.c.b16 %v3887, %v3886
      %v3898 = vpack.c.b16 %v3889, %v3888
      %v3909 = vsel %vm3095, %v3835, 0
      %3911 = vmatprep.subr.bf16.mxu0 0
      %3912 = vmatpush1.bf16.msra.mxu0 %v3890
      %3913 = vmatprep.subr.bf16.mxu0 0
      %3914 = vmatpush1.bf16.msra.mxu0 %v3891
      %3915 = vmatprep.subr.bf16.mxu0 0
      %3916 = vmatpush1.bf16.msra.mxu0 %v3892
      %3917 = vmatprep.subr.bf16.mxu0 0
      %3918 = vmatpush1.bf16.msra.mxu0 %v3893
      %3919 = vmatprep.subr.bf16.mxu0 0
      %3920 = vmatpush1.bf16.msra.mxu0 %v3894
      %3921 = vmatprep.subr.bf16.mxu0 0
      %3922 = vmatpush1.bf16.msra.mxu0 %v3895
      %3923 = vmatprep.subr.bf16.mxu0 0
      %3924 = vmatpush1.bf16.msra.mxu0 %v3896
      %3925 = vmatprep.subr.bf16.mxu0 0
      %3926 = vmatpush1.bf16.msra.mxu0 %v3897
      %3927 = vmatprep.subr.bf16.mxu0 0
      %3928 = vmatpush1.bf16.msra.mxu0 %v3898
      %3929 = vmatprep.subr.bf16.mxu0 0
      %3930 = vmatpush1.bf16.msra.mxu0 0
      %3931 = vmatprep.subr.bf16.mxu0 0
      %3932 = vmatpush1.bf16.msra.mxu0 0
      %3933 = vmatprep.subr.bf16.mxu0 0
      %3934 = vmatpush1.bf16.msra.mxu0 0
      %3935 = vmatprep.subr.bf16.mxu0 0
      %3936 = vmatpush1.bf16.msra.mxu0 0
      %3937 = vmatprep.subr.bf16.mxu0 0
      %3938 = vmatpush1.bf16.msra.mxu0 0
      %3939 = vmatprep.subr.bf16.mxu0 0
      %3940 = vmatpush1.bf16.msra.mxu0 0
      %3941 = vmatprep.subr.bf16.mxu0 0
      %3942 = vmatpush1.bf16.msra.mxu0 0
      %3943 = vmatprep.mubr.bf16.mxu0 %v3909
      %3944 = vmatmul.mubr.bf16.gmra.mrb[0].mxu0 %v3834
      %v3945 = vpop.f32.mrb[0].mxu0
      %v3946 = vadd.f32 0.0, %v3945
      %v3947 = vpop.f32.mrb[0].mxu0
      %v3948 = vpop.f32.mrb[0].mxu0
      %v3949 = vadd.f32 0.0, %v3948
      %v3950 = vpop.f32.mrb[0].mxu0
      %3951 = vdwg.mxu0
      %v3952 = vld [vmem:[%s6] sm:$0x1]
      %v3953 = vlaneseq
      %v3954 = vshrl.u32 %v3953, 7
      %v3955 = vsub.s32 0, %v3954
      %v3956 = vrot.slane %v3952, %v3955
      %v3957 = vmul.f32 %v3946, %v3956
      %v3958 = vmul.f32 %v3949, %v3956
      %v3959 = vld [vmem:[%s6 + $0x1] sm:$0x1]
      %v3960 = vlaneseq
      %v3961 = vshrl.u32 %v3960, 7
      %v3962 = vsub.s32 0, %v3961
      %v3963 = vrot.slane %v3959, %v3962
      %v3964 = vadd.f32 %v3957, %v3963
      %v3965 = vadd.f32 %v3958, %v3963
      %v3966 = vmax.f32 %v3964, 0.0
      %v3967 = vmax.f32 %v3965, 0.0
      %v3970 = vcombine.high %v3966, %v3966
      %v3971 = vcombine.high %v3967, %v3967
      %3974 = vrot.lane.b32.xlu0 %v3966, 16
      %v3975 = vpop.permute.xlu0 %3974
      %3976 = vrot.lane.b32.xlu0 %v3970, 16
      %v3977 = vpop.permute.xlu0 %3976
      %3978 = vrot.lane.b32.xlu0 %v3967, 16
      %v3979 = vpop.permute.xlu0 %3978
      %3980 = vrot.lane.b32.xlu0 %v3971, 16
      %v3981 = vpop.permute.xlu0 %3980
      %v3986 = vsel %vm3095, %v3712, %v3975
      %v3987 = vsel %vm3095, %v3715, %v3977
      %v3988 = vsel %vm3095, %v3718, %v3979
      %v3989 = vsel %vm3095, %v3721, %v3981
      %3994 = vrot.lane.b32.xlu0 %v3986, 48
      %v3995 = vpop.permute.xlu0 %3994
      %3996 = vrot.lane.b32.xlu0 %v3987, 48
      %v3997 = vpop.permute.xlu0 %3996
      %3998 = vrot.lane.b32.xlu0 %v3988, 48
      %v3999 = vpop.permute.xlu0 %3998
      %4000 = vrot.lane.b32.xlu0 %v3989, 48
      %v4001 = vpop.permute.xlu0 %4000
      %4006 = vrot.lane.b32.xlu0 %v3987, 96
      %v4007 = vpop.permute.xlu0 %4006
      %4008 = vrot.lane.b32.xlu0 %v3988, 96
      %v4009 = vpop.permute.xlu0 %4008
      %4010 = vrot.lane.b32.xlu0 %v3989, 96
      %v4011 = vpop.permute.xlu0 %4010
      %4012 = vrot.lane.b32.xlu0 0.0, 96
      %v4013 = vpop.permute.xlu0 %4012
      %v4018 = vsel %vm3265, 0.0, %v3995
      %v4019 = vsel %vm3265, %v3986, %v3997
      %v4020 = vsel %vm3265, %v3987, %v3999
      %v4021 = vsel %vm3265, %v3988, %v4001
      %v4022 = vsel %vm3274, %v4018, %v4007
      %v4023 = vsel %vm3274, %v4019, %v4009
      %v4024 = vsel %vm3274, %v4020, %v4011
      %v4025 = vsel %vm3274, %v4021, %v4013
      %v4030 = vrot.slane %v4022, 7
      %v4031 = vrot.slane %v4007, 7
      %v4032 = vrot.slane %v4023, 7
      %v4033 = vrot.slane %v4009, 7
      %v4034 = vrot.slane %v4024, 7
      %v4035 = vrot.slane %v4011, 7
      %v4036 = vrot.slane %v4025, 7
      %v4037 = vrot.slane %v4013, 7
      %v4046 = vsel %vm1099, 0.0, %v4030
      %v4047 = vsel %vm1099, 0.0, %v4031
      %v4048 = vsel %vm1099, 0.0, %v4032
      %v4049 = vsel %vm1099, 0.0, %v4033
      %v4050 = vsel %vm1099, 0.0, %v4034
      %v4051 = vsel %vm1099, 0.0, %v4035
      %v4052 = vsel %vm1099, 0.0, %v4036
      %v4053 = vsel %vm1099, 0.0, %v4037
      %v4054 = vsel %vm1760, %v4046, 0.0
      %v4055 = vsel %vm1760, %v4047, 0.0
      %v4056 = vsel %vm1760, %v4048, 0.0
      %v4057 = vsel %vm1760, %v4049, 0.0
      %v4058 = vsel %vm1760, %v4050, 0.0
      %v4059 = vsel %vm1760, %v4051, 0.0
      %v4060 = vsel %vm1760, %v4052, 0.0
      %v4061 = vsel %vm1760, %v4053, 0.0
      %v4070 = vrot.slane %v4054, 1
      %v4071 = vrot.slane %v4055, 1
      %v4072 = vrot.slane %v4056, 1
      %v4073 = vrot.slane %v4057, 1
      %v4074 = vrot.slane %v4058, 1
      %v4075 = vrot.slane %v4059, 1
      %v4076 = vrot.slane %v4060, 1
      %v4077 = vrot.slane %v4061, 1
      %4078 = vrot.lane.b32.xlu0 %v4070, 16
      %v4079 = vpop.permute.xlu0 %4078
      %4080 = vrot.lane.b32.xlu0 %v4071, 16
      %v4081 = vpop.permute.xlu0 %4080
      %4082 = vrot.lane.b32.xlu0 %v4072, 16
      %v4083 = vpop.permute.xlu0 %4082
      %4084 = vrot.lane.b32.xlu0 %v4073, 16
      %v4085 = vpop.permute.xlu0 %4084
      %4086 = vrot.lane.b32.xlu0 %v4074, 16
      %v4087 = vpop.permute.xlu0 %4086
      %4088 = vrot.lane.b32.xlu0 %v4075, 16
      %v4089 = vpop.permute.xlu0 %4088
      %4090 = vrot.lane.b32.xlu0 %v4076, 16
      %v4091 = vpop.permute.xlu0 %4090
      %4092 = vrot.lane.b32.xlu0 %v4077, 16
      %v4093 = vpop.permute.xlu0 %4092
      %v4094 = vsel %vm3095, %v4079, %v4081
      %v4095 = vsel %vm3095, %v4083, %v4085
      %v4096 = vsel %vm3095, %v4087, %v4089
      %v4097 = vsel %vm3095, %v4091, %v4093
      %v4106 = vrot.slane %v4054, 2
      %v4107 = vrot.slane %v4055, 2
      %v4108 = vrot.slane %v4056, 2
      %v4109 = vrot.slane %v4057, 2
      %v4110 = vrot.slane %v4058, 2
      %v4111 = vrot.slane %v4059, 2
      %v4112 = vrot.slane %v4060, 2
      %v4113 = vrot.slane %v4061, 2
      %4114 = vrot.lane.b32.xlu0 %v4106, 32
      %v4115 = vpop.permute.xlu0 %4114
      %4116 = vrot.lane.b32.xlu0 %v4107, 32
      %v4117 = vpop.permute.xlu0 %4116
      %4118 = vrot.lane.b32.xlu0 %v4108, 32
      %v4119 = vpop.permute.xlu0 %4118
      %4120 = vrot.lane.b32.xlu0 %v4109, 32
      %v4121 = vpop.permute.xlu0 %4120
      %4122 = vrot.lane.b32.xlu0 %v4110, 32
      %v4123 = vpop.permute.xlu0 %4122
      %4124 = vrot.lane.b32.xlu0 %v4111, 32
      %v4125 = vpop.permute.xlu0 %4124
      %4126 = vrot.lane.b32.xlu0 %v4112, 32
      %v4127 = vpop.permute.xlu0 %4126
      %4128 = vrot.lane.b32.xlu0 %v4113, 32
      %v4129 = vpop.permute.xlu0 %4128
      %v4130 = vsel %vm3104, %v4115, %v4117
      %v4131 = vsel %vm3104, %v4119, %v4121
      %v4132 = vsel %vm3104, %v4123, %v4125
      %v4133 = vsel %vm3104, %v4127, %v4129
      %v4138 = vsel %vm3095, %v4055, %v4079
      %v4139 = vsel %vm3095, %v4057, %v4083
      %v4140 = vsel %vm3095, %v4059, %v4087
      %v4141 = vsel %vm3095, %v4061, %v4091
      %v4142 = vsel %vm3104, %v4094, %v4115
      %v4143 = vsel %vm3104, %v4095, %v4119
      %v4144 = vsel %vm3104, %v4096, %v4123
      %v4145 = vsel %vm3104, %v4097, %v4127
      %v4154 = vcombine.low %v4054, %v4138
      %v4155 = vcombine.low %v4142, %v4130
      %v4156 = vcombine.low %v4056, %v4139
      %v4157 = vcombine.low %v4143, %v4131
      %v4158 = vcombine.low %v4058, %v4140
      %v4159 = vcombine.low %v4144, %v4132
      %v4160 = vcombine.low %v4060, %v4141
      %v4161 = vcombine.low %v4145, %v4133
      %v4162 = vcombine.low %v4154, %v4156
      %v4163 = vcombine.high %v4154, %v4156
      %v4164 = vcombine.low %v4155, %v4157
      %v4165 = vcombine.high %v4155, %v4157
      %v4166 = vcombine.low %v4158, %v4160
      %v4167 = vcombine.high %v4158, %v4160
      %v4168 = vcombine.low %v4159, %v4161
      %v4169 = vcombine.high %v4159, %v4161
      %v4178 = vpack.c.bf16 %v4166, %v4162
      %v4179 = vpack.c.bf16 %v4167, %v4163
      %v4180 = vpack.c.bf16 %v4168, %v4164
      %v4181 = vpack.c.bf16 %v4169, %v4165
      %v4182 = vld [vmem:[%s7] sm:$0xf]
      %v4183 = vld [vmem:[%s7 + $0x4] sm:$0xf]
      %v4184 = vld [vmem:[%s7 + $0x8] sm:$0xf]
      %v4185 = vld [vmem:[%s7 + $0xc] sm:$0xf]
      %v4186 = vld [vmem:[%s7 + $0x10] sm:$0xf]
      %v4187 = vld [vmem:[%s7 + $0x14] sm:$0xf]
      %v4188 = vld [vmem:[%s7 + $0x18] sm:$0xf]
      %v4189 = vld [vmem:[%s7 + $0x1c] sm:$0xf]
      %v4190 = vld [vmem:[%s7 + $0x20] sm:$0xf]
      %v4191 = vld [vmem:[%s7 + $0x24] sm:$0xf]
      %v4192 = vld [vmem:[%s7 + $0x28] sm:$0xf]
      %v4193 = vld [vmem:[%s7 + $0x2c] sm:$0xf]
      %v4194 = vld [vmem:[%s7 + $0x30] sm:$0xf]
      %v4195 = vld [vmem:[%s7 + $0x34] sm:$0xf]
      %v4196 = vld [vmem:[%s7 + $0x38] sm:$0xf]
      %v4197 = vld [vmem:[%s7 + $0x3c] sm:$0xf]
      %v4198 = vld [vmem:[%s7 + $0x40] sm:$0xf]
      %v4199 = vld [vmem:[%s7 + $0x44] sm:$0xf]
      %v4200 = vld [vmem:[%s7 + $0x48] sm:$0xf]
      %v4201 = vld [vmem:[%s7 + $0x4c] sm:$0xf]
      %v4202 = vld [vmem:[%s7 + $0x50] sm:$0xf]
      %v4203 = vld [vmem:[%s7 + $0x54] sm:$0xf]
      %v4204 = vld [vmem:[%s7 + $0x58] sm:$0xf]
      %v4205 = vld [vmem:[%s7 + $0x5c] sm:$0xf]
      %v4206 = vld [vmem:[%s7 + $0x60] sm:$0xf]
      %v4207 = vld [vmem:[%s7 + $0x64] sm:$0xf]
      %v4208 = vld [vmem:[%s7 + $0x68] sm:$0xf]
      %v4209 = vld [vmem:[%s7 + $0x6c] sm:$0xf]
      %v4210 = vld [vmem:[%s7 + $0x70] sm:$0xf]
      %v4211 = vld [vmem:[%s7 + $0x74] sm:$0xf]
      %v4212 = vld [vmem:[%s7 + $0x78] sm:$0xf]
      %v4213 = vld [vmem:[%s7 + $0x7c] sm:$0xf]
      %v4214 = vld [vmem:[%s7 + $0x80] sm:$0xf]
      %v4215 = vld [vmem:[%s7 + $0x84] sm:$0xf]
      %v4216 = vld [vmem:[%s7 + $0x88] sm:$0xf]
      %v4217 = vld [vmem:[%s7 + $0x8c] sm:$0xf]
      %v4218 = vld [vmem:[%s7 + $0x90] sm:$0xf]
      %v4219 = vld [vmem:[%s7 + $0x94] sm:$0xf]
      %v4220 = vld [vmem:[%s7 + $0x98] sm:$0xf]
      %v4221 = vld [vmem:[%s7 + $0x9c] sm:$0xf]
      %v4222 = vld [vmem:[%s7 + $0xa0] sm:$0xf]
      %v4223 = vld [vmem:[%s7 + $0xa4] sm:$0xf]
      %v4224 = vld [vmem:[%s7 + $0xa8] sm:$0xf]
      %v4225 = vld [vmem:[%s7 + $0xac] sm:$0xf]
      %v4226 = vld [vmem:[%s7 + $0xb0] sm:$0xf]
      %v4227 = vld [vmem:[%s7 + $0xb4] sm:$0xf]
      %v4228 = vld [vmem:[%s7 + $0xb8] sm:$0xf]
      %v4229 = vld [vmem:[%s7 + $0xbc] sm:$0xf]
      %v4230 = vld [vmem:[%s7 + $0xc0] sm:$0xf]
      %v4231 = vld [vmem:[%s7 + $0xc4] sm:$0xf]
      %v4232 = vld [vmem:[%s7 + $0xc8] sm:$0xf]
      %v4233 = vld [vmem:[%s7 + $0xcc] sm:$0xf]
      %v4234 = vld [vmem:[%s7 + $0xd0] sm:$0xf]
      %v4235 = vld [vmem:[%s7 + $0xd4] sm:$0xf]
      %v4290 = vunpack.c.l.b16 %v4182
      %v4291 = vunpack.c.l.b16 %v4183
      %v4292 = vunpack.c.l.b16 %v4184
      %v4293 = vunpack.c.l.b16 %v4185
      %v4294 = vunpack.c.l.b16 %v4186
      %v4295 = vunpack.c.l.b16 %v4187
      %v4296 = vunpack.c.l.b16 %v4188
      %v4297 = vunpack.c.l.b16 %v4189
      %v4298 = vunpack.c.l.b16 %v4190
      %v4299 = vunpack.c.l.b16 %v4191
      %v4300 = vunpack.c.l.b16 %v4192
      %v4301 = vunpack.c.l.b16 %v4193
      %v4302 = vunpack.c.l.b16 %v4194
      %v4303 = vunpack.c.l.b16 %v4195
      %v4304 = vunpack.c.l.b16 %v4196
      %v4305 = vunpack.c.l.b16 %v4197
      %v4306 = vunpack.c.l.b16 %v4198
      %v4307 = vunpack.c.l.b16 %v4199
      %v4308 = vunpack.c.l.b16 %v4200
      %v4309 = vunpack.c.l.b16 %v4201
      %v4310 = vunpack.c.l.b16 %v4202
      %v4311 = vunpack.c.l.b16 %v4203
      %v4312 = vunpack.c.l.b16 %v4204
      %v4313 = vunpack.c.l.b16 %v4205
      %v4314 = vunpack.c.l.b16 %v4206
      %v4315 = vunpack.c.l.b16 %v4207
      %v4316 = vunpack.c.l.b16 %v4208
      %v4317 = vunpack.c.l.b16 %v4209
      %v4318 = vunpack.c.l.b16 %v4210
      %v4319 = vunpack.c.l.b16 %v4211
      %v4320 = vunpack.c.l.b16 %v4212
      %v4321 = vunpack.c.l.b16 %v4213
      %v4322 = vunpack.c.l.b16 %v4214
      %v4323 = vunpack.c.l.b16 %v4215
      %v4324 = vunpack.c.l.b16 %v4216
      %v4325 = vunpack.c.l.b16 %v4217
      %v4326 = vunpack.c.l.b16 %v4218
      %v4327 = vunpack.c.l.b16 %v4219
      %v4328 = vunpack.c.l.b16 %v4220
      %v4329 = vunpack.c.l.b16 %v4221
      %v4330 = vunpack.c.l.b16 %v4222
      %v4331 = vunpack.c.l.b16 %v4223
      %v4332 = vunpack.c.l.b16 %v4224
      %v4333 = vunpack.c.l.b16 %v4225
      %v4334 = vunpack.c.l.b16 %v4226
      %v4335 = vunpack.c.l.b16 %v4227
      %v4336 = vunpack.c.l.b16 %v4228
      %v4337 = vunpack.c.l.b16 %v4229
      %v4338 = vunpack.c.l.b16 %v4230
      %v4339 = vunpack.c.l.b16 %v4231
      %v4340 = vunpack.c.l.b16 %v4232
      %v4341 = vunpack.c.l.b16 %v4233
      %v4342 = vunpack.c.l.b16 %v4234
      %v4343 = vunpack.c.l.b16 %v4235
      %v4344 = vpack.c.b16 %v4291, %v4290
      %v4345 = vpack.c.b16 %v4293, %v4292
      %v4346 = vpack.c.b16 %v4295, %v4294
      %v4347 = vpack.c.b16 %v4297, %v4296
      %v4348 = vpack.c.b16 %v4299, %v4298
      %v4349 = vpack.c.b16 %v4301, %v4300
      %v4350 = vpack.c.b16 %v4303, %v4302
      %v4351 = vpack.c.b16 %v4305, %v4304
      %v4352 = vpack.c.b16 %v4307, %v4306
      %v4353 = vpack.c.b16 %v4309, %v4308
      %v4354 = vpack.c.b16 %v4311, %v4310
      %v4355 = vpack.c.b16 %v4313, %v4312
      %v4356 = vpack.c.b16 %v4315, %v4314
      %v4357 = vpack.c.b16 %v4317, %v4316
      %v4358 = vpack.c.b16 %v4319, %v4318
      %v4359 = vpack.c.b16 %v4321, %v4320
      %v4360 = vpack.c.b16 %v4323, %v4322
      %v4361 = vpack.c.b16 %v4325, %v4324
      %v4362 = vpack.c.b16 %v4327, %v4326
      %v4363 = vpack.c.b16 %v4329, %v4328
      %v4364 = vpack.c.b16 %v4331, %v4330
      %v4365 = vpack.c.b16 %v4333, %v4332
      %v4366 = vpack.c.b16 %v4335, %v4334
      %v4367 = vpack.c.b16 %v4337, %v4336
      %v4368 = vpack.c.b16 %v4339, %v4338
      %v4369 = vpack.c.b16 %v4341, %v4340
      %v4370 = vpack.c.b16 %v4343, %v4342
      %v4399 = vsel %vm3265, %v4181, 0
      %4401 = vmatprep.subr.bf16.mxu0 0
      %4402 = vmatpush1.bf16.msra.mxu0 %v4344
      %4403 = vmatprep.subr.bf16.mxu0 0
      %4404 = vmatpush1.bf16.msra.mxu0 %v4345
      %4405 = vmatprep.subr.bf16.mxu0 0
      %4406 = vmatpush1.bf16.msra.mxu0 %v4346
      %4407 = vmatprep.subr.bf16.mxu0 0
      %4408 = vmatpush1.bf16.msra.mxu0 %v4347
      %4409 = vmatprep.subr.bf16.mxu0 0
      %4410 = vmatpush1.bf16.msra.mxu0 %v4348
      %4411 = vmatprep.subr.bf16.mxu0 0
      %4412 = vmatpush1.bf16.msra.mxu0 %v4349
      %4413 = vmatprep.subr.bf16.mxu0 0
      %4414 = vmatpush1.bf16.msra.mxu0 %v4350
      %4415 = vmatprep.subr.bf16.mxu0 0
      %4416 = vmatpush1.bf16.msra.mxu0 %v4351
      %4417 = vmatprep.subr.bf16.mxu0 0
      %4418 = vmatpush1.bf16.msra.mxu0 %v4352
      %4419 = vmatprep.subr.bf16.mxu0 0
      %4420 = vmatpush1.bf16.msra.mxu0 %v4353
      %4421 = vmatprep.subr.bf16.mxu0 0
      %4422 = vmatpush1.bf16.msra.mxu0 %v4354
      %4423 = vmatprep.subr.bf16.mxu0 0
      %4424 = vmatpush1.bf16.msra.mxu0 %v4355
      %4425 = vmatprep.subr.bf16.mxu0 0
      %4426 = vmatpush1.bf16.msra.mxu0 %v4356
      %4427 = vmatprep.subr.bf16.mxu0 0
      %4428 = vmatpush1.bf16.msra.mxu0 %v4357
      %4429 = vmatprep.subr.bf16.mxu0 0
      %4430 = vmatpush1.bf16.msra.mxu0 %v4358
      %4431 = vmatprep.subr.bf16.mxu0 0
      %4432 = vmatpush1.bf16.msra.mxu0 %v4359
      %4433 = vmatprep.mubr.bf16.mxu0 %v4179
      %4434 = vmatmul.mubr.bf16.gmra.mrb[0].mxu0 %v4178
      %v4435 = vpop.f32.mrb[0].mxu0
      %v4436 = vadd.f32 0.0, %v4435
      %v4437 = vpop.f32.mrb[0].mxu0
      %v4438 = vpop.f32.mrb[0].mxu0
      %v4439 = vadd.f32 0.0, %v4438
      %v4440 = vpop.f32.mrb[0].mxu0
      %4441 = vdwg.mxu0
      %4442 = vmatprep.subr.bf16.mxu0 0
      %4443 = vmatpush1.bf16.msra.mxu0 %v4360
      %4444 = vmatprep.subr.bf16.mxu0 0
      %4445 = vmatpush1.bf16.msra.mxu0 %v4361
      %4446 = vmatprep.subr.bf16.mxu0 0
      %4447 = vmatpush1.bf16.msra.mxu0 %v4362
      %4448 = vmatprep.subr.bf16.mxu0 0
      %4449 = vmatpush1.bf16.msra.mxu0 %v4363
      %4450 = vmatprep.subr.bf16.mxu0 0
      %4451 = vmatpush1.bf16.msra.mxu0 %v4364
      %4452 = vmatprep.subr.bf16.mxu0 0
      %4453 = vmatpush1.bf16.msra.mxu0 %v4365
      %4454 = vmatprep.subr.bf16.mxu0 0
      %4455 = vmatpush1.bf16.msra.mxu0 %v4366
      %4456 = vmatprep.subr.bf16.mxu0 0
      %4457 = vmatpush1.bf16.msra.mxu0 %v4367
      %4458 = vmatprep.subr.bf16.mxu0 0
      %4459 = vmatpush1.bf16.msra.mxu0 %v4368
      %4460 = vmatprep.subr.bf16.mxu0 0
      %4461 = vmatpush1.bf16.msra.mxu0 %v4369
      %4462 = vmatprep.subr.bf16.mxu0 0
      %4463 = vmatpush1.bf16.msra.mxu0 %v4370
      %4464 = vmatprep.subr.bf16.mxu0 0
      %4465 = vmatpush1.bf16.msra.mxu0 0
      %4466 = vmatprep.subr.bf16.mxu0 0
      %4467 = vmatpush1.bf16.msra.mxu0 0
      %4468 = vmatprep.subr.bf16.mxu0 0
      %4469 = vmatpush1.bf16.msra.mxu0 0
      %4470 = vmatprep.subr.bf16.mxu0 0
      %4471 = vmatpush1.bf16.msra.mxu0 0
      %4472 = vmatprep.subr.bf16.mxu0 0
      %4473 = vmatpush1.bf16.msra.mxu0 0
      %4474 = vmatprep.mubr.bf16.mxu0 %v4399
      %4475 = vmatmul.mubr.bf16.gmra.mrb[0].mxu0 %v4180
      %v4476 = vpop.f32.mrb[0].mxu0
      %v4477 = vadd.f32 %v4436, %v4476
      %v4478 = vpop.f32.mrb[0].mxu0
      %v4479 = vpop.f32.mrb[0].mxu0
      %v4480 = vadd.f32 %v4439, %v4479
      %v4481 = vpop.f32.mrb[0].mxu0
      %4482 = vdwg.mxu0
      %v4483 = vld [vmem:[%s8] sm:$0x1]
      %v4484 = vlaneseq
      %v4485 = vshrl.u32 %v4484, 7
      %v4486 = vsub.s32 0, %v4485
      %v4487 = vrot.slane %v4483, %v4486
      %v4488 = vmul.f32 %v4477, %v4487
      %v4489 = vmul.f32 %v4480, %v4487
      %v4490 = vld [vmem:[%s8 + $0x1] sm:$0x1]
      %v4491 = vlaneseq
      %v4492 = vshrl.u32 %v4491, 7
      %v4493 = vsub.s32 0, %v4492
      %v4494 = vrot.slane %v4490, %v4493
      %v4495 = vadd.f32 %v4488, %v4494
      %v4496 = vadd.f32 %v4489, %v4494
      %v4497 = vmax.f32 %v4495, 0.0
      %v4498 = vmax.f32 %v4496, 0.0
      %v4499 = vld [vmem:[%s21] sm:$0xff]
      %v4500 = vld [vmem:[%s21 + $0x8] sm:$0xff]
      %v4501 = vld [vmem:[%s21 + $0x10] sm:$0xff]
      %v4502 = vld [vmem:[%s21 + $0x18] sm:$0xff]
      %v4503 = vld [vmem:[%s21 + $0x20] sm:$0xff]
      %v4504 = vld [vmem:[%s21 + $0x28] sm:$0xff]
      %v4505 = vld [vmem:[%s21 + $0x30] sm:$0xff]
      %v4506 = vld [vmem:[%s21 + $0x38] sm:$0xff]
      %v4508 = vsel %vm3095, %v4499, 0
      %v4511 = vsel %vm3095, %v4500, 0
      %v4514 = vsel %vm3095, %v4501, 0
      %v4517 = vsel %vm3095, %v4502, 0
      %v4520 = vsel %vm3095, %v4503, 0
      %v4523 = vsel %vm3095, %v4504, 0
      %v4526 = vsel %vm3095, %v4505, 0
      %v4529 = vsel %vm3095, %v4506, 0
      %4531 = vmatprep.subr.mxu0 0.0
      %4532 = vmatpush1.msra.mxu0 %v4497
      %4533 = vmatprep.subr.mxu0 0.0
      %4534 = vmatpush1.msra.mxu0 %v4498
      %4535 = vmatprep.subr.mxu0 0.0
      %4536 = vmatpush1.msra.mxu0 0.0
      %4537 = vmatprep.subr.mxu0 0.0
      %4538 = vmatpush1.msra.mxu0 0.0
      %4539 = vmatprep.subr.mxu0 0.0
      %4540 = vmatpush1.msra.mxu0 0.0
      %4541 = vmatprep.subr.mxu0 0.0
      %4542 = vmatpush1.msra.mxu0 0.0
      %4543 = vmatprep.subr.mxu0 0.0
      %4544 = vmatpush1.msra.mxu0 0.0
      %4545 = vmatprep.subr.mxu0 0.0
      %4546 = vmatpush1.msra.mxu0 0.0
      %4547 = vmatprep.subr.mxu0 0.0
      %4548 = vmatpush1.msra.mxu0 0.0
      %4549 = vmatprep.subr.mxu0 0.0
      %4550 = vmatpush1.msra.mxu0 0.0
      %4551 = vmatprep.subr.mxu0 0.0
      %4552 = vmatpush1.msra.mxu0 0.0
      %4553 = vmatprep.subr.mxu0 0.0
      %4554 = vmatpush1.msra.mxu0 0.0
      %4555 = vmatprep.subr.mxu0 0.0
      %4556 = vmatpush1.msra.mxu0 0.0
      %4557 = vmatprep.subr.mxu0 0.0
      %4558 = vmatpush1.msra.mxu0 0.0
      %4559 = vmatprep.subr.mxu0 0.0
      %4560 = vmatpush1.msra.mxu0 0.0
      %4561 = vmatprep.subr.mxu0 0.0
      %4562 = vmatpush1.msra.mxu0 0.0
      %4563 = vmatprep.subr.mxu0 0.0
      %4564 = vmatpush1.msra.mxu0 0.0
      %4565 = vmatprep.subr.mxu0 0.0
      %4566 = vmatpush1.msra.mxu0 0.0
      %4567 = vmatprep.subr.mxu0 0.0
      %4568 = vmatpush1.msra.mxu0 0.0
      %4569 = vmatprep.subr.mxu0 0.0
      %4570 = vmatpush1.msra.mxu0 0.0
      %4571 = vmatprep.subr.mxu0 0.0
      %4572 = vmatpush1.msra.mxu0 0.0
      %4573 = vmatprep.subr.mxu0 0.0
      %4574 = vmatpush1.msra.mxu0 0.0
      %4575 = vmatprep.subr.mxu0 0.0
      %4576 = vmatpush1.msra.mxu0 0.0
      %4577 = vmatprep.subr.mxu0 0.0
      %4578 = vmatpush1.msra.mxu0 0.0
      %4579 = vmatprep.subr.mxu0 0.0
      %4580 = vmatpush1.msra.mxu0 0.0
      %4581 = vmatprep.subr.mxu0 0.0
      %4582 = vmatpush1.msra.mxu0 0.0
      %4583 = vmatprep.subr.mxu0 0.0
      %4584 = vmatpush1.msra.mxu0 0.0
      %4585 = vmatprep.subr.mxu0 0.0
      %4586 = vmatpush1.msra.mxu0 0.0
      %4587 = vmatprep.subr.mxu0 0.0
      %4588 = vmatpush1.msra.mxu0 0.0
      %4589 = vmatprep.subr.mxu0 0.0
      %4590 = vmatpush1.msra.mxu0 0.0
      %4591 = vmatprep.subr.mxu0 0.0
      %4592 = vmatpush1.msra.mxu0 0.0
      %4593 = vmatprep.subr.mxu0 0.0
      %4594 = vmatpush1.msra.mxu0 0.0
      %4595 = vmatprep.mubr.f32.mxu0 0.0
      %4596 = vmatmul.mubr.f32.gmra.mrb[0].mxu0 %v4508
      %v4597 = vpop.f32.mrb[0].mxu0
      %v4598 = vadd.f32 0.0, %v4597
      %v4599 = vpop.f32.mrb[0].mxu0
      %4600 = vmatprep.mubr.f32.mxu0 0.0
      %4601 = vmatmul.mubr.f32.gmra.mrb[0].mxu0 %v4511
      %v4602 = vpop.f32.mrb[0].mxu0
      %v4603 = vadd.f32 0.0, %v4602
      %v4604 = vpop.f32.mrb[0].mxu0
      %4605 = vmatprep.mubr.f32.mxu0 0.0
      %4606 = vmatmul.mubr.f32.gmra.mrb[0].mxu0 %v4514
      %v4607 = vpop.f32.mrb[0].mxu0
      %v4608 = vadd.f32 0.0, %v4607
      %v4609 = vpop.f32.mrb[0].mxu0
      %4610 = vmatprep.mubr.f32.mxu0 0.0
      %4611 = vmatmul.mubr.f32.gmra.mrb[0].mxu0 %v4517
      %v4612 = vpop.f32.mrb[0].mxu0
      %v4613 = vadd.f32 0.0, %v4612
      %v4614 = vpop.f32.mrb[0].mxu0
      %4615 = vmatprep.mubr.f32.mxu0 0.0
      %4616 = vmatmul.mubr.f32.gmra.mrb[0].mxu0 %v4520
      %v4617 = vpop.f32.mrb[0].mxu0
      %v4618 = vadd.f32 0.0, %v4617
      %v4619 = vpop.f32.mrb[0].mxu0
      %4620 = vmatprep.mubr.f32.mxu0 0.0
      %4621 = vmatmul.mubr.f32.gmra.mrb[0].mxu0 %v4523
      %v4622 = vpop.f32.mrb[0].mxu0
      %v4623 = vadd.f32 0.0, %v4622
      %v4624 = vpop.f32.mrb[0].mxu0
      %4625 = vmatprep.mubr.f32.mxu0 0.0
      %4626 = vmatmul.mubr.f32.gmra.mrb[0].mxu0 %v4526
      %v4627 = vpop.f32.mrb[0].mxu0
      %v4628 = vadd.f32 0.0, %v4627
      %v4629 = vpop.f32.mrb[0].mxu0
      %4630 = vmatprep.mubr.f32.mxu0 0.0
      %4631 = vmatmul.mubr.f32.gmra.mrb[0].mxu0 %v4529
      %v4632 = vpop.f32.mrb[0].mxu0
      %v4633 = vadd.f32 0.0, %v4632
      %v4634 = vpop.f32.mrb[0].mxu0
      %4635 = vdwg.mxu0
      %4644 = vrot.lane.b32.xlu0 %v3466, 32
      %v4645 = vpop.permute.xlu0 %4644
      %4646 = vrot.lane.b32.xlu0 %v3467, 32
      %v4647 = vpop.permute.xlu0 %4646
      %4648 = vrot.lane.b32.xlu0 %v3468, 32
      %v4649 = vpop.permute.xlu0 %4648
      %4650 = vrot.lane.b32.xlu0 %v3469, 32
      %v4651 = vpop.permute.xlu0 %4650
      %4652 = vrot.lane.b32.xlu0 %v3470, 32
      %v4653 = vpop.permute.xlu0 %4652
      %4654 = vrot.lane.b32.xlu0 %v3471, 32
      %v4655 = vpop.permute.xlu0 %4654
      %4656 = vrot.lane.b32.xlu0 %v3472, 32
      %v4657 = vpop.permute.xlu0 %4656
      %4658 = vrot.lane.b32.xlu0 %v3473, 32
      %v4659 = vpop.permute.xlu0 %4658
      %v4668 = vsel %vm3104, %v4598, %v4645
      %v4669 = vsel %vm3104, %v4603, %v4647
      %v4670 = vsel %vm3104, %v4608, %v4649
      %v4671 = vsel %vm3104, %v4613, %v4651
      %v4672 = vsel %vm3104, %v4618, %v4653
      %v4673 = vsel %vm3104, %v4623, %v4655
      %v4674 = vsel %vm3104, %v4628, %v4657
      %v4675 = vsel %vm3104, %v4633, %v4659
      %4684 = vrot.lane.b32.xlu0 %v4668, 48
      %v4685 = vpop.permute.xlu0 %4684
      %4686 = vrot.lane.b32.xlu0 %v4669, 48
      %v4687 = vpop.permute.xlu0 %4686
      %4688 = vrot.lane.b32.xlu0 %v4670, 48
      %v4689 = vpop.permute.xlu0 %4688
      %4690 = vrot.lane.b32.xlu0 %v4671, 48
      %v4691 = vpop.permute.xlu0 %4690
      %4692 = vrot.lane.b32.xlu0 %v4672, 48
      %v4693 = vpop.permute.xlu0 %4692
      %4694 = vrot.lane.b32.xlu0 %v4673, 48
      %v4695 = vpop.permute.xlu0 %4694
      %4696 = vrot.lane.b32.xlu0 %v4674, 48
      %v4697 = vpop.permute.xlu0 %4696
      %4698 = vrot.lane.b32.xlu0 %v4675, 48
      %v4699 = vpop.permute.xlu0 %4698
      %4708 = vrot.lane.b32.xlu0 %v4669, 96
      %v4709 = vpop.permute.xlu0 %4708
      %4710 = vrot.lane.b32.xlu0 %v4670, 96
      %v4711 = vpop.permute.xlu0 %4710
      %4712 = vrot.lane.b32.xlu0 %v4671, 96
      %v4713 = vpop.permute.xlu0 %4712
      %4714 = vrot.lane.b32.xlu0 %v4672, 96
      %v4715 = vpop.permute.xlu0 %4714
      %4716 = vrot.lane.b32.xlu0 %v4673, 96
      %v4717 = vpop.permute.xlu0 %4716
      %4718 = vrot.lane.b32.xlu0 %v4674, 96
      %v4719 = vpop.permute.xlu0 %4718
      %4720 = vrot.lane.b32.xlu0 %v4675, 96
      %v4721 = vpop.permute.xlu0 %4720
      %v4729 = vsel %vm3265, 0.0, %v4685
      %v4730 = vsel %vm3265, %v4668, %v4687
      %v4731 = vsel %vm3265, %v4669, %v4689
      %v4732 = vsel %vm3265, %v4670, %v4691
      %v4733 = vsel %vm3265, %v4671, %v4693
      %v4734 = vsel %vm3265, %v4672, %v4695
      %v4735 = vsel %vm3265, %v4673, %v4697
      %v4736 = vsel %vm3265, %v4674, %v4699
      %v4737 = vsel %vm3274, %v4729, %v4709
      %v4738 = vsel %vm3274, %v4730, %v4711
      %v4739 = vsel %vm3274, %v4731, %v4713
      %v4740 = vsel %vm3274, %v4732, %v4715
      %v4741 = vsel %vm3274, %v4733, %v4717
      %v4742 = vsel %vm3274, %v4734, %v4719
      %v4743 = vsel %vm3274, %v4735, %v4721
      %v4744 = vsel %vm3274, %v4736, %v4013
      %v4753 = vrot.slane %v4737, 7
      %v4754 = vrot.slane %v4709, 7
      %v4755 = vrot.slane %v4738, 7
      %v4756 = vrot.slane %v4711, 7
      %v4757 = vrot.slane %v4739, 7
      %v4758 = vrot.slane %v4713, 7
      %v4759 = vrot.slane %v4740, 7
      %v4760 = vrot.slane %v4715, 7
      %v4761 = vrot.slane %v4741, 7
      %v4762 = vrot.slane %v4717, 7
      %v4763 = vrot.slane %v4742, 7
      %v4764 = vrot.slane %v4719, 7
      %v4765 = vrot.slane %v4743, 7
      %v4766 = vrot.slane %v4721, 7
      %v4767 = vrot.slane %v4744, 7
      %v4783 = vsel %vm1099, 0.0, %v4753
      %v4784 = vsel %vm1099, 0.0, %v4754
      %v4785 = vsel %vm1099, 0.0, %v4755
      %v4786 = vsel %vm1099, 0.0, %v4756
      %v4787 = vsel %vm1099, 0.0, %v4757
      %v4788 = vsel %vm1099, 0.0, %v4758
      %v4789 = vsel %vm1099, 0.0, %v4759
      %v4790 = vsel %vm1099, 0.0, %v4760
      %v4791 = vsel %vm1099, 0.0, %v4761
      %v4792 = vsel %vm1099, 0.0, %v4762
      %v4793 = vsel %vm1099, 0.0, %v4763
      %v4794 = vsel %vm1099, 0.0, %v4764
      %v4795 = vsel %vm1099, 0.0, %v4765
      %v4796 = vsel %vm1099, 0.0, %v4766
      %v4797 = vsel %vm1099, 0.0, %v4767
      %v4798 = vsel %vm1099, %v4753, 0.0
      %v4799 = vsel %vm1099, %v4754, 0.0
      %v4800 = vsel %vm1099, %v4755, 0.0
      %v4801 = vsel %vm1099, %v4756, 0.0
      %v4802 = vsel %vm1099, %v4757, 0.0
      %v4803 = vsel %vm1099, %v4758, 0.0
      %v4804 = vsel %vm1099, %v4759, 0.0
      %v4805 = vsel %vm1099, %v4760, 0.0
      %v4806 = vsel %vm1099, %v4761, 0.0
      %v4807 = vsel %vm1099, %v4762, 0.0
      %v4808 = vsel %vm1099, %v4763, 0.0
      %v4809 = vsel %vm1099, %v4764, 0.0
      %v4810 = vsel %vm1099, %v4765, 0.0
      %v4811 = vsel %vm1099, %v4766, 0.0
      %v4812 = vsel %vm1099, %v4767, 0.0
      %v4813 = vsel %vm1099, %v4037, 0.0
      %v4846 = vrot.slane %v4783, 1
      %v4847 = vrot.slane %v4798, 1
      %v4848 = vsel %vm1260, %v4846, %v4847
      %v4849 = vrot.slane %v4784, 1
      %v4850 = vrot.slane %v4799, 1
      %v4851 = vsel %vm1260, %v4849, %v4850
      %v4852 = vrot.slane %v4785, 1
      %v4853 = vrot.slane %v4800, 1
      %v4854 = vsel %vm1260, %v4852, %v4853
      %v4855 = vrot.slane %v4786, 1
      %v4856 = vrot.slane %v4801, 1
      %v4857 = vsel %vm1260, %v4855, %v4856
      %v4858 = vrot.slane %v4787, 1
      %v4859 = vrot.slane %v4802, 1
      %v4860 = vsel %vm1260, %v4858, %v4859
      %v4861 = vrot.slane %v4788, 1
      %v4862 = vrot.slane %v4803, 1
      %v4863 = vsel %vm1260, %v4861, %v4862
      %v4864 = vrot.slane %v4789, 1
      %v4865 = vrot.slane %v4804, 1
      %v4866 = vsel %vm1260, %v4864, %v4865
      %v4867 = vrot.slane %v4790, 1
      %v4868 = vrot.slane %v4805, 1
      %v4869 = vsel %vm1260, %v4867, %v4868
      %v4870 = vrot.slane %v4791, 1
      %v4871 = vrot.slane %v4806, 1
      %v4872 = vsel %vm1260, %v4870, %v4871
      %v4873 = vrot.slane %v4792, 1
      %v4874 = vrot.slane %v4807, 1
      %v4875 = vsel %vm1260, %v4873, %v4874
      %v4876 = vrot.slane %v4793, 1
      %v4877 = vrot.slane %v4808, 1
      %v4878 = vsel %vm1260, %v4876, %v4877
      %v4879 = vrot.slane %v4794, 1
      %v4880 = vrot.slane %v4809, 1
      %v4881 = vsel %vm1260, %v4879, %v4880
      %v4882 = vrot.slane %v4795, 1
      %v4883 = vrot.slane %v4810, 1
      %v4884 = vsel %vm1260, %v4882, %v4883
      %v4885 = vrot.slane %v4796, 1
      %v4886 = vrot.slane %v4811, 1
      %v4887 = vsel %vm1260, %v4885, %v4886
      %v4888 = vrot.slane %v4797, 1
      %v4889 = vrot.slane %v4812, 1
      %v4890 = vsel %vm1260, %v4888, %v4889
      %v4891 = vrot.slane %v4053, 1
      %v4892 = vrot.slane %v4813, 1
      %v4893 = vsel %vm1260, %v4891, %v4892
      %4894 = vrot.lane.b32.xlu0 %v4848, 16
      %v4895 = vpop.permute.xlu0 %4894
      %4896 = vrot.lane.b32.xlu0 %v4851, 16
      %v4897 = vpop.permute.xlu0 %4896
      %4898 = vrot.lane.b32.xlu0 %v4854, 16
      %v4899 = vpop.permute.xlu0 %4898
      %4900 = vrot.lane.b32.xlu0 %v4857, 16
      %v4901 = vpop.permute.xlu0 %4900
      %4902 = vrot.lane.b32.xlu0 %v4860, 16
      %v4903 = vpop.permute.xlu0 %4902
      %4904 = vrot.lane.b32.xlu0 %v4863, 16
      %v4905 = vpop.permute.xlu0 %4904
      %4906 = vrot.lane.b32.xlu0 %v4866, 16
      %v4907 = vpop.permute.xlu0 %4906
      %4908 = vrot.lane.b32.xlu0 %v4869, 16
      %v4909 = vpop.permute.xlu0 %4908
      %4910 = vrot.lane.b32.xlu0 %v4872, 16
      %v4911 = vpop.permute.xlu0 %4910
      %4912 = vrot.lane.b32.xlu0 %v4875, 16
      %v4913 = vpop.permute.xlu0 %4912
      %4914 = vrot.lane.b32.xlu0 %v4878, 16
      %v4915 = vpop.permute.xlu0 %4914
      %4916 = vrot.lane.b32.xlu0 %v4881, 16
      %v4917 = vpop.permute.xlu0 %4916
      %4918 = vrot.lane.b32.xlu0 %v4884, 16
      %v4919 = vpop.permute.xlu0 %4918
      %4920 = vrot.lane.b32.xlu0 %v4887, 16
      %v4921 = vpop.permute.xlu0 %4920
      %4922 = vrot.lane.b32.xlu0 %v4890, 16
      %v4923 = vpop.permute.xlu0 %4922
      %4924 = vrot.lane.b32.xlu0 %v4893, 16
      %v4925 = vpop.permute.xlu0 %4924
      %v4926 = vsel %vm3095, %v4895, %v4897
      %v4927 = vsel %vm3095, %v4899, %v4901
      %v4928 = vsel %vm3095, %v4903, %v4905
      %v4929 = vsel %vm3095, %v4907, %v4909
      %v4930 = vsel %vm3095, %v4911, %v4913
      %v4931 = vsel %vm3095, %v4915, %v4917
      %v4932 = vsel %vm3095, %v4919, %v4921
      %v4933 = vsel %vm3095, %v4923, %v4925
      %v4950 = vrot.slane %v4783, 2
      %v4951 = vrot.slane %v4798, 2
      %v4952 = vsel %vm1437, %v4950, %v4951
      %v4953 = vrot.slane %v4784, 2
      %v4954 = vrot.slane %v4799, 2
      %v4955 = vsel %vm1437, %v4953, %v4954
      %v4956 = vrot.slane %v4785, 2
      %v4957 = vrot.slane %v4800, 2
      %v4958 = vsel %vm1437, %v4956, %v4957
      %v4959 = vrot.slane %v4786, 2
      %v4960 = vrot.slane %v4801, 2
      %v4961 = vsel %vm1437, %v4959, %v4960
      %v4962 = vrot.slane %v4787, 2
      %v4963 = vrot.slane %v4802, 2
      %v4964 = vsel %vm1437, %v4962, %v4963
      %v4965 = vrot.slane %v4788, 2
      %v4966 = vrot.slane %v4803, 2
      %v4967 = vsel %vm1437, %v4965, %v4966
      %v4968 = vrot.slane %v4789, 2
      %v4969 = vrot.slane %v4804, 2
      %v4970 = vsel %vm1437, %v4968, %v4969
      %v4971 = vrot.slane %v4790, 2
      %v4972 = vrot.slane %v4805, 2
      %v4973 = vsel %vm1437, %v4971, %v4972
      %v4974 = vrot.slane %v4791, 2
      %v4975 = vrot.slane %v4806, 2
      %v4976 = vsel %vm1437, %v4974, %v4975
      %v4977 = vrot.slane %v4792, 2
      %v4978 = vrot.slane %v4807, 2
      %v4979 = vsel %vm1437, %v4977, %v4978
      %v4980 = vrot.slane %v4793, 2
      %v4981 = vrot.slane %v4808, 2
      %v4982 = vsel %vm1437, %v4980, %v4981
      %v4983 = vrot.slane %v4794, 2
      %v4984 = vrot.slane %v4809, 2
      %v4985 = vsel %vm1437, %v4983, %v4984
      %v4986 = vrot.slane %v4795, 2
      %v4987 = vrot.slane %v4810, 2
      %v4988 = vsel %vm1437, %v4986, %v4987
      %v4989 = vrot.slane %v4796, 2
      %v4990 = vrot.slane %v4811, 2
      %v4991 = vsel %vm1437, %v4989, %v4990
      %v4992 = vrot.slane %v4797, 2
      %v4993 = vrot.slane %v4812, 2
      %v4994 = vsel %vm1437, %v4992, %v4993
      %v4995 = vrot.slane %v4053, 2
      %v4996 = vrot.slane %v4813, 2
      %v4997 = vsel %vm1437, %v4995, %v4996
      %4998 = vrot.lane.b32.xlu0 %v4952, 32
      %v4999 = vpop.permute.xlu0 %4998
      %5000 = vrot.lane.b32.xlu0 %v4955, 32
      %v5001 = vpop.permute.xlu0 %5000
      %5002 = vrot.lane.b32.xlu0 %v4958, 32
      %v5003 = vpop.permute.xlu0 %5002
      %5004 = vrot.lane.b32.xlu0 %v4961, 32
      %v5005 = vpop.permute.xlu0 %5004
      %5006 = vrot.lane.b32.xlu0 %v4964, 32
      %v5007 = vpop.permute.xlu0 %5006
      %5008 = vrot.lane.b32.xlu0 %v4967, 32
      %v5009 = vpop.permute.xlu0 %5008
      %5010 = vrot.lane.b32.xlu0 %v4970, 32
      %v5011 = vpop.permute.xlu0 %5010
      %5012 = vrot.lane.b32.xlu0 %v4973, 32
      %v5013 = vpop.permute.xlu0 %5012
      %5014 = vrot.lane.b32.xlu0 %v4976, 32
      %v5015 = vpop.permute.xlu0 %5014
      %5016 = vrot.lane.b32.xlu0 %v4979, 32
      %v5017 = vpop.permute.xlu0 %5016
      %5018 = vrot.lane.b32.xlu0 %v4982, 32
      %v5019 = vpop.permute.xlu0 %5018
      %5020 = vrot.lane.b32.xlu0 %v4985, 32
      %v5021 = vpop.permute.xlu0 %5020
      %5022 = vrot.lane.b32.xlu0 %v4988, 32
      %v5023 = vpop.permute.xlu0 %5022
      %5024 = vrot.lane.b32.xlu0 %v4991, 32
      %v5025 = vpop.permute.xlu0 %5024
      %5026 = vrot.lane.b32.xlu0 %v4994, 32
      %v5027 = vpop.permute.xlu0 %5026
      %5028 = vrot.lane.b32.xlu0 %v4997, 32
      %v5029 = vpop.permute.xlu0 %5028
      %v5030 = vsel %vm3104, %v4999, %v5001
      %v5031 = vsel %vm3104, %v5003, %v5005
      %v5032 = vsel %vm3104, %v5007, %v5009
      %v5033 = vsel %vm3104, %v5011, %v5013
      %v5034 = vsel %vm3104, %v5015, %v5017
      %v5035 = vsel %vm3104, %v5019, %v5021
      %v5036 = vsel %vm3104, %v5023, %v5025
      %v5037 = vsel %vm3104, %v5027, %v5029
      %v5054 = vsel %vm3095, %v4784, %v4895
      %v5055 = vsel %vm3095, %v4786, %v4899
      %v5056 = vsel %vm3095, %v4788, %v4903
      %v5057 = vsel %vm3095, %v4790, %v4907
      %v5058 = vsel %vm3095, %v4792, %v4911
      %v5059 = vsel %vm3095, %v4794, %v4915
      %v5060 = vsel %vm3095, %v4796, %v4919
      %v5061 = vsel %vm3095, %v4053, %v4923
      %v5062 = vsel %vm3104, %v4926, %v4999
      %v5063 = vsel %vm3104, %v4927, %v5003
      %v5064 = vsel %vm3104, %v4928, %v5007
      %v5065 = vsel %vm3104, %v4929, %v5011
      %v5066 = vsel %vm3104, %v4930, %v5015
      %v5067 = vsel %vm3104, %v4931, %v5019
      %v5068 = vsel %vm3104, %v4932, %v5023
      %v5069 = vsel %vm3104, %v4933, %v5027
      %v5070 = vpack.c.bf16 %v4785, %v4783
      %v5071 = vpack.c.bf16 %v5055, %v5054
      %v5072 = vpack.c.bf16 %v5063, %v5062
      %v5073 = vpack.c.bf16 %v5031, %v5030
      %v5074 = vpack.c.bf16 %v4789, %v4787
      %v5075 = vpack.c.bf16 %v5057, %v5056
      %v5076 = vpack.c.bf16 %v5065, %v5064
      %v5077 = vpack.c.bf16 %v5033, %v5032
      %v5078 = vpack.c.bf16 %v4793, %v4791
      %v5079 = vpack.c.bf16 %v5059, %v5058
      %v5080 = vpack.c.bf16 %v5067, %v5066
      %v5081 = vpack.c.bf16 %v5035, %v5034
      %v5082 = vpack.c.bf16 %v4797, %v4795
      %v5083 = vpack.c.bf16 %v5061, %v5060
      %v5084 = vpack.c.bf16 %v5069, %v5068
      %v5085 = vpack.c.bf16 %v5037, %v5036
      %v5086 = vld [vmem:[%s9] sm:$0xf]
      %v5087 = vld [vmem:[%s9 + $0x4] sm:$0xf]
      %v5088 = vld [vmem:[%s9 + $0x8] sm:$0xf]
      %v5089 = vld [vmem:[%s9 + $0xc] sm:$0xf]
      %v5090 = vld [vmem:[%s9 + $0x10] sm:$0xf]
      %v5091 = vld [vmem:[%s9 + $0x14] sm:$0xf]
      %v5092 = vld [vmem:[%s9 + $0x18] sm:$0xf]
      %v5093 = vld [vmem:[%s9 + $0x1c] sm:$0xf]
      %v5094 = vld [vmem:[%s9 + $0x20] sm:$0xf]
      %v5095 = vld [vmem:[%s9 + $0x24] sm:$0xf]
      %v5096 = vld [vmem:[%s9 + $0x28] sm:$0xf]
      %v5097 = vld [vmem:[%s9 + $0x2c] sm:$0xf]
      %v5098 = vld [vmem:[%s9 + $0x30] sm:$0xf]
      %v5099 = vld [vmem:[%s9 + $0x34] sm:$0xf]
      %v5100 = vld [vmem:[%s9 + $0x38] sm:$0xf]
      %v5101 = vld [vmem:[%s9 + $0x3c] sm:$0xf]
      %v5102 = vld [vmem:[%s9 + $0x40] sm:$0xf]
      %v5103 = vld [vmem:[%s9 + $0x44] sm:$0xf]
      %v5104 = vld [vmem:[%s9 + $0x48] sm:$0xf]
      %v5105 = vld [vmem:[%s9 + $0x4c] sm:$0xf]
      %v5106 = vld [vmem:[%s9 + $0x50] sm:$0xf]
      %v5107 = vld [vmem:[%s9 + $0x54] sm:$0xf]
      %v5108 = vld [vmem:[%s9 + $0x58] sm:$0xf]
      %v5109 = vld [vmem:[%s9 + $0x5c] sm:$0xf]
      %v5110 = vld [vmem:[%s9 + $0x60] sm:$0xf]
      %v5111 = vld [vmem:[%s9 + $0x64] sm:$0xf]
      %v5112 = vld [vmem:[%s9 + $0x68] sm:$0xf]
      %v5113 = vld [vmem:[%s9 + $0x6c] sm:$0xf]
      %v5114 = vld [vmem:[%s9 + $0x70] sm:$0xf]
      %v5115 = vld [vmem:[%s9 + $0x74] sm:$0xf]
      %v5116 = vld [vmem:[%s9 + $0x78] sm:$0xf]
      %v5117 = vld [vmem:[%s9 + $0x7c] sm:$0xf]
      %v5118 = vld [vmem:[%s9 + $0x80] sm:$0xf]
      %v5119 = vld [vmem:[%s9 + $0x84] sm:$0xf]
      %v5120 = vld [vmem:[%s9 + $0x88] sm:$0xf]
      %v5121 = vld [vmem:[%s9 + $0x8c] sm:$0xf]
      %v5122 = vld [vmem:[%s9 + $0x90] sm:$0xf]
      %v5123 = vld [vmem:[%s9 + $0x94] sm:$0xf]
      %v5124 = vld [vmem:[%s9 + $0x98] sm:$0xf]
      %v5125 = vld [vmem:[%s9 + $0x9c] sm:$0xf]
      %v5126 = vld [vmem:[%s9 + $0xa0] sm:$0xf]
      %v5127 = vld [vmem:[%s9 + $0xa4] sm:$0xf]
      %v5128 = vld [vmem:[%s9 + $0xa8] sm:$0xf]
      %v5129 = vld [vmem:[%s9 + $0xac] sm:$0xf]
      %v5130 = vld [vmem:[%s9 + $0xb0] sm:$0xf]
      %v5131 = vld [vmem:[%s9 + $0xb4] sm:$0xf]
      %v5132 = vld [vmem:[%s9 + $0xb8] sm:$0xf]
      %v5133 = vld [vmem:[%s9 + $0xbc] sm:$0xf]
      %v5134 = vld [vmem:[%s9 + $0xc0] sm:$0xf]
      %v5135 = vld [vmem:[%s9 + $0xc4] sm:$0xf]
      %v5136 = vld [vmem:[%s9 + $0xc8] sm:$0xf]
      %v5137 = vld [vmem:[%s9 + $0xcc] sm:$0xf]
      %v5138 = vld [vmem:[%s9 + $0xd0] sm:$0xf]
      %v5139 = vld [vmem:[%s9 + $0xd4] sm:$0xf]
      %v5194 = vunpack.c.l.b16 %v5086
      %v5195 = vunpack.c.l.b16 %v5087
      %v5196 = vunpack.c.l.b16 %v5088
      %v5197 = vunpack.c.l.b16 %v5089
      %v5198 = vunpack.c.l.b16 %v5090
      %v5199 = vunpack.c.l.b16 %v5091
      %v5200 = vunpack.c.l.b16 %v5092
      %v5201 = vunpack.c.l.b16 %v5093
      %v5202 = vunpack.c.l.b16 %v5094
      %v5203 = vunpack.c.l.b16 %v5095
      %v5204 = vunpack.c.l.b16 %v5096
      %v5205 = vunpack.c.l.b16 %v5097
      %v5206 = vunpack.c.l.b16 %v5098
      %v5207 = vunpack.c.l.b16 %v5099
      %v5208 = vunpack.c.l.b16 %v5100
      %v5209 = vunpack.c.l.b16 %v5101
      %v5210 = vunpack.c.l.b16 %v5102
      %v5211 = vunpack.c.l.b16 %v5103
      %v5212 = vunpack.c.l.b16 %v5104
      %v5213 = vunpack.c.l.b16 %v5105
      %v5214 = vunpack.c.l.b16 %v5106
      %v5215 = vunpack.c.l.b16 %v5107
      %v5216 = vunpack.c.l.b16 %v5108
      %v5217 = vunpack.c.l.b16 %v5109
      %v5218 = vunpack.c.l.b16 %v5110
      %v5219 = vunpack.c.l.b16 %v5111
      %v5220 = vunpack.c.l.b16 %v5112
      %v5221 = vunpack.c.l.b16 %v5113
      %v5222 = vunpack.c.l.b16 %v5114
      %v5223 = vunpack.c.l.b16 %v5115
      %v5224 = vunpack.c.l.b16 %v5116
      %v5225 = vunpack.c.l.b16 %v5117
      %v5226 = vunpack.c.l.b16 %v5118
      %v5227 = vunpack.c.l.b16 %v5119
      %v5228 = vunpack.c.l.b16 %v5120
      %v5229 = vunpack.c.l.b16 %v5121
      %v5230 = vunpack.c.l.b16 %v5122
      %v5231 = vunpack.c.l.b16 %v5123
      %v5232 = vunpack.c.l.b16 %v5124
      %v5233 = vunpack.c.l.b16 %v5125
      %v5234 = vunpack.c.l.b16 %v5126
      %v5235 = vunpack.c.l.b16 %v5127
      %v5236 = vunpack.c.l.b16 %v5128
      %v5237 = vunpack.c.l.b16 %v5129
      %v5238 = vunpack.c.l.b16 %v5130
      %v5239 = vunpack.c.l.b16 %v5131
      %v5240 = vunpack.c.l.b16 %v5132
      %v5241 = vunpack.c.l.b16 %v5133
      %v5242 = vunpack.c.l.b16 %v5134
      %v5243 = vunpack.c.l.b16 %v5135
      %v5244 = vunpack.c.l.b16 %v5136
      %v5245 = vunpack.c.l.b16 %v5137
      %v5246 = vunpack.c.l.b16 %v5138
      %v5247 = vunpack.c.l.b16 %v5139
      %v5248 = vpack.c.b16 %v5195, %v5194
      %v5249 = vpack.c.b16 %v5197, %v5196
      %v5250 = vpack.c.b16 %v5199, %v5198
      %v5251 = vpack.c.b16 %v5201, %v5200
      %v5252 = vpack.c.b16 %v5203, %v5202
      %v5253 = vpack.c.b16 %v5205, %v5204
      %v5254 = vpack.c.b16 %v5207, %v5206
      %v5255 = vpack.c.b16 %v5209, %v5208
      %v5256 = vpack.c.b16 %v5211, %v5210
      %v5257 = vpack.c.b16 %v5213, %v5212
      %v5258 = vpack.c.b16 %v5215, %v5214
      %v5259 = vpack.c.b16 %v5217, %v5216
      %v5260 = vpack.c.b16 %v5219, %v5218
      %v5261 = vpack.c.b16 %v5221, %v5220
      %v5262 = vpack.c.b16 %v5223, %v5222
      %v5263 = vpack.c.b16 %v5225, %v5224
      %v5264 = vpack.c.b16 %v5227, %v5226
      %v5265 = vpack.c.b16 %v5229, %v5228
      %v5266 = vpack.c.b16 %v5231, %v5230
      %v5267 = vpack.c.b16 %v5233, %v5232
      %v5268 = vpack.c.b16 %v5235, %v5234
      %v5269 = vpack.c.b16 %v5237, %v5236
      %v5270 = vpack.c.b16 %v5239, %v5238
      %v5271 = vpack.c.b16 %v5241, %v5240
      %v5272 = vpack.c.b16 %v5243, %v5242
      %v5273 = vpack.c.b16 %v5245, %v5244
      %v5274 = vpack.c.b16 %v5247, %v5246
      %v5303 = vsel %vm3265, %v5073, 0
      %v5306 = vsel %vm3265, %v5077, 0
      %v5309 = vsel %vm3265, %v5081, 0
      %v5312 = vsel %vm3265, %v5085, 0
      %5314 = vmatprep.subr.bf16.mxu0 0
      %5315 = vmatpush1.bf16.msra.mxu0 %v5248
      %5316 = vmatprep.subr.bf16.mxu0 0
      %5317 = vmatpush1.bf16.msra.mxu0 %v5249
      %5318 = vmatprep.subr.bf16.mxu0 0
      %5319 = vmatpush1.bf16.msra.mxu0 %v5250
      %5320 = vmatprep.subr.bf16.mxu0 0
      %5321 = vmatpush1.bf16.msra.mxu0 %v5251
      %5322 = vmatprep.subr.bf16.mxu0 0
      %5323 = vmatpush1.bf16.msra.mxu0 %v5252
      %5324 = vmatprep.subr.bf16.mxu0 0
      %5325 = vmatpush1.bf16.msra.mxu0 %v5253
      %5326 = vmatprep.subr.bf16.mxu0 0
      %5327 = vmatpush1.bf16.msra.mxu0 %v5254
      %5328 = vmatprep.subr.bf16.mxu0 0
      %5329 = vmatpush1.bf16.msra.mxu0 %v5255
      %5330 = vmatprep.subr.bf16.mxu0 0
      %5331 = vmatpush1.bf16.msra.mxu0 %v5256
      %5332 = vmatprep.subr.bf16.mxu0 0
      %5333 = vmatpush1.bf16.msra.mxu0 %v5257
      %5334 = vmatprep.subr.bf16.mxu0 0
      %5335 = vmatpush1.bf16.msra.mxu0 %v5258
      %5336 = vmatprep.subr.bf16.mxu0 0
      %5337 = vmatpush1.bf16.msra.mxu0 %v5259
      %5338 = vmatprep.subr.bf16.mxu0 0
      %5339 = vmatpush1.bf16.msra.mxu0 %v5260
      %5340 = vmatprep.subr.bf16.mxu0 0
      %5341 = vmatpush1.bf16.msra.mxu0 %v5261
      %5342 = vmatprep.subr.bf16.mxu0 0
      %5343 = vmatpush1.bf16.msra.mxu0 %v5262
      %5344 = vmatprep.subr.bf16.mxu0 0
      %5345 = vmatpush1.bf16.msra.mxu0 %v5263
      %5346 = vmatprep.mubr.bf16.mxu0 %v5071
      %5347 = vmatmul.mubr.bf16.gmra.mrb[0].mxu0 %v5070
      %v5348 = vpop.f32.mrb[0].mxu0
      %v5349 = vadd.f32 0.0, %v5348
      %v5350 = vpop.f32.mrb[0].mxu0
      %v5351 = vpop.f32.mrb[0].mxu0
      %v5352 = vadd.f32 0.0, %v5351
      %v5353 = vpop.f32.mrb[0].mxu0
      %5354 = vmatprep.mubr.bf16.mxu0 %v5075
      %5355 = vmatmul.mubr.bf16.gmra.mrb[0].mxu0 %v5074
      %v5356 = vpop.f32.mrb[0].mxu0
      %v5357 = vadd.f32 0.0, %v5356
      %v5358 = vpop.f32.mrb[0].mxu0
      %v5359 = vpop.f32.mrb[0].mxu0
      %v5360 = vadd.f32 0.0, %v5359
      %v5361 = vpop.f32.mrb[0].mxu0
      %5362 = vmatprep.mubr.bf16.mxu0 %v5079
      %5363 = vmatmul.mubr.bf16.gmra.mrb[0].mxu0 %v5078
      %v5364 = vpop.f32.mrb[0].mxu0
      %v5365 = vadd.f32 0.0, %v5364
      %v5366 = vpop.f32.mrb[0].mxu0
      %v5367 = vpop.f32.mrb[0].mxu0
      %v5368 = vadd.f32 0.0, %v5367
      %v5369 = vpop.f32.mrb[0].mxu0
      %5370 = vmatprep.mubr.bf16.mxu0 %v5083
      %5371 = vmatmul.mubr.bf16.gmra.mrb[0].mxu0 %v5082
      %v5372 = vpop.f32.mrb[0].mxu0
      %v5373 = vadd.f32 0.0, %v5372
      %v5374 = vpop.f32.mrb[0].mxu0
      %v5375 = vpop.f32.mrb[0].mxu0
      %v5376 = vadd.f32 0.0, %v5375
      %v5377 = vpop.f32.mrb[0].mxu0
      %5378 = vdwg.mxu0
      %5379 = vmatprep.subr.bf16.mxu0 0
      %5380 = vmatpush1.bf16.msra.mxu0 %v5264
      %5381 = vmatprep.subr.bf16.mxu0 0
      %5382 = vmatpush1.bf16.msra.mxu0 %v5265
      %5383 = vmatprep.subr.bf16.mxu0 0
      %5384 = vmatpush1.bf16.msra.mxu0 %v5266
      %5385 = vmatprep.subr.bf16.mxu0 0
      %5386 = vmatpush1.bf16.msra.mxu0 %v5267
      %5387 = vmatprep.subr.bf16.mxu0 0
      %5388 = vmatpush1.bf16.msra.mxu0 %v5268
      %5389 = vmatprep.subr.bf16.mxu0 0
      %5390 = vmatpush1.bf16.msra.mxu0 %v5269
      %5391 = vmatprep.subr.bf16.mxu0 0
      %5392 = vmatpush1.bf16.msra.mxu0 %v5270
      %5393 = vmatprep.subr.bf16.mxu0 0
      %5394 = vmatpush1.bf16.msra.mxu0 %v5271
      %5395 = vmatprep.subr.bf16.mxu0 0
      %5396 = vmatpush1.bf16.msra.mxu0 %v5272
      %5397 = vmatprep.subr.bf16.mxu0 0
      %5398 = vmatpush1.bf16.msra.mxu0 %v5273
      %5399 = vmatprep.subr.bf16.mxu0 0
      %5400 = vmatpush1.bf16.msra.mxu0 %v5274
      %5401 = vmatprep.subr.bf16.mxu0 0
      %5402 = vmatpush1.bf16.msra.mxu0 0
      %5403 = vmatprep.subr.bf16.mxu0 0
      %5404 = vmatpush1.bf16.msra.mxu0 0
      %5405 = vmatprep.subr.bf16.mxu0 0
      %5406 = vmatpush1.bf16.msra.mxu0 0
      %5407 = vmatprep.subr.bf16.mxu0 0
      %5408 = vmatpush1.bf16.msra.mxu0 0
      %5409 = vmatprep.subr.bf16.mxu0 0
      %5410 = vmatpush1.bf16.msra.mxu0 0
      %5411 = vmatprep.mubr.bf16.mxu0 %v5303
      %5412 = vmatmul.mubr.bf16.gmra.mrb[0].mxu0 %v5072
      %v5413 = vpop.f32.mrb[0].mxu0
      %v5414 = vadd.f32 %v5349, %v5413
      %v5415 = vpop.f32.mrb[0].mxu0
      %v5416 = vpop.f32.mrb[0].mxu0
      %v5417 = vadd.f32 %v5352, %v5416
      %v5418 = vpop.f32.mrb[0].mxu0
      %5419 = vmatprep.mubr.bf16.mxu0 %v5306
      %5420 = vmatmul.mubr.bf16.gmra.mrb[0].mxu0 %v5076
      %v5421 = vpop.f32.mrb[0].mxu0
      %v5422 = vadd.f32 %v5357, %v5421
      %v5423 = vpop.f32.mrb[0].mxu0
      %v5424 = vpop.f32.mrb[0].mxu0
      %v5425 = vadd.f32 %v5360, %v5424
      %v5426 = vpop.f32.mrb[0].mxu0
      %5427 = vmatprep.mubr.bf16.mxu0 %v5309
      %5428 = vmatmul.mubr.bf16.gmra.mrb[0].mxu0 %v5080
      %v5429 = vpop.f32.mrb[0].mxu0
      %v5430 = vadd.f32 %v5365, %v5429
      %v5431 = vpop.f32.mrb[0].mxu0
      %v5432 = vpop.f32.mrb[0].mxu0
      %v5433 = vadd.f32 %v5368, %v5432
      %v5434 = vpop.f32.mrb[0].mxu0
      %5435 = vmatprep.mubr.bf16.mxu0 %v5312
      %5436 = vmatmul.mubr.bf16.gmra.mrb[0].mxu0 %v5084
      %v5437 = vpop.f32.mrb[0].mxu0
      %v5438 = vadd.f32 %v5373, %v5437
      %v5439 = vpop.f32.mrb[0].mxu0
      %v5440 = vpop.f32.mrb[0].mxu0
      %v5441 = vadd.f32 %v5376, %v5440
      %v5442 = vpop.f32.mrb[0].mxu0
      %5443 = vdwg.mxu0
      %v5444 = vld [vmem:[%s10] sm:$0x1]
      %v5445 = vlaneseq
      %v5446 = vshrl.u32 %v5445, 7
      %v5447 = vsub.s32 0, %v5446
      %v5448 = vrot.slane %v5444, %v5447
      %v5449 = vmul.f32 %v5414, %v5448
      %v5450 = vmul.f32 %v5417, %v5448
      %v5451 = vmul.f32 %v5422, %v5448
      %v5452 = vmul.f32 %v5425, %v5448
      %v5453 = vmul.f32 %v5430, %v5448
      %v5454 = vmul.f32 %v5433, %v5448
      %v5455 = vmul.f32 %v5438, %v5448
      %v5456 = vmul.f32 %v5441, %v5448
      %v5457 = vld [vmem:[%s10 + $0x1] sm:$0x1]
      %v5458 = vlaneseq
      %v5459 = vshrl.u32 %v5458, 7
      %v5460 = vsub.s32 0, %v5459
      %v5461 = vrot.slane %v5457, %v5460
      %v5462 = vadd.f32 %v5449, %v5461
      %v5463 = vadd.f32 %v5450, %v5461
      %v5464 = vadd.f32 %v5451, %v5461
      %v5465 = vadd.f32 %v5452, %v5461
      %v5466 = vadd.f32 %v5453, %v5461
      %v5467 = vadd.f32 %v5454, %v5461
      %v5468 = vadd.f32 %v5455, %v5461
      %v5469 = vadd.f32 %v5456, %v5461
      %v5470 = vmax.f32 %v5462, 0.0
      %v5471 = vmax.f32 %v5463, 0.0
      %v5472 = vmax.f32 %v5464, 0.0
      %v5473 = vmax.f32 %v5465, 0.0
      %v5474 = vmax.f32 %v5466, 0.0
      %v5475 = vmax.f32 %v5467, 0.0
      %v5476 = vmax.f32 %v5468, 0.0
      %v5477 = vmax.f32 %v5469, 0.0
      %v5478 = vld [vmem:[%s22] sm:$0xff]
      %v5479 = vld [vmem:[%s22 + $0x8] sm:$0xff]
      %v5480 = vld [vmem:[%s22 + $0x10] sm:$0xff]
      %v5481 = vld [vmem:[%s22 + $0x18] sm:$0xff]
      %v5482 = vld [vmem:[%s22 + $0x20] sm:$0xff]
      %v5483 = vld [vmem:[%s22 + $0x28] sm:$0xff]
      %v5484 = vld [vmem:[%s22 + $0x30] sm:$0xff]
      %v5485 = vld [vmem:[%s22 + $0x38] sm:$0xff]
      %v5486 = vld [vmem:[%s22 + $0x40] sm:$0xff]
      %v5487 = vld [vmem:[%s22 + $0x48] sm:$0xff]
      %v5488 = vld [vmem:[%s22 + $0x50] sm:$0xff]
      %v5489 = vld [vmem:[%s22 + $0x58] sm:$0xff]
      %v5490 = vld [vmem:[%s22 + $0x60] sm:$0xff]
      %v5491 = vld [vmem:[%s22 + $0x68] sm:$0xff]
      %v5492 = vld [vmem:[%s22 + $0x70] sm:$0xff]
      %v5493 = vld [vmem:[%s22 + $0x78] sm:$0xff]
      %v5494 = vld [vmem:[%s22 + $0x80] sm:$0xff]
      %v5495 = vld [vmem:[%s22 + $0x88] sm:$0xff]
      %v5496 = vld [vmem:[%s22 + $0x90] sm:$0xff]
      %v5497 = vld [vmem:[%s22 + $0x98] sm:$0xff]
      %v5498 = vld [vmem:[%s22 + $0xa0] sm:$0xff]
      %v5499 = vld [vmem:[%s22 + $0xa8] sm:$0xff]
      %v5500 = vld [vmem:[%s22 + $0xb0] sm:$0xff]
      %v5501 = vld [vmem:[%s22 + $0xb8] sm:$0xff]
      %v5502 = vld [vmem:[%s22 + $0xc0] sm:$0xff]
      %v5503 = vld [vmem:[%s22 + $0xc8] sm:$0xff]
      %v5504 = vld [vmem:[%s22 + $0xd0] sm:$0xff]
      %v5505 = vld [vmem:[%s22 + $0xd8] sm:$0xff]
      %v5506 = vld [vmem:[%s22 + $0xe0] sm:$0xff]
      %v5507 = vld [vmem:[%s22 + $0xe8] sm:$0xff]
      %v5508 = vld [vmem:[%s22 + $0xf0] sm:$0xff]
      %v5509 = vld [vmem:[%s22 + $0xf8] sm:$0xff]
      %vm5510 = vcmask 523264
      %v5512 = vsel %vm5510, %v5478, 0
      %v5515 = vsel %vm5510, %v5479, 0
      %v5518 = vsel %vm5510, %v5480, 0
      %v5521 = vsel %vm5510, %v5481, 0
      %v5524 = vsel %vm5510, %v5482, 0
      %v5527 = vsel %vm5510, %v5483, 0
      %v5530 = vsel %vm5510, %v5484, 0
      %v5533 = vsel %vm5510, %v5485, 0
      %v5536 = vsel %vm5510, %v5486, 0
      %v5539 = vsel %vm5510, %v5487, 0
      %v5542 = vsel %vm5510, %v5488, 0
      %v5545 = vsel %vm5510, %v5489, 0
      %v5548 = vsel %vm5510, %v5490, 0
      %v5551 = vsel %vm5510, %v5491, 0
      %v5554 = vsel %vm5510, %v5492, 0
      %v5557 = vsel %vm5510, %v5493, 0
      %v5560 = vsel %vm5510, %v5494, 0
      %v5563 = vsel %vm5510, %v5495, 0
      %v5566 = vsel %vm5510, %v5496, 0
      %v5569 = vsel %vm5510, %v5497, 0
      %v5572 = vsel %vm5510, %v5498, 0
      %v5575 = vsel %vm5510, %v5499, 0
      %v5578 = vsel %vm5510, %v5500, 0
      %v5581 = vsel %vm5510, %v5501, 0
      %v5584 = vsel %vm5510, %v5502, 0
      %v5587 = vsel %vm5510, %v5503, 0
      %v5590 = vsel %vm5510, %v5504, 0
      %v5593 = vsel %vm5510, %v5505, 0
      %v5596 = vsel %vm5510, %v5506, 0
      %v5599 = vsel %vm5510, %v5507, 0
      %v5602 = vsel %vm5510, %v5508, 0
      %v5605 = vsel %vm5510, %v5509, 0
      %5607 = vmatprep.subr.mxu0 0.0
      %5608 = vmatpush1.msra.mxu0 %v5470
      %5609 = vmatprep.subr.mxu0 0.0
      %5610 = vmatpush1.msra.mxu0 %v5471
      %5611 = vmatprep.subr.mxu0 0.0
      %5612 = vmatpush1.msra.mxu0 %v5472
      %5613 = vmatprep.subr.mxu0 0.0
      %5614 = vmatpush1.msra.mxu0 %v5473
      %5615 = vmatprep.subr.mxu0 0.0
      %5616 = vmatpush1.msra.mxu0 %v5474
      %5617 = vmatprep.subr.mxu0 0.0
      %5618 = vmatpush1.msra.mxu0 %v5475
      %5619 = vmatprep.subr.mxu0 0.0
      %5620 = vmatpush1.msra.mxu0 %v5476
      %5621 = vmatprep.subr.mxu0 0.0
      %5622 = vmatpush1.msra.mxu0 %v5477
      %5623 = vmatprep.subr.mxu0 0.0
      %5624 = vmatpush1.msra.mxu0 0.0
      %5625 = vmatprep.subr.mxu0 0.0
      %5626 = vmatpush1.msra.mxu0 0.0
      %5627 = vmatprep.subr.mxu0 0.0
      %5628 = vmatpush1.msra.mxu0 0.0
      %5629 = vmatprep.subr.mxu0 0.0
      %5630 = vmatpush1.msra.mxu0 0.0
      %5631 = vmatprep.subr.mxu0 0.0
      %5632 = vmatpush1.msra.mxu0 0.0
      %5633 = vmatprep.subr.mxu0 0.0
      %5634 = vmatpush1.msra.mxu0 0.0
      %5635 = vmatprep.subr.mxu0 0.0
      %5636 = vmatpush1.msra.mxu0 0.0
      %5637 = vmatprep.subr.mxu0 0.0
      %5638 = vmatpush1.msra.mxu0 0.0
      %5639 = vmatprep.subr.mxu0 0.0
      %5640 = vmatpush1.msra.mxu0 0.0
      %5641 = vmatprep.subr.mxu0 0.0
      %5642 = vmatpush1.msra.mxu0 0.0
      %5643 = vmatprep.subr.mxu0 0.0
      %5644 = vmatpush1.msra.mxu0 0.0
      %5645 = vmatprep.subr.mxu0 0.0
      %5646 = vmatpush1.msra.mxu0 0.0
      %5647 = vmatprep.subr.mxu0 0.0
      %5648 = vmatpush1.msra.mxu0 0.0
      %5649 = vmatprep.subr.mxu0 0.0
      %5650 = vmatpush1.msra.mxu0 0.0
      %5651 = vmatprep.subr.mxu0 0.0
      %5652 = vmatpush1.msra.mxu0 0.0
      %5653 = vmatprep.subr.mxu0 0.0
      %5654 = vmatpush1.msra.mxu0 0.0
      %5655 = vmatprep.subr.mxu0 0.0
      %5656 = vmatpush1.msra.mxu0 0.0
      %5657 = vmatprep.subr.mxu0 0.0
      %5658 = vmatpush1.msra.mxu0 0.0
      %5659 = vmatprep.subr.mxu0 0.0
      %5660 = vmatpush1.msra.mxu0 0.0
      %5661 = vmatprep.subr.mxu0 0.0
      %5662 = vmatpush1.msra.mxu0 0.0
      %5663 = vmatprep.subr.mxu0 0.0
      %5664 = vmatpush1.msra.mxu0 0.0
      %5665 = vmatprep.subr.mxu0 0.0
      %5666 = vmatpush1.msra.mxu0 0.0
      %5667 = vmatprep.subr.mxu0 0.0
      %5668 = vmatpush1.msra.mxu0 0.0
      %5669 = vmatprep.subr.mxu0 0.0
      %5670 = vmatpush1.msra.mxu0 0.0
      %5671 = vmatprep.mubr.f32.mxu0 0.0
      %5672 = vmatmul.mubr.f32.gmra.mrb[0].mxu0 %v5512
      %v5673 = vpop.f32.mrb[0].mxu0
      %v5674 = vadd.f32 0.0, %v5673
      %v5675 = vpop.f32.mrb[0].mxu0
      %5676 = vmatprep.mubr.f32.mxu0 0.0
      %5677 = vmatmul.mubr.f32.gmra.mrb[0].mxu0 %v5515
      %v5678 = vpop.f32.mrb[0].mxu0
      %v5679 = vadd.f32 0.0, %v5678
      %v5680 = vpop.f32.mrb[0].mxu0
      %5681 = vmatprep.mubr.f32.mxu0 0.0
      %5682 = vmatmul.mubr.f32.gmra.mrb[0].mxu0 %v5518
      %v5683 = vpop.f32.mrb[0].mxu0
      %v5684 = vadd.f32 0.0, %v5683
      %v5685 = vpop.f32.mrb[0].mxu0
      %5686 = vmatprep.mubr.f32.mxu0 0.0
      %5687 = vmatmul.mubr.f32.gmra.mrb[0].mxu0 %v5521
      %v5688 = vpop.f32.mrb[0].mxu0
      %v5689 = vadd.f32 0.0, %v5688
      %v5690 = vpop.f32.mrb[0].mxu0
      %5691 = vmatprep.mubr.f32.mxu0 0.0
      %5692 = vmatmul.mubr.f32.gmra.mrb[0].mxu0 %v5524
      %v5693 = vpop.f32.mrb[0].mxu0
      %v5694 = vadd.f32 0.0, %v5693
      %v5695 = vpop.f32.mrb[0].mxu0
      %5696 = vmatprep.mubr.f32.mxu0 0.0
      %5697 = vmatmul.mubr.f32.gmra.mrb[0].mxu0 %v5527
      %v5698 = vpop.f32.mrb[0].mxu0
      %v5699 = vadd.f32 0.0, %v5698
      %v5700 = vpop.f32.mrb[0].mxu0
      %5701 = vmatprep.mubr.f32.mxu0 0.0
      %5702 = vmatmul.mubr.f32.gmra.mrb[0].mxu0 %v5530
      %v5703 = vpop.f32.mrb[0].mxu0
      %v5704 = vadd.f32 0.0, %v5703
      %v5705 = vpop.f32.mrb[0].mxu0
      %5706 = vmatprep.mubr.f32.mxu0 0.0
      %5707 = vmatmul.mubr.f32.gmra.mrb[0].mxu0 %v5533
      %v5708 = vpop.f32.mrb[0].mxu0
      %v5709 = vadd.f32 0.0, %v5708
      %v5710 = vpop.f32.mrb[0].mxu0
      %5711 = vmatprep.mubr.f32.mxu0 0.0
      %5712 = vmatmul.mubr.f32.gmra.mrb[0].mxu0 %v5536
      %v5713 = vpop.f32.mrb[0].mxu0
      %v5714 = vadd.f32 0.0, %v5713
      %v5715 = vpop.f32.mrb[0].mxu0
      %5716 = vmatprep.mubr.f32.mxu0 0.0
      %5717 = vmatmul.mubr.f32.gmra.mrb[0].mxu0 %v5539
      %v5718 = vpop.f32.mrb[0].mxu0
      %v5719 = vadd.f32 0.0, %v5718
      %v5720 = vpop.f32.mrb[0].mxu0
      %5721 = vmatprep.mubr.f32.mxu0 0.0
      %5722 = vmatmul.mubr.f32.gmra.mrb[0].mxu0 %v5542
      %v5723 = vpop.f32.mrb[0].mxu0
      %v5724 = vadd.f32 0.0, %v5723
      %v5725 = vpop.f32.mrb[0].mxu0
      %5726 = vmatprep.mubr.f32.mxu0 0.0
      %5727 = vmatmul.mubr.f32.gmra.mrb[0].mxu0 %v5545
      %v5728 = vpop.f32.mrb[0].mxu0
      %v5729 = vadd.f32 0.0, %v5728
      %v5730 = vpop.f32.mrb[0].mxu0
      %5731 = vmatprep.mubr.f32.mxu0 0.0
      %5732 = vmatmul.mubr.f32.gmra.mrb[0].mxu0 %v5548
      %v5733 = vpop.f32.mrb[0].mxu0
      %v5734 = vadd.f32 0.0, %v5733
      %v5735 = vpop.f32.mrb[0].mxu0
      %5736 = vmatprep.mubr.f32.mxu0 0.0
      %5737 = vmatmul.mubr.f32.gmra.mrb[0].mxu0 %v5551
      %v5738 = vpop.f32.mrb[0].mxu0
      %v5739 = vadd.f32 0.0, %v5738
      %v5740 = vpop.f32.mrb[0].mxu0
      %5741 = vmatprep.mubr.f32.mxu0 0.0
      %5742 = vmatmul.mubr.f32.gmra.mrb[0].mxu0 %v5554
      %v5743 = vpop.f32.mrb[0].mxu0
      %v5744 = vadd.f32 0.0, %v5743
      %v5745 = vpop.f32.mrb[0].mxu0
      %5746 = vmatprep.mubr.f32.mxu0 0.0
      %5747 = vmatmul.mubr.f32.gmra.mrb[0].mxu0 %v5557
      %v5748 = vpop.f32.mrb[0].mxu0
      %v5749 = vadd.f32 0.0, %v5748
      %v5750 = vpop.f32.mrb[0].mxu0
      %5751 = vmatprep.mubr.f32.mxu0 0.0
      %5752 = vmatmul.mubr.f32.gmra.mrb[0].mxu0 %v5560
      %v5753 = vpop.f32.mrb[0].mxu0
      %v5754 = vadd.f32 0.0, %v5753
      %v5755 = vpop.f32.mrb[0].mxu0
      %5756 = vmatprep.mubr.f32.mxu0 0.0
      %5757 = vmatmul.mubr.f32.gmra.mrb[0].mxu0 %v5563
      %v5758 = vpop.f32.mrb[0].mxu0
      %v5759 = vadd.f32 0.0, %v5758
      %v5760 = vpop.f32.mrb[0].mxu0
      %5761 = vmatprep.mubr.f32.mxu0 0.0
      %5762 = vmatmul.mubr.f32.gmra.mrb[0].mxu0 %v5566
      %v5763 = vpop.f32.mrb[0].mxu0
      %v5764 = vadd.f32 0.0, %v5763
      %v5765 = vpop.f32.mrb[0].mxu0
      %5766 = vmatprep.mubr.f32.mxu0 0.0
      %5767 = vmatmul.mubr.f32.gmra.mrb[0].mxu0 %v5569
      %v5768 = vpop.f32.mrb[0].mxu0
      %v5769 = vadd.f32 0.0, %v5768
      %v5770 = vpop.f32.mrb[0].mxu0
      %5771 = vmatprep.mubr.f32.mxu0 0.0
      %5772 = vmatmul.mubr.f32.gmra.mrb[0].mxu0 %v5572
      %v5773 = vpop.f32.mrb[0].mxu0
      %v5774 = vadd.f32 0.0, %v5773
      %v5775 = vpop.f32.mrb[0].mxu0
      %5776 = vmatprep.mubr.f32.mxu0 0.0
      %5777 = vmatmul.mubr.f32.gmra.mrb[0].mxu0 %v5575
      %v5778 = vpop.f32.mrb[0].mxu0
      %v5779 = vadd.f32 0.0, %v5778
      %v5780 = vpop.f32.mrb[0].mxu0
      %5781 = vmatprep.mubr.f32.mxu0 0.0
      %5782 = vmatmul.mubr.f32.gmra.mrb[0].mxu0 %v5578
      %v5783 = vpop.f32.mrb[0].mxu0
      %v5784 = vadd.f32 0.0, %v5783
      %v5785 = vpop.f32.mrb[0].mxu0
      %5786 = vmatprep.mubr.f32.mxu0 0.0
      %5787 = vmatmul.mubr.f32.gmra.mrb[0].mxu0 %v5581
      %v5788 = vpop.f32.mrb[0].mxu0
      %v5789 = vadd.f32 0.0, %v5788
      %v5790 = vpop.f32.mrb[0].mxu0
      %5791 = vmatprep.mubr.f32.mxu0 0.0
      %5792 = vmatmul.mubr.f32.gmra.mrb[0].mxu0 %v5584
      %v5793 = vpop.f32.mrb[0].mxu0
      %v5794 = vadd.f32 0.0, %v5793
      %v5795 = vpop.f32.mrb[0].mxu0
      %5796 = vmatprep.mubr.f32.mxu0 0.0
      %5797 = vmatmul.mubr.f32.gmra.mrb[0].mxu0 %v5587
      %v5798 = vpop.f32.mrb[0].mxu0
      %v5799 = vadd.f32 0.0, %v5798
      %v5800 = vpop.f32.mrb[0].mxu0
      %5801 = vmatprep.mubr.f32.mxu0 0.0
      %5802 = vmatmul.mubr.f32.gmra.mrb[0].mxu0 %v5590
      %v5803 = vpop.f32.mrb[0].mxu0
      %v5804 = vadd.f32 0.0, %v5803
      %v5805 = vpop.f32.mrb[0].mxu0
      %5806 = vmatprep.mubr.f32.mxu0 0.0
      %5807 = vmatmul.mubr.f32.gmra.mrb[0].mxu0 %v5593
      %v5808 = vpop.f32.mrb[0].mxu0
      %v5809 = vadd.f32 0.0, %v5808
      %v5810 = vpop.f32.mrb[0].mxu0
      %5811 = vmatprep.mubr.f32.mxu0 0.0
      %5812 = vmatmul.mubr.f32.gmra.mrb[0].mxu0 %v5596
      %v5813 = vpop.f32.mrb[0].mxu0
      %v5814 = vadd.f32 0.0, %v5813
      %v5815 = vpop.f32.mrb[0].mxu0
      %5816 = vmatprep.mubr.f32.mxu0 0.0
      %5817 = vmatmul.mubr.f32.gmra.mrb[0].mxu0 %v5599
      %v5818 = vpop.f32.mrb[0].mxu0
      %v5819 = vadd.f32 0.0, %v5818
      %v5820 = vpop.f32.mrb[0].mxu0
      %5821 = vmatprep.mubr.f32.mxu0 0.0
      %5822 = vmatmul.mubr.f32.gmra.mrb[0].mxu0 %v5602
      %v5823 = vpop.f32.mrb[0].mxu0
      %v5824 = vadd.f32 0.0, %v5823
      %v5825 = vpop.f32.mrb[0].mxu0
      %5826 = vmatprep.mubr.f32.mxu0 0.0
      %5827 = vmatmul.mubr.f32.gmra.mrb[0].mxu0 %v5605
      %v5828 = vpop.f32.mrb[0].mxu0
      %v5829 = vadd.f32 0.0, %v5828
      %v5830 = vpop.f32.mrb[0].mxu0
      %5831 = vdwg.mxu0
      %5864 = vrot.lane.b32.xlu0 %v2001, 16
      %v5865 = vpop.permute.xlu0 %5864
      %5866 = vrot.lane.b32.xlu0 %v2002, 16
      %v5867 = vpop.permute.xlu0 %5866
      %5868 = vrot.lane.b32.xlu0 %v2003, 16
      %v5869 = vpop.permute.xlu0 %5868
      %5870 = vrot.lane.b32.xlu0 %v2004, 16
      %v5871 = vpop.permute.xlu0 %5870
      %5872 = vrot.lane.b32.xlu0 %v2005, 16
      %v5873 = vpop.permute.xlu0 %5872
      %5874 = vrot.lane.b32.xlu0 %v2006, 16
      %v5875 = vpop.permute.xlu0 %5874
      %5876 = vrot.lane.b32.xlu0 %v2007, 16
      %v5877 = vpop.permute.xlu0 %5876
      %5878 = vrot.lane.b32.xlu0 %v2008, 16
      %v5879 = vpop.permute.xlu0 %5878
      %5880 = vrot.lane.b32.xlu0 %v2009, 16
      %v5881 = vpop.permute.xlu0 %5880
      %5882 = vrot.lane.b32.xlu0 %v2010, 16
      %v5883 = vpop.permute.xlu0 %5882
      %5884 = vrot.lane.b32.xlu0 %v2011, 16
      %v5885 = vpop.permute.xlu0 %5884
      %5886 = vrot.lane.b32.xlu0 %v2012, 16
      %v5887 = vpop.permute.xlu0 %5886
      %5888 = vrot.lane.b32.xlu0 %v2013, 16
      %v5889 = vpop.permute.xlu0 %5888
      %5890 = vrot.lane.b32.xlu0 %v2014, 16
      %v5891 = vpop.permute.xlu0 %5890
      %5892 = vrot.lane.b32.xlu0 %v2015, 16
      %v5893 = vpop.permute.xlu0 %5892
      %5894 = vrot.lane.b32.xlu0 %v2016, 16
      %v5895 = vpop.permute.xlu0 %5894
      %5896 = vrot.lane.b32.xlu0 %v2017, 16
      %v5897 = vpop.permute.xlu0 %5896
      %5898 = vrot.lane.b32.xlu0 %v2018, 16
      %v5899 = vpop.permute.xlu0 %5898
      %5900 = vrot.lane.b32.xlu0 %v2019, 16
      %v5901 = vpop.permute.xlu0 %5900
      %5902 = vrot.lane.b32.xlu0 %v2020, 16
      %v5903 = vpop.permute.xlu0 %5902
      %5904 = vrot.lane.b32.xlu0 %v2021, 16
      %v5905 = vpop.permute.xlu0 %5904
      %5906 = vrot.lane.b32.xlu0 %v2022, 16
      %v5907 = vpop.permute.xlu0 %5906
      %5908 = vrot.lane.b32.xlu0 %v2023, 16
      %v5909 = vpop.permute.xlu0 %5908
      %5910 = vrot.lane.b32.xlu0 %v2024, 16
      %v5911 = vpop.permute.xlu0 %5910
      %5912 = vrot.lane.b32.xlu0 %v2025, 16
      %v5913 = vpop.permute.xlu0 %5912
      %5914 = vrot.lane.b32.xlu0 %v2026, 16
      %v5915 = vpop.permute.xlu0 %5914
      %5916 = vrot.lane.b32.xlu0 %v2027, 16
      %v5917 = vpop.permute.xlu0 %5916
      %5918 = vrot.lane.b32.xlu0 %v2028, 16
      %v5919 = vpop.permute.xlu0 %5918
      %5920 = vrot.lane.b32.xlu0 %v2029, 16
      %v5921 = vpop.permute.xlu0 %5920
      %5922 = vrot.lane.b32.xlu0 %v2030, 16
      %v5923 = vpop.permute.xlu0 %5922
      %5924 = vrot.lane.b32.xlu0 %v2031, 16
      %v5925 = vpop.permute.xlu0 %5924
      %5926 = vrot.lane.b32.xlu0 %v2032, 16
      %v5927 = vpop.permute.xlu0 %5926
      %v5960 = vsel %vm3095, %v5674, %v5865
      %v5961 = vsel %vm3095, %v5679, %v5867
      %v5962 = vsel %vm3095, %v5684, %v5869
      %v5963 = vsel %vm3095, %v5689, %v5871
      %v5964 = vsel %vm3095, %v5694, %v5873
      %v5965 = vsel %vm3095, %v5699, %v5875
      %v5966 = vsel %vm3095, %v5704, %v5877
      %v5967 = vsel %vm3095, %v5709, %v5879
      %v5968 = vsel %vm3095, %v5714, %v5881
      %v5969 = vsel %vm3095, %v5719, %v5883
      %v5970 = vsel %vm3095, %v5724, %v5885
      %v5971 = vsel %vm3095, %v5729, %v5887
      %v5972 = vsel %vm3095, %v5734, %v5889
      %v5973 = vsel %vm3095, %v5739, %v5891
      %v5974 = vsel %vm3095, %v5744, %v5893
      %v5975 = vsel %vm3095, %v5749, %v5895
      %v5976 = vsel %vm3095, %v5754, %v5897
      %v5977 = vsel %vm3095, %v5759, %v5899
      %v5978 = vsel %vm3095, %v5764, %v5901
      %v5979 = vsel %vm3095, %v5769, %v5903
      %v5980 = vsel %vm3095, %v5774, %v5905
      %v5981 = vsel %vm3095, %v5779, %v5907
      %v5982 = vsel %vm3095, %v5784, %v5909
      %v5983 = vsel %vm3095, %v5789, %v5911
      %v5984 = vsel %vm3095, %v5794, %v5913
      %v5985 = vsel %vm3095, %v5799, %v5915
      %v5986 = vsel %vm3095, %v5804, %v5917
      %v5987 = vsel %vm3095, %v5809, %v5919
      %v5988 = vsel %vm3095, %v5814, %v5921
      %v5989 = vsel %vm3095, %v5819, %v5923
      %v5990 = vsel %vm3095, %v5824, %v5925
      %v5991 = vsel %vm3095, %v5829, %v5927
      %6024 = vrot.lane.b32.xlu0 %v5960, 32
      %v6025 = vpop.permute.xlu0 %6024
      %6026 = vrot.lane.b32.xlu0 %v5961, 32
      %v6027 = vpop.permute.xlu0 %6026
      %6028 = vrot.lane.b32.xlu0 %v5962, 32
      %v6029 = vpop.permute.xlu0 %6028
      %6030 = vrot.lane.b32.xlu0 %v5963, 32
      %v6031 = vpop.permute.xlu0 %6030
      %6032 = vrot.lane.b32.xlu0 %v5964, 32
      %v6033 = vpop.permute.xlu0 %6032
      %6034 = vrot.lane.b32.xlu0 %v5965, 32
      %v6035 = vpop.permute.xlu0 %6034
      %6036 = vrot.lane.b32.xlu0 %v5966, 32
      %v6037 = vpop.permute.xlu0 %6036
      %6038 = vrot.lane.b32.xlu0 %v5967, 32
      %v6039 = vpop.permute.xlu0 %6038
      %6040 = vrot.lane.b32.xlu0 %v5968, 32
      %v6041 = vpop.permute.xlu0 %6040
      %6042 = vrot.lane.b32.xlu0 %v5969, 32
      %v6043 = vpop.permute.xlu0 %6042
      %6044 = vrot.lane.b32.xlu0 %v5970, 32
      %v6045 = vpop.permute.xlu0 %6044
      %6046 = vrot.lane.b32.xlu0 %v5971, 32
      %v6047 = vpop.permute.xlu0 %6046
      %6048 = vrot.lane.b32.xlu0 %v5972, 32
      %v6049 = vpop.permute.xlu0 %6048
      %6050 = vrot.lane.b32.xlu0 %v5973, 32
      %v6051 = vpop.permute.xlu0 %6050
      %6052 = vrot.lane.b32.xlu0 %v5974, 32
      %v6053 = vpop.permute.xlu0 %6052
      %6054 = vrot.lane.b32.xlu0 %v5975, 32
      %v6055 = vpop.permute.xlu0 %6054
      %6056 = vrot.lane.b32.xlu0 %v5976, 32
      %v6057 = vpop.permute.xlu0 %6056
      %6058 = vrot.lane.b32.xlu0 %v5977, 32
      %v6059 = vpop.permute.xlu0 %6058
      %6060 = vrot.lane.b32.xlu0 %v5978, 32
      %v6061 = vpop.permute.xlu0 %6060
      %6062 = vrot.lane.b32.xlu0 %v5979, 32
      %v6063 = vpop.permute.xlu0 %6062
      %6064 = vrot.lane.b32.xlu0 %v5980, 32
      %v6065 = vpop.permute.xlu0 %6064
      %6066 = vrot.lane.b32.xlu0 %v5981, 32
      %v6067 = vpop.permute.xlu0 %6066
      %6068 = vrot.lane.b32.xlu0 %v5982, 32
      %v6069 = vpop.permute.xlu0 %6068
      %6070 = vrot.lane.b32.xlu0 %v5983, 32
      %v6071 = vpop.permute.xlu0 %6070
      %6072 = vrot.lane.b32.xlu0 %v5984, 32
      %v6073 = vpop.permute.xlu0 %6072
      %6074 = vrot.lane.b32.xlu0 %v5985, 32
      %v6075 = vpop.permute.xlu0 %6074
      %6076 = vrot.lane.b32.xlu0 %v5986, 32
      %v6077 = vpop.permute.xlu0 %6076
      %6078 = vrot.lane.b32.xlu0 %v5987, 32
      %v6079 = vpop.permute.xlu0 %6078
      %6080 = vrot.lane.b32.xlu0 %v5988, 32
      %v6081 = vpop.permute.xlu0 %6080
      %6082 = vrot.lane.b32.xlu0 %v5989, 32
      %v6083 = vpop.permute.xlu0 %6082
      %6084 = vrot.lane.b32.xlu0 %v5990, 32
      %v6085 = vpop.permute.xlu0 %6084
      %6086 = vrot.lane.b32.xlu0 %v5991, 32
      %v6087 = vpop.permute.xlu0 %6086
      %6120 = vrot.lane.b32.xlu0 %v5962, 64
      %v6121 = vpop.permute.xlu0 %6120
      %6122 = vrot.lane.b32.xlu0 %v5963, 64
      %v6123 = vpop.permute.xlu0 %6122
      %6124 = vrot.lane.b32.xlu0 %v5964, 64
      %v6125 = vpop.permute.xlu0 %6124
      %6126 = vrot.lane.b32.xlu0 %v5965, 64
      %v6127 = vpop.permute.xlu0 %6126
      %6128 = vrot.lane.b32.xlu0 %v5966, 64
      %v6129 = vpop.permute.xlu0 %6128
      %6130 = vrot.lane.b32.xlu0 %v5967, 64
      %v6131 = vpop.permute.xlu0 %6130
      %6132 = vrot.lane.b32.xlu0 %v5968, 64
      %v6133 = vpop.permute.xlu0 %6132
      %6134 = vrot.lane.b32.xlu0 %v5969, 64
      %v6135 = vpop.permute.xlu0 %6134
      %6136 = vrot.lane.b32.xlu0 %v5970, 64
      %v6137 = vpop.permute.xlu0 %6136
      %6138 = vrot.lane.b32.xlu0 %v5971, 64
      %v6139 = vpop.permute.xlu0 %6138
      %6140 = vrot.lane.b32.xlu0 %v5972, 64
      %v6141 = vpop.permute.xlu0 %6140
      %6142 = vrot.lane.b32.xlu0 %v5973, 64
      %v6143 = vpop.permute.xlu0 %6142
      %6144 = vrot.lane.b32.xlu0 %v5974, 64
      %v6145 = vpop.permute.xlu0 %6144
      %6146 = vrot.lane.b32.xlu0 %v5975, 64
      %v6147 = vpop.permute.xlu0 %6146
      %6148 = vrot.lane.b32.xlu0 %v5976, 64
      %v6149 = vpop.permute.xlu0 %6148
      %6150 = vrot.lane.b32.xlu0 %v5977, 64
      %v6151 = vpop.permute.xlu0 %6150
      %6152 = vrot.lane.b32.xlu0 %v5978, 64
      %v6153 = vpop.permute.xlu0 %6152
      %6154 = vrot.lane.b32.xlu0 %v5979, 64
      %v6155 = vpop.permute.xlu0 %6154
      %6156 = vrot.lane.b32.xlu0 %v5980, 64
      %v6157 = vpop.permute.xlu0 %6156
      %6158 = vrot.lane.b32.xlu0 %v5981, 64
      %v6159 = vpop.permute.xlu0 %6158
      %6160 = vrot.lane.b32.xlu0 %v5982, 64
      %v6161 = vpop.permute.xlu0 %6160
      %6162 = vrot.lane.b32.xlu0 %v5983, 64
      %v6163 = vpop.permute.xlu0 %6162
      %6164 = vrot.lane.b32.xlu0 %v5984, 64
      %v6165 = vpop.permute.xlu0 %6164
      %6166 = vrot.lane.b32.xlu0 %v5985, 64
      %v6167 = vpop.permute.xlu0 %6166
      %6168 = vrot.lane.b32.xlu0 %v5986, 64
      %v6169 = vpop.permute.xlu0 %6168
      %6170 = vrot.lane.b32.xlu0 %v5987, 64
      %v6171 = vpop.permute.xlu0 %6170
      %6172 = vrot.lane.b32.xlu0 %v5988, 64
      %v6173 = vpop.permute.xlu0 %6172
      %6174 = vrot.lane.b32.xlu0 %v5989, 64
      %v6175 = vpop.permute.xlu0 %6174
      %6176 = vrot.lane.b32.xlu0 %v5990, 64
      %v6177 = vpop.permute.xlu0 %6176
      %6178 = vrot.lane.b32.xlu0 %v5991, 64
      %v6179 = vpop.permute.xlu0 %6178
      %6180 = vrot.lane.b32.xlu0 0.0, 64
      %v6181 = vpop.permute.xlu0 %6180
      %v6213 = vsel %vm3104, 0.0, %v6025
      %v6214 = vsel %vm3104, 0.0, %v6027
      %v6215 = vsel %vm3104, %v5960, %v6029
      %v6216 = vsel %vm3104, %v5961, %v6031
      %v6217 = vsel %vm3104, %v5962, %v6033
      %v6218 = vsel %vm3104, %v5963, %v6035
      %v6219 = vsel %vm3104, %v5964, %v6037
      %v6220 = vsel %vm3104, %v5965, %v6039
      %v6221 = vsel %vm3104, %v5966, %v6041
      %v6222 = vsel %vm3104, %v5967, %v6043
      %v6223 = vsel %vm3104, %v5968, %v6045
      %v6224 = vsel %vm3104, %v5969, %v6047
      %v6225 = vsel %vm3104, %v5970, %v6049
      %v6226 = vsel %vm3104, %v5971, %v6051
      %v6227 = vsel %vm3104, %v5972, %v6053
      %v6228 = vsel %vm3104, %v5973, %v6055
      %v6229 = vsel %vm3104, %v5974, %v6057
      %v6230 = vsel %vm3104, %v5975, %v6059
      %v6231 = vsel %vm3104, %v5976, %v6061
      %v6232 = vsel %vm3104, %v5977, %v6063
      %v6233 = vsel %vm3104, %v5978, %v6065
      %v6234 = vsel %vm3104, %v5979, %v6067
      %v6235 = vsel %vm3104, %v5980, %v6069
      %v6236 = vsel %vm3104, %v5981, %v6071
      %v6237 = vsel %vm3104, %v5982, %v6073
      %v6238 = vsel %vm3104, %v5983, %v6075
      %v6239 = vsel %vm3104, %v5984, %v6077
      %v6240 = vsel %vm3104, %v5985, %v6079
      %v6241 = vsel %vm3104, %v5986, %v6081
      %v6242 = vsel %vm3104, %v5987, %v6083
      %v6243 = vsel %vm3104, %v5988, %v6085
      %v6244 = vsel %vm3104, %v5989, %v6087
      %v6245 = vsel %vm5510, %v6213, %v6121
      %v6246 = vsel %vm5510, %v6214, %v6123
      %v6247 = vsel %vm5510, %v6215, %v6125
      %v6248 = vsel %vm5510, %v6216, %v6127
      %v6249 = vsel %vm5510, %v6217, %v6129
      %v6250 = vsel %vm5510, %v6218, %v6131
      %v6251 = vsel %vm5510, %v6219, %v6133
      %v6252 = vsel %vm5510, %v6220, %v6135
      %v6253 = vsel %vm5510, %v6221, %v6137
      %v6254 = vsel %vm5510, %v6222, %v6139
      %v6255 = vsel %vm5510, %v6223, %v6141
      %v6256 = vsel %vm5510, %v6224, %v6143
      %v6257 = vsel %vm5510, %v6225, %v6145
      %v6258 = vsel %vm5510, %v6226, %v6147
      %v6259 = vsel %vm5510, %v6227, %v6149
      %v6260 = vsel %vm5510, %v6228, %v6151
      %v6261 = vsel %vm5510, %v6229, %v6153
      %v6262 = vsel %vm5510, %v6230, %v6155
      %v6263 = vsel %vm5510, %v6231, %v6157
      %v6264 = vsel %vm5510, %v6232, %v6159
      %v6265 = vsel %vm5510, %v6233, %v6161
      %v6266 = vsel %vm5510, %v6234, %v6163
      %v6267 = vsel %vm5510, %v6235, %v6165
      %v6268 = vsel %vm5510, %v6236, %v6167
      %v6269 = vsel %vm5510, %v6237, %v6169
      %v6270 = vsel %vm5510, %v6238, %v6171
      %v6271 = vsel %vm5510, %v6239, %v6173
      %v6272 = vsel %vm5510, %v6240, %v6175
      %v6273 = vsel %vm5510, %v6241, %v6177
      %v6274 = vsel %vm5510, %v6242, %v6179
      %v6275 = vsel %vm5510, %v6243, %v6181
      %v6276 = vsel %vm5510, %v6244, %v6181
      %v6309 = vrot.slane %v6245, 7
      %v6310 = vrot.slane %v6246, 7
      %v6311 = vsel %vm1099, %v6309, %v6310
      %v6312 = vrot.slane %v6247, 7
      %v6313 = vrot.slane %v6248, 7
      %v6314 = vsel %vm1099, %v6312, %v6313
      %v6315 = vrot.slane %v6249, 7
      %v6316 = vrot.slane %v6250, 7
      %v6317 = vsel %vm1099, %v6315, %v6316
      %v6318 = vrot.slane %v6251, 7
      %v6319 = vrot.slane %v6252, 7
      %v6320 = vsel %vm1099, %v6318, %v6319
      %v6321 = vrot.slane %v6253, 7
      %v6322 = vrot.slane %v6254, 7
      %v6323 = vsel %vm1099, %v6321, %v6322
      %v6324 = vrot.slane %v6255, 7
      %v6325 = vrot.slane %v6256, 7
      %v6326 = vsel %vm1099, %v6324, %v6325
      %v6327 = vrot.slane %v6257, 7
      %v6328 = vrot.slane %v6258, 7
      %v6329 = vsel %vm1099, %v6327, %v6328
      %v6330 = vrot.slane %v6259, 7
      %v6331 = vrot.slane %v6260, 7
      %v6332 = vsel %vm1099, %v6330, %v6331
      %v6333 = vrot.slane %v6261, 7
      %v6334 = vrot.slane %v6262, 7
      %v6335 = vsel %vm1099, %v6333, %v6334
      %v6336 = vrot.slane %v6263, 7
      %v6337 = vrot.slane %v6264, 7
      %v6338 = vsel %vm1099, %v6336, %v6337
      %v6339 = vrot.slane %v6265, 7
      %v6340 = vrot.slane %v6266, 7
      %v6341 = vsel %vm1099, %v6339, %v6340
      %v6342 = vrot.slane %v6267, 7
      %v6343 = vrot.slane %v6268, 7
      %v6344 = vsel %vm1099, %v6342, %v6343
      %v6345 = vrot.slane %v6269, 7
      %v6346 = vrot.slane %v6270, 7
      %v6347 = vsel %vm1099, %v6345, %v6346
      %v6348 = vrot.slane %v6271, 7
      %v6349 = vrot.slane %v6272, 7
      %v6350 = vsel %vm1099, %v6348, %v6349
      %v6351 = vrot.slane %v6273, 7
      %v6352 = vrot.slane %v6274, 7
      %v6353 = vsel %vm1099, %v6351, %v6352
      %v6354 = vrot.slane %v6275, 7
      %v6355 = vrot.slane %v6276, 7
      %v6356 = vsel %vm1099, %v6354, %v6355
      %v6405 = vsel %vm1099, 0.0, %v6309
      %v6406 = vsel %vm1099, 0.0, %v6312
      %v6407 = vsel %vm1099, 0.0, %v6315
      %v6408 = vsel %vm1099, 0.0, %v6318
      %v6409 = vsel %vm1099, 0.0, %v6321
      %v6410 = vsel %vm1099, 0.0, %v6324
      %v6411 = vsel %vm1099, 0.0, %v6327
      %v6412 = vsel %vm1099, 0.0, %v6330
      %v6413 = vsel %vm1099, 0.0, %v6333
      %v6414 = vsel %vm1099, 0.0, %v6336
      %v6415 = vsel %vm1099, 0.0, %v6339
      %v6416 = vsel %vm1099, 0.0, %v6342
      %v6417 = vsel %vm1099, 0.0, %v6345
      %v6418 = vsel %vm1099, 0.0, %v6348
      %v6419 = vsel %vm1099, 0.0, %v6351
      %v6420 = vsel %vm1099, 0.0, %v6354
      %v6421 = vsel %vm1099, %v6310, 0.0
      %v6422 = vsel %vm1099, %v6313, 0.0
      %v6423 = vsel %vm1099, %v6316, 0.0
      %v6424 = vsel %vm1099, %v6319, 0.0
      %v6425 = vsel %vm1099, %v6322, 0.0
      %v6426 = vsel %vm1099, %v6325, 0.0
      %v6427 = vsel %vm1099, %v6328, 0.0
      %v6428 = vsel %vm1099, %v6331, 0.0
      %v6429 = vsel %vm1099, %v6334, 0.0
      %v6430 = vsel %vm1099, %v6337, 0.0
      %v6431 = vsel %vm1099, %v6340, 0.0
      %v6432 = vsel %vm1099, %v6343, 0.0
      %v6433 = vsel %vm1099, %v6346, 0.0
      %v6434 = vsel %vm1099, %v6349, 0.0
      %v6435 = vsel %vm1099, %v6352, 0.0
      %v6436 = vsel %vm1099, %v6355, 0.0
      %v6469 = vrot.slane %v6405, 1
      %v6470 = vrot.slane %v6311, 1
      %v6471 = vsel %vm1260, %v6469, %v6470
      %v6472 = vrot.slane %v6421, 1
      %v6473 = vsel %vm1260, %v6470, %v6472
      %v6474 = vrot.slane %v6406, 1
      %v6475 = vrot.slane %v6314, 1
      %v6476 = vsel %vm1260, %v6474, %v6475
      %v6477 = vrot.slane %v6422, 1
      %v6478 = vsel %vm1260, %v6475, %v6477
      %v6479 = vrot.slane %v6407, 1
      %v6480 = vrot.slane %v6317, 1
      %v6481 = vsel %vm1260, %v6479, %v6480
      %v6482 = vrot.slane %v6423, 1
      %v6483 = vsel %vm1260, %v6480, %v6482
      %v6484 = vrot.slane %v6408, 1
      %v6485 = vrot.slane %v6320, 1
      %v6486 = vsel %vm1260, %v6484, %v6485
      %v6487 = vrot.slane %v6424, 1
      %v6488 = vsel %vm1260, %v6485, %v6487
      %v6489 = vrot.slane %v6409, 1
      %v6490 = vrot.slane %v6323, 1
      %v6491 = vsel %vm1260, %v6489, %v6490
      %v6492 = vrot.slane %v6425, 1
      %v6493 = vsel %vm1260, %v6490, %v6492
      %v6494 = vrot.slane %v6410, 1
      %v6495 = vrot.slane %v6326, 1
      %v6496 = vsel %vm1260, %v6494, %v6495
      %v6497 = vrot.slane %v6426, 1
      %v6498 = vsel %vm1260, %v6495, %v6497
      %v6499 = vrot.slane %v6411, 1
      %v6500 = vrot.slane %v6329, 1
      %v6501 = vsel %vm1260, %v6499, %v6500
      %v6502 = vrot.slane %v6427, 1
      %v6503 = vsel %vm1260, %v6500, %v6502
      %v6504 = vrot.slane %v6412, 1
      %v6505 = vrot.slane %v6332, 1
      %v6506 = vsel %vm1260, %v6504, %v6505
      %v6507 = vrot.slane %v6428, 1
      %v6508 = vsel %vm1260, %v6505, %v6507
      %v6509 = vrot.slane %v6413, 1
      %v6510 = vrot.slane %v6335, 1
      %v6511 = vsel %vm1260, %v6509, %v6510
      %v6512 = vrot.slane %v6429, 1
      %v6513 = vsel %vm1260, %v6510, %v6512
      %v6514 = vrot.slane %v6414, 1
      %v6515 = vrot.slane %v6338, 1
      %v6516 = vsel %vm1260, %v6514, %v6515
      %v6517 = vrot.slane %v6430, 1
      %v6518 = vsel %vm1260, %v6515, %v6517
      %v6519 = vrot.slane %v6415, 1
      %v6520 = vrot.slane %v6341, 1
      %v6521 = vsel %vm1260, %v6519, %v6520
      %v6522 = vrot.slane %v6431, 1
      %v6523 = vsel %vm1260, %v6520, %v6522
      %v6524 = vrot.slane %v6416, 1
      %v6525 = vrot.slane %v6344, 1
      %v6526 = vsel %vm1260, %v6524, %v6525
      %v6527 = vrot.slane %v6432, 1
      %v6528 = vsel %vm1260, %v6525, %v6527
      %v6529 = vrot.slane %v6417, 1
      %v6530 = vrot.slane %v6347, 1
      %v6531 = vsel %vm1260, %v6529, %v6530
      %v6532 = vrot.slane %v6433, 1
      %v6533 = vsel %vm1260, %v6530, %v6532
      %v6534 = vrot.slane %v6418, 1
      %v6535 = vrot.slane %v6350, 1
      %v6536 = vsel %vm1260, %v6534, %v6535
      %v6537 = vrot.slane %v6434, 1
      %v6538 = vsel %vm1260, %v6535, %v6537
      %v6539 = vrot.slane %v6419, 1
      %v6540 = vrot.slane %v6353, 1
      %v6541 = vsel %vm1260, %v6539, %v6540
      %v6542 = vrot.slane %v6435, 1
      %v6543 = vsel %vm1260, %v6540, %v6542
      %v6544 = vrot.slane %v6420, 1
      %v6545 = vrot.slane %v6356, 1
      %v6546 = vsel %vm1260, %v6544, %v6545
      %v6547 = vrot.slane %v6436, 1
      %v6548 = vsel %vm1260, %v6545, %v6547
      %6549 = vrot.lane.b32.xlu0 %v6471, 96
      %v6550 = vpop.permute.xlu0 %6549
      %6551 = vrot.lane.b32.xlu0 %v6473, 96
      %v6552 = vpop.permute.xlu0 %6551
      %6553 = vrot.lane.b32.xlu0 %v6476, 96
      %v6554 = vpop.permute.xlu0 %6553
      %6555 = vrot.lane.b32.xlu0 %v6478, 96
      %v6556 = vpop.permute.xlu0 %6555
      %6557 = vrot.lane.b32.xlu0 %v6481, 96
      %v6558 = vpop.permute.xlu0 %6557
      %6559 = vrot.lane.b32.xlu0 %v6483, 96
      %v6560 = vpop.permute.xlu0 %6559
      %6561 = vrot.lane.b32.xlu0 %v6486, 96
      %v6562 = vpop.permute.xlu0 %6561
      %6563 = vrot.lane.b32.xlu0 %v6488, 96
      %v6564 = vpop.permute.xlu0 %6563
      %6565 = vrot.lane.b32.xlu0 %v6491, 96
      %v6566 = vpop.permute.xlu0 %6565
      %6567 = vrot.lane.b32.xlu0 %v6493, 96
      %v6568 = vpop.permute.xlu0 %6567
      %6569 = vrot.lane.b32.xlu0 %v6496, 96
      %v6570 = vpop.permute.xlu0 %6569
      %6571 = vrot.lane.b32.xlu0 %v6498, 96
      %v6572 = vpop.permute.xlu0 %6571
      %6573 = vrot.lane.b32.xlu0 %v6501, 96
      %v6574 = vpop.permute.xlu0 %6573
      %6575 = vrot.lane.b32.xlu0 %v6503, 96
      %v6576 = vpop.permute.xlu0 %6575
      %6577 = vrot.lane.b32.xlu0 %v6506, 96
      %v6578 = vpop.permute.xlu0 %6577
      %6579 = vrot.lane.b32.xlu0 %v6508, 96
      %v6580 = vpop.permute.xlu0 %6579
      %6581 = vrot.lane.b32.xlu0 %v6511, 96
      %v6582 = vpop.permute.xlu0 %6581
      %6583 = vrot.lane.b32.xlu0 %v6513, 96
      %v6584 = vpop.permute.xlu0 %6583
      %6585 = vrot.lane.b32.xlu0 %v6516, 96
      %v6586 = vpop.permute.xlu0 %6585
      %6587 = vrot.lane.b32.xlu0 %v6518, 96
      %v6588 = vpop.permute.xlu0 %6587
      %6589 = vrot.lane.b32.xlu0 %v6521, 96
      %v6590 = vpop.permute.xlu0 %6589
      %6591 = vrot.lane.b32.xlu0 %v6523, 96
      %v6592 = vpop.permute.xlu0 %6591
      %6593 = vrot.lane.b32.xlu0 %v6526, 96
      %v6594 = vpop.permute.xlu0 %6593
      %6595 = vrot.lane.b32.xlu0 %v6528, 96
      %v6596 = vpop.permute.xlu0 %6595
      %6597 = vrot.lane.b32.xlu0 %v6531, 96
      %v6598 = vpop.permute.xlu0 %6597
      %6599 = vrot.lane.b32.xlu0 %v6533, 96
      %v6600 = vpop.permute.xlu0 %6599
      %6601 = vrot.lane.b32.xlu0 %v6536, 96
      %v6602 = vpop.permute.xlu0 %6601
      %6603 = vrot.lane.b32.xlu0 %v6538, 96
      %v6604 = vpop.permute.xlu0 %6603
      %6605 = vrot.lane.b32.xlu0 %v6541, 96
      %v6606 = vpop.permute.xlu0 %6605
      %6607 = vrot.lane.b32.xlu0 %v6543, 96
      %v6608 = vpop.permute.xlu0 %6607
      %6609 = vrot.lane.b32.xlu0 %v6546, 96
      %v6610 = vpop.permute.xlu0 %6609
      %6611 = vrot.lane.b32.xlu0 %v6548, 96
      %v6612 = vpop.permute.xlu0 %6611
      %v6645 = vrot.slane %v6405, 2
      %v6646 = vrot.slane %v6311, 2
      %v6647 = vsel %vm1437, %v6645, %v6646
      %v6648 = vrot.slane %v6421, 2
      %v6649 = vsel %vm1437, %v6646, %v6648
      %v6650 = vrot.slane %v6406, 2
      %v6651 = vrot.slane %v6314, 2
      %v6652 = vsel %vm1437, %v6650, %v6651
      %v6653 = vrot.slane %v6422, 2
      %v6654 = vsel %vm1437, %v6651, %v6653
      %v6655 = vrot.slane %v6407, 2
      %v6656 = vrot.slane %v6317, 2
      %v6657 = vsel %vm1437, %v6655, %v6656
      %v6658 = vrot.slane %v6423, 2
      %v6659 = vsel %vm1437, %v6656, %v6658
      %v6660 = vrot.slane %v6408, 2
      %v6661 = vrot.slane %v6320, 2
      %v6662 = vsel %vm1437, %v6660, %v6661
      %v6663 = vrot.slane %v6424, 2
      %v6664 = vsel %vm1437, %v6661, %v6663
      %v6665 = vrot.slane %v6409, 2
      %v6666 = vrot.slane %v6323, 2
      %v6667 = vsel %vm1437, %v6665, %v6666
      %v6668 = vrot.slane %v6425, 2
      %v6669 = vsel %vm1437, %v6666, %v6668
      %v6670 = vrot.slane %v6410, 2
      %v6671 = vrot.slane %v6326, 2
      %v6672 = vsel %vm1437, %v6670, %v6671
      %v6673 = vrot.slane %v6426, 2
      %v6674 = vsel %vm1437, %v6671, %v6673
      %v6675 = vrot.slane %v6411, 2
      %v6676 = vrot.slane %v6329, 2
      %v6677 = vsel %vm1437, %v6675, %v6676
      %v6678 = vrot.slane %v6427, 2
      %v6679 = vsel %vm1437, %v6676, %v6678
      %v6680 = vrot.slane %v6412, 2
      %v6681 = vrot.slane %v6332, 2
      %v6682 = vsel %vm1437, %v6680, %v6681
      %v6683 = vrot.slane %v6428, 2
      %v6684 = vsel %vm1437, %v6681, %v6683
      %v6685 = vrot.slane %v6413, 2
      %v6686 = vrot.slane %v6335, 2
      %v6687 = vsel %vm1437, %v6685, %v6686
      %v6688 = vrot.slane %v6429, 2
      %v6689 = vsel %vm1437, %v6686, %v6688
      %v6690 = vrot.slane %v6414, 2
      %v6691 = vrot.slane %v6338, 2
      %v6692 = vsel %vm1437, %v6690, %v6691
      %v6693 = vrot.slane %v6430, 2
      %v6694 = vsel %vm1437, %v6691, %v6693
      %v6695 = vrot.slane %v6415, 2
      %v6696 = vrot.slane %v6341, 2
      %v6697 = vsel %vm1437, %v6695, %v6696
      %v6698 = vrot.slane %v6431, 2
      %v6699 = vsel %vm1437, %v6696, %v6698
      %v6700 = vrot.slane %v6416, 2
      %v6701 = vrot.slane %v6344, 2
      %v6702 = vsel %vm1437, %v6700, %v6701
      %v6703 = vrot.slane %v6432, 2
      %v6704 = vsel %vm1437, %v6701, %v6703
      %v6705 = vrot.slane %v6417, 2
      %v6706 = vrot.slane %v6347, 2
      %v6707 = vsel %vm1437, %v6705, %v6706
      %v6708 = vrot.slane %v6433, 2
      %v6709 = vsel %vm1437, %v6706, %v6708
      %v6710 = vrot.slane %v6418, 2
      %v6711 = vrot.slane %v6350, 2
      %v6712 = vsel %vm1437, %v6710, %v6711
      %v6713 = vrot.slane %v6434, 2
      %v6714 = vsel %vm1437, %v6711, %v6713
      %v6715 = vrot.slane %v6419, 2
      %v6716 = vrot.slane %v6353, 2
      %v6717 = vsel %vm1437, %v6715, %v6716
      %v6718 = vrot.slane %v6435, 2
      %v6719 = vsel %vm1437, %v6716, %v6718
      %v6720 = vrot.slane %v6420, 2
      %v6721 = vrot.slane %v6356, 2
      %v6722 = vsel %vm1437, %v6720, %v6721
      %v6723 = vrot.slane %v6436, 2
      %v6724 = vsel %vm1437, %v6721, %v6723
      %6725 = vrot.lane.b32.xlu0 %v6647, 64
      %v6726 = vpop.permute.xlu0 %6725
      %6727 = vrot.lane.b32.xlu0 %v6649, 64
      %v6728 = vpop.permute.xlu0 %6727
      %6729 = vrot.lane.b32.xlu0 %v6652, 64
      %v6730 = vpop.permute.xlu0 %6729
      %6731 = vrot.lane.b32.xlu0 %v6654, 64
      %v6732 = vpop.permute.xlu0 %6731
      %6733 = vrot.lane.b32.xlu0 %v6657, 64
      %v6734 = vpop.permute.xlu0 %6733
      %6735 = vrot.lane.b32.xlu0 %v6659, 64
      %v6736 = vpop.permute.xlu0 %6735
      %6737 = vrot.lane.b32.xlu0 %v6662, 64
      %v6738 = vpop.permute.xlu0 %6737
      %6739 = vrot.lane.b32.xlu0 %v6664, 64
      %v6740 = vpop.permute.xlu0 %6739
      %6741 = vrot.lane.b32.xlu0 %v6667, 64
      %v6742 = vpop.permute.xlu0 %6741
      %6743 = vrot.lane.b32.xlu0 %v6669, 64
      %v6744 = vpop.permute.xlu0 %6743
      %6745 = vrot.lane.b32.xlu0 %v6672, 64
      %v6746 = vpop.permute.xlu0 %6745
      %6747 = vrot.lane.b32.xlu0 %v6674, 64
      %v6748 = vpop.permute.xlu0 %6747
      %6749 = vrot.lane.b32.xlu0 %v6677, 64
      %v6750 = vpop.permute.xlu0 %6749
      %6751 = vrot.lane.b32.xlu0 %v6679, 64
      %v6752 = vpop.permute.xlu0 %6751
      %6753 = vrot.lane.b32.xlu0 %v6682, 64
      %v6754 = vpop.permute.xlu0 %6753
      %6755 = vrot.lane.b32.xlu0 %v6684, 64
      %v6756 = vpop.permute.xlu0 %6755
      %6757 = vrot.lane.b32.xlu0 %v6687, 64
      %v6758 = vpop.permute.xlu0 %6757
      %6759 = vrot.lane.b32.xlu0 %v6689, 64
      %v6760 = vpop.permute.xlu0 %6759
      %6761 = vrot.lane.b32.xlu0 %v6692, 64
      %v6762 = vpop.permute.xlu0 %6761
      %6763 = vrot.lane.b32.xlu0 %v6694, 64
      %v6764 = vpop.permute.xlu0 %6763
      %6765 = vrot.lane.b32.xlu0 %v6697, 64
      %v6766 = vpop.permute.xlu0 %6765
      %6767 = vrot.lane.b32.xlu0 %v6699, 64
      %v6768 = vpop.permute.xlu0 %6767
      %6769 = vrot.lane.b32.xlu0 %v6702, 64
      %v6770 = vpop.permute.xlu0 %6769
      %6771 = vrot.lane.b32.xlu0 %v6704, 64
      %v6772 = vpop.permute.xlu0 %6771
      %6773 = vrot.lane.b32.xlu0 %v6707, 64
      %v6774 = vpop.permute.xlu0 %6773
      %6775 = vrot.lane.b32.xlu0 %v6709, 64
      %v6776 = vpop.permute.xlu0 %6775
      %6777 = vrot.lane.b32.xlu0 %v6712, 64
      %v6778 = vpop.permute.xlu0 %6777
      %6779 = vrot.lane.b32.xlu0 %v6714, 64
      %v6780 = vpop.permute.xlu0 %6779
      %6781 = vrot.lane.b32.xlu0 %v6717, 64
      %v6782 = vpop.permute.xlu0 %6781
      %6783 = vrot.lane.b32.xlu0 %v6719, 64
      %v6784 = vpop.permute.xlu0 %6783
      %6785 = vrot.lane.b32.xlu0 %v6722, 64
      %v6786 = vpop.permute.xlu0 %6785
      %6787 = vrot.lane.b32.xlu0 %v6724, 64
      %v6788 = vpop.permute.xlu0 %6787
      %v6821 = vsel %vm3274, %v6405, %v6550
      %v6822 = vsel %vm3274, %v6311, %v6552
      %v6823 = vsel %vm3274, %v6406, %v6554
      %v6824 = vsel %vm3274, %v6314, %v6556
      %v6825 = vsel %vm3274, %v6407, %v6558
      %v6826 = vsel %vm3274, %v6317, %v6560
      %v6827 = vsel %vm3274, %v6408, %v6562
      %v6828 = vsel %vm3274, %v6320, %v6564
      %v6829 = vsel %vm3274, %v6409, %v6566
      %v6830 = vsel %vm3274, %v6323, %v6568
      %v6831 = vsel %vm3274, %v6410, %v6570
      %v6832 = vsel %vm3274, %v6326, %v6572
      %v6833 = vsel %vm3274, %v6411, %v6574
      %v6834 = vsel %vm3274, %v6329, %v6576
      %v6835 = vsel %vm3274, %v6412, %v6578
      %v6836 = vsel %vm3274, %v6332, %v6580
      %v6837 = vsel %vm3274, %v6413, %v6582
      %v6838 = vsel %vm3274, %v6335, %v6584
      %v6839 = vsel %vm3274, %v6414, %v6586
      %v6840 = vsel %vm3274, %v6338, %v6588
      %v6841 = vsel %vm3274, %v6415, %v6590
      %v6842 = vsel %vm3274, %v6341, %v6592
      %v6843 = vsel %vm3274, %v6416, %v6594
      %v6844 = vsel %vm3274, %v6344, %v6596
      %v6845 = vsel %vm3274, %v6417, %v6598
      %v6846 = vsel %vm3274, %v6347, %v6600
      %v6847 = vsel %vm3274, %v6418, %v6602
      %v6848 = vsel %vm3274, %v6350, %v6604
      %v6849 = vsel %vm3274, %v6419, %v6606
      %v6850 = vsel %vm3274, %v6353, %v6608
      %v6851 = vsel %vm3274, %v6420, %v6610
      %v6852 = vsel %vm3274, %v6356, %v6612
      %v6853 = vsel %vm5510, %v6550, %v6726
      %v6854 = vsel %vm5510, %v6552, %v6728
      %v6855 = vsel %vm5510, %v6554, %v6730
      %v6856 = vsel %vm5510, %v6556, %v6732
      %v6857 = vsel %vm5510, %v6558, %v6734
      %v6858 = vsel %vm5510, %v6560, %v6736
      %v6859 = vsel %vm5510, %v6562, %v6738
      %v6860 = vsel %vm5510, %v6564, %v6740
      %v6861 = vsel %vm5510, %v6566, %v6742
      %v6862 = vsel %vm5510, %v6568, %v6744
      %v6863 = vsel %vm5510, %v6570, %v6746
      %v6864 = vsel %vm5510, %v6572, %v6748
      %v6865 = vsel %vm5510, %v6574, %v6750
      %v6866 = vsel %vm5510, %v6576, %v6752
      %v6867 = vsel %vm5510, %v6578, %v6754
      %v6868 = vsel %vm5510, %v6580, %v6756
      %v6869 = vsel %vm5510, %v6582, %v6758
      %v6870 = vsel %vm5510, %v6584, %v6760
      %v6871 = vsel %vm5510, %v6586, %v6762
      %v6872 = vsel %vm5510, %v6588, %v6764
      %v6873 = vsel %vm5510, %v6590, %v6766
      %v6874 = vsel %vm5510, %v6592, %v6768
      %v6875 = vsel %vm5510, %v6594, %v6770
      %v6876 = vsel %vm5510, %v6596, %v6772
      %v6877 = vsel %vm5510, %v6598, %v6774
      %v6878 = vsel %vm5510, %v6600, %v6776
      %v6879 = vsel %vm5510, %v6602, %v6778
      %v6880 = vsel %vm5510, %v6604, %v6780
      %v6881 = vsel %vm5510, %v6606, %v6782
      %v6882 = vsel %vm5510, %v6608, %v6784
      %v6883 = vsel %vm5510, %v6610, %v6786
      %v6884 = vsel %vm5510, %v6612, %v6788
      %v6885 = vpack.c.bf16 %v6822, %v6821
      %v6886 = vpack.c.bf16 %v6854, %v6853
      %v6887 = vpack.c.bf16 %v6728, %v6726
      %v6888 = vpack.c.bf16 %v6824, %v6823
      %v6889 = vpack.c.bf16 %v6856, %v6855
      %v6890 = vpack.c.bf16 %v6732, %v6730
      %v6891 = vpack.c.bf16 %v6826, %v6825
      %v6892 = vpack.c.bf16 %v6858, %v6857
      %v6893 = vpack.c.bf16 %v6736, %v6734
      %v6894 = vpack.c.bf16 %v6828, %v6827
      %v6895 = vpack.c.bf16 %v6860, %v6859
      %v6896 = vpack.c.bf16 %v6740, %v6738
      %v6897 = vpack.c.bf16 %v6830, %v6829
      %v6898 = vpack.c.bf16 %v6862, %v6861
      %v6899 = vpack.c.bf16 %v6744, %v6742
      %v6900 = vpack.c.bf16 %v6832, %v6831
      %v6901 = vpack.c.bf16 %v6864, %v6863
      %v6902 = vpack.c.bf16 %v6748, %v6746
      %v6903 = vpack.c.bf16 %v6834, %v6833
      %v6904 = vpack.c.bf16 %v6866, %v6865
      %v6905 = vpack.c.bf16 %v6752, %v6750
      %v6906 = vpack.c.bf16 %v6836, %v6835
      %v6907 = vpack.c.bf16 %v6868, %v6867
      %v6908 = vpack.c.bf16 %v6756, %v6754
      %v6909 = vpack.c.bf16 %v6838, %v6837
      %v6910 = vpack.c.bf16 %v6870, %v6869
      %v6911 = vpack.c.bf16 %v6760, %v6758
      %v6912 = vpack.c.bf16 %v6840, %v6839
      %v6913 = vpack.c.bf16 %v6872, %v6871
      %v6914 = vpack.c.bf16 %v6764, %v6762
      %v6915 = vpack.c.bf16 %v6842, %v6841
      %v6916 = vpack.c.bf16 %v6874, %v6873
      %v6917 = vpack.c.bf16 %v6768, %v6766
      %v6918 = vpack.c.bf16 %v6844, %v6843
      %v6919 = vpack.c.bf16 %v6876, %v6875
      %v6920 = vpack.c.bf16 %v6772, %v6770
      %v6921 = vpack.c.bf16 %v6846, %v6845
      %v6922 = vpack.c.bf16 %v6878, %v6877
      %v6923 = vpack.c.bf16 %v6776, %v6774
      %v6924 = vpack.c.bf16 %v6848, %v6847
      %v6925 = vpack.c.bf16 %v6880, %v6879
      %v6926 = vpack.c.bf16 %v6780, %v6778
      %v6927 = vpack.c.bf16 %v6850, %v6849
      %v6928 = vpack.c.bf16 %v6882, %v6881
      %v6929 = vpack.c.bf16 %v6784, %v6782
      %v6930 = vpack.c.bf16 %v6852, %v6851
      %v6931 = vpack.c.bf16 %v6884, %v6883
      %v6932 = vpack.c.bf16 %v6788, %v6786
      %v6933 = vld [vmem:[%s11] sm:$0xf]
      %v6934 = vld [vmem:[%s11 + $0x4] sm:$0xf]
      %v6935 = vld [vmem:[%s11 + $0x8] sm:$0xf]
      %v6936 = vld [vmem:[%s11 + $0xc] sm:$0xf]
      %v6937 = vld [vmem:[%s11 + $0x10] sm:$0xf]
      %v6938 = vld [vmem:[%s11 + $0x14] sm:$0xf]
      %v6939 = vld [vmem:[%s11 + $0x18] sm:$0xf]
      %v6940 = vld [vmem:[%s11 + $0x1c] sm:$0xf]
      %v6941 = vld [vmem:[%s11 + $0x20] sm:$0xf]
      %v6942 = vld [vmem:[%s11 + $0x24] sm:$0xf]
      %v6943 = vld [vmem:[%s11 + $0x28] sm:$0xf]
      %v6944 = vld [vmem:[%s11 + $0x2c] sm:$0xf]
      %v6945 = vld [vmem:[%s11 + $0x30] sm:$0xf]
      %v6946 = vld [vmem:[%s11 + $0x34] sm:$0xf]
      %v6947 = vld [vmem:[%s11 + $0x38] sm:$0xf]
      %v6948 = vld [vmem:[%s11 + $0x3c] sm:$0xf]
      %v6949 = vld [vmem:[%s11 + $0x40] sm:$0xf]
      %v6950 = vld [vmem:[%s11 + $0x44] sm:$0xf]
      %v6951 = vld [vmem:[%s11 + $0x48] sm:$0xf]
      %v6952 = vld [vmem:[%s11 + $0x4c] sm:$0xf]
      %v6953 = vld [vmem:[%s11 + $0x50] sm:$0xf]
      %v6954 = vld [vmem:[%s11 + $0x54] sm:$0xf]
      %v6955 = vld [vmem:[%s11 + $0x58] sm:$0xf]
      %v6956 = vld [vmem:[%s11 + $0x5c] sm:$0xf]
      %v6957 = vld [vmem:[%s11 + $0x60] sm:$0xf]
      %v6958 = vld [vmem:[%s11 + $0x64] sm:$0xf]
      %v6959 = vld [vmem:[%s11 + $0x68] sm:$0xf]
      %v6960 = vld [vmem:[%s11 + $0x6c] sm:$0xf]
      %v6961 = vld [vmem:[%s11 + $0x70] sm:$0xf]
      %v6962 = vld [vmem:[%s11 + $0x74] sm:$0xf]
      %v6963 = vld [vmem:[%s11 + $0x78] sm:$0xf]
      %v6964 = vld [vmem:[%s11 + $0x7c] sm:$0xf]
      %v6965 = vld [vmem:[%s11 + $0x80] sm:$0xf]
      %v6966 = vld [vmem:[%s11 + $0x84] sm:$0xf]
      %v6967 = vld [vmem:[%s11 + $0x88] sm:$0xf]
      %v6968 = vld [vmem:[%s11 + $0x8c] sm:$0xf]
      %v7005 = vunpack.c.l.b16 %v6933
      %v7006 = vunpack.c.l.b16 %v6934
      %v7007 = vunpack.c.l.b16 %v6935
      %v7008 = vunpack.c.l.b16 %v6936
      %v7009 = vunpack.c.l.b16 %v6937
      %v7010 = vunpack.c.l.b16 %v6938
      %v7011 = vunpack.c.l.b16 %v6939
      %v7012 = vunpack.c.l.b16 %v6940
      %v7013 = vunpack.c.l.b16 %v6941
      %v7014 = vunpack.c.l.b16 %v6942
      %v7015 = vunpack.c.l.b16 %v6943
      %v7016 = vunpack.c.l.b16 %v6944
      %v7017 = vunpack.c.l.b16 %v6945
      %v7018 = vunpack.c.l.b16 %v6946
      %v7019 = vunpack.c.l.b16 %v6947
      %v7020 = vunpack.c.l.b16 %v6948
      %v7021 = vunpack.c.l.b16 %v6949
      %v7022 = vunpack.c.l.b16 %v6950
      %v7023 = vunpack.c.l.b16 %v6951
      %v7024 = vunpack.c.l.b16 %v6952
      %v7025 = vunpack.c.l.b16 %v6953
      %v7026 = vunpack.c.l.b16 %v6954
      %v7027 = vunpack.c.l.b16 %v6955
      %v7028 = vunpack.c.l.b16 %v6956
      %v7029 = vunpack.c.l.b16 %v6957
      %v7030 = vunpack.c.l.b16 %v6958
      %v7031 = vunpack.c.l.b16 %v6959
      %v7032 = vunpack.c.l.b16 %v6960
      %v7033 = vunpack.c.l.b16 %v6961
      %v7034 = vunpack.c.l.b16 %v6962
      %v7035 = vunpack.c.l.b16 %v6963
      %v7036 = vunpack.c.l.b16 %v6964
      %v7037 = vunpack.c.l.b16 %v6965
      %v7038 = vunpack.c.l.b16 %v6966
      %v7039 = vunpack.c.l.b16 %v6967
      %v7040 = vunpack.c.l.b16 %v6968
      %v7041 = vpack.c.b16 %v7006, %v7005
      %v7042 = vpack.c.b16 %v7008, %v7007
      %v7043 = vpack.c.b16 %v7010, %v7009
      %v7044 = vpack.c.b16 %v7012, %v7011
      %v7045 = vpack.c.b16 %v7014, %v7013
      %v7046 = vpack.c.b16 %v7016, %v7015
      %v7047 = vpack.c.b16 %v7018, %v7017
      %v7048 = vpack.c.b16 %v7020, %v7019
      %v7049 = vpack.c.b16 %v7022, %v7021
      %v7050 = vpack.c.b16 %v7024, %v7023
      %v7051 = vpack.c.b16 %v7026, %v7025
      %v7052 = vpack.c.b16 %v7028, %v7027
      %v7053 = vpack.c.b16 %v7030, %v7029
      %v7054 = vpack.c.b16 %v7032, %v7031
      %v7055 = vpack.c.b16 %v7034, %v7033
      %v7056 = vpack.c.b16 %v7036, %v7035
      %v7057 = vpack.c.b16 %v7038, %v7037
      %v7058 = vpack.c.b16 %v7040, %v7039
      %v7078 = vsel %vm3104, %v6887, 0
      %v7081 = vsel %vm3104, %v6890, 0
      %v7084 = vsel %vm3104, %v6893, 0
      %v7087 = vsel %vm3104, %v6896, 0
      %v7090 = vsel %vm3104, %v6899, 0
      %v7093 = vsel %vm3104, %v6902, 0
      %v7096 = vsel %vm3104, %v6905, 0
      %v7099 = vsel %vm3104, %v6908, 0
      %v7102 = vsel %vm3104, %v6911, 0
      %v7105 = vsel %vm3104, %v6914, 0
      %v7108 = vsel %vm3104, %v6917, 0
      %v7111 = vsel %vm3104, %v6920, 0
      %v7114 = vsel %vm3104, %v6923, 0
      %v7117 = vsel %vm3104, %v6926, 0
      %v7120 = vsel %vm3104, %v6929, 0
      %v7123 = vsel %vm3104, %v6932, 0
      %7125 = vmatprep.subr.bf16.mxu0 0
      %7126 = vmatpush1.bf16.msra.mxu0 %v7041
      %7127 = vmatprep.subr.bf16.mxu0 0
      %7128 = vmatpush1.bf16.msra.mxu0 %v7042
      %7129 = vmatprep.subr.bf16.mxu0 0
      %7130 = vmatpush1.bf16.msra.mxu0 %v7043
      %7131 = vmatprep.subr.bf16.mxu0 0
      %7132 = vmatpush1.bf16.msra.mxu0 %v7044
      %7133 = vmatprep.subr.bf16.mxu0 0
      %7134 = vmatpush1.bf16.msra.mxu0 %v7045
      %7135 = vmatprep.subr.bf16.mxu0 0
      %7136 = vmatpush1.bf16.msra.mxu0 %v7046
      %7137 = vmatprep.subr.bf16.mxu0 0
      %7138 = vmatpush1.bf16.msra.mxu0 %v7047
      %7139 = vmatprep.subr.bf16.mxu0 0
      %7140 = vmatpush1.bf16.msra.mxu0 %v7048
      %7141 = vmatprep.subr.bf16.mxu0 0
      %7142 = vmatpush1.bf16.msra.mxu0 %v7049
      %7143 = vmatprep.subr.bf16.mxu0 0
      %7144 = vmatpush1.bf16.msra.mxu0 %v7050
      %7145 = vmatprep.subr.bf16.mxu0 0
      %7146 = vmatpush1.bf16.msra.mxu0 %v7051
      %7147 = vmatprep.subr.bf16.mxu0 0
      %7148 = vmatpush1.bf16.msra.mxu0 %v7052
      %7149 = vmatprep.subr.bf16.mxu0 0
      %7150 = vmatpush1.bf16.msra.mxu0 %v7053
      %7151 = vmatprep.subr.bf16.mxu0 0
      %7152 = vmatpush1.bf16.msra.mxu0 %v7054
      %7153 = vmatprep.subr.bf16.mxu0 0
      %7154 = vmatpush1.bf16.msra.mxu0 %v7055
      %7155 = vmatprep.subr.bf16.mxu0 0
      %7156 = vmatpush1.bf16.msra.mxu0 %v7056
      %7157 = vmatprep.mubr.bf16.mxu0 %v6886
      %7158 = vmatmul.mubr.bf16.gmra.mrb[0].mxu0 %v6885
      %v7159 = vpop.f32.mrb[0].mxu0
      %v7160 = vadd.f32 0.0, %v7159
      %v7161 = vpop.f32.mrb[0].mxu0
      %v7162 = vpop.f32.mrb[0].mxu0
      %v7163 = vadd.f32 0.0, %v7162
      %v7164 = vpop.f32.mrb[0].mxu0
      %7165 = vmatprep.mubr.bf16.mxu0 %v6889
      %7166 = vmatmul.mubr.bf16.gmra.mrb[0].mxu0 %v6888
      %v7167 = vpop.f32.mrb[0].mxu0
      %v7168 = vadd.f32 0.0, %v7167
      %v7169 = vpop.f32.mrb[0].mxu0
      %v7170 = vpop.f32.mrb[0].mxu0
      %v7171 = vadd.f32 0.0, %v7170
      %v7172 = vpop.f32.mrb[0].mxu0
      %7173 = vmatprep.mubr.bf16.mxu0 %v6892
      %7174 = vmatmul.mubr.bf16.gmra.mrb[0].mxu0 %v6891
      %v7175 = vpop.f32.mrb[0].mxu0
      %v7176 = vadd.f32 0.0, %v7175
      %v7177 = vpop.f32.mrb[0].mxu0
      %v7178 = vpop.f32.mrb[0].mxu0
      %v7179 = vadd.f32 0.0, %v7178
      %v7180 = vpop.f32.mrb[0].mxu0
      %7181 = vmatprep.mubr.bf16.mxu0 %v6895
      %7182 = vmatmul.mubr.bf16.gmra.mrb[0].mxu0 %v6894
      %v7183 = vpop.f32.mrb[0].mxu0
      %v7184 = vadd.f32 0.0, %v7183
      %v7185 = vpop.f32.mrb[0].mxu0
      %v7186 = vpop.f32.mrb[0].mxu0
      %v7187 = vadd.f32 0.0, %v7186
      %v7188 = vpop.f32.mrb[0].mxu0
      %7189 = vmatprep.mubr.bf16.mxu0 %v6898
      %7190 = vmatmul.mubr.bf16.gmra.mrb[0].mxu0 %v6897
      %v7191 = vpop.f32.mrb[0].mxu0
      %v7192 = vadd.f32 0.0, %v7191
      %v7193 = vpop.f32.mrb[0].mxu0
      %v7194 = vpop.f32.mrb[0].mxu0
      %v7195 = vadd.f32 0.0, %v7194
      %v7196 = vpop.f32.mrb[0].mxu0
      %7197 = vmatprep.mubr.bf16.mxu0 %v6901
      %7198 = vmatmul.mubr.bf16.gmra.mrb[0].mxu0 %v6900
      %v7199 = vpop.f32.mrb[0].mxu0
      %v7200 = vadd.f32 0.0, %v7199
      %v7201 = vpop.f32.mrb[0].mxu0
      %v7202 = vpop.f32.mrb[0].mxu0
      %v7203 = vadd.f32 0.0, %v7202
      %v7204 = vpop.f32.mrb[0].mxu0
      %7205 = vmatprep.mubr.bf16.mxu0 %v6904
      %7206 = vmatmul.mubr.bf16.gmra.mrb[0].mxu0 %v6903
      %v7207 = vpop.f32.mrb[0].mxu0
      %v7208 = vadd.f32 0.0, %v7207
      %v7209 = vpop.f32.mrb[0].mxu0
      %v7210 = vpop.f32.mrb[0].mxu0
      %v7211 = vadd.f32 0.0, %v7210
      %v7212 = vpop.f32.mrb[0].mxu0
      %7213 = vmatprep.mubr.bf16.mxu0 %v6907
      %7214 = vmatmul.mubr.bf16.gmra.mrb[0].mxu0 %v6906
      %v7215 = vpop.f32.mrb[0].mxu0
      %v7216 = vadd.f32 0.0, %v7215
      %v7217 = vpop.f32.mrb[0].mxu0
      %v7218 = vpop.f32.mrb[0].mxu0
      %v7219 = vadd.f32 0.0, %v7218
      %v7220 = vpop.f32.mrb[0].mxu0
      %7221 = vmatprep.mubr.bf16.mxu0 %v6910
      %7222 = vmatmul.mubr.bf16.gmra.mrb[0].mxu0 %v6909
      %v7223 = vpop.f32.mrb[0].mxu0
      %v7224 = vadd.f32 0.0, %v7223
      %v7225 = vpop.f32.mrb[0].mxu0
      %v7226 = vpop.f32.mrb[0].mxu0
      %v7227 = vadd.f32 0.0, %v7226
      %v7228 = vpop.f32.mrb[0].mxu0
      %7229 = vmatprep.mubr.bf16.mxu0 %v6913
      %7230 = vmatmul.mubr.bf16.gmra.mrb[0].mxu0 %v6912
      %v7231 = vpop.f32.mrb[0].mxu0
      %v7232 = vadd.f32 0.0, %v7231
      %v7233 = vpop.f32.mrb[0].mxu0
      %v7234 = vpop.f32.mrb[0].mxu0
      %v7235 = vadd.f32 0.0, %v7234
      %v7236 = vpop.f32.mrb[0].mxu0
      %7237 = vmatprep.mubr.bf16.mxu0 %v6916
      %7238 = vmatmul.mubr.bf16.gmra.mrb[0].mxu0 %v6915
      %v7239 = vpop.f32.mrb[0].mxu0
      %v7240 = vadd.f32 0.0, %v7239
      %v7241 = vpop.f32.mrb[0].mxu0
      %v7242 = vpop.f32.mrb[0].mxu0
      %v7243 = vadd.f32 0.0, %v7242
      %v7244 = vpop.f32.mrb[0].mxu0
      %7245 = vmatprep.mubr.bf16.mxu0 %v6919
      %7246 = vmatmul.mubr.bf16.gmra.mrb[0].mxu0 %v6918
      %v7247 = vpop.f32.mrb[0].mxu0
      %v7248 = vadd.f32 0.0, %v7247
      %v7249 = vpop.f32.mrb[0].mxu0
      %v7250 = vpop.f32.mrb[0].mxu0
      %v7251 = vadd.f32 0.0, %v7250
      %v7252 = vpop.f32.mrb[0].mxu0
      %7253 = vmatprep.mubr.bf16.mxu0 %v6922
      %7254 = vmatmul.mubr.bf16.gmra.mrb[0].mxu0 %v6921
      %v7255 = vpop.f32.mrb[0].mxu0
      %v7256 = vadd.f32 0.0, %v7255
      %v7257 = vpop.f32.mrb[0].mxu0
      %v7258 = vpop.f32.mrb[0].mxu0
      %v7259 = vadd.f32 0.0, %v7258
      %v7260 = vpop.f32.mrb[0].mxu0
      %7261 = vmatprep.mubr.bf16.mxu0 %v6925
      %7262 = vmatmul.mubr.bf16.gmra.mrb[0].mxu0 %v6924
      %v7263 = vpop.f32.mrb[0].mxu0
      %v7264 = vadd.f32 0.0, %v7263
      %v7265 = vpop.f32.mrb[0].mxu0
      %v7266 = vpop.f32.mrb[0].mxu0
      %v7267 = vadd.f32 0.0, %v7266
      %v7268 = vpop.f32.mrb[0].mxu0
      %7269 = vmatprep.mubr.bf16.mxu0 %v6928
      %7270 = vmatmul.mubr.bf16.gmra.mrb[0].mxu0 %v6927
      %v7271 = vpop.f32.mrb[0].mxu0
      %v7272 = vadd.f32 0.0, %v7271
      %v7273 = vpop.f32.mrb[0].mxu0
      %v7274 = vpop.f32.mrb[0].mxu0
      %v7275 = vadd.f32 0.0, %v7274
      %v7276 = vpop.f32.mrb[0].mxu0
      %7277 = vmatprep.mubr.bf16.mxu0 %v6931
      %7278 = vmatmul.mubr.bf16.gmra.mrb[0].mxu0 %v6930
      %v7279 = vpop.f32.mrb[0].mxu0
      %v7280 = vadd.f32 0.0, %v7279
      %v7281 = vpop.f32.mrb[0].mxu0
      %v7282 = vpop.f32.mrb[0].mxu0
      %v7283 = vadd.f32 0.0, %v7282
      %v7284 = vpop.f32.mrb[0].mxu0
      %7285 = vdwg.mxu0
      %7286 = vmatprep.subr.bf16.mxu0 0
      %7287 = vmatpush1.bf16.msra.mxu0 %v7057
      %7288 = vmatprep.subr.bf16.mxu0 0
      %7289 = vmatpush1.bf16.msra.mxu0 %v7058
      %7290 = vmatprep.subr.bf16.mxu0 0
      %7291 = vmatpush1.bf16.msra.mxu0 0
      %7292 = vmatprep.subr.bf16.mxu0 0
      %7293 = vmatpush1.bf16.msra.mxu0 0
      %7294 = vmatprep.subr.bf16.mxu0 0
      %7295 = vmatpush1.bf16.msra.mxu0 0
      %7296 = vmatprep.subr.bf16.mxu0 0
      %7297 = vmatpush1.bf16.msra.mxu0 0
      %7298 = vmatprep.subr.bf16.mxu0 0
      %7299 = vmatpush1.bf16.msra.mxu0 0
      %7300 = vmatprep.subr.bf16.mxu0 0
      %7301 = vmatpush1.bf16.msra.mxu0 0
      %7302 = vmatprep.subr.bf16.mxu0 0
      %7303 = vmatpush1.bf16.msra.mxu0 0
      %7304 = vmatprep.subr.bf16.mxu0 0
      %7305 = vmatpush1.bf16.msra.mxu0 0
      %7306 = vmatprep.subr.bf16.mxu0 0
      %7307 = vmatpush1.bf16.msra.mxu0 0
      %7308 = vmatprep.subr.bf16.mxu0 0
      %7309 = vmatpush1.bf16.msra.mxu0 0
      %7310 = vmatprep.subr.bf16.mxu0 0
      %7311 = vmatpush1.bf16.msra.mxu0 0
      %7312 = vmatprep.subr.bf16.mxu0 0
      %7313 = vmatpush1.bf16.msra.mxu0 0
      %7314 = vmatprep.subr.bf16.mxu0 0
      %7315 = vmatpush1.bf16.msra.mxu0 0
      %7316 = vmatprep.subr.bf16.mxu0 0
      %7317 = vmatpush1.bf16.msra.mxu0 0
      %7318 = vmatprep.mubr.bf16.mxu0 0
      %7319 = vmatmul.mubr.bf16.gmra.mrb[0].mxu0 %v7078
      %v7320 = vpop.f32.mrb[0].mxu0
      %v7321 = vadd.f32 %v7160, %v7320
      %v7322 = vpop.f32.mrb[0].mxu0
      %v7323 = vpop.f32.mrb[0].mxu0
      %v7324 = vadd.f32 %v7163, %v7323
      %v7325 = vpop.f32.mrb[0].mxu0
      %7326 = vmatprep.mubr.bf16.mxu0 0
      %7327 = vmatmul.mubr.bf16.gmra.mrb[0].mxu0 %v7081
      %v7328 = vpop.f32.mrb[0].mxu0
      %v7329 = vadd.f32 %v7168, %v7328
      %v7330 = vpop.f32.mrb[0].mxu0
      %v7331 = vpop.f32.mrb[0].mxu0
      %v7332 = vadd.f32 %v7171, %v7331
      %v7333 = vpop.f32.mrb[0].mxu0
      %7334 = vmatprep.mubr.bf16.mxu0 0
      %7335 = vmatmul.mubr.bf16.gmra.mrb[0].mxu0 %v7084
      %v7336 = vpop.f32.mrb[0].mxu0
      %v7337 = vadd.f32 %v7176, %v7336
      %v7338 = vpop.f32.mrb[0].mxu0
      %v7339 = vpop.f32.mrb[0].mxu0
      %v7340 = vadd.f32 %v7179, %v7339
      %v7341 = vpop.f32.mrb[0].mxu0
      %7342 = vmatprep.mubr.bf16.mxu0 0
      %7343 = vmatmul.mubr.bf16.gmra.mrb[0].mxu0 %v7087
      %v7344 = vpop.f32.mrb[0].mxu0
      %v7345 = vadd.f32 %v7184, %v7344
      %v7346 = vpop.f32.mrb[0].mxu0
      %v7347 = vpop.f32.mrb[0].mxu0
      %v7348 = vadd.f32 %v7187, %v7347
      %v7349 = vpop.f32.mrb[0].mxu0
      %7350 = vmatprep.mubr.bf16.mxu0 0
      %7351 = vmatmul.mubr.bf16.gmra.mrb[0].mxu0 %v7090
      %v7352 = vpop.f32.mrb[0].mxu0
      %v7353 = vadd.f32 %v7192, %v7352
      %v7354 = vpop.f32.mrb[0].mxu0
      %v7355 = vpop.f32.mrb[0].mxu0
      %v7356 = vadd.f32 %v7195, %v7355
      %v7357 = vpop.f32.mrb[0].mxu0
      %7358 = vmatprep.mubr.bf16.mxu0 0
      %7359 = vmatmul.mubr.bf16.gmra.mrb[0].mxu0 %v7093
      %v7360 = vpop.f32.mrb[0].mxu0
      %v7361 = vadd.f32 %v7200, %v7360
      %v7362 = vpop.f32.mrb[0].mxu0
      %v7363 = vpop.f32.mrb[0].mxu0
      %v7364 = vadd.f32 %v7203, %v7363
      %v7365 = vpop.f32.mrb[0].mxu0
      %7366 = vmatprep.mubr.bf16.mxu0 0
      %7367 = vmatmul.mubr.bf16.gmra.mrb[0].mxu0 %v7096
      %v7368 = vpop.f32.mrb[0].mxu0
      %v7369 = vadd.f32 %v7208, %v7368
      %v7370 = vpop.f32.mrb[0].mxu0
      %v7371 = vpop.f32.mrb[0].mxu0
      %v7372 = vadd.f32 %v7211, %v7371
      %v7373 = vpop.f32.mrb[0].mxu0
      %7374 = vmatprep.mubr.bf16.mxu0 0
      %7375 = vmatmul.mubr.bf16.gmra.mrb[0].mxu0 %v7099
      %v7376 = vpop.f32.mrb[0].mxu0
      %v7377 = vadd.f32 %v7216, %v7376
      %v7378 = vpop.f32.mrb[0].mxu0
      %v7379 = vpop.f32.mrb[0].mxu0
      %v7380 = vadd.f32 %v7219, %v7379
      %v7381 = vpop.f32.mrb[0].mxu0
      %7382 = vmatprep.mubr.bf16.mxu0 0
      %7383 = vmatmul.mubr.bf16.gmra.mrb[0].mxu0 %v7102
      %v7384 = vpop.f32.mrb[0].mxu0
      %v7385 = vadd.f32 %v7224, %v7384
      %v7386 = vpop.f32.mrb[0].mxu0
      %v7387 = vpop.f32.mrb[0].mxu0
      %v7388 = vadd.f32 %v7227, %v7387
      %v7389 = vpop.f32.mrb[0].mxu0
      %7390 = vmatprep.mubr.bf16.mxu0 0
      %7391 = vmatmul.mubr.bf16.gmra.mrb[0].mxu0 %v7105
      %v7392 = vpop.f32.mrb[0].mxu0
      %v7393 = vadd.f32 %v7232, %v7392
      %v7394 = vpop.f32.mrb[0].mxu0
      %v7395 = vpop.f32.mrb[0].mxu0
      %v7396 = vadd.f32 %v7235, %v7395
      %v7397 = vpop.f32.mrb[0].mxu0
      %7398 = vmatprep.mubr.bf16.mxu0 0
      %7399 = vmatmul.mubr.bf16.gmra.mrb[0].mxu0 %v7108
      %v7400 = vpop.f32.mrb[0].mxu0
      %v7401 = vadd.f32 %v7240, %v7400
      %v7402 = vpop.f32.mrb[0].mxu0
      %v7403 = vpop.f32.mrb[0].mxu0
      %v7404 = vadd.f32 %v7243, %v7403
      %v7405 = vpop.f32.mrb[0].mxu0
      %7406 = vmatprep.mubr.bf16.mxu0 0
      %7407 = vmatmul.mubr.bf16.gmra.mrb[0].mxu0 %v7111
      %v7408 = vpop.f32.mrb[0].mxu0
      %v7409 = vadd.f32 %v7248, %v7408
      %v7410 = vpop.f32.mrb[0].mxu0
      %v7411 = vpop.f32.mrb[0].mxu0
      %v7412 = vadd.f32 %v7251, %v7411
      %v7413 = vpop.f32.mrb[0].mxu0
      %7414 = vmatprep.mubr.bf16.mxu0 0
      %7415 = vmatmul.mubr.bf16.gmra.mrb[0].mxu0 %v7114
      %v7416 = vpop.f32.mrb[0].mxu0
      %v7417 = vadd.f32 %v7256, %v7416
      %v7418 = vpop.f32.mrb[0].mxu0
      %v7419 = vpop.f32.mrb[0].mxu0
      %v7420 = vadd.f32 %v7259, %v7419
      %v7421 = vpop.f32.mrb[0].mxu0
      %7422 = vmatprep.mubr.bf16.mxu0 0
      %7423 = vmatmul.mubr.bf16.gmra.mrb[0].mxu0 %v7117
      %v7424 = vpop.f32.mrb[0].mxu0
      %v7425 = vadd.f32 %v7264, %v7424
      %v7426 = vpop.f32.mrb[0].mxu0
      %v7427 = vpop.f32.mrb[0].mxu0
      %v7428 = vadd.f32 %v7267, %v7427
      %v7429 = vpop.f32.mrb[0].mxu0
      %7430 = vmatprep.mubr.bf16.mxu0 0
      %7431 = vmatmul.mubr.bf16.gmra.mrb[0].mxu0 %v7120
      %v7432 = vpop.f32.mrb[0].mxu0
      %v7433 = vadd.f32 %v7272, %v7432
      %v7434 = vpop.f32.mrb[0].mxu0
      %v7435 = vpop.f32.mrb[0].mxu0
      %v7436 = vadd.f32 %v7275, %v7435
      %v7437 = vpop.f32.mrb[0].mxu0
      %7438 = vmatprep.mubr.bf16.mxu0 0
      %7439 = vmatmul.mubr.bf16.gmra.mrb[0].mxu0 %v7123
      %v7440 = vpop.f32.mrb[0].mxu0
      %v7441 = vadd.f32 %v7280, %v7440
      %v7442 = vpop.f32.mrb[0].mxu0
      %v7443 = vpop.f32.mrb[0].mxu0
      %v7444 = vadd.f32 %v7283, %v7443
      %v7445 = vpop.f32.mrb[0].mxu0
      %7446 = vdwg.mxu0
      %v7447 = vld [vmem:[%s12] sm:$0x1]
      %v7448 = vlaneseq
      %v7449 = vshrl.u32 %v7448, 7
      %v7450 = vsub.s32 0, %v7449
      %v7451 = vrot.slane %v7447, %v7450
      %v7452 = vmul.f32 %v7321, %v7451
      %v7453 = vmul.f32 %v7324, %v7451
      %v7454 = vmul.f32 %v7329, %v7451
      %v7455 = vmul.f32 %v7332, %v7451
      %v7456 = vmul.f32 %v7337, %v7451
      %v7457 = vmul.f32 %v7340, %v7451
      %v7458 = vmul.f32 %v7345, %v7451
      %v7459 = vmul.f32 %v7348, %v7451
      %v7460 = vmul.f32 %v7353, %v7451
      %v7461 = vmul.f32 %v7356, %v7451
      %v7462 = vmul.f32 %v7361, %v7451
      %v7463 = vmul.f32 %v7364, %v7451
      %v7464 = vmul.f32 %v7369, %v7451
      %v7465 = vmul.f32 %v7372, %v7451
      %v7466 = vmul.f32 %v7377, %v7451
      %v7467 = vmul.f32 %v7380, %v7451
      %v7468 = vmul.f32 %v7385, %v7451
      %v7469 = vmul.f32 %v7388, %v7451
      %v7470 = vmul.f32 %v7393, %v7451
      %v7471 = vmul.f32 %v7396, %v7451
      %v7472 = vmul.f32 %v7401, %v7451
      %v7473 = vmul.f32 %v7404, %v7451
      %v7474 = vmul.f32 %v7409, %v7451
      %v7475 = vmul.f32 %v7412, %v7451
      %v7476 = vmul.f32 %v7417, %v7451
      %v7477 = vmul.f32 %v7420, %v7451
      %v7478 = vmul.f32 %v7425, %v7451
      %v7479 = vmul.f32 %v7428, %v7451
      %v7480 = vmul.f32 %v7433, %v7451
      %v7481 = vmul.f32 %v7436, %v7451
      %v7482 = vmul.f32 %v7441, %v7451
      %v7483 = vmul.f32 %v7444, %v7451
      %v7484 = vld [vmem:[%s12 + $0x1] sm:$0x1]
      %v7485 = vlaneseq
      %v7486 = vshrl.u32 %v7485, 7
      %v7487 = vsub.s32 0, %v7486
      %v7488 = vrot.slane %v7484, %v7487
      %v7489 = vadd.f32 %v7452, %v7488
      %v7490 = vadd.f32 %v7453, %v7488
      %v7491 = vadd.f32 %v7454, %v7488
      %v7492 = vadd.f32 %v7455, %v7488
      %v7493 = vadd.f32 %v7456, %v7488
      %v7494 = vadd.f32 %v7457, %v7488
      %v7495 = vadd.f32 %v7458, %v7488
      %v7496 = vadd.f32 %v7459, %v7488
      %v7497 = vadd.f32 %v7460, %v7488
      %v7498 = vadd.f32 %v7461, %v7488
      %v7499 = vadd.f32 %v7462, %v7488
      %v7500 = vadd.f32 %v7463, %v7488
      %v7501 = vadd.f32 %v7464, %v7488
      %v7502 = vadd.f32 %v7465, %v7488
      %v7503 = vadd.f32 %v7466, %v7488
      %v7504 = vadd.f32 %v7467, %v7488
      %v7505 = vadd.f32 %v7468, %v7488
      %v7506 = vadd.f32 %v7469, %v7488
      %v7507 = vadd.f32 %v7470, %v7488
      %v7508 = vadd.f32 %v7471, %v7488
      %v7509 = vadd.f32 %v7472, %v7488
      %v7510 = vadd.f32 %v7473, %v7488
      %v7511 = vadd.f32 %v7474, %v7488
      %v7512 = vadd.f32 %v7475, %v7488
      %v7513 = vadd.f32 %v7476, %v7488
      %v7514 = vadd.f32 %v7477, %v7488
      %v7515 = vadd.f32 %v7478, %v7488
      %v7516 = vadd.f32 %v7479, %v7488
      %v7517 = vadd.f32 %v7480, %v7488
      %v7518 = vadd.f32 %v7481, %v7488
      %v7519 = vadd.f32 %v7482, %v7488
      %v7520 = vadd.f32 %v7483, %v7488
      %v7521 = vmax.f32 %v7489, 0.0
      %v7522 = vmax.f32 %v7490, 0.0
      %v7523 = vmax.f32 %v7491, 0.0
      %v7524 = vmax.f32 %v7492, 0.0
      %v7525 = vmax.f32 %v7493, 0.0
      %v7526 = vmax.f32 %v7494, 0.0
      %v7527 = vmax.f32 %v7495, 0.0
      %v7528 = vmax.f32 %v7496, 0.0
      %v7529 = vmax.f32 %v7497, 0.0
      %v7530 = vmax.f32 %v7498, 0.0
      %v7531 = vmax.f32 %v7499, 0.0
      %v7532 = vmax.f32 %v7500, 0.0
      %v7533 = vmax.f32 %v7501, 0.0
      %v7534 = vmax.f32 %v7502, 0.0
      %v7535 = vmax.f32 %v7503, 0.0
      %v7536 = vmax.f32 %v7504, 0.0
      %v7537 = vmax.f32 %v7505, 0.0
      %v7538 = vmax.f32 %v7506, 0.0
      %v7539 = vmax.f32 %v7507, 0.0
      %v7540 = vmax.f32 %v7508, 0.0
      %v7541 = vmax.f32 %v7509, 0.0
      %v7542 = vmax.f32 %v7510, 0.0
      %v7543 = vmax.f32 %v7511, 0.0
      %v7544 = vmax.f32 %v7512, 0.0
      %v7545 = vmax.f32 %v7513, 0.0
      %v7546 = vmax.f32 %v7514, 0.0
      %v7547 = vmax.f32 %v7515, 0.0
      %v7548 = vmax.f32 %v7516, 0.0
      %v7549 = vmax.f32 %v7517, 0.0
      %v7550 = vmax.f32 %v7518, 0.0
      %v7551 = vmax.f32 %v7519, 0.0
      %v7552 = vmax.f32 %v7520, 0.0
      %7585 = vrot.lane.b32.xlu0 %v7521, 16
      %v7586 = vpop.permute.xlu0 %7585
      %7587 = vrot.lane.b32.xlu0 %v7522, 16
      %v7588 = vpop.permute.xlu0 %7587
      %7589 = vrot.lane.b32.xlu0 %v7523, 16
      %v7590 = vpop.permute.xlu0 %7589
      %7591 = vrot.lane.b32.xlu0 %v7524, 16
      %v7592 = vpop.permute.xlu0 %7591
      %7593 = vrot.lane.b32.xlu0 %v7525, 16
      %v7594 = vpop.permute.xlu0 %7593
      %7595 = vrot.lane.b32.xlu0 %v7526, 16
      %v7596 = vpop.permute.xlu0 %7595
      %7597 = vrot.lane.b32.xlu0 %v7527, 16
      %v7598 = vpop.permute.xlu0 %7597
      %7599 = vrot.lane.b32.xlu0 %v7528, 16
      %v7600 = vpop.permute.xlu0 %7599
      %7601 = vrot.lane.b32.xlu0 %v7529, 16
      %v7602 = vpop.permute.xlu0 %7601
      %7603 = vrot.lane.b32.xlu0 %v7530, 16
      %v7604 = vpop.permute.xlu0 %7603
      %7605 = vrot.lane.b32.xlu0 %v7531, 16
      %v7606 = vpop.permute.xlu0 %7605
      %7607 = vrot.lane.b32.xlu0 %v7532, 16
      %v7608 = vpop.permute.xlu0 %7607
      %7609 = vrot.lane.b32.xlu0 %v7533, 16
      %v7610 = vpop.permute.xlu0 %7609
      %7611 = vrot.lane.b32.xlu0 %v7534, 16
      %v7612 = vpop.permute.xlu0 %7611
      %7613 = vrot.lane.b32.xlu0 %v7535, 16
      %v7614 = vpop.permute.xlu0 %7613
      %7615 = vrot.lane.b32.xlu0 %v7536, 16
      %v7616 = vpop.permute.xlu0 %7615
      %7617 = vrot.lane.b32.xlu0 %v7537, 16
      %v7618 = vpop.permute.xlu0 %7617
      %7619 = vrot.lane.b32.xlu0 %v7538, 16
      %v7620 = vpop.permute.xlu0 %7619
      %7621 = vrot.lane.b32.xlu0 %v7539, 16
      %v7622 = vpop.permute.xlu0 %7621
      %7623 = vrot.lane.b32.xlu0 %v7540, 16
      %v7624 = vpop.permute.xlu0 %7623
      %7625 = vrot.lane.b32.xlu0 %v7541, 16
      %v7626 = vpop.permute.xlu0 %7625
      %7627 = vrot.lane.b32.xlu0 %v7542, 16
      %v7628 = vpop.permute.xlu0 %7627
      %7629 = vrot.lane.b32.xlu0 %v7543, 16
      %v7630 = vpop.permute.xlu0 %7629
      %7631 = vrot.lane.b32.xlu0 %v7544, 16
      %v7632 = vpop.permute.xlu0 %7631
      %7633 = vrot.lane.b32.xlu0 %v7545, 16
      %v7634 = vpop.permute.xlu0 %7633
      %7635 = vrot.lane.b32.xlu0 %v7546, 16
      %v7636 = vpop.permute.xlu0 %7635
      %7637 = vrot.lane.b32.xlu0 %v7547, 16
      %v7638 = vpop.permute.xlu0 %7637
      %7639 = vrot.lane.b32.xlu0 %v7548, 16
      %v7640 = vpop.permute.xlu0 %7639
      %7641 = vrot.lane.b32.xlu0 %v7549, 16
      %v7642 = vpop.permute.xlu0 %7641
      %7643 = vrot.lane.b32.xlu0 %v7550, 16
      %v7644 = vpop.permute.xlu0 %7643
      %7645 = vrot.lane.b32.xlu0 %v7551, 16
      %v7646 = vpop.permute.xlu0 %7645
      %7647 = vrot.lane.b32.xlu0 %v7552, 16
      %v7648 = vpop.permute.xlu0 %7647
      %7681 = vrot.lane.b32.xlu0 %v7523, 32
      %v7682 = vpop.permute.xlu0 %7681
      %7683 = vrot.lane.b32.xlu0 %v7524, 32
      %v7684 = vpop.permute.xlu0 %7683
      %7685 = vrot.lane.b32.xlu0 %v7525, 32
      %v7686 = vpop.permute.xlu0 %7685
      %7687 = vrot.lane.b32.xlu0 %v7526, 32
      %v7688 = vpop.permute.xlu0 %7687
      %7689 = vrot.lane.b32.xlu0 %v7527, 32
      %v7690 = vpop.permute.xlu0 %7689
      %7691 = vrot.lane.b32.xlu0 %v7528, 32
      %v7692 = vpop.permute.xlu0 %7691
      %7693 = vrot.lane.b32.xlu0 %v7529, 32
      %v7694 = vpop.permute.xlu0 %7693
      %7695 = vrot.lane.b32.xlu0 %v7530, 32
      %v7696 = vpop.permute.xlu0 %7695
      %7697 = vrot.lane.b32.xlu0 %v7531, 32
      %v7698 = vpop.permute.xlu0 %7697
      %7699 = vrot.lane.b32.xlu0 %v7532, 32
      %v7700 = vpop.permute.xlu0 %7699
      %7701 = vrot.lane.b32.xlu0 %v7533, 32
      %v7702 = vpop.permute.xlu0 %7701
      %7703 = vrot.lane.b32.xlu0 %v7534, 32
      %v7704 = vpop.permute.xlu0 %7703
      %7705 = vrot.lane.b32.xlu0 %v7535, 32
      %v7706 = vpop.permute.xlu0 %7705
      %7707 = vrot.lane.b32.xlu0 %v7536, 32
      %v7708 = vpop.permute.xlu0 %7707
      %7709 = vrot.lane.b32.xlu0 %v7537, 32
      %v7710 = vpop.permute.xlu0 %7709
      %7711 = vrot.lane.b32.xlu0 %v7538, 32
      %v7712 = vpop.permute.xlu0 %7711
      %7713 = vrot.lane.b32.xlu0 %v7539, 32
      %v7714 = vpop.permute.xlu0 %7713
      %7715 = vrot.lane.b32.xlu0 %v7540, 32
      %v7716 = vpop.permute.xlu0 %7715
      %7717 = vrot.lane.b32.xlu0 %v7541, 32
      %v7718 = vpop.permute.xlu0 %7717
      %7719 = vrot.lane.b32.xlu0 %v7542, 32
      %v7720 = vpop.permute.xlu0 %7719
      %7721 = vrot.lane.b32.xlu0 %v7543, 32
      %v7722 = vpop.permute.xlu0 %7721
      %7723 = vrot.lane.b32.xlu0 %v7544, 32
      %v7724 = vpop.permute.xlu0 %7723
      %7725 = vrot.lane.b32.xlu0 %v7545, 32
      %v7726 = vpop.permute.xlu0 %7725
      %7727 = vrot.lane.b32.xlu0 %v7546, 32
      %v7728 = vpop.permute.xlu0 %7727
      %7729 = vrot.lane.b32.xlu0 %v7547, 32
      %v7730 = vpop.permute.xlu0 %7729
      %7731 = vrot.lane.b32.xlu0 %v7548, 32
      %v7732 = vpop.permute.xlu0 %7731
      %7733 = vrot.lane.b32.xlu0 %v7549, 32
      %v7734 = vpop.permute.xlu0 %7733
      %7735 = vrot.lane.b32.xlu0 %v7550, 32
      %v7736 = vpop.permute.xlu0 %7735
      %7737 = vrot.lane.b32.xlu0 %v7551, 32
      %v7738 = vpop.permute.xlu0 %7737
      %7739 = vrot.lane.b32.xlu0 %v7552, 32
      %v7740 = vpop.permute.xlu0 %7739
      %v7771 = vsel %vm3095, 0.0, %v7586
      %v7772 = vsel %vm3095, 0.0, %v7588
      %v7773 = vsel %vm3095, %v7521, %v7590
      %v7774 = vsel %vm3095, %v7522, %v7592
      %v7775 = vsel %vm3095, %v7523, %v7594
      %v7776 = vsel %vm3095, %v7524, %v7596
      %v7777 = vsel %vm3095, %v7525, %v7598
      %v7778 = vsel %vm3095, %v7526, %v7600
      %v7779 = vsel %vm3095, %v7527, %v7602
      %v7780 = vsel %vm3095, %v7528, %v7604
      %v7781 = vsel %vm3095, %v7529, %v7606
      %v7782 = vsel %vm3095, %v7530, %v7608
      %v7783 = vsel %vm3095, %v7531, %v7610
      %v7784 = vsel %vm3095, %v7532, %v7612
      %v7785 = vsel %vm3095, %v7533, %v7614
      %v7786 = vsel %vm3095, %v7534, %v7616
      %v7787 = vsel %vm3095, %v7535, %v7618
      %v7788 = vsel %vm3095, %v7536, %v7620
      %v7789 = vsel %vm3095, %v7537, %v7622
      %v7790 = vsel %vm3095, %v7538, %v7624
      %v7791 = vsel %vm3095, %v7539, %v7626
      %v7792 = vsel %vm3095, %v7540, %v7628
      %v7793 = vsel %vm3095, %v7541, %v7630
      %v7794 = vsel %vm3095, %v7542, %v7632
      %v7795 = vsel %vm3095, %v7543, %v7634
      %v7796 = vsel %vm3095, %v7544, %v7636
      %v7797 = vsel %vm3095, %v7545, %v7638
      %v7798 = vsel %vm3095, %v7546, %v7640
      %v7799 = vsel %vm3095, %v7547, %v7642
      %v7800 = vsel %vm3095, %v7548, %v7644
      %v7801 = vsel %vm3095, %v7549, %v7646
      %v7802 = vsel %vm3095, %v7550, %v7648
      %v7803 = vsel %vm3104, %v7771, %v7682
      %v7804 = vsel %vm3104, %v7772, %v7684
      %v7805 = vsel %vm3104, %v7773, %v7686
      %v7806 = vsel %vm3104, %v7774, %v7688
      %v7807 = vsel %vm3104, %v7775, %v7690
      %v7808 = vsel %vm3104, %v7776, %v7692
      %v7809 = vsel %vm3104, %v7777, %v7694
      %v7810 = vsel %vm3104, %v7778, %v7696
      %v7811 = vsel %vm3104, %v7779, %v7698
      %v7812 = vsel %vm3104, %v7780, %v7700
      %v7813 = vsel %vm3104, %v7781, %v7702
      %v7814 = vsel %vm3104, %v7782, %v7704
      %v7815 = vsel %vm3104, %v7783, %v7706
      %v7816 = vsel %vm3104, %v7784, %v7708
      %v7817 = vsel %vm3104, %v7785, %v7710
      %v7818 = vsel %vm3104, %v7786, %v7712
      %v7819 = vsel %vm3104, %v7787, %v7714
      %v7820 = vsel %vm3104, %v7788, %v7716
      %v7821 = vsel %vm3104, %v7789, %v7718
      %v7822 = vsel %vm3104, %v7790, %v7720
      %v7823 = vsel %vm3104, %v7791, %v7722
      %v7824 = vsel %vm3104, %v7792, %v7724
      %v7825 = vsel %vm3104, %v7793, %v7726
      %v7826 = vsel %vm3104, %v7794, %v7728
      %v7827 = vsel %vm3104, %v7795, %v7730
      %v7828 = vsel %vm3104, %v7796, %v7732
      %v7829 = vsel %vm3104, %v7797, %v7734
      %v7830 = vsel %vm3104, %v7798, %v7736
      %v7831 = vsel %vm3104, %v7799, %v7738
      %v7832 = vsel %vm3104, %v7800, %v7740
      %v7833 = vsel %vm3104, %v7801, %v3086
      %v7834 = vsel %vm3104, %v7802, %v3086
      %v7867 = vrot.slane %v7803, 7
      %v7868 = vrot.slane %v7804, 7
      %v7869 = vsel %vm1099, %v7867, %v7868
      %v7870 = vrot.slane %v7805, 7
      %v7871 = vrot.slane %v7806, 7
      %v7872 = vsel %vm1099, %v7870, %v7871
      %v7873 = vrot.slane %v7807, 7
      %v7874 = vrot.slane %v7808, 7
      %v7875 = vsel %vm1099, %v7873, %v7874
      %v7876 = vrot.slane %v7809, 7
      %v7877 = vrot.slane %v7810, 7
      %v7878 = vsel %vm1099, %v7876, %v7877
      %v7879 = vrot.slane %v7811, 7
      %v7880 = vrot.slane %v7812, 7
      %v7881 = vsel %vm1099, %v7879, %v7880
      %v7882 = vrot.slane %v7813, 7
      %v7883 = vrot.slane %v7814, 7
      %v7884 = vsel %vm1099, %v7882, %v7883
      %v7885 = vrot.slane %v7815, 7
      %v7886 = vrot.slane %v7816, 7
      %v7887 = vsel %vm1099, %v7885, %v7886
      %v7888 = vrot.slane %v7817, 7
      %v7889 = vrot.slane %v7818, 7
      %v7890 = vsel %vm1099, %v7888, %v7889
      %v7891 = vrot.slane %v7819, 7
      %v7892 = vrot.slane %v7820, 7
      %v7893 = vsel %vm1099, %v7891, %v7892
      %v7894 = vrot.slane %v7821, 7
      %v7895 = vrot.slane %v7822, 7
      %v7896 = vsel %vm1099, %v7894, %v7895
      %v7897 = vrot.slane %v7823, 7
      %v7898 = vrot.slane %v7824, 7
      %v7899 = vsel %vm1099, %v7897, %v7898
      %v7900 = vrot.slane %v7825, 7
      %v7901 = vrot.slane %v7826, 7
      %v7902 = vsel %vm1099, %v7900, %v7901
      %v7903 = vrot.slane %v7827, 7
      %v7904 = vrot.slane %v7828, 7
      %v7905 = vsel %vm1099, %v7903, %v7904
      %v7906 = vrot.slane %v7829, 7
      %v7907 = vrot.slane %v7830, 7
      %v7908 = vsel %vm1099, %v7906, %v7907
      %v7909 = vrot.slane %v7831, 7
      %v7910 = vrot.slane %v7832, 7
      %v7911 = vsel %vm1099, %v7909, %v7910
      %v7912 = vrot.slane %v7833, 7
      %v7913 = vrot.slane %v7834, 7
      %v7914 = vsel %vm1099, %v7912, %v7913
      %v7963 = vsel %vm1099, 0.0, %v7867
      %v7964 = vsel %vm1099, 0.0, %v7870
      %v7965 = vsel %vm1099, 0.0, %v7873
      %v7966 = vsel %vm1099, 0.0, %v7876
      %v7967 = vsel %vm1099, 0.0, %v7879
      %v7968 = vsel %vm1099, 0.0, %v7882
      %v7969 = vsel %vm1099, 0.0, %v7885
      %v7970 = vsel %vm1099, 0.0, %v7888
      %v7971 = vsel %vm1099, 0.0, %v7891
      %v7972 = vsel %vm1099, 0.0, %v7894
      %v7973 = vsel %vm1099, 0.0, %v7897
      %v7974 = vsel %vm1099, 0.0, %v7900
      %v7975 = vsel %vm1099, 0.0, %v7903
      %v7976 = vsel %vm1099, 0.0, %v7906
      %v7977 = vsel %vm1099, 0.0, %v7909
      %v7978 = vsel %vm1099, 0.0, %v7912
      %v7979 = vsel %vm1099, %v7868, 0.0
      %v7980 = vsel %vm1099, %v7871, 0.0
      %v7981 = vsel %vm1099, %v7874, 0.0
      %v7982 = vsel %vm1099, %v7877, 0.0
      %v7983 = vsel %vm1099, %v7880, 0.0
      %v7984 = vsel %vm1099, %v7883, 0.0
      %v7985 = vsel %vm1099, %v7886, 0.0
      %v7986 = vsel %vm1099, %v7889, 0.0
      %v7987 = vsel %vm1099, %v7892, 0.0
      %v7988 = vsel %vm1099, %v7895, 0.0
      %v7989 = vsel %vm1099, %v7898, 0.0
      %v7990 = vsel %vm1099, %v7901, 0.0
      %v7991 = vsel %vm1099, %v7904, 0.0
      %v7992 = vsel %vm1099, %v7907, 0.0
      %v7993 = vsel %vm1099, %v7910, 0.0
      %v7994 = vsel %vm1099, %v7913, 0.0
      %v8027 = vrot.slane %v7963, 1
      %v8028 = vrot.slane %v7869, 1
      %v8029 = vsel %vm1260, %v8027, %v8028
      %v8030 = vrot.slane %v7979, 1
      %v8031 = vsel %vm1260, %v8028, %v8030
      %v8032 = vrot.slane %v7964, 1
      %v8033 = vrot.slane %v7872, 1
      %v8034 = vsel %vm1260, %v8032, %v8033
      %v8035 = vrot.slane %v7980, 1
      %v8036 = vsel %vm1260, %v8033, %v8035
      %v8037 = vrot.slane %v7965, 1
      %v8038 = vrot.slane %v7875, 1
      %v8039 = vsel %vm1260, %v8037, %v8038
      %v8040 = vrot.slane %v7981, 1
      %v8041 = vsel %vm1260, %v8038, %v8040
      %v8042 = vrot.slane %v7966, 1
      %v8043 = vrot.slane %v7878, 1
      %v8044 = vsel %vm1260, %v8042, %v8043
      %v8045 = vrot.slane %v7982, 1
      %v8046 = vsel %vm1260, %v8043, %v8045
      %v8047 = vrot.slane %v7967, 1
      %v8048 = vrot.slane %v7881, 1
      %v8049 = vsel %vm1260, %v8047, %v8048
      %v8050 = vrot.slane %v7983, 1
      %v8051 = vsel %vm1260, %v8048, %v8050
      %v8052 = vrot.slane %v7968, 1
      %v8053 = vrot.slane %v7884, 1
      %v8054 = vsel %vm1260, %v8052, %v8053
      %v8055 = vrot.slane %v7984, 1
      %v8056 = vsel %vm1260, %v8053, %v8055
      %v8057 = vrot.slane %v7969, 1
      %v8058 = vrot.slane %v7887, 1
      %v8059 = vsel %vm1260, %v8057, %v8058
      %v8060 = vrot.slane %v7985, 1
      %v8061 = vsel %vm1260, %v8058, %v8060
      %v8062 = vrot.slane %v7970, 1
      %v8063 = vrot.slane %v7890, 1
      %v8064 = vsel %vm1260, %v8062, %v8063
      %v8065 = vrot.slane %v7986, 1
      %v8066 = vsel %vm1260, %v8063, %v8065
      %v8067 = vrot.slane %v7971, 1
      %v8068 = vrot.slane %v7893, 1
      %v8069 = vsel %vm1260, %v8067, %v8068
      %v8070 = vrot.slane %v7987, 1
      %v8071 = vsel %vm1260, %v8068, %v8070
      %v8072 = vrot.slane %v7972, 1
      %v8073 = vrot.slane %v7896, 1
      %v8074 = vsel %vm1260, %v8072, %v8073
      %v8075 = vrot.slane %v7988, 1
      %v8076 = vsel %vm1260, %v8073, %v8075
      %v8077 = vrot.slane %v7973, 1
      %v8078 = vrot.slane %v7899, 1
      %v8079 = vsel %vm1260, %v8077, %v8078
      %v8080 = vrot.slane %v7989, 1
      %v8081 = vsel %vm1260, %v8078, %v8080
      %v8082 = vrot.slane %v7974, 1
      %v8083 = vrot.slane %v7902, 1
      %v8084 = vsel %vm1260, %v8082, %v8083
      %v8085 = vrot.slane %v7990, 1
      %v8086 = vsel %vm1260, %v8083, %v8085
      %v8087 = vrot.slane %v7975, 1
      %v8088 = vrot.slane %v7905, 1
      %v8089 = vsel %vm1260, %v8087, %v8088
      %v8090 = vrot.slane %v7991, 1
      %v8091 = vsel %vm1260, %v8088, %v8090
      %v8092 = vrot.slane %v7976, 1
      %v8093 = vrot.slane %v7908, 1
      %v8094 = vsel %vm1260, %v8092, %v8093
      %v8095 = vrot.slane %v7992, 1
      %v8096 = vsel %vm1260, %v8093, %v8095
      %v8097 = vrot.slane %v7977, 1
      %v8098 = vrot.slane %v7911, 1
      %v8099 = vsel %vm1260, %v8097, %v8098
      %v8100 = vrot.slane %v7993, 1
      %v8101 = vsel %vm1260, %v8098, %v8100
      %v8102 = vrot.slane %v7978, 1
      %v8103 = vrot.slane %v7914, 1
      %v8104 = vsel %vm1260, %v8102, %v8103
      %v8105 = vrot.slane %v7994, 1
      %v8106 = vsel %vm1260, %v8103, %v8105
      %8107 = vrot.lane.b32.xlu0 %v8029, 48
      %v8108 = vpop.permute.xlu0 %8107
      %8109 = vrot.lane.b32.xlu0 %v8031, 48
      %v8110 = vpop.permute.xlu0 %8109
      %8111 = vrot.lane.b32.xlu0 %v8034, 48
      %v8112 = vpop.permute.xlu0 %8111
      %8113 = vrot.lane.b32.xlu0 %v8036, 48
      %v8114 = vpop.permute.xlu0 %8113
      %8115 = vrot.lane.b32.xlu0 %v8039, 48
      %v8116 = vpop.permute.xlu0 %8115
      %8117 = vrot.lane.b32.xlu0 %v8041, 48
      %v8118 = vpop.permute.xlu0 %8117
      %8119 = vrot.lane.b32.xlu0 %v8044, 48
      %v8120 = vpop.permute.xlu0 %8119
      %8121 = vrot.lane.b32.xlu0 %v8046, 48
      %v8122 = vpop.permute.xlu0 %8121
      %8123 = vrot.lane.b32.xlu0 %v8049, 48
      %v8124 = vpop.permute.xlu0 %8123
      %8125 = vrot.lane.b32.xlu0 %v8051, 48
      %v8126 = vpop.permute.xlu0 %8125
      %8127 = vrot.lane.b32.xlu0 %v8054, 48
      %v8128 = vpop.permute.xlu0 %8127
      %8129 = vrot.lane.b32.xlu0 %v8056, 48
      %v8130 = vpop.permute.xlu0 %8129
      %8131 = vrot.lane.b32.xlu0 %v8059, 48
      %v8132 = vpop.permute.xlu0 %8131
      %8133 = vrot.lane.b32.xlu0 %v8061, 48
      %v8134 = vpop.permute.xlu0 %8133
      %8135 = vrot.lane.b32.xlu0 %v8064, 48
      %v8136 = vpop.permute.xlu0 %8135
      %8137 = vrot.lane.b32.xlu0 %v8066, 48
      %v8138 = vpop.permute.xlu0 %8137
      %8139 = vrot.lane.b32.xlu0 %v8069, 48
      %v8140 = vpop.permute.xlu0 %8139
      %8141 = vrot.lane.b32.xlu0 %v8071, 48
      %v8142 = vpop.permute.xlu0 %8141
      %8143 = vrot.lane.b32.xlu0 %v8074, 48
      %v8144 = vpop.permute.xlu0 %8143
      %8145 = vrot.lane.b32.xlu0 %v8076, 48
      %v8146 = vpop.permute.xlu0 %8145
      %8147 = vrot.lane.b32.xlu0 %v8079, 48
      %v8148 = vpop.permute.xlu0 %8147
      %8149 = vrot.lane.b32.xlu0 %v8081, 48
      %v8150 = vpop.permute.xlu0 %8149
      %8151 = vrot.lane.b32.xlu0 %v8084, 48
      %v8152 = vpop.permute.xlu0 %8151
      %8153 = vrot.lane.b32.xlu0 %v8086, 48
      %v8154 = vpop.permute.xlu0 %8153
      %8155 = vrot.lane.b32.xlu0 %v8089, 48
      %v8156 = vpop.permute.xlu0 %8155
      %8157 = vrot.lane.b32.xlu0 %v8091, 48
      %v8158 = vpop.permute.xlu0 %8157
      %8159 = vrot.lane.b32.xlu0 %v8094, 48
      %v8160 = vpop.permute.xlu0 %8159
      %8161 = vrot.lane.b32.xlu0 %v8096, 48
      %v8162 = vpop.permute.xlu0 %8161
      %8163 = vrot.lane.b32.xlu0 %v8099, 48
      %v8164 = vpop.permute.xlu0 %8163
      %8165 = vrot.lane.b32.xlu0 %v8101, 48
      %v8166 = vpop.permute.xlu0 %8165
      %8167 = vrot.lane.b32.xlu0 %v8104, 48
      %v8168 = vpop.permute.xlu0 %8167
      %8169 = vrot.lane.b32.xlu0 %v8106, 48
      %v8170 = vpop.permute.xlu0 %8169
      %v8203 = vrot.slane %v7963, 2
      %v8204 = vrot.slane %v7869, 2
      %v8205 = vsel %vm1437, %v8203, %v8204
      %v8206 = vrot.slane %v7979, 2
      %v8207 = vsel %vm1437, %v8204, %v8206
      %v8208 = vrot.slane %v7964, 2
      %v8209 = vrot.slane %v7872, 2
      %v8210 = vsel %vm1437, %v8208, %v8209
      %v8211 = vrot.slane %v7980, 2
      %v8212 = vsel %vm1437, %v8209, %v8211
      %v8213 = vrot.slane %v7965, 2
      %v8214 = vrot.slane %v7875, 2
      %v8215 = vsel %vm1437, %v8213, %v8214
      %v8216 = vrot.slane %v7981, 2
      %v8217 = vsel %vm1437, %v8214, %v8216
      %v8218 = vrot.slane %v7966, 2
      %v8219 = vrot.slane %v7878, 2
      %v8220 = vsel %vm1437, %v8218, %v8219
      %v8221 = vrot.slane %v7982, 2
      %v8222 = vsel %vm1437, %v8219, %v8221
      %v8223 = vrot.slane %v7967, 2
      %v8224 = vrot.slane %v7881, 2
      %v8225 = vsel %vm1437, %v8223, %v8224
      %v8226 = vrot.slane %v7983, 2
      %v8227 = vsel %vm1437, %v8224, %v8226
      %v8228 = vrot.slane %v7968, 2
      %v8229 = vrot.slane %v7884, 2
      %v8230 = vsel %vm1437, %v8228, %v8229
      %v8231 = vrot.slane %v7984, 2
      %v8232 = vsel %vm1437, %v8229, %v8231
      %v8233 = vrot.slane %v7969, 2
      %v8234 = vrot.slane %v7887, 2
      %v8235 = vsel %vm1437, %v8233, %v8234
      %v8236 = vrot.slane %v7985, 2
      %v8237 = vsel %vm1437, %v8234, %v8236
      %v8238 = vrot.slane %v7970, 2
      %v8239 = vrot.slane %v7890, 2
      %v8240 = vsel %vm1437, %v8238, %v8239
      %v8241 = vrot.slane %v7986, 2
      %v8242 = vsel %vm1437, %v8239, %v8241
      %v8243 = vrot.slane %v7971, 2
      %v8244 = vrot.slane %v7893, 2
      %v8245 = vsel %vm1437, %v8243, %v8244
      %v8246 = vrot.slane %v7987, 2
      %v8247 = vsel %vm1437, %v8244, %v8246
      %v8248 = vrot.slane %v7972, 2
      %v8249 = vrot.slane %v7896, 2
      %v8250 = vsel %vm1437, %v8248, %v8249
      %v8251 = vrot.slane %v7988, 2
      %v8252 = vsel %vm1437, %v8249, %v8251
      %v8253 = vrot.slane %v7973, 2
      %v8254 = vrot.slane %v7899, 2
      %v8255 = vsel %vm1437, %v8253, %v8254
      %v8256 = vrot.slane %v7989, 2
      %v8257 = vsel %vm1437, %v8254, %v8256
      %v8258 = vrot.slane %v7974, 2
      %v8259 = vrot.slane %v7902, 2
      %v8260 = vsel %vm1437, %v8258, %v8259
      %v8261 = vrot.slane %v7990, 2
      %v8262 = vsel %vm1437, %v8259, %v8261
      %v8263 = vrot.slane %v7975, 2
      %v8264 = vrot.slane %v7905, 2
      %v8265 = vsel %vm1437, %v8263, %v8264
      %v8266 = vrot.slane %v7991, 2
      %v8267 = vsel %vm1437, %v8264, %v8266
      %v8268 = vrot.slane %v7976, 2
      %v8269 = vrot.slane %v7908, 2
      %v8270 = vsel %vm1437, %v8268, %v8269
      %v8271 = vrot.slane %v7992, 2
      %v8272 = vsel %vm1437, %v8269, %v8271
      %v8273 = vrot.slane %v7977, 2
      %v8274 = vrot.slane %v7911, 2
      %v8275 = vsel %vm1437, %v8273, %v8274
      %v8276 = vrot.slane %v7993, 2
      %v8277 = vsel %vm1437, %v8274, %v8276
      %v8278 = vrot.slane %v7978, 2
      %v8279 = vrot.slane %v7914, 2
      %v8280 = vsel %vm1437, %v8278, %v8279
      %v8281 = vrot.slane %v7994, 2
      %v8282 = vsel %vm1437, %v8279, %v8281
      %8283 = vrot.lane.b32.xlu0 %v8205, 96
      %v8284 = vpop.permute.xlu0 %8283
      %8285 = vrot.lane.b32.xlu0 %v8207, 96
      %v8286 = vpop.permute.xlu0 %8285
      %8287 = vrot.lane.b32.xlu0 %v8210, 96
      %v8288 = vpop.permute.xlu0 %8287
      %8289 = vrot.lane.b32.xlu0 %v8212, 96
      %v8290 = vpop.permute.xlu0 %8289
      %8291 = vrot.lane.b32.xlu0 %v8215, 96
      %v8292 = vpop.permute.xlu0 %8291
      %8293 = vrot.lane.b32.xlu0 %v8217, 96
      %v8294 = vpop.permute.xlu0 %8293
      %8295 = vrot.lane.b32.xlu0 %v8220, 96
      %v8296 = vpop.permute.xlu0 %8295
      %8297 = vrot.lane.b32.xlu0 %v8222, 96
      %v8298 = vpop.permute.xlu0 %8297
      %8299 = vrot.lane.b32.xlu0 %v8225, 96
      %v8300 = vpop.permute.xlu0 %8299
      %8301 = vrot.lane.b32.xlu0 %v8227, 96
      %v8302 = vpop.permute.xlu0 %8301
      %8303 = vrot.lane.b32.xlu0 %v8230, 96
      %v8304 = vpop.permute.xlu0 %8303
      %8305 = vrot.lane.b32.xlu0 %v8232, 96
      %v8306 = vpop.permute.xlu0 %8305
      %8307 = vrot.lane.b32.xlu0 %v8235, 96
      %v8308 = vpop.permute.xlu0 %8307
      %8309 = vrot.lane.b32.xlu0 %v8237, 96
      %v8310 = vpop.permute.xlu0 %8309
      %8311 = vrot.lane.b32.xlu0 %v8240, 96
      %v8312 = vpop.permute.xlu0 %8311
      %8313 = vrot.lane.b32.xlu0 %v8242, 96
      %v8314 = vpop.permute.xlu0 %8313
      %8315 = vrot.lane.b32.xlu0 %v8245, 96
      %v8316 = vpop.permute.xlu0 %8315
      %8317 = vrot.lane.b32.xlu0 %v8247, 96
      %v8318 = vpop.permute.xlu0 %8317
      %8319 = vrot.lane.b32.xlu0 %v8250, 96
      %v8320 = vpop.permute.xlu0 %8319
      %8321 = vrot.lane.b32.xlu0 %v8252, 96
      %v8322 = vpop.permute.xlu0 %8321
      %8323 = vrot.lane.b32.xlu0 %v8255, 96
      %v8324 = vpop.permute.xlu0 %8323
      %8325 = vrot.lane.b32.xlu0 %v8257, 96
      %v8326 = vpop.permute.xlu0 %8325
      %8327 = vrot.lane.b32.xlu0 %v8260, 96
      %v8328 = vpop.permute.xlu0 %8327
      %8329 = vrot.lane.b32.xlu0 %v8262, 96
      %v8330 = vpop.permute.xlu0 %8329
      %8331 = vrot.lane.b32.xlu0 %v8265, 96
      %v8332 = vpop.permute.xlu0 %8331
      %8333 = vrot.lane.b32.xlu0 %v8267, 96
      %v8334 = vpop.permute.xlu0 %8333
      %8335 = vrot.lane.b32.xlu0 %v8270, 96
      %v8336 = vpop.permute.xlu0 %8335
      %8337 = vrot.lane.b32.xlu0 %v8272, 96
      %v8338 = vpop.permute.xlu0 %8337
      %8339 = vrot.lane.b32.xlu0 %v8275, 96
      %v8340 = vpop.permute.xlu0 %8339
      %8341 = vrot.lane.b32.xlu0 %v8277, 96
      %v8342 = vpop.permute.xlu0 %8341
      %8343 = vrot.lane.b32.xlu0 %v8280, 96
      %v8344 = vpop.permute.xlu0 %8343
      %8345 = vrot.lane.b32.xlu0 %v8282, 96
      %v8346 = vpop.permute.xlu0 %8345
      %v8379 = vsel %vm3265, %v7963, %v8108
      %v8380 = vsel %vm3265, %v7869, %v8110
      %v8381 = vsel %vm3265, %v7964, %v8112
      %v8382 = vsel %vm3265, %v7872, %v8114
      %v8383 = vsel %vm3265, %v7965, %v8116
      %v8384 = vsel %vm3265, %v7875, %v8118
      %v8385 = vsel %vm3265, %v7966, %v8120
      %v8386 = vsel %vm3265, %v7878, %v8122
      %v8387 = vsel %vm3265, %v7967, %v8124
      %v8388 = vsel %vm3265, %v7881, %v8126
      %v8389 = vsel %vm3265, %v7968, %v8128
      %v8390 = vsel %vm3265, %v7884, %v8130
      %v8391 = vsel %vm3265, %v7969, %v8132
      %v8392 = vsel %vm3265, %v7887, %v8134
      %v8393 = vsel %vm3265, %v7970, %v8136
      %v8394 = vsel %vm3265, %v7890, %v8138
      %v8395 = vsel %vm3265, %v7971, %v8140
      %v8396 = vsel %vm3265, %v7893, %v8142
      %v8397 = vsel %vm3265, %v7972, %v8144
      %v8398 = vsel %vm3265, %v7896, %v8146
      %v8399 = vsel %vm3265, %v7973, %v8148
      %v8400 = vsel %vm3265, %v7899, %v8150
      %v8401 = vsel %vm3265, %v7974, %v8152
      %v8402 = vsel %vm3265, %v7902, %v8154
      %v8403 = vsel %vm3265, %v7975, %v8156
      %v8404 = vsel %vm3265, %v7905, %v8158
      %v8405 = vsel %vm3265, %v7976, %v8160
      %v8406 = vsel %vm3265, %v7908, %v8162
      %v8407 = vsel %vm3265, %v7977, %v8164
      %v8408 = vsel %vm3265, %v7911, %v8166
      %v8409 = vsel %vm3265, %v7978, %v8168
      %v8410 = vsel %vm3265, %v7914, %v8170
      %v8411 = vsel %vm3274, %v8379, %v8284
      %v8412 = vsel %vm3274, %v8380, %v8286
      %v8413 = vsel %vm3274, %v8381, %v8288
      %v8414 = vsel %vm3274, %v8382, %v8290
      %v8415 = vsel %vm3274, %v8383, %v8292
      %v8416 = vsel %vm3274, %v8384, %v8294
      %v8417 = vsel %vm3274, %v8385, %v8296
      %v8418 = vsel %vm3274, %v8386, %v8298
      %v8419 = vsel %vm3274, %v8387, %v8300
      %v8420 = vsel %vm3274, %v8388, %v8302
      %v8421 = vsel %vm3274, %v8389, %v8304
      %v8422 = vsel %vm3274, %v8390, %v8306
      %v8423 = vsel %vm3274, %v8391, %v8308
      %v8424 = vsel %vm3274, %v8392, %v8310
      %v8425 = vsel %vm3274, %v8393, %v8312
      %v8426 = vsel %vm3274, %v8394, %v8314
      %v8427 = vsel %vm3274, %v8395, %v8316
      %v8428 = vsel %vm3274, %v8396, %v8318
      %v8429 = vsel %vm3274, %v8397, %v8320
      %v8430 = vsel %vm3274, %v8398, %v8322
      %v8431 = vsel %vm3274, %v8399, %v8324
      %v8432 = vsel %vm3274, %v8400, %v8326
      %v8433 = vsel %vm3274, %v8401, %v8328
      %v8434 = vsel %vm3274, %v8402, %v8330
      %v8435 = vsel %vm3274, %v8403, %v8332
      %v8436 = vsel %vm3274, %v8404, %v8334
      %v8437 = vsel %vm3274, %v8405, %v8336
      %v8438 = vsel %vm3274, %v8406, %v8338
      %v8439 = vsel %vm3274, %v8407, %v8340
      %v8440 = vsel %vm3274, %v8408, %v8342
      %v8441 = vsel %vm3274, %v8409, %v8344
      %v8442 = vsel %vm3274, %v8410, %v8346
      %v8443 = vld [vmem:[%s13] sm:$0x3]
      %v8445 = vlaneseq
      %v8446 = vshrl.u32 %v8445, 7
      %v8447 = vsub.s32 0, %v8446
      %v8448 = vrot.slane %v8443, %v8447
      %v8449 = vlaneseq
      %v8450 = vshrl.u32 %v8449, 7
      %v8451 = vsub.s32 1, %v8450
      %v8452 = vrot.slane %v8443, %v8451
      %v8455 = vmul.f32 %v8411, %v8448
      %v8456 = vmul.f32 %v8284, %v8452
      %v8457 = vmul.f32 %v8412, %v8448
      %v8458 = vmul.f32 %v8286, %v8452
      %v8459 = vmul.f32 %v8413, %v8448
      %v8460 = vmul.f32 %v8288, %v8452
      %v8461 = vmul.f32 %v8414, %v8448
      %v8462 = vmul.f32 %v8290, %v8452
      %v8463 = vmul.f32 %v8415, %v8448
      %v8464 = vmul.f32 %v8292, %v8452
      %v8465 = vmul.f32 %v8416, %v8448
      %v8466 = vmul.f32 %v8294, %v8452
      %v8467 = vmul.f32 %v8417, %v8448
      %v8468 = vmul.f32 %v8296, %v8452
      %v8469 = vmul.f32 %v8418, %v8448
      %v8470 = vmul.f32 %v8298, %v8452
      %v8471 = vmul.f32 %v8419, %v8448
      %v8472 = vmul.f32 %v8300, %v8452
      %v8473 = vmul.f32 %v8420, %v8448
      %v8474 = vmul.f32 %v8302, %v8452
      %v8475 = vmul.f32 %v8421, %v8448
      %v8476 = vmul.f32 %v8304, %v8452
      %v8477 = vmul.f32 %v8422, %v8448
      %v8478 = vmul.f32 %v8306, %v8452
      %v8479 = vmul.f32 %v8423, %v8448
      %v8480 = vmul.f32 %v8308, %v8452
      %v8481 = vmul.f32 %v8424, %v8448
      %v8482 = vmul.f32 %v8310, %v8452
      %v8483 = vmul.f32 %v8425, %v8448
      %v8484 = vmul.f32 %v8312, %v8452
      %v8485 = vmul.f32 %v8426, %v8448
      %v8486 = vmul.f32 %v8314, %v8452
      %v8487 = vmul.f32 %v8427, %v8448
      %v8488 = vmul.f32 %v8316, %v8452
      %v8489 = vmul.f32 %v8428, %v8448
      %v8490 = vmul.f32 %v8318, %v8452
      %v8491 = vmul.f32 %v8429, %v8448
      %v8492 = vmul.f32 %v8320, %v8452
      %v8493 = vmul.f32 %v8430, %v8448
      %v8494 = vmul.f32 %v8322, %v8452
      %v8495 = vmul.f32 %v8431, %v8448
      %v8496 = vmul.f32 %v8324, %v8452
      %v8497 = vmul.f32 %v8432, %v8448
      %v8498 = vmul.f32 %v8326, %v8452
      %v8499 = vmul.f32 %v8433, %v8448
      %v8500 = vmul.f32 %v8328, %v8452
      %v8501 = vmul.f32 %v8434, %v8448
      %v8502 = vmul.f32 %v8330, %v8452
      %v8503 = vmul.f32 %v8435, %v8448
      %v8504 = vmul.f32 %v8332, %v8452
      %v8505 = vmul.f32 %v8436, %v8448
      %v8506 = vmul.f32 %v8334, %v8452
      %v8507 = vmul.f32 %v8437, %v8448
      %v8508 = vmul.f32 %v8336, %v8452
      %v8509 = vmul.f32 %v8438, %v8448
      %v8510 = vmul.f32 %v8338, %v8452
      %v8511 = vmul.f32 %v8439, %v8448
      %v8512 = vmul.f32 %v8340, %v8452
      %v8513 = vmul.f32 %v8440, %v8448
      %v8514 = vmul.f32 %v8342, %v8452
      %v8515 = vmul.f32 %v8441, %v8448
      %v8516 = vmul.f32 %v8344, %v8452
      %v8517 = vmul.f32 %v8442, %v8448
      %v8518 = vmul.f32 %v8346, %v8452
      %v8519 = vsel %vm3095, %v8456, 0.0
      %v8520 = vadd.f32 %v8455, %v8519
      %8521 = vadd.xlane.f32.xlu0 %v8520
      %v8522 = vpop.xlane.xlu0 %8521
      %v8523 = vsel %vm3095, %v8458, 0.0
      %v8524 = vadd.f32 %v8457, %v8523
      %8525 = vadd.xlane.f32.xlu0 %v8524
      %v8526 = vpop.xlane.xlu0 %8525
      %v8527 = vsel %vm3095, %v8460, 0.0
      %v8528 = vadd.f32 %v8459, %v8527
      %8529 = vadd.xlane.f32.xlu0 %v8528
      %v8530 = vpop.xlane.xlu0 %8529
      %v8531 = vsel %vm3095, %v8462, 0.0
      %v8532 = vadd.f32 %v8461, %v8531
      %8533 = vadd.xlane.f32.xlu0 %v8532
      %v8534 = vpop.xlane.xlu0 %8533
      %v8535 = vsel %vm3095, %v8464, 0.0
      %v8536 = vadd.f32 %v8463, %v8535
      %8537 = vadd.xlane.f32.xlu0 %v8536
      %v8538 = vpop.xlane.xlu0 %8537
      %v8539 = vsel %vm3095, %v8466, 0.0
      %v8540 = vadd.f32 %v8465, %v8539
      %8541 = vadd.xlane.f32.xlu0 %v8540
      %v8542 = vpop.xlane.xlu0 %8541
      %v8543 = vsel %vm3095, %v8468, 0.0
      %v8544 = vadd.f32 %v8467, %v8543
      %8545 = vadd.xlane.f32.xlu0 %v8544
      %v8546 = vpop.xlane.xlu0 %8545
      %v8547 = vsel %vm3095, %v8470, 0.0
      %v8548 = vadd.f32 %v8469, %v8547
      %8549 = vadd.xlane.f32.xlu0 %v8548
      %v8550 = vpop.xlane.xlu0 %8549
      %v8551 = vsel %vm3095, %v8472, 0.0
      %v8552 = vadd.f32 %v8471, %v8551
      %8553 = vadd.xlane.f32.xlu0 %v8552
      %v8554 = vpop.xlane.xlu0 %8553
      %v8555 = vsel %vm3095, %v8474, 0.0
      %v8556 = vadd.f32 %v8473, %v8555
      %8557 = vadd.xlane.f32.xlu0 %v8556
      %v8558 = vpop.xlane.xlu0 %8557
      %v8559 = vsel %vm3095, %v8476, 0.0
      %v8560 = vadd.f32 %v8475, %v8559
      %8561 = vadd.xlane.f32.xlu0 %v8560
      %v8562 = vpop.xlane.xlu0 %8561
      %v8563 = vsel %vm3095, %v8478, 0.0
      %v8564 = vadd.f32 %v8477, %v8563
      %8565 = vadd.xlane.f32.xlu0 %v8564
      %v8566 = vpop.xlane.xlu0 %8565
      %v8567 = vsel %vm3095, %v8480, 0.0
      %v8568 = vadd.f32 %v8479, %v8567
      %8569 = vadd.xlane.f32.xlu0 %v8568
      %v8570 = vpop.xlane.xlu0 %8569
      %v8571 = vsel %vm3095, %v8482, 0.0
      %v8572 = vadd.f32 %v8481, %v8571
      %8573 = vadd.xlane.f32.xlu0 %v8572
      %v8574 = vpop.xlane.xlu0 %8573
      %v8575 = vsel %vm3095, %v8484, 0.0
      %v8576 = vadd.f32 %v8483, %v8575
      %8577 = vadd.xlane.f32.xlu0 %v8576
      %v8578 = vpop.xlane.xlu0 %8577
      %v8579 = vsel %vm3095, %v8486, 0.0
      %v8580 = vadd.f32 %v8485, %v8579
      %8581 = vadd.xlane.f32.xlu0 %v8580
      %v8582 = vpop.xlane.xlu0 %8581
      %v8583 = vsel %vm3095, %v8488, 0.0
      %v8584 = vadd.f32 %v8487, %v8583
      %8585 = vadd.xlane.f32.xlu0 %v8584
      %v8586 = vpop.xlane.xlu0 %8585
      %v8587 = vsel %vm3095, %v8490, 0.0
      %v8588 = vadd.f32 %v8489, %v8587
      %8589 = vadd.xlane.f32.xlu0 %v8588
      %v8590 = vpop.xlane.xlu0 %8589
      %v8591 = vsel %vm3095, %v8492, 0.0
      %v8592 = vadd.f32 %v8491, %v8591
      %8593 = vadd.xlane.f32.xlu0 %v8592
      %v8594 = vpop.xlane.xlu0 %8593
      %v8595 = vsel %vm3095, %v8494, 0.0
      %v8596 = vadd.f32 %v8493, %v8595
      %8597 = vadd.xlane.f32.xlu0 %v8596
      %v8598 = vpop.xlane.xlu0 %8597
      %v8599 = vsel %vm3095, %v8496, 0.0
      %v8600 = vadd.f32 %v8495, %v8599
      %8601 = vadd.xlane.f32.xlu0 %v8600
      %v8602 = vpop.xlane.xlu0 %8601
      %v8603 = vsel %vm3095, %v8498, 0.0
      %v8604 = vadd.f32 %v8497, %v8603
      %8605 = vadd.xlane.f32.xlu0 %v8604
      %v8606 = vpop.xlane.xlu0 %8605
      %v8607 = vsel %vm3095, %v8500, 0.0
      %v8608 = vadd.f32 %v8499, %v8607
      %8609 = vadd.xlane.f32.xlu0 %v8608
      %v8610 = vpop.xlane.xlu0 %8609
      %v8611 = vsel %vm3095, %v8502, 0.0
      %v8612 = vadd.f32 %v8501, %v8611
      %8613 = vadd.xlane.f32.xlu0 %v8612
      %v8614 = vpop.xlane.xlu0 %8613
      %v8615 = vsel %vm3095, %v8504, 0.0
      %v8616 = vadd.f32 %v8503, %v8615
      %8617 = vadd.xlane.f32.xlu0 %v8616
      %v8618 = vpop.xlane.xlu0 %8617
      %v8619 = vsel %vm3095, %v8506, 0.0
      %v8620 = vadd.f32 %v8505, %v8619
      %8621 = vadd.xlane.f32.xlu0 %v8620
      %v8622 = vpop.xlane.xlu0 %8621
      %v8623 = vsel %vm3095, %v8508, 0.0
      %v8624 = vadd.f32 %v8507, %v8623
      %8625 = vadd.xlane.f32.xlu0 %v8624
      %v8626 = vpop.xlane.xlu0 %8625
      %v8627 = vsel %vm3095, %v8510, 0.0
      %v8628 = vadd.f32 %v8509, %v8627
      %8629 = vadd.xlane.f32.xlu0 %v8628
      %v8630 = vpop.xlane.xlu0 %8629
      %v8631 = vsel %vm3095, %v8512, 0.0
      %v8632 = vadd.f32 %v8511, %v8631
      %8633 = vadd.xlane.f32.xlu0 %v8632
      %v8634 = vpop.xlane.xlu0 %8633
      %v8635 = vsel %vm3095, %v8514, 0.0
      %v8636 = vadd.f32 %v8513, %v8635
      %8637 = vadd.xlane.f32.xlu0 %v8636
      %v8638 = vpop.xlane.xlu0 %8637
      %v8639 = vsel %vm3095, %v8516, 0.0
      %v8640 = vadd.f32 %v8515, %v8639
      %8641 = vadd.xlane.f32.xlu0 %v8640
      %v8642 = vpop.xlane.xlu0 %8641
      %v8643 = vsel %vm3095, %v8518, 0.0
      %v8644 = vadd.f32 %v8517, %v8643
      %8645 = vadd.xlane.f32.xlu0 %v8644
      %v8646 = vpop.xlane.xlu0 %8645
      %v8647 = vld [vmem:[#allocation2] sm:$0x1]
      %v8649 = vlaneseq
      %v8650 = vshrl.u32 %v8649, 7
      %v8651 = vsub.s32 0, %v8650
      %v8652 = vrot.slane %v8647, %v8651
      %v8654 = vadd.f32 %v8522, %v8652
      %v8655 = vadd.f32 %v8526, %v8652
      %v8656 = vadd.f32 %v8530, %v8652
      %v8657 = vadd.f32 %v8534, %v8652
      %v8658 = vadd.f32 %v8538, %v8652
      %v8659 = vadd.f32 %v8542, %v8652
      %v8660 = vadd.f32 %v8546, %v8652
      %v8661 = vadd.f32 %v8550, %v8652
      %v8662 = vadd.f32 %v8554, %v8652
      %v8663 = vadd.f32 %v8558, %v8652
      %v8664 = vadd.f32 %v8562, %v8652
      %v8665 = vadd.f32 %v8566, %v8652
      %v8666 = vadd.f32 %v8570, %v8652
      %v8667 = vadd.f32 %v8574, %v8652
      %v8668 = vadd.f32 %v8578, %v8652
      %v8669 = vadd.f32 %v8582, %v8652
      %v8670 = vadd.f32 %v8586, %v8652
      %v8671 = vadd.f32 %v8590, %v8652
      %v8672 = vadd.f32 %v8594, %v8652
      %v8673 = vadd.f32 %v8598, %v8652
      %v8674 = vadd.f32 %v8602, %v8652
      %v8675 = vadd.f32 %v8606, %v8652
      %v8676 = vadd.f32 %v8610, %v8652
      %v8677 = vadd.f32 %v8614, %v8652
      %v8678 = vadd.f32 %v8618, %v8652
      %v8679 = vadd.f32 %v8622, %v8652
      %v8680 = vadd.f32 %v8626, %v8652
      %v8681 = vadd.f32 %v8630, %v8652
      %v8682 = vadd.f32 %v8634, %v8652
      %v8683 = vadd.f32 %v8638, %v8652
      %v8684 = vadd.f32 %v8642, %v8652
      %v8685 = vadd.f32 %v8646, %v8652
      %8694 = vrot.lane.b32.xlu0 %v5470, 16
      %v8695 = vpop.permute.xlu0 %8694
      %8696 = vrot.lane.b32.xlu0 %v5471, 16
      %v8697 = vpop.permute.xlu0 %8696
      %8698 = vrot.lane.b32.xlu0 %v5472, 16
      %v8699 = vpop.permute.xlu0 %8698
      %8700 = vrot.lane.b32.xlu0 %v5473, 16
      %v8701 = vpop.permute.xlu0 %8700
      %8702 = vrot.lane.b32.xlu0 %v5474, 16
      %v8703 = vpop.permute.xlu0 %8702
      %8704 = vrot.lane.b32.xlu0 %v5475, 16
      %v8705 = vpop.permute.xlu0 %8704
      %8706 = vrot.lane.b32.xlu0 %v5476, 16
      %v8707 = vpop.permute.xlu0 %8706
      %8708 = vrot.lane.b32.xlu0 %v5477, 16
      %v8709 = vpop.permute.xlu0 %8708
      %8718 = vrot.lane.b32.xlu0 %v5471, 32
      %v8719 = vpop.permute.xlu0 %8718
      %8720 = vrot.lane.b32.xlu0 %v5472, 32
      %v8721 = vpop.permute.xlu0 %8720
      %8722 = vrot.lane.b32.xlu0 %v5473, 32
      %v8723 = vpop.permute.xlu0 %8722
      %8724 = vrot.lane.b32.xlu0 %v5474, 32
      %v8725 = vpop.permute.xlu0 %8724
      %8726 = vrot.lane.b32.xlu0 %v5475, 32
      %v8727 = vpop.permute.xlu0 %8726
      %8728 = vrot.lane.b32.xlu0 %v5476, 32
      %v8729 = vpop.permute.xlu0 %8728
      %8730 = vrot.lane.b32.xlu0 %v5477, 32
      %v8731 = vpop.permute.xlu0 %8730
      %v8739 = vsel %vm3095, 0.0, %v8695
      %v8740 = vsel %vm3095, %v5470, %v8697
      %v8741 = vsel %vm3095, %v5471, %v8699
      %v8742 = vsel %vm3095, %v5472, %v8701
      %v8743 = vsel %vm3095, %v5473, %v8703
      %v8744 = vsel %vm3095, %v5474, %v8705
      %v8745 = vsel %vm3095, %v5475, %v8707
      %v8746 = vsel %vm3095, %v5476, %v8709
      %v8747 = vsel %vm3104, %v8739, %v8719
      %v8748 = vsel %vm3104, %v8740, %v8721
      %v8749 = vsel %vm3104, %v8741, %v8723
      %v8750 = vsel %vm3104, %v8742, %v8725
      %v8751 = vsel %vm3104, %v8743, %v8727
      %v8752 = vsel %vm3104, %v8744, %v8729
      %v8753 = vsel %vm3104, %v8745, %v8731
      %v8754 = vsel %vm3104, %v8746, %v3086
      %v8763 = vrot.slane %v8747, 7
      %v8764 = vrot.slane %v8748, 7
      %v8765 = vrot.slane %v8749, 7
      %v8766 = vrot.slane %v8750, 7
      %v8767 = vrot.slane %v8751, 7
      %v8768 = vrot.slane %v8752, 7
      %v8769 = vrot.slane %v8753, 7
      %v8770 = vrot.slane %v8754, 7
      %v8779 = vsel %vm1099, 0.0, %v8763
      %v8780 = vsel %vm1099, 0.0, %v8764
      %v8781 = vsel %vm1099, 0.0, %v8765
      %v8782 = vsel %vm1099, 0.0, %v8766
      %v8783 = vsel %vm1099, 0.0, %v8767
      %v8784 = vsel %vm1099, 0.0, %v8768
      %v8785 = vsel %vm1099, 0.0, %v8769
      %v8786 = vsel %vm1099, 0.0, %v8770
      %v8787 = vsel %vm1099, %v8763, 0.0
      %v8788 = vsel %vm1099, %v8764, 0.0
      %v8789 = vsel %vm1099, %v8765, 0.0
      %v8790 = vsel %vm1099, %v8766, 0.0
      %v8791 = vsel %vm1099, %v8767, 0.0
      %v8792 = vsel %vm1099, %v8768, 0.0
      %v8793 = vsel %vm1099, %v8769, 0.0
      %v8794 = vsel %vm1099, %v8770, 0.0
      %v8811 = vrot.slane %v8779, 1
      %v8812 = vrot.slane %v8787, 1
      %v8813 = vsel %vm1260, %v8811, %v8812
      %v8814 = vrot.slane %v8780, 1
      %v8815 = vrot.slane %v8788, 1
      %v8816 = vsel %vm1260, %v8814, %v8815
      %v8817 = vrot.slane %v8781, 1
      %v8818 = vrot.slane %v8789, 1
      %v8819 = vsel %vm1260, %v8817, %v8818
      %v8820 = vrot.slane %v8782, 1
      %v8821 = vrot.slane %v8790, 1
      %v8822 = vsel %vm1260, %v8820, %v8821
      %v8823 = vrot.slane %v8783, 1
      %v8824 = vrot.slane %v8791, 1
      %v8825 = vsel %vm1260, %v8823, %v8824
      %v8826 = vrot.slane %v8784, 1
      %v8827 = vrot.slane %v8792, 1
      %v8828 = vsel %vm1260, %v8826, %v8827
      %v8829 = vrot.slane %v8785, 1
      %v8830 = vrot.slane %v8793, 1
      %v8831 = vsel %vm1260, %v8829, %v8830
      %v8832 = vrot.slane %v8786, 1
      %v8833 = vrot.slane %v8794, 1
      %v8834 = vsel %vm1260, %v8832, %v8833
      %8835 = vrot.lane.b32.xlu0 %v8813, 48
      %v8836 = vpop.permute.xlu0 %8835
      %8837 = vrot.lane.b32.xlu0 %v8816, 48
      %v8838 = vpop.permute.xlu0 %8837
      %8839 = vrot.lane.b32.xlu0 %v8819, 48
      %v8840 = vpop.permute.xlu0 %8839
      %8841 = vrot.lane.b32.xlu0 %v8822, 48
      %v8842 = vpop.permute.xlu0 %8841
      %8843 = vrot.lane.b32.xlu0 %v8825, 48
      %v8844 = vpop.permute.xlu0 %8843
      %8845 = vrot.lane.b32.xlu0 %v8828, 48
      %v8846 = vpop.permute.xlu0 %8845
      %8847 = vrot.lane.b32.xlu0 %v8831, 48
      %v8848 = vpop.permute.xlu0 %8847
      %8849 = vrot.lane.b32.xlu0 %v8834, 48
      %v8850 = vpop.permute.xlu0 %8849
      %v8859 = vrot.slane %v8779, 2
      %v8860 = vrot.slane %v8787, 2
      %v8861 = vsel %vm1437, %v8859, %v8860
      %v8862 = vrot.slane %v8780, 2
      %v8863 = vrot.slane %v8788, 2
      %v8864 = vsel %vm1437, %v8862, %v8863
      %v8865 = vrot.slane %v8781, 2
      %v8866 = vrot.slane %v8789, 2
      %v8867 = vsel %vm1437, %v8865, %v8866
      %v8868 = vrot.slane %v8782, 2
      %v8869 = vrot.slane %v8790, 2
      %v8870 = vsel %vm1437, %v8868, %v8869
      %v8871 = vrot.slane %v8783, 2
      %v8872 = vrot.slane %v8791, 2
      %v8873 = vsel %vm1437, %v8871, %v8872
      %v8874 = vrot.slane %v8784, 2
      %v8875 = vrot.slane %v8792, 2
      %v8876 = vsel %vm1437, %v8874, %v8875
      %v8877 = vrot.slane %v8785, 2
      %v8878 = vrot.slane %v8793, 2
      %v8879 = vsel %vm1437, %v8877, %v8878
      %v8880 = vrot.slane %v8786, 2
      %v8881 = vrot.slane %v8794, 2
      %v8882 = vsel %vm1437, %v8880, %v8881
      %8883 = vrot.lane.b32.xlu0 %v8861, 96
      %v8884 = vpop.permute.xlu0 %8883
      %8885 = vrot.lane.b32.xlu0 %v8864, 96
      %v8886 = vpop.permute.xlu0 %8885
      %8887 = vrot.lane.b32.xlu0 %v8867, 96
      %v8888 = vpop.permute.xlu0 %8887
      %8889 = vrot.lane.b32.xlu0 %v8870, 96
      %v8890 = vpop.permute.xlu0 %8889
      %8891 = vrot.lane.b32.xlu0 %v8873, 96
      %v8892 = vpop.permute.xlu0 %8891
      %8893 = vrot.lane.b32.xlu0 %v8876, 96
      %v8894 = vpop.permute.xlu0 %8893
      %8895 = vrot.lane.b32.xlu0 %v8879, 96
      %v8896 = vpop.permute.xlu0 %8895
      %8897 = vrot.lane.b32.xlu0 %v8882, 96
      %v8898 = vpop.permute.xlu0 %8897
      %v8907 = vsel %vm3265, %v8779, %v8836
      %v8908 = vsel %vm3265, %v8780, %v8838
      %v8909 = vsel %vm3265, %v8781, %v8840
      %v8910 = vsel %vm3265, %v8782, %v8842
      %v8911 = vsel %vm3265, %v8783, %v8844
      %v8912 = vsel %vm3265, %v8784, %v8846
      %v8913 = vsel %vm3265, %v8785, %v8848
      %v8914 = vsel %vm3265, %v8786, %v8850
      %v8915 = vsel %vm3274, %v8907, %v8884
      %v8916 = vsel %vm3274, %v8908, %v8886
      %v8917 = vsel %vm3274, %v8909, %v8888
      %v8918 = vsel %vm3274, %v8910, %v8890
      %v8919 = vsel %vm3274, %v8911, %v8892
      %v8920 = vsel %vm3274, %v8912, %v8894
      %v8921 = vsel %vm3274, %v8913, %v8896
      %v8922 = vsel %vm3274, %v8914, %v8898
      %v8923 = vld [vmem:[%s15] sm:$0x3]
      %v8925 = vlaneseq
      %v8926 = vshrl.u32 %v8925, 7
      %v8927 = vsub.s32 0, %v8926
      %v8928 = vrot.slane %v8923, %v8927
      %v8929 = vlaneseq
      %v8930 = vshrl.u32 %v8929, 7
      %v8931 = vsub.s32 1, %v8930
      %v8932 = vrot.slane %v8923, %v8931
      %v8935 = vmul.f32 %v8915, %v8928
      %v8936 = vmul.f32 %v8884, %v8932
      %v8937 = vmul.f32 %v8916, %v8928
      %v8938 = vmul.f32 %v8886, %v8932
      %v8939 = vmul.f32 %v8917, %v8928
      %v8940 = vmul.f32 %v8888, %v8932
      %v8941 = vmul.f32 %v8918, %v8928
      %v8942 = vmul.f32 %v8890, %v8932
      %v8943 = vmul.f32 %v8919, %v8928
      %v8944 = vmul.f32 %v8892, %v8932
      %v8945 = vmul.f32 %v8920, %v8928
      %v8946 = vmul.f32 %v8894, %v8932
      %v8947 = vmul.f32 %v8921, %v8928
      %v8948 = vmul.f32 %v8896, %v8932
      %v8949 = vmul.f32 %v8922, %v8928
      %v8950 = vmul.f32 %v8898, %v8932
      %v8951 = vsel %vm3095, %v8936, 0.0
      %v8952 = vadd.f32 %v8935, %v8951
      %8953 = vadd.xlane.f32.xlu0 %v8952
      %v8954 = vpop.xlane.xlu0 %8953
      %v8955 = vsel %vm3095, %v8938, 0.0
      %v8956 = vadd.f32 %v8937, %v8955
      %8957 = vadd.xlane.f32.xlu0 %v8956
      %v8958 = vpop.xlane.xlu0 %8957
      %v8959 = vsel %vm3095, %v8940, 0.0
      %v8960 = vadd.f32 %v8939, %v8959
      %8961 = vadd.xlane.f32.xlu0 %v8960
      %v8962 = vpop.xlane.xlu0 %8961
      %v8963 = vsel %vm3095, %v8942, 0.0
      %v8964 = vadd.f32 %v8941, %v8963
      %8965 = vadd.xlane.f32.xlu0 %v8964
      %v8966 = vpop.xlane.xlu0 %8965
      %v8967 = vsel %vm3095, %v8944, 0.0
      %v8968 = vadd.f32 %v8943, %v8967
      %8969 = vadd.xlane.f32.xlu0 %v8968
      %v8970 = vpop.xlane.xlu0 %8969
      %v8971 = vsel %vm3095, %v8946, 0.0
      %v8972 = vadd.f32 %v8945, %v8971
      %8973 = vadd.xlane.f32.xlu0 %v8972
      %v8974 = vpop.xlane.xlu0 %8973
      %v8975 = vsel %vm3095, %v8948, 0.0
      %v8976 = vadd.f32 %v8947, %v8975
      %8977 = vadd.xlane.f32.xlu0 %v8976
      %v8978 = vpop.xlane.xlu0 %8977
      %v8979 = vsel %vm3095, %v8950, 0.0
      %v8980 = vadd.f32 %v8949, %v8979
      %8981 = vadd.xlane.f32.xlu0 %v8980
      %v8982 = vpop.xlane.xlu0 %8981
      %v8983 = vld [vmem:[#allocation3] sm:$0x1]
      %v8985 = vlaneseq
      %v8986 = vshrl.u32 %v8985, 7
      %v8987 = vsub.s32 0, %v8986
      %v8988 = vrot.slane %v8983, %v8987
      %v8990 = vadd.f32 %v8954, %v8988
      %v8991 = vadd.f32 %v8958, %v8988
      %v8992 = vadd.f32 %v8962, %v8988
      %v8993 = vadd.f32 %v8966, %v8988
      %v8994 = vadd.f32 %v8970, %v8988
      %v8995 = vadd.f32 %v8974, %v8988
      %v8996 = vadd.f32 %v8978, %v8988
      %v8997 = vadd.f32 %v8982, %v8988
      %8998 = vrot.lane.b32.xlu0 %v3966, 32
      %v8999 = vpop.permute.xlu0 %8998
      %9000 = vrot.lane.b32.xlu0 %v3970, 32
      %v9001 = vpop.permute.xlu0 %9000
      %9002 = vrot.lane.b32.xlu0 %v3967, 32
      %v9003 = vpop.permute.xlu0 %9002
      %9004 = vrot.lane.b32.xlu0 %v3971, 32
      %v9005 = vpop.permute.xlu0 %9004
      %9010 = vrot.lane.b32.xlu0 %v3970, 64
      %v9011 = vpop.permute.xlu0 %9010
      %9012 = vrot.lane.b32.xlu0 %v3967, 64
      %v9013 = vpop.permute.xlu0 %9012
      %9014 = vrot.lane.b32.xlu0 %v3971, 64
      %v9015 = vpop.permute.xlu0 %9014
      %v9019 = vsel %vm3104, 0.0, %v8999
      %v9020 = vsel %vm3104, %v3966, %v9001
      %v9021 = vsel %vm3104, %v3970, %v9003
      %v9022 = vsel %vm3104, %v3967, %v9005
      %v9023 = vsel %vm5510, %v9019, %v9011
      %v9024 = vsel %vm5510, %v9020, %v9013
      %v9025 = vsel %vm5510, %v9021, %v9015
      %v9026 = vsel %vm5510, %v9022, %v6181
      %v9031 = vrot.slane %v9023, 7
      %v9032 = vrot.slane %v9024, 7
      %v9033 = vrot.slane %v9025, 7
      %v9034 = vrot.slane %v9026, 7
      %v9039 = vsel %vm1099, 0.0, %v9031
      %v9040 = vsel %vm1099, 0.0, %v9032
      %v9041 = vsel %vm1099, 0.0, %v9033
      %v9042 = vsel %vm1099, 0.0, %v9034
      %v9043 = vsel %vm1760, %v9039, 0.0
      %v9044 = vsel %vm1760, %v9040, 0.0
      %v9045 = vsel %vm1760, %v9041, 0.0
      %v9046 = vsel %vm1760, %v9042, 0.0
      %v9051 = vrot.slane %v9043, 1
      %v9052 = vrot.slane %v9044, 1
      %v9053 = vrot.slane %v9045, 1
      %v9054 = vrot.slane %v9046, 1
      %9055 = vrot.lane.b32.xlu0 %v9051, 96
      %v9056 = vpop.permute.xlu0 %9055
      %9057 = vrot.lane.b32.xlu0 %v9052, 96
      %v9058 = vpop.permute.xlu0 %9057
      %9059 = vrot.lane.b32.xlu0 %v9053, 96
      %v9060 = vpop.permute.xlu0 %9059
      %9061 = vrot.lane.b32.xlu0 %v9054, 96
      %v9062 = vpop.permute.xlu0 %9061
      %v9067 = vrot.slane %v9043, 2
      %v9068 = vrot.slane %v9044, 2
      %v9069 = vrot.slane %v9045, 2
      %v9070 = vrot.slane %v9046, 2
      %9071 = vrot.lane.b32.xlu0 %v9067, 64
      %v9072 = vpop.permute.xlu0 %9071
      %9073 = vrot.lane.b32.xlu0 %v9068, 64
      %v9074 = vpop.permute.xlu0 %9073
      %9075 = vrot.lane.b32.xlu0 %v9069, 64
      %v9076 = vpop.permute.xlu0 %9075
      %9077 = vrot.lane.b32.xlu0 %v9070, 64
      %v9078 = vpop.permute.xlu0 %9077
      %v9083 = vsel %vm3274, %v9043, %v9056
      %v9084 = vsel %vm3274, %v9044, %v9058
      %v9085 = vsel %vm3274, %v9045, %v9060
      %v9086 = vsel %vm3274, %v9046, %v9062
      %v9087 = vsel %vm5510, %v9056, %v9072
      %v9088 = vsel %vm5510, %v9058, %v9074
      %v9089 = vsel %vm5510, %v9060, %v9076
      %v9090 = vsel %vm5510, %v9062, %v9078
      %v9099 = vcombine.low %v9083, %v9087
      %v9100 = vcombine.low %v9084, %v9088
      %v9101 = vcombine.low %v9085, %v9089
      %v9102 = vcombine.low %v9086, %v9090
      %v9107 = vld [vmem:[%s17] sm:$0x7]
      %v9109 = vlaneseq
      %v9110 = vshrl.u32 %v9109, 7
      %v9111 = vsub.s32 0, %v9110
      %v9112 = vrot.slane %v9107, %v9111
      %v9113 = vlaneseq
      %v9114 = vshrl.u32 %v9113, 7
      %v9115 = vsub.s32 1, %v9114
      %v9116 = vrot.slane %v9107, %v9115
      %v9117 = vlaneseq
      %v9118 = vshrl.u32 %v9117, 7
      %v9119 = vsub.s32 2, %v9118
      %v9120 = vrot.slane %v9107, %v9119
      %v9122 = vcombine.low %v9112, %v9116
      %v9123 = vcombine.high %v9112, %v9116
      %v9124 = vcombine.high %v9120, %v9120
      %v9128 = vmul.f32 %v9099, %v9122
      %v9129 = vmul.f32 %v9072, %v9120
      %v9130 = vmul.f32 %v9100, %v9123
      %v9131 = vmul.f32 %v9074, %v9124
      %v9132 = vmul.f32 %v9101, %v9122
      %v9133 = vmul.f32 %v9076, %v9120
      %v9134 = vmul.f32 %v9102, %v9123
      %v9135 = vmul.f32 %v9078, %v9124
      %v9144 = vcombine.low %v9128, %v9130
      %v9145 = vcombine.high %v9128, %v9130
      %v9146 = vcombine.low %v9129, %v9131
      %v9147 = vcombine.low %v9132, %v9134
      %v9148 = vcombine.high %v9132, %v9134
      %v9149 = vcombine.low %v9133, %v9135
      %v9156 = vadd.f32 %v9144, %v9145
      %v9157 = vsel %vm3104, %v9146, 0.0
      %v9158 = vadd.f32 %v9156, %v9157
      %9159 = vadd.xlane.f32.xlu0 %v9158
      %v9160 = vpop.xlane.xlu0 %9159
      %v9161 = vadd.f32 %v9147, %v9148
      %v9162 = vsel %vm3104, %v9149, 0.0
      %v9163 = vadd.f32 %v9161, %v9162
      %9164 = vadd.xlane.f32.xlu0 %v9163
      %v9165 = vpop.xlane.xlu0 %9164
      %v9166 = vld [vmem:[#allocation4] sm:$0x1]
      %v9168 = vlaneseq
      %v9169 = vshrl.u32 %v9168, 7
      %v9170 = vsub.s32 0, %v9169
      %v9171 = vrot.slane %v9166, %v9170
      %v9173 = vadd.f32 %v9160, %v9171
      %v9174 = vadd.f32 %v9165, %v9171
      %9175 = vmatprep.subr.mxu0 0.0
      %9176 = vmatpush1.msra.mxu0 %v8990
      %9177 = vmatprep.subr.mxu0 0.0
      %9178 = vmatpush1.msra.mxu0 %v8991
      %9179 = vmatprep.subr.mxu0 0.0
      %9180 = vmatpush1.msra.mxu0 %v8992
      %9181 = vmatprep.subr.mxu0 0.0
      %9182 = vmatpush1.msra.mxu0 %v8993
      %9183 = vmatprep.subr.mxu0 0.0
      %9184 = vmatpush1.msra.mxu0 %v8994
      %9185 = vmatprep.subr.mxu0 0.0
      %9186 = vmatpush1.msra.mxu0 %v8995
      %9187 = vmatprep.subr.mxu0 0.0
      %9188 = vmatpush1.msra.mxu0 %v8996
      %9189 = vmatprep.subr.mxu0 0.0
      %9190 = vmatpush1.msra.mxu0 %v8997
      %9191 = vmatprep.subr.mxu0 0.0
      %9192 = vmatpush1.msra.mxu0 0.0
      %9193 = vmatprep.subr.mxu0 0.0
      %9194 = vmatpush1.msra.mxu0 0.0
      %9195 = vmatprep.subr.mxu0 0.0
      %9196 = vmatpush1.msra.mxu0 0.0
      %9197 = vmatprep.subr.mxu0 0.0
      %9198 = vmatpush1.msra.mxu0 0.0
      %9199 = vmatprep.subr.mxu0 0.0
      %9200 = vmatpush1.msra.mxu0 0.0
      %9201 = vmatprep.subr.mxu0 0.0
      %9202 = vmatpush1.msra.mxu0 0.0
      %9203 = vmatprep.subr.mxu0 0.0
      %9204 = vmatpush1.msra.mxu0 0.0
      %9205 = vmatprep.subr.mxu0 0.0
      %9206 = vmatpush1.msra.mxu0 0.0
      %9207 = vmatprep.subr.mxu0 0.0
      %9208 = vmatpush1.msra.mxu0 0.0
      %9209 = vmatprep.subr.mxu0 0.0
      %9210 = vmatpush1.msra.mxu0 0.0
      %9211 = vmatprep.subr.mxu0 0.0
      %9212 = vmatpush1.msra.mxu0 0.0
      %9213 = vmatprep.subr.mxu0 0.0
      %9214 = vmatpush1.msra.mxu0 0.0
      %9215 = vmatprep.subr.mxu0 0.0
      %9216 = vmatpush1.msra.mxu0 0.0
      %9217 = vmatprep.subr.mxu0 0.0
      %9218 = vmatpush1.msra.mxu0 0.0
      %9219 = vmatprep.subr.mxu0 0.0
      %9220 = vmatpush1.msra.mxu0 0.0
      %9221 = vmatprep.subr.mxu0 0.0
      %9222 = vmatpush1.msra.mxu0 0.0
      %9223 = vmatprep.subr.mxu0 0.0
      %9224 = vmatpush1.msra.mxu0 0.0
      %9225 = vmatprep.subr.mxu0 0.0
      %9226 = vmatpush1.msra.mxu0 0.0
      %9227 = vmatprep.subr.mxu0 0.0
      %9228 = vmatpush1.msra.mxu0 0.0
      %9229 = vmatprep.subr.mxu0 0.0
      %9230 = vmatpush1.msra.mxu0 0.0
      %9231 = vmatprep.subr.mxu0 0.0
      %9232 = vmatpush1.msra.mxu0 0.0
      %9233 = vmatprep.subr.mxu0 0.0
      %9234 = vmatpush1.msra.mxu0 0.0
      %9235 = vmatprep.subr.mxu0 0.0
      %9236 = vmatpush1.msra.mxu0 0.0
      %9237 = vmatprep.subr.mxu0 0.0
      %9238 = vmatpush1.msra.mxu0 0.0
      %9239 = vmatprep.mubr.f32.mxu0 0.0
      %9240 = vmatmul.mubr.f32.gmra.mrb[0].mxu0 %v5512
      %v9241 = vpop.f32.mrb[0].mxu0
      %v9242 = vadd.f32 0.0, %v9241
      %v9243 = vpop.f32.mrb[0].mxu0
      %9244 = vmatprep.mubr.f32.mxu0 0.0
      %9245 = vmatmul.mubr.f32.gmra.mrb[0].mxu0 %v5515
      %v9246 = vpop.f32.mrb[0].mxu0
      %v9247 = vadd.f32 0.0, %v9246
      %v9248 = vpop.f32.mrb[0].mxu0
      %9249 = vmatprep.mubr.f32.mxu0 0.0
      %9250 = vmatmul.mubr.f32.gmra.mrb[0].mxu0 %v5518
      %v9251 = vpop.f32.mrb[0].mxu0
      %v9252 = vadd.f32 0.0, %v9251
      %v9253 = vpop.f32.mrb[0].mxu0
      %9254 = vmatprep.mubr.f32.mxu0 0.0
      %9255 = vmatmul.mubr.f32.gmra.mrb[0].mxu0 %v5521
      %v9256 = vpop.f32.mrb[0].mxu0
      %v9257 = vadd.f32 0.0, %v9256
      %v9258 = vpop.f32.mrb[0].mxu0
      %9259 = vmatprep.mubr.f32.mxu0 0.0
      %9260 = vmatmul.mubr.f32.gmra.mrb[0].mxu0 %v5524
      %v9261 = vpop.f32.mrb[0].mxu0
      %v9262 = vadd.f32 0.0, %v9261
      %v9263 = vpop.f32.mrb[0].mxu0
      %9264 = vmatprep.mubr.f32.mxu0 0.0
      %9265 = vmatmul.mubr.f32.gmra.mrb[0].mxu0 %v5527
      %v9266 = vpop.f32.mrb[0].mxu0
      %v9267 = vadd.f32 0.0, %v9266
      %v9268 = vpop.f32.mrb[0].mxu0
      %9269 = vmatprep.mubr.f32.mxu0 0.0
      %9270 = vmatmul.mubr.f32.gmra.mrb[0].mxu0 %v5530
      %v9271 = vpop.f32.mrb[0].mxu0
      %v9272 = vadd.f32 0.0, %v9271
      %v9273 = vpop.f32.mrb[0].mxu0
      %9274 = vmatprep.mubr.f32.mxu0 0.0
      %9275 = vmatmul.mubr.f32.gmra.mrb[0].mxu0 %v5533
      %v9276 = vpop.f32.mrb[0].mxu0
      %v9277 = vadd.f32 0.0, %v9276
      %v9278 = vpop.f32.mrb[0].mxu0
      %9279 = vmatprep.mubr.f32.mxu0 0.0
      %9280 = vmatmul.mubr.f32.gmra.mrb[0].mxu0 %v5536
      %v9281 = vpop.f32.mrb[0].mxu0
      %v9282 = vadd.f32 0.0, %v9281
      %v9283 = vpop.f32.mrb[0].mxu0
      %9284 = vmatprep.mubr.f32.mxu0 0.0
      %9285 = vmatmul.mubr.f32.gmra.mrb[0].mxu0 %v5539
      %v9286 = vpop.f32.mrb[0].mxu0
      %v9287 = vadd.f32 0.0, %v9286
      %v9288 = vpop.f32.mrb[0].mxu0
      %9289 = vmatprep.mubr.f32.mxu0 0.0
      %9290 = vmatmul.mubr.f32.gmra.mrb[0].mxu0 %v5542
      %v9291 = vpop.f32.mrb[0].mxu0
      %v9292 = vadd.f32 0.0, %v9291
      %v9293 = vpop.f32.mrb[0].mxu0
      %9294 = vmatprep.mubr.f32.mxu0 0.0
      %9295 = vmatmul.mubr.f32.gmra.mrb[0].mxu0 %v5545
      %v9296 = vpop.f32.mrb[0].mxu0
      %v9297 = vadd.f32 0.0, %v9296
      %v9298 = vpop.f32.mrb[0].mxu0
      %9299 = vmatprep.mubr.f32.mxu0 0.0
      %9300 = vmatmul.mubr.f32.gmra.mrb[0].mxu0 %v5548
      %v9301 = vpop.f32.mrb[0].mxu0
      %v9302 = vadd.f32 0.0, %v9301
      %v9303 = vpop.f32.mrb[0].mxu0
      %9304 = vmatprep.mubr.f32.mxu0 0.0
      %9305 = vmatmul.mubr.f32.gmra.mrb[0].mxu0 %v5551
      %v9306 = vpop.f32.mrb[0].mxu0
      %v9307 = vadd.f32 0.0, %v9306
      %v9308 = vpop.f32.mrb[0].mxu0
      %9309 = vmatprep.mubr.f32.mxu0 0.0
      %9310 = vmatmul.mubr.f32.gmra.mrb[0].mxu0 %v5554
      %v9311 = vpop.f32.mrb[0].mxu0
      %v9312 = vadd.f32 0.0, %v9311
      %v9313 = vpop.f32.mrb[0].mxu0
      %9314 = vmatprep.mubr.f32.mxu0 0.0
      %9315 = vmatmul.mubr.f32.gmra.mrb[0].mxu0 %v5557
      %v9316 = vpop.f32.mrb[0].mxu0
      %v9317 = vadd.f32 0.0, %v9316
      %v9318 = vpop.f32.mrb[0].mxu0
      %9319 = vmatprep.mubr.f32.mxu0 0.0
      %9320 = vmatmul.mubr.f32.gmra.mrb[0].mxu0 %v5560
      %v9321 = vpop.f32.mrb[0].mxu0
      %v9322 = vadd.f32 0.0, %v9321
      %v9323 = vpop.f32.mrb[0].mxu0
      %9324 = vmatprep.mubr.f32.mxu0 0.0
      %9325 = vmatmul.mubr.f32.gmra.mrb[0].mxu0 %v5563
      %v9326 = vpop.f32.mrb[0].mxu0
      %v9327 = vadd.f32 0.0, %v9326
      %v9328 = vpop.f32.mrb[0].mxu0
      %9329 = vmatprep.mubr.f32.mxu0 0.0
      %9330 = vmatmul.mubr.f32.gmra.mrb[0].mxu0 %v5566
      %v9331 = vpop.f32.mrb[0].mxu0
      %v9332 = vadd.f32 0.0, %v9331
      %v9333 = vpop.f32.mrb[0].mxu0
      %9334 = vmatprep.mubr.f32.mxu0 0.0
      %9335 = vmatmul.mubr.f32.gmra.mrb[0].mxu0 %v5569
      %v9336 = vpop.f32.mrb[0].mxu0
      %v9337 = vadd.f32 0.0, %v9336
      %v9338 = vpop.f32.mrb[0].mxu0
      %9339 = vmatprep.mubr.f32.mxu0 0.0
      %9340 = vmatmul.mubr.f32.gmra.mrb[0].mxu0 %v5572
      %v9341 = vpop.f32.mrb[0].mxu0
      %v9342 = vadd.f32 0.0, %v9341
      %v9343 = vpop.f32.mrb[0].mxu0
      %9344 = vmatprep.mubr.f32.mxu0 0.0
      %9345 = vmatmul.mubr.f32.gmra.mrb[0].mxu0 %v5575
      %v9346 = vpop.f32.mrb[0].mxu0
      %v9347 = vadd.f32 0.0, %v9346
      %v9348 = vpop.f32.mrb[0].mxu0
      %9349 = vmatprep.mubr.f32.mxu0 0.0
      %9350 = vmatmul.mubr.f32.gmra.mrb[0].mxu0 %v5578
      %v9351 = vpop.f32.mrb[0].mxu0
      %v9352 = vadd.f32 0.0, %v9351
      %v9353 = vpop.f32.mrb[0].mxu0
      %9354 = vmatprep.mubr.f32.mxu0 0.0
      %9355 = vmatmul.mubr.f32.gmra.mrb[0].mxu0 %v5581
      %v9356 = vpop.f32.mrb[0].mxu0
      %v9357 = vadd.f32 0.0, %v9356
      %v9358 = vpop.f32.mrb[0].mxu0
      %9359 = vmatprep.mubr.f32.mxu0 0.0
      %9360 = vmatmul.mubr.f32.gmra.mrb[0].mxu0 %v5584
      %v9361 = vpop.f32.mrb[0].mxu0
      %v9362 = vadd.f32 0.0, %v9361
      %v9363 = vpop.f32.mrb[0].mxu0
      %9364 = vmatprep.mubr.f32.mxu0 0.0
      %9365 = vmatmul.mubr.f32.gmra.mrb[0].mxu0 %v5587
      %v9366 = vpop.f32.mrb[0].mxu0
      %v9367 = vadd.f32 0.0, %v9366
      %v9368 = vpop.f32.mrb[0].mxu0
      %9369 = vmatprep.mubr.f32.mxu0 0.0
      %9370 = vmatmul.mubr.f32.gmra.mrb[0].mxu0 %v5590
      %v9371 = vpop.f32.mrb[0].mxu0
      %v9372 = vadd.f32 0.0, %v9371
      %v9373 = vpop.f32.mrb[0].mxu0
      %9374 = vmatprep.mubr.f32.mxu0 0.0
      %9375 = vmatmul.mubr.f32.gmra.mrb[0].mxu0 %v5593
      %v9376 = vpop.f32.mrb[0].mxu0
      %v9377 = vadd.f32 0.0, %v9376
      %v9378 = vpop.f32.mrb[0].mxu0
      %9379 = vmatprep.mubr.f32.mxu0 0.0
      %9380 = vmatmul.mubr.f32.gmra.mrb[0].mxu0 %v5596
      %v9381 = vpop.f32.mrb[0].mxu0
      %v9382 = vadd.f32 0.0, %v9381
      %v9383 = vpop.f32.mrb[0].mxu0
      %9384 = vmatprep.mubr.f32.mxu0 0.0
      %9385 = vmatmul.mubr.f32.gmra.mrb[0].mxu0 %v5599
      %v9386 = vpop.f32.mrb[0].mxu0
      %v9387 = vadd.f32 0.0, %v9386
      %v9388 = vpop.f32.mrb[0].mxu0
      %9389 = vmatprep.mubr.f32.mxu0 0.0
      %9390 = vmatmul.mubr.f32.gmra.mrb[0].mxu0 %v5602
      %v9391 = vpop.f32.mrb[0].mxu0
      %v9392 = vadd.f32 0.0, %v9391
      %v9393 = vpop.f32.mrb[0].mxu0
      %9394 = vmatprep.mubr.f32.mxu0 0.0
      %9395 = vmatmul.mubr.f32.gmra.mrb[0].mxu0 %v5605
      %v9396 = vpop.f32.mrb[0].mxu0
      %v9397 = vadd.f32 0.0, %v9396
      %v9398 = vpop.f32.mrb[0].mxu0
      %9399 = vdwg.mxu0
      %v9400 = vld [vmem:[%s23] sm:$0xff]
      %v9401 = vld [vmem:[%s23 + $0x8] sm:$0xff]
      %v9402 = vld [vmem:[%s23 + $0x10] sm:$0xff]
      %v9403 = vld [vmem:[%s23 + $0x18] sm:$0xff]
      %v9404 = vld [vmem:[%s23 + $0x20] sm:$0xff]
      %v9405 = vld [vmem:[%s23 + $0x28] sm:$0xff]
      %v9406 = vld [vmem:[%s23 + $0x30] sm:$0xff]
      %v9407 = vld [vmem:[%s23 + $0x38] sm:$0xff]
      %v9408 = vld [vmem:[%s23 + $0x40] sm:$0xff]
      %v9409 = vld [vmem:[%s23 + $0x48] sm:$0xff]
      %v9410 = vld [vmem:[%s23 + $0x50] sm:$0xff]
      %v9411 = vld [vmem:[%s23 + $0x58] sm:$0xff]
      %v9412 = vld [vmem:[%s23 + $0x60] sm:$0xff]
      %v9413 = vld [vmem:[%s23 + $0x68] sm:$0xff]
      %v9414 = vld [vmem:[%s23 + $0x70] sm:$0xff]
      %v9415 = vld [vmem:[%s23 + $0x78] sm:$0xff]
      %v9416 = vld [vmem:[%s23 + $0x80] sm:$0xff]
      %v9417 = vld [vmem:[%s23 + $0x88] sm:$0xff]
      %v9418 = vld [vmem:[%s23 + $0x90] sm:$0xff]
      %v9419 = vld [vmem:[%s23 + $0x98] sm:$0xff]
      %v9420 = vld [vmem:[%s23 + $0xa0] sm:$0xff]
      %v9421 = vld [vmem:[%s23 + $0xa8] sm:$0xff]
      %v9422 = vld [vmem:[%s23 + $0xb0] sm:$0xff]
      %v9423 = vld [vmem:[%s23 + $0xb8] sm:$0xff]
      %v9424 = vld [vmem:[%s23 + $0xc0] sm:$0xff]
      %v9425 = vld [vmem:[%s23 + $0xc8] sm:$0xff]
      %v9426 = vld [vmem:[%s23 + $0xd0] sm:$0xff]
      %v9427 = vld [vmem:[%s23 + $0xd8] sm:$0xff]
      %v9428 = vld [vmem:[%s23 + $0xe0] sm:$0xff]
      %v9429 = vld [vmem:[%s23 + $0xe8] sm:$0xff]
      %v9430 = vld [vmem:[%s23 + $0xf0] sm:$0xff]
      %v9431 = vld [vmem:[%s23 + $0xf8] sm:$0xff]
      %v9433 = vsel %vm3095, %v9400, 0
      %v9436 = vsel %vm3095, %v9401, 0
      %v9439 = vsel %vm3095, %v9402, 0
      %v9442 = vsel %vm3095, %v9403, 0
      %v9445 = vsel %vm3095, %v9404, 0
      %v9448 = vsel %vm3095, %v9405, 0
      %v9451 = vsel %vm3095, %v9406, 0
      %v9454 = vsel %vm3095, %v9407, 0
      %v9457 = vsel %vm3095, %v9408, 0
      %v9460 = vsel %vm3095, %v9409, 0
      %v9463 = vsel %vm3095, %v9410, 0
      %v9466 = vsel %vm3095, %v9411, 0
      %v9469 = vsel %vm3095, %v9412, 0
      %v9472 = vsel %vm3095, %v9413, 0
      %v9475 = vsel %vm3095, %v9414, 0
      %v9478 = vsel %vm3095, %v9415, 0
      %v9481 = vsel %vm3095, %v9416, 0
      %v9484 = vsel %vm3095, %v9417, 0
      %v9487 = vsel %vm3095, %v9418, 0
      %v9490 = vsel %vm3095, %v9419, 0
      %v9493 = vsel %vm3095, %v9420, 0
      %v9496 = vsel %vm3095, %v9421, 0
      %v9499 = vsel %vm3095, %v9422, 0
      %v9502 = vsel %vm3095, %v9423, 0
      %v9505 = vsel %vm3095, %v9424, 0
      %v9508 = vsel %vm3095, %v9425, 0
      %v9511 = vsel %vm3095, %v9426, 0
      %v9514 = vsel %vm3095, %v9427, 0
      %v9517 = vsel %vm3095, %v9428, 0
      %v9520 = vsel %vm3095, %v9429, 0
      %v9523 = vsel %vm3095, %v9430, 0
      %v9526 = vsel %vm3095, %v9431, 0
      %9528 = vmatprep.subr.mxu0 0.0
      %9529 = vmatpush1.msra.mxu0 %v9173
      %9530 = vmatprep.subr.mxu0 0.0
      %9531 = vmatpush1.msra.mxu0 %v9174
      %9532 = vmatprep.subr.mxu0 0.0
      %9533 = vmatpush1.msra.mxu0 0.0
      %9534 = vmatprep.subr.mxu0 0.0
      %9535 = vmatpush1.msra.mxu0 0.0
      %9536 = vmatprep.subr.mxu0 0.0
      %9537 = vmatpush1.msra.mxu0 0.0
      %9538 = vmatprep.subr.mxu0 0.0
      %9539 = vmatpush1.msra.mxu0 0.0
      %9540 = vmatprep.subr.mxu0 0.0
      %9541 = vmatpush1.msra.mxu0 0.0
      %9542 = vmatprep.subr.mxu0 0.0
      %9543 = vmatpush1.msra.mxu0 0.0
      %9544 = vmatprep.subr.mxu0 0.0
      %9545 = vmatpush1.msra.mxu0 0.0
      %9546 = vmatprep.subr.mxu0 0.0
      %9547 = vmatpush1.msra.mxu0 0.0
      %9548 = vmatprep.subr.mxu0 0.0
      %9549 = vmatpush1.msra.mxu0 0.0
      %9550 = vmatprep.subr.mxu0 0.0
      %9551 = vmatpush1.msra.mxu0 0.0
      %9552 = vmatprep.subr.mxu0 0.0
      %9553 = vmatpush1.msra.mxu0 0.0
      %9554 = vmatprep.subr.mxu0 0.0
      %9555 = vmatpush1.msra.mxu0 0.0
      %9556 = vmatprep.subr.mxu0 0.0
      %9557 = vmatpush1.msra.mxu0 0.0
      %9558 = vmatprep.subr.mxu0 0.0
      %9559 = vmatpush1.msra.mxu0 0.0
      %9560 = vmatprep.subr.mxu0 0.0
      %9561 = vmatpush1.msra.mxu0 0.0
      %9562 = vmatprep.subr.mxu0 0.0
      %9563 = vmatpush1.msra.mxu0 0.0
      %9564 = vmatprep.subr.mxu0 0.0
      %9565 = vmatpush1.msra.mxu0 0.0
      %9566 = vmatprep.subr.mxu0 0.0
      %9567 = vmatpush1.msra.mxu0 0.0
      %9568 = vmatprep.subr.mxu0 0.0
      %9569 = vmatpush1.msra.mxu0 0.0
      %9570 = vmatprep.subr.mxu0 0.0
      %9571 = vmatpush1.msra.mxu0 0.0
      %9572 = vmatprep.subr.mxu0 0.0
      %9573 = vmatpush1.msra.mxu0 0.0
      %9574 = vmatprep.subr.mxu0 0.0
      %9575 = vmatpush1.msra.mxu0 0.0
      %9576 = vmatprep.subr.mxu0 0.0
      %9577 = vmatpush1.msra.mxu0 0.0
      %9578 = vmatprep.subr.mxu0 0.0
      %9579 = vmatpush1.msra.mxu0 0.0
      %9580 = vmatprep.subr.mxu0 0.0
      %9581 = vmatpush1.msra.mxu0 0.0
      %9582 = vmatprep.subr.mxu0 0.0
      %9583 = vmatpush1.msra.mxu0 0.0
      %9584 = vmatprep.subr.mxu0 0.0
      %9585 = vmatpush1.msra.mxu0 0.0
      %9586 = vmatprep.subr.mxu0 0.0
      %9587 = vmatpush1.msra.mxu0 0.0
      %9588 = vmatprep.subr.mxu0 0.0
      %9589 = vmatpush1.msra.mxu0 0.0
      %9590 = vmatprep.subr.mxu0 0.0
      %9591 = vmatpush1.msra.mxu0 0.0
      %9592 = vmatprep.mubr.f32.mxu0 0.0
      %9593 = vmatmul.mubr.f32.gmra.mrb[0].mxu0 %v9433
      %v9594 = vpop.f32.mrb[0].mxu0
      %v9595 = vadd.f32 0.0, %v9594
      %v9596 = vpop.f32.mrb[0].mxu0
      %9597 = vmatprep.mubr.f32.mxu0 0.0
      %9598 = vmatmul.mubr.f32.gmra.mrb[0].mxu0 %v9436
      %v9599 = vpop.f32.mrb[0].mxu0
      %v9600 = vadd.f32 0.0, %v9599
      %v9601 = vpop.f32.mrb[0].mxu0
      %9602 = vmatprep.mubr.f32.mxu0 0.0
      %9603 = vmatmul.mubr.f32.gmra.mrb[0].mxu0 %v9439
      %v9604 = vpop.f32.mrb[0].mxu0
      %v9605 = vadd.f32 0.0, %v9604
      %v9606 = vpop.f32.mrb[0].mxu0
      %9607 = vmatprep.mubr.f32.mxu0 0.0
      %9608 = vmatmul.mubr.f32.gmra.mrb[0].mxu0 %v9442
      %v9609 = vpop.f32.mrb[0].mxu0
      %v9610 = vadd.f32 0.0, %v9609
      %v9611 = vpop.f32.mrb[0].mxu0
      %9612 = vmatprep.mubr.f32.mxu0 0.0
      %9613 = vmatmul.mubr.f32.gmra.mrb[0].mxu0 %v9445
      %v9614 = vpop.f32.mrb[0].mxu0
      %v9615 = vadd.f32 0.0, %v9614
      %v9616 = vpop.f32.mrb[0].mxu0
      %9617 = vmatprep.mubr.f32.mxu0 0.0
      %9618 = vmatmul.mubr.f32.gmra.mrb[0].mxu0 %v9448
      %v9619 = vpop.f32.mrb[0].mxu0
      %v9620 = vadd.f32 0.0, %v9619
      %v9621 = vpop.f32.mrb[0].mxu0
      %9622 = vmatprep.mubr.f32.mxu0 0.0
      %9623 = vmatmul.mubr.f32.gmra.mrb[0].mxu0 %v9451
      %v9624 = vpop.f32.mrb[0].mxu0
      %v9625 = vadd.f32 0.0, %v9624
      %v9626 = vpop.f32.mrb[0].mxu0
      %9627 = vmatprep.mubr.f32.mxu0 0.0
      %9628 = vmatmul.mubr.f32.gmra.mrb[0].mxu0 %v9454
      %v9629 = vpop.f32.mrb[0].mxu0
      %v9630 = vadd.f32 0.0, %v9629
      %v9631 = vpop.f32.mrb[0].mxu0
      %9632 = vmatprep.mubr.f32.mxu0 0.0
      %9633 = vmatmul.mubr.f32.gmra.mrb[0].mxu0 %v9457
      %v9634 = vpop.f32.mrb[0].mxu0
      %v9635 = vadd.f32 0.0, %v9634
      %v9636 = vpop.f32.mrb[0].mxu0
      %9637 = vmatprep.mubr.f32.mxu0 0.0
      %9638 = vmatmul.mubr.f32.gmra.mrb[0].mxu0 %v9460
      %v9639 = vpop.f32.mrb[0].mxu0
      %v9640 = vadd.f32 0.0, %v9639
      %v9641 = vpop.f32.mrb[0].mxu0
      %9642 = vmatprep.mubr.f32.mxu0 0.0
      %9643 = vmatmul.mubr.f32.gmra.mrb[0].mxu0 %v9463
      %v9644 = vpop.f32.mrb[0].mxu0
      %v9645 = vadd.f32 0.0, %v9644
      %v9646 = vpop.f32.mrb[0].mxu0
      %9647 = vmatprep.mubr.f32.mxu0 0.0
      %9648 = vmatmul.mubr.f32.gmra.mrb[0].mxu0 %v9466
      %v9649 = vpop.f32.mrb[0].mxu0
      %v9650 = vadd.f32 0.0, %v9649
      %v9651 = vpop.f32.mrb[0].mxu0
      %9652 = vmatprep.mubr.f32.mxu0 0.0
      %9653 = vmatmul.mubr.f32.gmra.mrb[0].mxu0 %v9469
      %v9654 = vpop.f32.mrb[0].mxu0
      %v9655 = vadd.f32 0.0, %v9654
      %v9656 = vpop.f32.mrb[0].mxu0
      %9657 = vmatprep.mubr.f32.mxu0 0.0
      %9658 = vmatmul.mubr.f32.gmra.mrb[0].mxu0 %v9472
      %v9659 = vpop.f32.mrb[0].mxu0
      %v9660 = vadd.f32 0.0, %v9659
      %v9661 = vpop.f32.mrb[0].mxu0
      %9662 = vmatprep.mubr.f32.mxu0 0.0
      %9663 = vmatmul.mubr.f32.gmra.mrb[0].mxu0 %v9475
      %v9664 = vpop.f32.mrb[0].mxu0
      %v9665 = vadd.f32 0.0, %v9664
      %v9666 = vpop.f32.mrb[0].mxu0
      %9667 = vmatprep.mubr.f32.mxu0 0.0
      %9668 = vmatmul.mubr.f32.gmra.mrb[0].mxu0 %v9478
      %v9669 = vpop.f32.mrb[0].mxu0
      %v9670 = vadd.f32 0.0, %v9669
      %v9671 = vpop.f32.mrb[0].mxu0
      %9672 = vmatprep.mubr.f32.mxu0 0.0
      %9673 = vmatmul.mubr.f32.gmra.mrb[0].mxu0 %v9481
      %v9674 = vpop.f32.mrb[0].mxu0
      %v9675 = vadd.f32 0.0, %v9674
      %v9676 = vpop.f32.mrb[0].mxu0
      %9677 = vmatprep.mubr.f32.mxu0 0.0
      %9678 = vmatmul.mubr.f32.gmra.mrb[0].mxu0 %v9484
      %v9679 = vpop.f32.mrb[0].mxu0
      %v9680 = vadd.f32 0.0, %v9679
      %v9681 = vpop.f32.mrb[0].mxu0
      %9682 = vmatprep.mubr.f32.mxu0 0.0
      %9683 = vmatmul.mubr.f32.gmra.mrb[0].mxu0 %v9487
      %v9684 = vpop.f32.mrb[0].mxu0
      %v9685 = vadd.f32 0.0, %v9684
      %v9686 = vpop.f32.mrb[0].mxu0
      %9687 = vmatprep.mubr.f32.mxu0 0.0
      %9688 = vmatmul.mubr.f32.gmra.mrb[0].mxu0 %v9490
      %v9689 = vpop.f32.mrb[0].mxu0
      %v9690 = vadd.f32 0.0, %v9689
      %v9691 = vpop.f32.mrb[0].mxu0
      %9692 = vmatprep.mubr.f32.mxu0 0.0
      %9693 = vmatmul.mubr.f32.gmra.mrb[0].mxu0 %v9493
      %v9694 = vpop.f32.mrb[0].mxu0
      %v9695 = vadd.f32 0.0, %v9694
      %v9696 = vpop.f32.mrb[0].mxu0
      %9697 = vmatprep.mubr.f32.mxu0 0.0
      %9698 = vmatmul.mubr.f32.gmra.mrb[0].mxu0 %v9496
      %v9699 = vpop.f32.mrb[0].mxu0
      %v9700 = vadd.f32 0.0, %v9699
      %v9701 = vpop.f32.mrb[0].mxu0
      %9702 = vmatprep.mubr.f32.mxu0 0.0
      %9703 = vmatmul.mubr.f32.gmra.mrb[0].mxu0 %v9499
      %v9704 = vpop.f32.mrb[0].mxu0
      %v9705 = vadd.f32 0.0, %v9704
      %v9706 = vpop.f32.mrb[0].mxu0
      %9707 = vmatprep.mubr.f32.mxu0 0.0
      %9708 = vmatmul.mubr.f32.gmra.mrb[0].mxu0 %v9502
      %v9709 = vpop.f32.mrb[0].mxu0
      %v9710 = vadd.f32 0.0, %v9709
      %v9711 = vpop.f32.mrb[0].mxu0
      %9712 = vmatprep.mubr.f32.mxu0 0.0
      %9713 = vmatmul.mubr.f32.gmra.mrb[0].mxu0 %v9505
      %v9714 = vpop.f32.mrb[0].mxu0
      %v9715 = vadd.f32 0.0, %v9714
      %v9716 = vpop.f32.mrb[0].mxu0
      %9717 = vmatprep.mubr.f32.mxu0 0.0
      %9718 = vmatmul.mubr.f32.gmra.mrb[0].mxu0 %v9508
      %v9719 = vpop.f32.mrb[0].mxu0
      %v9720 = vadd.f32 0.0, %v9719
      %v9721 = vpop.f32.mrb[0].mxu0
      %9722 = vmatprep.mubr.f32.mxu0 0.0
      %9723 = vmatmul.mubr.f32.gmra.mrb[0].mxu0 %v9511
      %v9724 = vpop.f32.mrb[0].mxu0
      %v9725 = vadd.f32 0.0, %v9724
      %v9726 = vpop.f32.mrb[0].mxu0
      %9727 = vmatprep.mubr.f32.mxu0 0.0
      %9728 = vmatmul.mubr.f32.gmra.mrb[0].mxu0 %v9514
      %v9729 = vpop.f32.mrb[0].mxu0
      %v9730 = vadd.f32 0.0, %v9729
      %v9731 = vpop.f32.mrb[0].mxu0
      %9732 = vmatprep.mubr.f32.mxu0 0.0
      %9733 = vmatmul.mubr.f32.gmra.mrb[0].mxu0 %v9517
      %v9734 = vpop.f32.mrb[0].mxu0
      %v9735 = vadd.f32 0.0, %v9734
      %v9736 = vpop.f32.mrb[0].mxu0
      %9737 = vmatprep.mubr.f32.mxu0 0.0
      %9738 = vmatmul.mubr.f32.gmra.mrb[0].mxu0 %v9520
      %v9739 = vpop.f32.mrb[0].mxu0
      %v9740 = vadd.f32 0.0, %v9739
      %v9741 = vpop.f32.mrb[0].mxu0
      %9742 = vmatprep.mubr.f32.mxu0 0.0
      %9743 = vmatmul.mubr.f32.gmra.mrb[0].mxu0 %v9523
      %v9744 = vpop.f32.mrb[0].mxu0
      %v9745 = vadd.f32 0.0, %v9744
      %v9746 = vpop.f32.mrb[0].mxu0
      %9747 = vmatprep.mubr.f32.mxu0 0.0
      %9748 = vmatmul.mubr.f32.gmra.mrb[0].mxu0 %v9526
      %v9749 = vpop.f32.mrb[0].mxu0
      %v9750 = vadd.f32 0.0, %v9749
      %v9751 = vpop.f32.mrb[0].mxu0
      %9752 = vdwg.mxu0
      %9785 = vrot.lane.b32.xlu0 %v9242, 1
      %v9786 = vpop.permute.xlu0 %9785
      %9787 = vrot.lane.b32.xlu0 %v9247, 1
      %v9788 = vpop.permute.xlu0 %9787
      %9789 = vrot.lane.b32.xlu0 %v9252, 1
      %v9790 = vpop.permute.xlu0 %9789
      %9791 = vrot.lane.b32.xlu0 %v9257, 1
      %v9792 = vpop.permute.xlu0 %9791
      %9793 = vrot.lane.b32.xlu0 %v9262, 1
      %v9794 = vpop.permute.xlu0 %9793
      %9795 = vrot.lane.b32.xlu0 %v9267, 1
      %v9796 = vpop.permute.xlu0 %9795
      %9797 = vrot.lane.b32.xlu0 %v9272, 1
      %v9798 = vpop.permute.xlu0 %9797
      %9799 = vrot.lane.b32.xlu0 %v9277, 1
      %v9800 = vpop.permute.xlu0 %9799
      %9801 = vrot.lane.b32.xlu0 %v9282, 1
      %v9802 = vpop.permute.xlu0 %9801
      %9803 = vrot.lane.b32.xlu0 %v9287, 1
      %v9804 = vpop.permute.xlu0 %9803
      %9805 = vrot.lane.b32.xlu0 %v9292, 1
      %v9806 = vpop.permute.xlu0 %9805
      %9807 = vrot.lane.b32.xlu0 %v9297, 1
      %v9808 = vpop.permute.xlu0 %9807
      %9809 = vrot.lane.b32.xlu0 %v9302, 1
      %v9810 = vpop.permute.xlu0 %9809
      %9811 = vrot.lane.b32.xlu0 %v9307, 1
      %v9812 = vpop.permute.xlu0 %9811
      %9813 = vrot.lane.b32.xlu0 %v9312, 1
      %v9814 = vpop.permute.xlu0 %9813
      %9815 = vrot.lane.b32.xlu0 %v9317, 1
      %v9816 = vpop.permute.xlu0 %9815
      %9817 = vrot.lane.b32.xlu0 %v9322, 1
      %v9818 = vpop.permute.xlu0 %9817
      %9819 = vrot.lane.b32.xlu0 %v9327, 1
      %v9820 = vpop.permute.xlu0 %9819
      %9821 = vrot.lane.b32.xlu0 %v9332, 1
      %v9822 = vpop.permute.xlu0 %9821
      %9823 = vrot.lane.b32.xlu0 %v9337, 1
      %v9824 = vpop.permute.xlu0 %9823
      %9825 = vrot.lane.b32.xlu0 %v9342, 1
      %v9826 = vpop.permute.xlu0 %9825
      %9827 = vrot.lane.b32.xlu0 %v9347, 1
      %v9828 = vpop.permute.xlu0 %9827
      %9829 = vrot.lane.b32.xlu0 %v9352, 1
      %v9830 = vpop.permute.xlu0 %9829
      %9831 = vrot.lane.b32.xlu0 %v9357, 1
      %v9832 = vpop.permute.xlu0 %9831
      %9833 = vrot.lane.b32.xlu0 %v9362, 1
      %v9834 = vpop.permute.xlu0 %9833
      %9835 = vrot.lane.b32.xlu0 %v9367, 1
      %v9836 = vpop.permute.xlu0 %9835
      %9837 = vrot.lane.b32.xlu0 %v9372, 1
      %v9838 = vpop.permute.xlu0 %9837
      %9839 = vrot.lane.b32.xlu0 %v9377, 1
      %v9840 = vpop.permute.xlu0 %9839
      %9841 = vrot.lane.b32.xlu0 %v9382, 1
      %v9842 = vpop.permute.xlu0 %9841
      %9843 = vrot.lane.b32.xlu0 %v9387, 1
      %v9844 = vpop.permute.xlu0 %9843
      %9845 = vrot.lane.b32.xlu0 %v9392, 1
      %v9846 = vpop.permute.xlu0 %9845
      %9847 = vrot.lane.b32.xlu0 %v9397, 1
      %v9848 = vpop.permute.xlu0 %9847
      %9913 = vrot.lane.b32.xlu0 %v9595, 2
      %v9914 = vpop.permute.xlu0 %9913
      %9915 = vrot.lane.b32.xlu0 %v9600, 2
      %v9916 = vpop.permute.xlu0 %9915
      %9917 = vrot.lane.b32.xlu0 %v9605, 2
      %v9918 = vpop.permute.xlu0 %9917
      %9919 = vrot.lane.b32.xlu0 %v9610, 2
      %v9920 = vpop.permute.xlu0 %9919
      %9921 = vrot.lane.b32.xlu0 %v9615, 2
      %v9922 = vpop.permute.xlu0 %9921
      %9923 = vrot.lane.b32.xlu0 %v9620, 2
      %v9924 = vpop.permute.xlu0 %9923
      %9925 = vrot.lane.b32.xlu0 %v9625, 2
      %v9926 = vpop.permute.xlu0 %9925
      %9927 = vrot.lane.b32.xlu0 %v9630, 2
      %v9928 = vpop.permute.xlu0 %9927
      %9929 = vrot.lane.b32.xlu0 %v9635, 2
      %v9930 = vpop.permute.xlu0 %9929
      %9931 = vrot.lane.b32.xlu0 %v9640, 2
      %v9932 = vpop.permute.xlu0 %9931
      %9933 = vrot.lane.b32.xlu0 %v9645, 2
      %v9934 = vpop.permute.xlu0 %9933
      %9935 = vrot.lane.b32.xlu0 %v9650, 2
      %v9936 = vpop.permute.xlu0 %9935
      %9937 = vrot.lane.b32.xlu0 %v9655, 2
      %v9938 = vpop.permute.xlu0 %9937
      %9939 = vrot.lane.b32.xlu0 %v9660, 2
      %v9940 = vpop.permute.xlu0 %9939
      %9941 = vrot.lane.b32.xlu0 %v9665, 2
      %v9942 = vpop.permute.xlu0 %9941
      %9943 = vrot.lane.b32.xlu0 %v9670, 2
      %v9944 = vpop.permute.xlu0 %9943
      %9945 = vrot.lane.b32.xlu0 %v9675, 2
      %v9946 = vpop.permute.xlu0 %9945
      %9947 = vrot.lane.b32.xlu0 %v9680, 2
      %v9948 = vpop.permute.xlu0 %9947
      %9949 = vrot.lane.b32.xlu0 %v9685, 2
      %v9950 = vpop.permute.xlu0 %9949
      %9951 = vrot.lane.b32.xlu0 %v9690, 2
      %v9952 = vpop.permute.xlu0 %9951
      %9953 = vrot.lane.b32.xlu0 %v9695, 2
      %v9954 = vpop.permute.xlu0 %9953
      %9955 = vrot.lane.b32.xlu0 %v9700, 2
      %v9956 = vpop.permute.xlu0 %9955
      %9957 = vrot.lane.b32.xlu0 %v9705, 2
      %v9958 = vpop.permute.xlu0 %9957
      %9959 = vrot.lane.b32.xlu0 %v9710, 2
      %v9960 = vpop.permute.xlu0 %9959
      %9961 = vrot.lane.b32.xlu0 %v9715, 2
      %v9962 = vpop.permute.xlu0 %9961
      %9963 = vrot.lane.b32.xlu0 %v9720, 2
      %v9964 = vpop.permute.xlu0 %9963
      %9965 = vrot.lane.b32.xlu0 %v9725, 2
      %v9966 = vpop.permute.xlu0 %9965
      %9967 = vrot.lane.b32.xlu0 %v9730, 2
      %v9968 = vpop.permute.xlu0 %9967
      %9969 = vrot.lane.b32.xlu0 %v9735, 2
      %v9970 = vpop.permute.xlu0 %9969
      %9971 = vrot.lane.b32.xlu0 %v9740, 2
      %v9972 = vpop.permute.xlu0 %9971
      %9973 = vrot.lane.b32.xlu0 %v9745, 2
      %v9974 = vpop.permute.xlu0 %9973
      %9975 = vrot.lane.b32.xlu0 %v9750, 2
      %v9976 = vpop.permute.xlu0 %9975
      %vm10009 = vcmask 7168
      %v10010 = vsel %vm10009, %v8654, %v9786
      %v10011 = vsel %vm10009, %v8655, %v9788
      %v10012 = vsel %vm10009, %v8656, %v9790
      %v10013 = vsel %vm10009, %v8657, %v9792
      %v10014 = vsel %vm10009, %v8658, %v9794
      %v10015 = vsel %vm10009, %v8659, %v9796
      %v10016 = vsel %vm10009, %v8660, %v9798
      %v10017 = vsel %vm10009, %v8661, %v9800
      %v10018 = vsel %vm10009, %v8662, %v9802
      %v10019 = vsel %vm10009, %v8663, %v9804
      %v10020 = vsel %vm10009, %v8664, %v9806
      %v10021 = vsel %vm10009, %v8665, %v9808
      %v10022 = vsel %vm10009, %v8666, %v9810
      %v10023 = vsel %vm10009, %v8667, %v9812
      %v10024 = vsel %vm10009, %v8668, %v9814
      %v10025 = vsel %vm10009, %v8669, %v9816
      %v10026 = vsel %vm10009, %v8670, %v9818
      %v10027 = vsel %vm10009, %v8671, %v9820
      %v10028 = vsel %vm10009, %v8672, %v9822
      %v10029 = vsel %vm10009, %v8673, %v9824
      %v10030 = vsel %vm10009, %v8674, %v9826
      %v10031 = vsel %vm10009, %v8675, %v9828
      %v10032 = vsel %vm10009, %v8676, %v9830
      %v10033 = vsel %vm10009, %v8677, %v9832
      %v10034 = vsel %vm10009, %v8678, %v9834
      %v10035 = vsel %vm10009, %v8679, %v9836
      %v10036 = vsel %vm10009, %v8680, %v9838
      %v10037 = vsel %vm10009, %v8681, %v9840
      %v10038 = vsel %vm10009, %v8682, %v9842
      %v10039 = vsel %vm10009, %v8683, %v9844
      %v10040 = vsel %vm10009, %v8684, %v9846
      %v10041 = vsel %vm10009, %v8685, %v9848
      %vm10042 = vcmask 15360
      %v10043 = vsel %vm10042, %v10010, %v9914
      %v10044 = vsel %vm10042, %v10011, %v9916
      %v10045 = vsel %vm10042, %v10012, %v9918
      %v10046 = vsel %vm10042, %v10013, %v9920
      %v10047 = vsel %vm10042, %v10014, %v9922
      %v10048 = vsel %vm10042, %v10015, %v9924
      %v10049 = vsel %vm10042, %v10016, %v9926
      %v10050 = vsel %vm10042, %v10017, %v9928
      %v10051 = vsel %vm10042, %v10018, %v9930
      %v10052 = vsel %vm10042, %v10019, %v9932
      %v10053 = vsel %vm10042, %v10020, %v9934
      %v10054 = vsel %vm10042, %v10021, %v9936
      %v10055 = vsel %vm10042, %v10022, %v9938
      %v10056 = vsel %vm10042, %v10023, %v9940
      %v10057 = vsel %vm10042, %v10024, %v9942
      %v10058 = vsel %vm10042, %v10025, %v9944
      %v10059 = vsel %vm10042, %v10026, %v9946
      %v10060 = vsel %vm10042, %v10027, %v9948
      %v10061 = vsel %vm10042, %v10028, %v9950
      %v10062 = vsel %vm10042, %v10029, %v9952
      %v10063 = vsel %vm10042, %v10030, %v9954
      %v10064 = vsel %vm10042, %v10031, %v9956
      %v10065 = vsel %vm10042, %v10032, %v9958
      %v10066 = vsel %vm10042, %v10033, %v9960
      %v10067 = vsel %vm10042, %v10034, %v9962
      %v10068 = vsel %vm10042, %v10035, %v9964
      %v10069 = vsel %vm10042, %v10036, %v9966
      %v10070 = vsel %vm10042, %v10037, %v9968
      %v10071 = vsel %vm10042, %v10038, %v9970
      %v10072 = vsel %vm10042, %v10039, %v9972
      %v10073 = vsel %vm10042, %v10040, %v9974
      %v10074 = vsel %vm10042, %v10041, %v9976
      %v10075 = vld [vmem:[%s19] sm:$0x1]
      %v10077 = vlaneseq
      %v10078 = vshrl.u32 %v10077, 7
      %v10079 = vsub.s32 0, %v10078
      %v10080 = vrot.slane %v10075, %v10079
      %v10082 = vmul.f32 %v10043, %v10080
      %v10083 = vmul.f32 %v10044, %v10080
      %v10084 = vmul.f32 %v10045, %v10080
      %v10085 = vmul.f32 %v10046, %v10080
      %v10086 = vmul.f32 %v10047, %v10080
      %v10087 = vmul.f32 %v10048, %v10080
      %v10088 = vmul.f32 %v10049, %v10080
      %v10089 = vmul.f32 %v10050, %v10080
      %v10090 = vmul.f32 %v10051, %v10080
      %v10091 = vmul.f32 %v10052, %v10080
      %v10092 = vmul.f32 %v10053, %v10080
      %v10093 = vmul.f32 %v10054, %v10080
      %v10094 = vmul.f32 %v10055, %v10080
      %v10095 = vmul.f32 %v10056, %v10080
      %v10096 = vmul.f32 %v10057, %v10080
      %v10097 = vmul.f32 %v10058, %v10080
      %v10098 = vmul.f32 %v10059, %v10080
      %v10099 = vmul.f32 %v10060, %v10080
      %v10100 = vmul.f32 %v10061, %v10080
      %v10101 = vmul.f32 %v10062, %v10080
      %v10102 = vmul.f32 %v10063, %v10080
      %v10103 = vmul.f32 %v10064, %v10080
      %v10104 = vmul.f32 %v10065, %v10080
      %v10105 = vmul.f32 %v10066, %v10080
      %v10106 = vmul.f32 %v10067, %v10080
      %v10107 = vmul.f32 %v10068, %v10080
      %v10108 = vmul.f32 %v10069, %v10080
      %v10109 = vmul.f32 %v10070, %v10080
      %v10110 = vmul.f32 %v10071, %v10080
      %v10111 = vmul.f32 %v10072, %v10080
      %v10112 = vmul.f32 %v10073, %v10080
      %v10113 = vmul.f32 %v10074, %v10080
      %v10114 = vsel %vm1001, %v10082, 0.0
      %10115 = vadd.xlane.f32.xlu0 %v10114
      %v10116 = vpop.xlane.xlu0 %10115
      %v10117 = vsel %vm1001, %v10083, 0.0
      %10118 = vadd.xlane.f32.xlu0 %v10117
      %v10119 = vpop.xlane.xlu0 %10118
      %v10120 = vsel %vm1001, %v10084, 0.0
      %10121 = vadd.xlane.f32.xlu0 %v10120
      %v10122 = vpop.xlane.xlu0 %10121
      %v10123 = vsel %vm1001, %v10085, 0.0
      %10124 = vadd.xlane.f32.xlu0 %v10123
      %v10125 = vpop.xlane.xlu0 %10124
      %v10126 = vsel %vm1001, %v10086, 0.0
      %10127 = vadd.xlane.f32.xlu0 %v10126
      %v10128 = vpop.xlane.xlu0 %10127
      %v10129 = vsel %vm1001, %v10087, 0.0
      %10130 = vadd.xlane.f32.xlu0 %v10129
      %v10131 = vpop.xlane.xlu0 %10130
      %v10132 = vsel %vm1001, %v10088, 0.0
      %10133 = vadd.xlane.f32.xlu0 %v10132
      %v10134 = vpop.xlane.xlu0 %10133
      %v10135 = vsel %vm1001, %v10089, 0.0
      %10136 = vadd.xlane.f32.xlu0 %v10135
      %v10137 = vpop.xlane.xlu0 %10136
      %v10138 = vsel %vm1001, %v10090, 0.0
      %10139 = vadd.xlane.f32.xlu0 %v10138
      %v10140 = vpop.xlane.xlu0 %10139
      %v10141 = vsel %vm1001, %v10091, 0.0
      %10142 = vadd.xlane.f32.xlu0 %v10141
      %v10143 = vpop.xlane.xlu0 %10142
      %v10144 = vsel %vm1001, %v10092, 0.0
      %10145 = vadd.xlane.f32.xlu0 %v10144
      %v10146 = vpop.xlane.xlu0 %10145
      %v10147 = vsel %vm1001, %v10093, 0.0
      %10148 = vadd.xlane.f32.xlu0 %v10147
      %v10149 = vpop.xlane.xlu0 %10148
      %v10150 = vsel %vm1001, %v10094, 0.0
      %10151 = vadd.xlane.f32.xlu0 %v10150
      %v10152 = vpop.xlane.xlu0 %10151
      %v10153 = vsel %vm1001, %v10095, 0.0
      %10154 = vadd.xlane.f32.xlu0 %v10153
      %v10155 = vpop.xlane.xlu0 %10154
      %v10156 = vsel %vm1001, %v10096, 0.0
      %10157 = vadd.xlane.f32.xlu0 %v10156
      %v10158 = vpop.xlane.xlu0 %10157
      %v10159 = vsel %vm1001, %v10097, 0.0
      %10160 = vadd.xlane.f32.xlu0 %v10159
      %v10161 = vpop.xlane.xlu0 %10160
      %v10162 = vsel %vm1001, %v10098, 0.0
      %10163 = vadd.xlane.f32.xlu0 %v10162
      %v10164 = vpop.xlane.xlu0 %10163
      %v10165 = vsel %vm1001, %v10099, 0.0
      %10166 = vadd.xlane.f32.xlu0 %v10165
      %v10167 = vpop.xlane.xlu0 %10166
      %v10168 = vsel %vm1001, %v10100, 0.0
      %10169 = vadd.xlane.f32.xlu0 %v10168
      %v10170 = vpop.xlane.xlu0 %10169
      %v10171 = vsel %vm1001, %v10101, 0.0
      %10172 = vadd.xlane.f32.xlu0 %v10171
      %v10173 = vpop.xlane.xlu0 %10172
      %v10174 = vsel %vm1001, %v10102, 0.0
      %10175 = vadd.xlane.f32.xlu0 %v10174
      %v10176 = vpop.xlane.xlu0 %10175
      %v10177 = vsel %vm1001, %v10103, 0.0
      %10178 = vadd.xlane.f32.xlu0 %v10177
      %v10179 = vpop.xlane.xlu0 %10178
      %v10180 = vsel %vm1001, %v10104, 0.0
      %10181 = vadd.xlane.f32.xlu0 %v10180
      %v10182 = vpop.xlane.xlu0 %10181
      %v10183 = vsel %vm1001, %v10105, 0.0
      %10184 = vadd.xlane.f32.xlu0 %v10183
      %v10185 = vpop.xlane.xlu0 %10184
      %v10186 = vsel %vm1001, %v10106, 0.0
      %10187 = vadd.xlane.f32.xlu0 %v10186
      %v10188 = vpop.xlane.xlu0 %10187
      %v10189 = vsel %vm1001, %v10107, 0.0
      %10190 = vadd.xlane.f32.xlu0 %v10189
      %v10191 = vpop.xlane.xlu0 %10190
      %v10192 = vsel %vm1001, %v10108, 0.0
      %10193 = vadd.xlane.f32.xlu0 %v10192
      %v10194 = vpop.xlane.xlu0 %10193
      %v10195 = vsel %vm1001, %v10109, 0.0
      %10196 = vadd.xlane.f32.xlu0 %v10195
      %v10197 = vpop.xlane.xlu0 %10196
      %v10198 = vsel %vm1001, %v10110, 0.0
      %10199 = vadd.xlane.f32.xlu0 %v10198
      %v10200 = vpop.xlane.xlu0 %10199
      %v10201 = vsel %vm1001, %v10111, 0.0
      %10202 = vadd.xlane.f32.xlu0 %v10201
      %v10203 = vpop.xlane.xlu0 %10202
      %v10204 = vsel %vm1001, %v10112, 0.0
      %10205 = vadd.xlane.f32.xlu0 %v10204
      %v10206 = vpop.xlane.xlu0 %10205
      %v10207 = vsel %vm1001, %v10113, 0.0
      %10208 = vadd.xlane.f32.xlu0 %v10207
      %v10209 = vpop.xlane.xlu0 %10208
      %v10210 = vld [vmem:[#allocation5] sm:$0x1]
      %v10212 = vlaneseq
      %v10213 = vshrl.u32 %v10212, 7
      %v10214 = vsub.s32 0, %v10213
      %v10215 = vrot.slane %v10210, %v10214
      %v10217 = vadd.f32 %v10116, %v10215
      %v10218 = vadd.f32 %v10119, %v10215
      %v10219 = vadd.f32 %v10122, %v10215
      %v10220 = vadd.f32 %v10125, %v10215
      %v10221 = vadd.f32 %v10128, %v10215
      %v10222 = vadd.f32 %v10131, %v10215
      %v10223 = vadd.f32 %v10134, %v10215
      %v10224 = vadd.f32 %v10137, %v10215
      %v10225 = vadd.f32 %v10140, %v10215
      %v10226 = vadd.f32 %v10143, %v10215
      %v10227 = vadd.f32 %v10146, %v10215
      %v10228 = vadd.f32 %v10149, %v10215
      %v10229 = vadd.f32 %v10152, %v10215
      %v10230 = vadd.f32 %v10155, %v10215
      %v10231 = vadd.f32 %v10158, %v10215
      %v10232 = vadd.f32 %v10161, %v10215
      %v10233 = vadd.f32 %v10164, %v10215
      %v10234 = vadd.f32 %v10167, %v10215
      %v10235 = vadd.f32 %v10170, %v10215
      %v10236 = vadd.f32 %v10173, %v10215
      %v10237 = vadd.f32 %v10176, %v10215
      %v10238 = vadd.f32 %v10179, %v10215
      %v10239 = vadd.f32 %v10182, %v10215
      %v10240 = vadd.f32 %v10185, %v10215
      %v10241 = vadd.f32 %v10188, %v10215
      %v10242 = vadd.f32 %v10191, %v10215
      %v10243 = vadd.f32 %v10194, %v10215
      %v10244 = vadd.f32 %v10197, %v10215
      %v10245 = vadd.f32 %v10200, %v10215
      %v10246 = vadd.f32 %v10203, %v10215
      %v10247 = vadd.f32 %v10206, %v10215
      %v10248 = vadd.f32 %v10209, %v10215
      %10281 = vrot.lane.b32.xlu0 %v8654, 1
      %v10282 = vpop.permute.xlu0 %10281
      %10283 = vrot.lane.b32.xlu0 %v8655, 1
      %v10284 = vpop.permute.xlu0 %10283
      %10285 = vrot.lane.b32.xlu0 %v8656, 1
      %v10286 = vpop.permute.xlu0 %10285
      %10287 = vrot.lane.b32.xlu0 %v8657, 1
      %v10288 = vpop.permute.xlu0 %10287
      %10289 = vrot.lane.b32.xlu0 %v8658, 1
      %v10290 = vpop.permute.xlu0 %10289
      %10291 = vrot.lane.b32.xlu0 %v8659, 1
      %v10292 = vpop.permute.xlu0 %10291
      %10293 = vrot.lane.b32.xlu0 %v8660, 1
      %v10294 = vpop.permute.xlu0 %10293
      %10295 = vrot.lane.b32.xlu0 %v8661, 1
      %v10296 = vpop.permute.xlu0 %10295
      %10297 = vrot.lane.b32.xlu0 %v8662, 1
      %v10298 = vpop.permute.xlu0 %10297
      %10299 = vrot.lane.b32.xlu0 %v8663, 1
      %v10300 = vpop.permute.xlu0 %10299
      %10301 = vrot.lane.b32.xlu0 %v8664, 1
      %v10302 = vpop.permute.xlu0 %10301
      %10303 = vrot.lane.b32.xlu0 %v8665, 1
      %v10304 = vpop.permute.xlu0 %10303
      %10305 = vrot.lane.b32.xlu0 %v8666, 1
      %v10306 = vpop.permute.xlu0 %10305
      %10307 = vrot.lane.b32.xlu0 %v8667, 1
      %v10308 = vpop.permute.xlu0 %10307
      %10309 = vrot.lane.b32.xlu0 %v8668, 1
      %v10310 = vpop.permute.xlu0 %10309
      %10311 = vrot.lane.b32.xlu0 %v8669, 1
      %v10312 = vpop.permute.xlu0 %10311
      %10313 = vrot.lane.b32.xlu0 %v8670, 1
      %v10314 = vpop.permute.xlu0 %10313
      %10315 = vrot.lane.b32.xlu0 %v8671, 1
      %v10316 = vpop.permute.xlu0 %10315
      %10317 = vrot.lane.b32.xlu0 %v8672, 1
      %v10318 = vpop.permute.xlu0 %10317
      %10319 = vrot.lane.b32.xlu0 %v8673, 1
      %v10320 = vpop.permute.xlu0 %10319
      %10321 = vrot.lane.b32.xlu0 %v8674, 1
      %v10322 = vpop.permute.xlu0 %10321
      %10323 = vrot.lane.b32.xlu0 %v8675, 1
      %v10324 = vpop.permute.xlu0 %10323
      %10325 = vrot.lane.b32.xlu0 %v8676, 1
      %v10326 = vpop.permute.xlu0 %10325
      %10327 = vrot.lane.b32.xlu0 %v8677, 1
      %v10328 = vpop.permute.xlu0 %10327
      %10329 = vrot.lane.b32.xlu0 %v8678, 1
      %v10330 = vpop.permute.xlu0 %10329
      %10331 = vrot.lane.b32.xlu0 %v8679, 1
      %v10332 = vpop.permute.xlu0 %10331
      %10333 = vrot.lane.b32.xlu0 %v8680, 1
      %v10334 = vpop.permute.xlu0 %10333
      %10335 = vrot.lane.b32.xlu0 %v8681, 1
      %v10336 = vpop.permute.xlu0 %10335
      %10337 = vrot.lane.b32.xlu0 %v8682, 1
      %v10338 = vpop.permute.xlu0 %10337
      %10339 = vrot.lane.b32.xlu0 %v8683, 1
      %v10340 = vpop.permute.xlu0 %10339
      %10341 = vrot.lane.b32.xlu0 %v8684, 1
      %v10342 = vpop.permute.xlu0 %10341
      %10343 = vrot.lane.b32.xlu0 %v8685, 1
      %v10344 = vpop.permute.xlu0 %10343
      %10377 = vrot.lane.b32.xlu0 %v9242, 2
      %v10378 = vpop.permute.xlu0 %10377
      %10379 = vrot.lane.b32.xlu0 %v9247, 2
      %v10380 = vpop.permute.xlu0 %10379
      %10381 = vrot.lane.b32.xlu0 %v9252, 2
      %v10382 = vpop.permute.xlu0 %10381
      %10383 = vrot.lane.b32.xlu0 %v9257, 2
      %v10384 = vpop.permute.xlu0 %10383
      %10385 = vrot.lane.b32.xlu0 %v9262, 2
      %v10386 = vpop.permute.xlu0 %10385
      %10387 = vrot.lane.b32.xlu0 %v9267, 2
      %v10388 = vpop.permute.xlu0 %10387
      %10389 = vrot.lane.b32.xlu0 %v9272, 2
      %v10390 = vpop.permute.xlu0 %10389
      %10391 = vrot.lane.b32.xlu0 %v9277, 2
      %v10392 = vpop.permute.xlu0 %10391
      %10393 = vrot.lane.b32.xlu0 %v9282, 2
      %v10394 = vpop.permute.xlu0 %10393
      %10395 = vrot.lane.b32.xlu0 %v9287, 2
      %v10396 = vpop.permute.xlu0 %10395
      %10397 = vrot.lane.b32.xlu0 %v9292, 2
      %v10398 = vpop.permute.xlu0 %10397
      %10399 = vrot.lane.b32.xlu0 %v9297, 2
      %v10400 = vpop.permute.xlu0 %10399
      %10401 = vrot.lane.b32.xlu0 %v9302, 2
      %v10402 = vpop.permute.xlu0 %10401
      %10403 = vrot.lane.b32.xlu0 %v9307, 2
      %v10404 = vpop.permute.xlu0 %10403
      %10405 = vrot.lane.b32.xlu0 %v9312, 2
      %v10406 = vpop.permute.xlu0 %10405
      %10407 = vrot.lane.b32.xlu0 %v9317, 2
      %v10408 = vpop.permute.xlu0 %10407
      %10409 = vrot.lane.b32.xlu0 %v9322, 2
      %v10410 = vpop.permute.xlu0 %10409
      %10411 = vrot.lane.b32.xlu0 %v9327, 2
      %v10412 = vpop.permute.xlu0 %10411
      %10413 = vrot.lane.b32.xlu0 %v9332, 2
      %v10414 = vpop.permute.xlu0 %10413
      %10415 = vrot.lane.b32.xlu0 %v9337, 2
      %v10416 = vpop.permute.xlu0 %10415
      %10417 = vrot.lane.b32.xlu0 %v9342, 2
      %v10418 = vpop.permute.xlu0 %10417
      %10419 = vrot.lane.b32.xlu0 %v9347, 2
      %v10420 = vpop.permute.xlu0 %10419
      %10421 = vrot.lane.b32.xlu0 %v9352, 2
      %v10422 = vpop.permute.xlu0 %10421
      %10423 = vrot.lane.b32.xlu0 %v9357, 2
      %v10424 = vpop.permute.xlu0 %10423
      %10425 = vrot.lane.b32.xlu0 %v9362, 2
      %v10426 = vpop.permute.xlu0 %10425
      %10427 = vrot.lane.b32.xlu0 %v9367, 2
      %v10428 = vpop.permute.xlu0 %10427
      %10429 = vrot.lane.b32.xlu0 %v9372, 2
      %v10430 = vpop.permute.xlu0 %10429
      %10431 = vrot.lane.b32.xlu0 %v9377, 2
      %v10432 = vpop.permute.xlu0 %10431
      %10433 = vrot.lane.b32.xlu0 %v9382, 2
      %v10434 = vpop.permute.xlu0 %10433
      %10435 = vrot.lane.b32.xlu0 %v9387, 2
      %v10436 = vpop.permute.xlu0 %10435
      %10437 = vrot.lane.b32.xlu0 %v9392, 2
      %v10438 = vpop.permute.xlu0 %10437
      %10439 = vrot.lane.b32.xlu0 %v9397, 2
      %v10440 = vpop.permute.xlu0 %10439
      %10473 = vrot.lane.b32.xlu0 %v9595, 3
      %v10474 = vpop.permute.xlu0 %10473
      %10475 = vrot.lane.b32.xlu0 %v9600, 3
      %v10476 = vpop.permute.xlu0 %10475
      %10477 = vrot.lane.b32.xlu0 %v9605, 3
      %v10478 = vpop.permute.xlu0 %10477
      %10479 = vrot.lane.b32.xlu0 %v9610, 3
      %v10480 = vpop.permute.xlu0 %10479
      %10481 = vrot.lane.b32.xlu0 %v9615, 3
      %v10482 = vpop.permute.xlu0 %10481
      %10483 = vrot.lane.b32.xlu0 %v9620, 3
      %v10484 = vpop.permute.xlu0 %10483
      %10485 = vrot.lane.b32.xlu0 %v9625, 3
      %v10486 = vpop.permute.xlu0 %10485
      %10487 = vrot.lane.b32.xlu0 %v9630, 3
      %v10488 = vpop.permute.xlu0 %10487
      %10489 = vrot.lane.b32.xlu0 %v9635, 3
      %v10490 = vpop.permute.xlu0 %10489
      %10491 = vrot.lane.b32.xlu0 %v9640, 3
      %v10492 = vpop.permute.xlu0 %10491
      %10493 = vrot.lane.b32.xlu0 %v9645, 3
      %v10494 = vpop.permute.xlu0 %10493
      %10495 = vrot.lane.b32.xlu0 %v9650, 3
      %v10496 = vpop.permute.xlu0 %10495
      %10497 = vrot.lane.b32.xlu0 %v9655, 3
      %v10498 = vpop.permute.xlu0 %10497
      %10499 = vrot.lane.b32.xlu0 %v9660, 3
      %v10500 = vpop.permute.xlu0 %10499
      %10501 = vrot.lane.b32.xlu0 %v9665, 3
      %v10502 = vpop.permute.xlu0 %10501
      %10503 = vrot.lane.b32.xlu0 %v9670, 3
      %v10504 = vpop.permute.xlu0 %10503
      %10505 = vrot.lane.b32.xlu0 %v9675, 3
      %v10506 = vpop.permute.xlu0 %10505
      %10507 = vrot.lane.b32.xlu0 %v9680, 3
      %v10508 = vpop.permute.xlu0 %10507
      %10509 = vrot.lane.b32.xlu0 %v9685, 3
      %v10510 = vpop.permute.xlu0 %10509
      %10511 = vrot.lane.b32.xlu0 %v9690, 3
      %v10512 = vpop.permute.xlu0 %10511
      %10513 = vrot.lane.b32.xlu0 %v9695, 3
      %v10514 = vpop.permute.xlu0 %10513
      %10515 = vrot.lane.b32.xlu0 %v9700, 3
      %v10516 = vpop.permute.xlu0 %10515
      %10517 = vrot.lane.b32.xlu0 %v9705, 3
      %v10518 = vpop.permute.xlu0 %10517
      %10519 = vrot.lane.b32.xlu0 %v9710, 3
      %v10520 = vpop.permute.xlu0 %10519
      %10521 = vrot.lane.b32.xlu0 %v9715, 3
      %v10522 = vpop.permute.xlu0 %10521
      %10523 = vrot.lane.b32.xlu0 %v9720, 3
      %v10524 = vpop.permute.xlu0 %10523
      %10525 = vrot.lane.b32.xlu0 %v9725, 3
      %v10526 = vpop.permute.xlu0 %10525
      %10527 = vrot.lane.b32.xlu0 %v9730, 3
      %v10528 = vpop.permute.xlu0 %10527
      %10529 = vrot.lane.b32.xlu0 %v9735, 3
      %v10530 = vpop.permute.xlu0 %10529
      %10531 = vrot.lane.b32.xlu0 %v9740, 3
      %v10532 = vpop.permute.xlu0 %10531
      %10533 = vrot.lane.b32.xlu0 %v9745, 3
      %v10534 = vpop.permute.xlu0 %10533
      %10535 = vrot.lane.b32.xlu0 %v9750, 3
      %v10536 = vpop.permute.xlu0 %10535
      %v10569 = vsel %vm10009, %v10217, %v10282
      %v10570 = vsel %vm10009, %v10218, %v10284
      %v10571 = vsel %vm10009, %v10219, %v10286
      %v10572 = vsel %vm10009, %v10220, %v10288
      %v10573 = vsel %vm10009, %v10221, %v10290
      %v10574 = vsel %vm10009, %v10222, %v10292
      %v10575 = vsel %vm10009, %v10223, %v10294
      %v10576 = vsel %vm10009, %v10224, %v10296
      %v10577 = vsel %vm10009, %v10225, %v10298
      %v10578 = vsel %vm10009, %v10226, %v10300
      %v10579 = vsel %vm10009, %v10227, %v10302
      %v10580 = vsel %vm10009, %v10228, %v10304
      %v10581 = vsel %vm10009, %v10229, %v10306
      %v10582 = vsel %vm10009, %v10230, %v10308
      %v10583 = vsel %vm10009, %v10231, %v10310
      %v10584 = vsel %vm10009, %v10232, %v10312
      %v10585 = vsel %vm10009, %v10233, %v10314
      %v10586 = vsel %vm10009, %v10234, %v10316
      %v10587 = vsel %vm10009, %v10235, %v10318
      %v10588 = vsel %vm10009, %v10236, %v10320
      %v10589 = vsel %vm10009, %v10237, %v10322
      %v10590 = vsel %vm10009, %v10238, %v10324
      %v10591 = vsel %vm10009, %v10239, %v10326
      %v10592 = vsel %vm10009, %v10240, %v10328
      %v10593 = vsel %vm10009, %v10241, %v10330
      %v10594 = vsel %vm10009, %v10242, %v10332
      %v10595 = vsel %vm10009, %v10243, %v10334
      %v10596 = vsel %vm10009, %v10244, %v10336
      %v10597 = vsel %vm10009, %v10245, %v10338
      %v10598 = vsel %vm10009, %v10246, %v10340
      %v10599 = vsel %vm10009, %v10247, %v10342
      %v10600 = vsel %vm10009, %v10248, %v10344
      %v10601 = vsel %vm10042, %v10569, %v10378
      %v10602 = vsel %vm10042, %v10570, %v10380
      %v10603 = vsel %vm10042, %v10571, %v10382
      %v10604 = vsel %vm10042, %v10572, %v10384
      %v10605 = vsel %vm10042, %v10573, %v10386
      %v10606 = vsel %vm10042, %v10574, %v10388
      %v10607 = vsel %vm10042, %v10575, %v10390
      %v10608 = vsel %vm10042, %v10576, %v10392
      %v10609 = vsel %vm10042, %v10577, %v10394
      %v10610 = vsel %vm10042, %v10578, %v10396
      %v10611 = vsel %vm10042, %v10579, %v10398
      %v10612 = vsel %vm10042, %v10580, %v10400
      %v10613 = vsel %vm10042, %v10581, %v10402
      %v10614 = vsel %vm10042, %v10582, %v10404
      %v10615 = vsel %vm10042, %v10583, %v10406
      %v10616 = vsel %vm10042, %v10584, %v10408
      %v10617 = vsel %vm10042, %v10585, %v10410
      %v10618 = vsel %vm10042, %v10586, %v10412
      %v10619 = vsel %vm10042, %v10587, %v10414
      %v10620 = vsel %vm10042, %v10588, %v10416
      %v10621 = vsel %vm10042, %v10589, %v10418
      %v10622 = vsel %vm10042, %v10590, %v10420
      %v10623 = vsel %vm10042, %v10591, %v10422
      %v10624 = vsel %vm10042, %v10592, %v10424
      %v10625 = vsel %vm10042, %v10593, %v10426
      %v10626 = vsel %vm10042, %v10594, %v10428
      %v10627 = vsel %vm10042, %v10595, %v10430
      %v10628 = vsel %vm10042, %v10596, %v10432
      %v10629 = vsel %vm10042, %v10597, %v10434
      %v10630 = vsel %vm10042, %v10598, %v10436
      %v10631 = vsel %vm10042, %v10599, %v10438
      %v10632 = vsel %vm10042, %v10600, %v10440
      %v10633 = vsel %vm1001, %v10601, %v10474
      %v10634 = vsel %vm1001, %v10602, %v10476
      %v10635 = vsel %vm1001, %v10603, %v10478
      %v10636 = vsel %vm1001, %v10604, %v10480
      %v10637 = vsel %vm1001, %v10605, %v10482
      %v10638 = vsel %vm1001, %v10606, %v10484
      %v10639 = vsel %vm1001, %v10607, %v10486
      %v10640 = vsel %vm1001, %v10608, %v10488
      %v10641 = vsel %vm1001, %v10609, %v10490
      %v10642 = vsel %vm1001, %v10610, %v10492
      %v10643 = vsel %vm1001, %v10611, %v10494
      %v10644 = vsel %vm1001, %v10612, %v10496
      %v10645 = vsel %vm1001, %v10613, %v10498
      %v10646 = vsel %vm1001, %v10614, %v10500
      %v10647 = vsel %vm1001, %v10615, %v10502
      %v10648 = vsel %vm1001, %v10616, %v10504
      %v10649 = vsel %vm1001, %v10617, %v10506
      %v10650 = vsel %vm1001, %v10618, %v10508
      %v10651 = vsel %vm1001, %v10619, %v10510
      %v10652 = vsel %vm1001, %v10620, %v10512
      %v10653 = vsel %vm1001, %v10621, %v10514
      %v10654 = vsel %vm1001, %v10622, %v10516
      %v10655 = vsel %vm1001, %v10623, %v10518
      %v10656 = vsel %vm1001, %v10624, %v10520
      %v10657 = vsel %vm1001, %v10625, %v10522
      %v10658 = vsel %vm1001, %v10626, %v10524
      %v10659 = vsel %vm1001, %v10627, %v10526
      %v10660 = vsel %vm1001, %v10628, %v10528
      %v10661 = vsel %vm1001, %v10629, %v10530
      %v10662 = vsel %vm1001, %v10630, %v10532
      %v10663 = vsel %vm1001, %v10631, %v10534
      %v10664 = vsel %vm1001, %v10632, %v10536
      %v10665 = vxor.u32 %v10633, 2147483648
      %v10666 = vxor.u32 %v10634, 2147483648
      %v10667 = vxor.u32 %v10635, 2147483648
      %v10668 = vxor.u32 %v10636, 2147483648
      %v10669 = vxor.u32 %v10637, 2147483648
      %v10670 = vxor.u32 %v10638, 2147483648
      %v10671 = vxor.u32 %v10639, 2147483648
      %v10672 = vxor.u32 %v10640, 2147483648
      %v10673 = vxor.u32 %v10641, 2147483648
      %v10674 = vxor.u32 %v10642, 2147483648
      %v10675 = vxor.u32 %v10643, 2147483648
      %v10676 = vxor.u32 %v10644, 2147483648
      %v10677 = vxor.u32 %v10645, 2147483648
      %v10678 = vxor.u32 %v10646, 2147483648
      %v10679 = vxor.u32 %v10647, 2147483648
      %v10680 = vxor.u32 %v10648, 2147483648
      %v10681 = vxor.u32 %v10649, 2147483648
      %v10682 = vxor.u32 %v10650, 2147483648
      %v10683 = vxor.u32 %v10651, 2147483648
      %v10684 = vxor.u32 %v10652, 2147483648
      %v10685 = vxor.u32 %v10653, 2147483648
      %v10686 = vxor.u32 %v10654, 2147483648
      %v10687 = vxor.u32 %v10655, 2147483648
      %v10688 = vxor.u32 %v10656, 2147483648
      %v10689 = vxor.u32 %v10657, 2147483648
      %v10690 = vxor.u32 %v10658, 2147483648
      %v10691 = vxor.u32 %v10659, 2147483648
      %v10692 = vxor.u32 %v10660, 2147483648
      %v10693 = vxor.u32 %v10661, 2147483648
      %v10694 = vxor.u32 %v10662, 2147483648
      %v10695 = vxor.u32 %v10663, 2147483648
      %v10696 = vxor.u32 %v10664, 2147483648
      %v10697 = vmul.f32 %v10665, 1.442695
      %v10698 = vpow.pop %v10697
      %v10699 = vmul.f32 %v10666, 1.442695
      %v10700 = vpow.pop %v10699
      %v10701 = vmul.f32 %v10667, 1.442695
      %v10702 = vpow.pop %v10701
      %v10703 = vmul.f32 %v10668, 1.442695
      %v10704 = vpow.pop %v10703
      %v10705 = vmul.f32 %v10669, 1.442695
      %v10706 = vpow.pop %v10705
      %v10707 = vmul.f32 %v10670, 1.442695
      %v10708 = vpow.pop %v10707
      %v10709 = vmul.f32 %v10671, 1.442695
      %v10710 = vpow.pop %v10709
      %v10711 = vmul.f32 %v10672, 1.442695
      %v10712 = vpow.pop %v10711
      %v10713 = vmul.f32 %v10673, 1.442695
      %v10714 = vpow.pop %v10713
      %v10715 = vmul.f32 %v10674, 1.442695
      %v10716 = vpow.pop %v10715
      %v10717 = vmul.f32 %v10675, 1.442695
      %v10718 = vpow.pop %v10717
      %v10719 = vmul.f32 %v10676, 1.442695
      %v10720 = vpow.pop %v10719
      %v10721 = vmul.f32 %v10677, 1.442695
      %v10722 = vpow.pop %v10721
      %v10723 = vmul.f32 %v10678, 1.442695
      %v10724 = vpow.pop %v10723
      %v10725 = vmul.f32 %v10679, 1.442695
      %v10726 = vpow.pop %v10725
      %v10727 = vmul.f32 %v10680, 1.442695
      %v10728 = vpow.pop %v10727
      %v10729 = vmul.f32 %v10681, 1.442695
      %v10730 = vpow.pop %v10729
      %v10731 = vmul.f32 %v10682, 1.442695
      %v10732 = vpow.pop %v10731
      %v10733 = vmul.f32 %v10683, 1.442695
      %v10734 = vpow.pop %v10733
      %v10735 = vmul.f32 %v10684, 1.442695
      %v10736 = vpow.pop %v10735
      %v10737 = vmul.f32 %v10685, 1.442695
      %v10738 = vpow.pop %v10737
      %v10739 = vmul.f32 %v10686, 1.442695
      %v10740 = vpow.pop %v10739
      %v10741 = vmul.f32 %v10687, 1.442695
      %v10742 = vpow.pop %v10741
      %v10743 = vmul.f32 %v10688, 1.442695
      %v10744 = vpow.pop %v10743
      %v10745 = vmul.f32 %v10689, 1.442695
      %v10746 = vpow.pop %v10745
      %v10747 = vmul.f32 %v10690, 1.442695
      %v10748 = vpow.pop %v10747
      %v10749 = vmul.f32 %v10691, 1.442695
      %v10750 = vpow.pop %v10749
      %v10751 = vmul.f32 %v10692, 1.442695
      %v10752 = vpow.pop %v10751
      %v10753 = vmul.f32 %v10693, 1.442695
      %v10754 = vpow.pop %v10753
      %v10755 = vmul.f32 %v10694, 1.442695
      %v10756 = vpow.pop %v10755
      %v10757 = vmul.f32 %v10695, 1.442695
      %v10758 = vpow.pop %v10757
      %v10759 = vmul.f32 %v10696, 1.442695
      %v10760 = vpow.pop %v10759
      %v10761 = vadd.f32 %v10698, 1.0
      %v10762 = vadd.f32 %v10700, 1.0
      %v10763 = vadd.f32 %v10702, 1.0
      %v10764 = vadd.f32 %v10704, 1.0
      %v10765 = vadd.f32 %v10706, 1.0
      %v10766 = vadd.f32 %v10708, 1.0
      %v10767 = vadd.f32 %v10710, 1.0
      %v10768 = vadd.f32 %v10712, 1.0
      %v10769 = vadd.f32 %v10714, 1.0
      %v10770 = vadd.f32 %v10716, 1.0
      %v10771 = vadd.f32 %v10718, 1.0
      %v10772 = vadd.f32 %v10720, 1.0
      %v10773 = vadd.f32 %v10722, 1.0
      %v10774 = vadd.f32 %v10724, 1.0
      %v10775 = vadd.f32 %v10726, 1.0
      %v10776 = vadd.f32 %v10728, 1.0
      %v10777 = vadd.f32 %v10730, 1.0
      %v10778 = vadd.f32 %v10732, 1.0
      %v10779 = vadd.f32 %v10734, 1.0
      %v10780 = vadd.f32 %v10736, 1.0
      %v10781 = vadd.f32 %v10738, 1.0
      %v10782 = vadd.f32 %v10740, 1.0
      %v10783 = vadd.f32 %v10742, 1.0
      %v10784 = vadd.f32 %v10744, 1.0
      %v10785 = vadd.f32 %v10746, 1.0
      %v10786 = vadd.f32 %v10748, 1.0
      %v10787 = vadd.f32 %v10750, 1.0
      %v10788 = vadd.f32 %v10752, 1.0
      %v10789 = vadd.f32 %v10754, 1.0
      %v10790 = vadd.f32 %v10756, 1.0
      %v10791 = vadd.f32 %v10758, 1.0
      %v10792 = vadd.f32 %v10760, 1.0
      %v10793 = vrcp.pop %v10761
      %v10794 = vmul.f32 1.0, %v10793
      %v10795 = vrcp.pop %v10762
      %v10796 = vmul.f32 1.0, %v10795
      %v10797 = vrcp.pop %v10763
      %v10798 = vmul.f32 1.0, %v10797
      %v10799 = vrcp.pop %v10764
      %v10800 = vmul.f32 1.0, %v10799
      %v10801 = vrcp.pop %v10765
      %v10802 = vmul.f32 1.0, %v10801
      %v10803 = vrcp.pop %v10766
      %v10804 = vmul.f32 1.0, %v10803
      %v10805 = vrcp.pop %v10767
      %v10806 = vmul.f32 1.0, %v10805
      %v10807 = vrcp.pop %v10768
      %v10808 = vmul.f32 1.0, %v10807
      %v10809 = vrcp.pop %v10769
      %v10810 = vmul.f32 1.0, %v10809
      %v10811 = vrcp.pop %v10770
      %v10812 = vmul.f32 1.0, %v10811
      %v10813 = vrcp.pop %v10771
      %v10814 = vmul.f32 1.0, %v10813
      %v10815 = vrcp.pop %v10772
      %v10816 = vmul.f32 1.0, %v10815
      %v10817 = vrcp.pop %v10773
      %v10818 = vmul.f32 1.0, %v10817
      %v10819 = vrcp.pop %v10774
      %v10820 = vmul.f32 1.0, %v10819
      %v10821 = vrcp.pop %v10775
      %v10822 = vmul.f32 1.0, %v10821
      %v10823 = vrcp.pop %v10776
      %v10824 = vmul.f32 1.0, %v10823
      %v10825 = vrcp.pop %v10777
      %v10826 = vmul.f32 1.0, %v10825
      %v10827 = vrcp.pop %v10778
      %v10828 = vmul.f32 1.0, %v10827
      %v10829 = vrcp.pop %v10779
      %v10830 = vmul.f32 1.0, %v10829
      %v10831 = vrcp.pop %v10780
      %v10832 = vmul.f32 1.0, %v10831
      %v10833 = vrcp.pop %v10781
      %v10834 = vmul.f32 1.0, %v10833
      %v10835 = vrcp.pop %v10782
      %v10836 = vmul.f32 1.0, %v10835
      %v10837 = vrcp.pop %v10783
      %v10838 = vmul.f32 1.0, %v10837
      %v10839 = vrcp.pop %v10784
      %v10840 = vmul.f32 1.0, %v10839
      %v10841 = vrcp.pop %v10785
      %v10842 = vmul.f32 1.0, %v10841
      %v10843 = vrcp.pop %v10786
      %v10844 = vmul.f32 1.0, %v10843
      %v10845 = vrcp.pop %v10787
      %v10846 = vmul.f32 1.0, %v10845
      %v10847 = vrcp.pop %v10788
      %v10848 = vmul.f32 1.0, %v10847
      %v10849 = vrcp.pop %v10789
      %v10850 = vmul.f32 1.0, %v10849
      %v10851 = vrcp.pop %v10790
      %v10852 = vmul.f32 1.0, %v10851
      %v10853 = vrcp.pop %v10791
      %v10854 = vmul.f32 1.0, %v10853
      %v10855 = vrcp.pop %v10792
      %v10856 = vmul.f32 1.0, %v10855
      %10857 = vxpose.xlu0.b32.start [1/16] %v10794, 128
      %10858 = vxpose.xlu0.b32.cont [2/16] %v10796, 128
      %10859 = vxpose.xlu0.b32.cont [3/16] %v10798, 128
      %10860 = vxpose.xlu0.b32.cont [4/16] %v10800, 128
      %10861 = vxpose.xlu0.b32.cont [5/16] %v10802, 128
      %10862 = vxpose.xlu0.b32.cont [6/16] %v10804, 128
      %10863 = vxpose.xlu0.b32.cont [7/16] %v10806, 128
      %10864 = vxpose.xlu0.b32.cont [8/16] %v10808, 128
      %10865 = vxpose.xlu0.b32.cont [9/16] %v10810, 128
      %10866 = vxpose.xlu0.b32.cont [10/16] %v10812, 128
      %10867 = vxpose.xlu0.b32.cont [11/16] %v10814, 128
      %10868 = vxpose.xlu0.b32.cont [12/16] %v10816, 128
      %10869 = vxpose.xlu0.b32.cont [13/16] %v10818, 128
      %10870 = vxpose.xlu0.b32.cont [14/16] %v10820, 128
      %10871 = vxpose.xlu0.b32.cont [15/16] %v10822, 128
      %10872 = vxpose.xlu0.b32.end [16/16] %v10824, 128
      %v10873 = vpop.trf.xlu0
      %v10874 = vpop.trf.xlu0
      %v10875 = vpop.trf.xlu0
      %v10876 = vpop.trf.xlu0
      %v10877 = vpop.trf.xlu0
      %v10878 = vpop.trf.xlu0
      %v10879 = vpop.trf.xlu0
      %v10880 = vpop.trf.xlu0
      %v10881 = vpop.trf.xlu0
      %v10882 = vpop.trf.xlu0
      %v10883 = vpop.trf.xlu0
      %v10884 = vpop.trf.xlu0
      %v10885 = vpop.trf.xlu0
      %v10886 = vpop.trf.xlu0
      %v10887 = vpop.trf.xlu0
      %v10888 = vpop.trf.xlu0
      %10889 = vxpose.xlu0.b32.start [1/16] %v10826, 128
      %10890 = vxpose.xlu0.b32.cont [2/16] %v10828, 128
      %10891 = vxpose.xlu0.b32.cont [3/16] %v10830, 128
      %10892 = vxpose.xlu0.b32.cont [4/16] %v10832, 128
      %10893 = vxpose.xlu0.b32.cont [5/16] %v10834, 128
      %10894 = vxpose.xlu0.b32.cont [6/16] %v10836, 128
      %10895 = vxpose.xlu0.b32.cont [7/16] %v10838, 128
      %10896 = vxpose.xlu0.b32.cont [8/16] %v10840, 128
      %10897 = vxpose.xlu0.b32.cont [9/16] %v10842, 128
      %10898 = vxpose.xlu0.b32.cont [10/16] %v10844, 128
      %10899 = vxpose.xlu0.b32.cont [11/16] %v10846, 128
      %10900 = vxpose.xlu0.b32.cont [12/16] %v10848, 128
      %10901 = vxpose.xlu0.b32.cont [13/16] %v10850, 128
      %10902 = vxpose.xlu0.b32.cont [14/16] %v10852, 128
      %10903 = vxpose.xlu0.b32.cont [15/16] %v10854, 128
      %10904 = vxpose.xlu0.b32.end [16/16] %v10856, 128
      %v10905 = vpop.trf.xlu0
      %v10906 = vpop.trf.xlu0
      %v10907 = vpop.trf.xlu0
      %v10908 = vpop.trf.xlu0
      %v10909 = vpop.trf.xlu0
      %v10910 = vpop.trf.xlu0
      %v10911 = vpop.trf.xlu0
      %v10912 = vpop.trf.xlu0
      %v10913 = vpop.trf.xlu0
      %v10914 = vpop.trf.xlu0
      %v10915 = vpop.trf.xlu0
      %v10916 = vpop.trf.xlu0
      %v10917 = vpop.trf.xlu0
      %v10918 = vpop.trf.xlu0
      %v10919 = vpop.trf.xlu0
      %v10920 = vpop.trf.xlu0
      %v10923 = vcombine.low %v10873, %v10905
      %10925 = vst [vmem:[%s745] sm:$0xff] %v10923
      %p10926 = scmp.lt.s32.totalorder %s43, 1
      %s10927 = scalar_select %p10926, %s43, 1
      %s10928 = smul.addr %s10927, 2
      %s10929 = smul.addr %s10928, 4
      %s10930 = scalar_lea.vmem %s24, %s10929
      // Predicated region
      $region117: #{unet3_forward_nchw.1} parent=115 // pred_check
        %p10931 = pneg %p570
      $region118: #{unet3_forward_nchw.1} parent=115 // pred_check_branch
        %10933 = sbr.rel (%p10931) target = $region120
      $region119: #{unet3_forward_nchw.1} parent=115 // pred_region
        _
      $region120: #{unet3_forward_nchw.1} parent=115 // pred_fallthru
        _
    $region116: #{unet3_forward_nchw.1} parent=5 // pred_fallthru
      _
    %p10934 = scmp.le.s32.totalorder 2, %s38
    // Predicated region
    $region121: #{unet3_forward_nchw.1} parent=5 // pred_check
      %p10935 = pneg %p10934
    $region122: #{unet3_forward_nchw.1} parent=5 // pred_check_branch
      %10937 = sbr.rel (%p10935) target = $region124
    $region123: #{unet3_forward_nchw.1} parent=5 // pred_region
      %s10938 = ssub.s32 %s38, 2
      // Predicated region
      $region125: #{unet3_forward_nchw.1} parent=123 // pred_check
        %p10939 = pneg %p576
      $region126: #{unet3_forward_nchw.1} parent=123 // pred_check_branch
        %10941 = sbr.rel (%p10939) target = $region128
      $region127: #{unet3_forward_nchw.1} parent=123 // pred_region
        %p10942 = scmp.lt.s32.totalorder %s44, 1
        %s10943 = scalar_select %p10942, %s44, 1
        %s10944 = smul.addr %s10943, 2
        %s10945 = smul.addr %s10944, 4
        %s10946 = scalar_lea.vmem %s24, %s10945
      $region128: #{unet3_forward_nchw.1} parent=123 // pred_fallthru
        _
    $region124: #{unet3_forward_nchw.1} parent=5 // pred_fallthru
      _
  $region6: #{unet3_forward_nchw.1} parent=0 // loop_footer
    %s42 = sadd.s32 1, %s38
  $region7: #{unet3_forward_nchw.1} parent=0 // loop_footer_branch
    %37 = sbr.rel target = $region3
  $region8: #{unet3_forward_nchw.1} parent=0 // loop_exit
    _

</llo_original>
